<compile_context>
chip_gen: v5e
topology: v5e:2x2
jax: 0.10.0
libtpu: 0.0.40
codegen_flags: <defaults>
</compile_context>

<pallas_src>
import numpy as np
import jax
import jax.numpy as jnp
from jax.experimental import pallas as pl
from jax.experimental.pallas import tpu as pltpu

VMEM = pltpu.MemorySpace.VMEM


def _vmem_specs(n):
    return [pl.BlockSpec(memory_space=VMEM) for _ in range(n)]


# ----------------------------- Pallas kernels ------------------------------ #

def features_kernel(patches_ref, w1_ref, b1_ref,            # conv1
                    a1_ref, e1_ref, se1a_ref, se1b_ref,      # SE1
                    g_ref, w2_ref, b2_ref,                   # conv2 (stacked gather)
                    gamma_ref, beta_ref,                     # BN (training-mode stats)
                    a2_ref, e2_ref, se2a_ref, se2b_ref,      # SE2
                    out_ref):
    f32 = jnp.float32
    n_pool = patches_ref.shape[0] // 4          # B * 10 * 10 (pooled spatial rows)
    n_out = out_ref.shape[0]                    # B * 12 * 12 (conv2 spatial rows)

    # ---- conv1 (5x5, pad 2) as one im2col matmul; rows are pool-phase-major so
    # the 2x2/stride-2 max-pool is an elementwise max of 4 aligned row blocks.
    # bias/ReLU commute with the max, so apply them after pooling (less work).
    c1 = jnp.dot(patches_ref[...], w1_ref[...], preferred_element_type=f32)   # (4*n_pool, 10)
    pooled = jnp.maximum(
        jnp.maximum(c1[0 * n_pool:1 * n_pool], c1[1 * n_pool:2 * n_pool]),
        jnp.maximum(c1[2 * n_pool:3 * n_pool], c1[3 * n_pool:4 * n_pool]))
    act = jnp.maximum(pooled + b1_ref[...], 0.0)                              # (n_pool, 10)

    # ---- SE1: per-batch GAP -> Linear -> ReLU -> Linear -> sigmoid -> scale.
    # Per-batch mean / broadcast are expressed as tiny indicator matmuls.
    p1 = jnp.dot(a1_ref[...], act, preferred_element_type=f32)                # (B, 10)
    h1 = jnp.maximum(jnp.dot(p1, se1a_ref[...], preferred_element_type=f32), 0.0)
    g1 = jax.nn.sigmoid(jnp.dot(h1, se1b_ref[...], preferred_element_type=f32))
    act = act * jnp.dot(e1_ref[...], g1, preferred_element_type=f32)          # (n_pool, 10)

    # ---- conv2 (3x3, pad 2): im2col as ONE stacked 0/1 gather matmul (all 9 taps
    # row-stacked in g_ref), then 9 tiny tap-weight matmuls on aligned row slices.
    pcat = jnp.dot(g_ref[...].astype(f32), act, preferred_element_type=f32)   # (9*n_out, 10)
    y = jnp.dot(pcat[0:n_out], w2_ref[0], preferred_element_type=f32)         # (n_out, 20)
    for k in range(1, 9):
        y = y + jnp.dot(pcat[k * n_out:(k + 1) * n_out], w2_ref[k],
                        preferred_element_type=f32)
    y = y + b2_ref[...]

    # ---- BatchNorm2d(20), training-mode batch statistics (biased var, eps=1e-5)
    mean = jnp.mean(y, axis=0, keepdims=True)
    var = jnp.mean((y - mean) ** 2, axis=0, keepdims=True)
    y = (y - mean) * jax.lax.rsqrt(var + 1e-5)
    y = y * gamma_ref[...] + beta_ref[...]
    y = jnp.maximum(y, 0.0)                                                   # ReLU

    # ---- SE2 (vectorized over batch, same indicator-matmul trick)
    p2 = jnp.dot(a2_ref[...], y, preferred_element_type=f32)                  # (B, 20)
    h2 = jnp.maximum(jnp.dot(p2, se2a_ref[...], preferred_element_type=f32), 0.0)
    g2 = jax.nn.sigmoid(jnp.dot(h2, se2b_ref[...], preferred_element_type=f32))
    out_ref[...] = y * jnp.dot(e2_ref[...], g2, preferred_element_type=f32)   # (n_out, 20)


def head_kernel(x_ref, w1_ref, b1_ref, w2_ref, b2_ref, o_ref):
    # fc1 (2880 -> 288) + ReLU, then fc2 (288 -> 2)
    h = jnp.dot(x_ref[...], w1_ref[...], preferred_element_type=jnp.float32) + b1_ref[...]
    h = jnp.maximum(h, 0.0)
    o_ref[...] = jnp.dot(h, w2_ref[...], preferred_element_type=jnp.float32) + b2_ref[...]


# --------------------------------- glue ------------------------------------ #

def _conv1_pool_patches(x):
    """conv1 im2col on the raw input, rows ordered pool-phase-major:
    row = phase*(B*100) + b*100 + i*10 + j, col = ky*5 + kx.  Tiny (~80 KB)."""
    B = x.shape[0]
    xp = jnp.pad(x, ((0, 0), (2, 2), (2, 2)))            # (B, 24, 24)
    blocks = []
    for py in range(2):
        for px in range(2):
            cols = []
            for ky in range(5):
                for kx in range(5):
                    s = xp[:, py + ky:py + ky + 20:2, px + kx:px + kx + 20:2]  # (B,10,10)
                    cols.append(s.reshape(B * 100))
            blocks.append(jnp.stack(cols, axis=-1))       # (B*100, 25)
    return jnp.concatenate(blocks, axis=0)                # (4*B*100, 25)


def init_params(key):
    ks = jax.random.split(key, 12)

    def u(k, shape, fan_in):
        bound = 1.0 / float(np.sqrt(float(fan_in)))
        return jax.random.uniform(k, shape, jnp.float32, -bound, bound)

    p = {}
    # torch parameter shapes
    p["conv1_w"] = u(ks[0], (10, 1, 5, 5), 1 * 5 * 5)
    p["conv1_b"] = u(ks[1], (10,), 1 * 5 * 5)
    p["conv2_w"] = u(ks[2], (20, 10, 3, 3), 10 * 3 * 3)
    p["conv2_b"] = u(ks[3], (20,), 10 * 3 * 3)
    p["bn1_g"] = jnp.ones((20,), jnp.float32)
    p["bn1_b"] = jnp.zeros((20,), jnp.float32)
    p["se1_w1"] = u(ks[4], (2, 10), 10)      # Linear(10 -> 2, bias=False)
    p["se1_w2"] = u(ks[5], (10, 2), 2)       # Linear(2 -> 10, bias=False)
    p["se2_w1"] = u(ks[6], (4, 20), 20)      # Linear(20 -> 4, bias=False)
    p["se2_w2"] = u(ks[7], (20, 4), 4)       # Linear(4 -> 20, bias=False)
    p["fc1_w"] = u(ks[8], (288, 2880), 2880)
    p["fc1_b"] = u(ks[9], (288,), 2880)
    p["fc2_w"] = u(ks[10], (2, 288), 288)
    p["fc2_b"] = u(ks[11], (2,), 288)
    return p


def prepare_params(p, batch):
    """One-time (outside jit) weight layout prep: no per-forward transposes."""
    B = batch
    f32 = np.float32
    kp = {}
    kp["w1"] = jnp.asarray(np.transpose(np.asarray(p["conv1_w"]), (2, 3, 1, 0)).reshape(25, 10))
    kp["b1"] = jnp.asarray(np.asarray(p["conv1_b"]).reshape(1, 10))
    kp["se1a"] = jnp.asarray(np.asarray(p["se1_w1"]).T)           # (10, 2)
    kp["se1b"] = jnp.asarray(np.asarray(p["se1_w2"]).T)           # (2, 10)
    kp["w2"] = jnp.asarray(np.transpose(np.asarray(p["conv2_w"]), (2, 3, 1, 0)).reshape(9, 10, 20))
    kp["b2"] = jnp.asarray(np.asarray(p["conv2_b"]).reshape(1, 20))
    kp["gamma"] = jnp.asarray(np.asarray(p["bn1_g"]).reshape(1, 20))
    kp["beta"] = jnp.asarray(np.asarray(p["bn1_b"]).reshape(1, 20))
    kp["se2a"] = jnp.asarray(np.asarray(p["se2_w1"]).T)           # (20, 4)
    kp["se2b"] = jnp.asarray(np.asarray(p["se2_w2"]).T)           # (4, 20)

    # SE per-batch average-pool / broadcast indicator matrices.
    def seg(seg_len, scale):
        m = np.zeros((B, B * seg_len), f32)
        for b in range(B):
            m[b, b * seg_len:(b + 1) * seg_len] = scale
        return m
    kp["a1"] = jnp.asarray(seg(100, 1.0 / 100.0))                 # (B, B*100)
    kp["e1"] = jnp.asarray(seg(100, 1.0).T)                       # (B*100, B)
    kp["a2"] = jnp.asarray(seg(144, 1.0 / 144.0))                 # (B, B*144)
    kp["e2"] = jnp.asarray(seg(144, 1.0).T)                       # (B*144, B)

    # conv2 im2col gather matrix (0/1), all 9 taps row-stacked into ONE 2-D matrix
    # so the kernel issues a single gather matmul; bf16 halves the DMA.
    # NOTE: size is (9*B*144, B*100) -> scales with B^2; fine for small batches.
    g = np.zeros((9, B * 144, B * 100), f32)
    for ky in range(3):
        for kx in range(3):
            k = ky * 3 + kx
            for b in range(B):
                for oy in range(12):
                    iy = oy + ky - 2
                    if not (0 <= iy < 10):
                        continue
                    for ox in range(12):
                        ix = ox + kx - 2
                        if not (0 <= ix < 10):
                            continue
                        g[k, b * 144 + oy * 12 + ox, b * 100 + iy * 10 + ix] = 1.0
    kp["g"] = jnp.asarray(g.reshape(9 * B * 144, B * 100), dtype=jnp.bfloat16)

    # fc1: fold PyTorch's NCHW flatten (feature index c*144 + p) into a one-time
    # row permutation, so the conv features can be fed with a plain reshape.
    fc1_w = np.asarray(p["fc1_w"])                                # (288, 2880)
    wp = fc1_w.reshape(288, 20, 144).transpose(2, 1, 0).reshape(2880, 288)
    kp["fc1_w"] = jnp.asarray(wp)                                 # (2880, 288), rows in (p, c) order
    kp["fc1_b"] = jnp.asarray(np.asarray(p["fc1_b"]).reshape(1, 288))
    kp["fc2_w"] = jnp.asarray(np.asarray(p["fc2_w"]).T)           # (288, 2)
    kp["fc2_b"] = jnp.asarray(np.asarray(p["fc2_b"]).reshape(1, 2))
    return kp


def cnn_se_forward(x_nchw, kp):
    B = x_nchw.shape[0]
    x = x_nchw.reshape(B, 20, 20)                         # C_in == 1
    patches = _conv1_pool_patches(x)                      # (4*B*100, 25)

    # kernel 1: conv1 + ReLU + maxpool + SE1 + conv2 + BN + ReLU + SE2 (all in VMEM)
    feats = pl.pallas_call(
        features_kernel,
        out_shape=jax.ShapeDtypeStruct((B * 144, 20), jnp.float32),
        in_specs=_vmem_specs(16),
        out_specs=pl.BlockSpec(memory_space=VMEM),
    )(patches, kp["w1"], kp["b1"],
      kp["a1"], kp["e1"], kp["se1a"], kp["se1b"],
      kp["g"], kp["w2"], kp["b2"],
      kp["gamma"], kp["beta"],
      kp["a2"], kp["e2"], kp["se2a"], kp["se2b"])

    # The only inter-kernel glue: a ~23 KB reshape (the NCHW flatten permutation
    # is already folded into the fc1 weight rows).
    flat = feats.reshape(B, 20 * 12 * 12)                 # (B, 2880), (p, c) row order

    # kernel 2: fc1 + ReLU + fc2
    out = pl.pallas_call(
        head_kernel,
        out_shape=jax.ShapeDtypeStruct((B, 2), jnp.float32),
        in_specs=_vmem_specs(5),
        out_specs=pl.BlockSpec(memory_space=VMEM),
    )(flat, kp["fc1_w"], kp["fc1_b"], kp["fc2_w"], kp["fc2_b"])
    return out


if __name__ == "__main__":
    key = jax.random.PRNGKey(0)
    kx, kparam = jax.random.split(key)
    # Spatial size must be 20x20 so that fc1 sees 20*12*12 = 2880 features.
    x = jax.random.normal(kx, (2, 1, 20, 20), jnp.float32)     # NCHW, like torch
    params = init_params(kparam)
    kparams = prepare_params(params, batch=x.shape[0])
    fwd = jax.jit(cnn_se_forward)
    out = fwd(x, kparams)
    jax.block_until_ready(out)
    assert out.shape == (2, 2) and out.dtype == jnp.float32
    assert bool(jnp.all(jnp.isfinite(out)))
    print("KERNEL_OK")
</pallas_src>

<mosaic_0001>
module attributes {stable_mosaic.version = 11 : i64} {
  func.func @features_kernel(%arg0: memref<800x25xf32, #tpu.memory_space<vmem>>, %arg1: memref<25x10xf32, #tpu.memory_space<vmem>>, %arg2: memref<1x10xf32, #tpu.memory_space<vmem>>, %arg3: memref<2x200xf32, #tpu.memory_space<vmem>>, %arg4: memref<200x2xf32, #tpu.memory_space<vmem>>, %arg5: memref<10x2xf32, #tpu.memory_space<vmem>>, %arg6: memref<2x10xf32, #tpu.memory_space<vmem>>, %arg7: memref<2592x200xbf16, #tpu.memory_space<vmem>>, %arg8: memref<9x10x20xf32, #tpu.memory_space<vmem>>, %arg9: memref<1x20xf32, #tpu.memory_space<vmem>>, %arg10: memref<1x20xf32, #tpu.memory_space<vmem>>, %arg11: memref<1x20xf32, #tpu.memory_space<vmem>>, %arg12: memref<2x288xf32, #tpu.memory_space<vmem>>, %arg13: memref<288x2xf32, #tpu.memory_space<vmem>>, %arg14: memref<20x4xf32, #tpu.memory_space<vmem>>, %arg15: memref<4x20xf32, #tpu.memory_space<vmem>>, %arg16: memref<288x20xf32, #tpu.memory_space<vmem>>) attributes {dimension_semantics = [], scalar_prefetch = 0 : i64, scratch_operands = 0 : i64, tpu.core_type = #tpu.core_type<tc>} {
    %c0 = arith.constant 0 : index
    %c0_0 = arith.constant 0 : index
    %0 = vector.load %arg0[%c0, %c0_0] : memref<800x25xf32, #tpu.memory_space<vmem>>, vector<800x25xf32>
    %c0_1 = arith.constant 0 : index
    %c0_2 = arith.constant 0 : index
    %1 = vector.load %arg1[%c0_1, %c0_2] : memref<25x10xf32, #tpu.memory_space<vmem>>, vector<25x10xf32>
    %cst = arith.constant dense<0.000000e+00> : vector<800x10xf32>
    %2 = tpu.matmul %0, %1, %cst {dimension_numbers = #tpu.dot_dimension_numbers<[1], [0], [0], [1], [0, 0, 1, 1], [], []>} : vector<800x25xf32>, vector<25x10xf32>, vector<800x10xf32> -> vector<800x10xf32>
    %3 = vector.extract_strided_slice %2 {offsets = [0, 0], sizes = [200, 10], strides = [1, 1]} : vector<800x10xf32> to vector<200x10xf32>
    %4 = vector.extract_strided_slice %2 {offsets = [200, 0], sizes = [200, 10], strides = [1, 1]} : vector<800x10xf32> to vector<200x10xf32>
    %5 = arith.maximumf %3, %4 : vector<200x10xf32>
    %6 = vector.extract_strided_slice %2 {offsets = [400, 0], sizes = [200, 10], strides = [1, 1]} : vector<800x10xf32> to vector<200x10xf32>
    %7 = vector.extract_strided_slice %2 {offsets = [600, 0], sizes = [200, 10], strides = [1, 1]} : vector<800x10xf32> to vector<200x10xf32>
    %8 = arith.maximumf %6, %7 : vector<200x10xf32>
    %9 = arith.maximumf %5, %8 : vector<200x10xf32>
    %c0_3 = arith.constant 0 : index
    %c0_4 = arith.constant 0 : index
    %10 = vector.load %arg2[%c0_3, %c0_4] : memref<1x10xf32, #tpu.memory_space<vmem>>, vector<1x10xf32>
    %11 = vector.broadcast %10 : vector<1x10xf32> to vector<200x10xf32>
    %12 = arith.addf %9, %11 : vector<200x10xf32>
    %cst_5 = arith.constant 0.000000e+00 : f32
    %13 = vector.broadcast %cst_5 : f32 to vector<200x10xf32>
    %14 = arith.maximumf %12, %13 : vector<200x10xf32>
    %c0_6 = arith.constant 0 : index
    %c0_7 = arith.constant 0 : index
    %15 = vector.load %arg3[%c0_6, %c0_7] : memref<2x200xf32, #tpu.memory_space<vmem>>, vector<2x200xf32>
    %cst_8 = arith.constant dense<0.000000e+00> : vector<2x10xf32>
    %16 = tpu.matmul %15, %14, %cst_8 {dimension_numbers = #tpu.dot_dimension_numbers<[1], [0], [0], [1], [0, 0, 1, 1], [], []>} : vector<2x200xf32>, vector<200x10xf32>, vector<2x10xf32> -> vector<2x10xf32>
    %c0_9 = arith.constant 0 : index
    %c0_10 = arith.constant 0 : index
    %17 = vector.load %arg5[%c0_9, %c0_10] : memref<10x2xf32, #tpu.memory_space<vmem>>, vector<10x2xf32>
    %cst_11 = arith.constant dense<0.000000e+00> : vector<2x2xf32>
    %18 = tpu.matmul %16, %17, %cst_11 {dimension_numbers = #tpu.dot_dimension_numbers<[1], [0], [0], [1], [0, 0, 1, 1], [], []>} : vector<2x10xf32>, vector<10x2xf32>, vector<2x2xf32> -> vector<2x2xf32>
    %cst_12 = arith.constant 0.000000e+00 : f32
    %19 = vector.broadcast %cst_12 : f32 to vector<2x2xf32>
    %20 = arith.maximumf %18, %19 : vector<2x2xf32>
    %c0_13 = arith.constant 0 : index
    %c0_14 = arith.constant 0 : index
    %21 = vector.load %arg6[%c0_13, %c0_14] : memref<2x10xf32, #tpu.memory_space<vmem>>, vector<2x10xf32>
    %cst_15 = arith.constant dense<0.000000e+00> : vector<2x10xf32>
    %22 = tpu.matmul %20, %21, %cst_15 {dimension_numbers = #tpu.dot_dimension_numbers<[1], [0], [0], [1], [0, 0, 1, 1], [], []>} : vector<2x2xf32>, vector<2x10xf32>, vector<2x10xf32> -> vector<2x10xf32>
    %23 = arith.negf %22 : vector<2x10xf32>
    %24 = math.exp %23 : vector<2x10xf32>
    %cst_16 = arith.constant 1.000000e+00 : f32
    %25 = vector.broadcast %cst_16 : f32 to vector<2x10xf32>
    %26 = arith.addf %25, %24 : vector<2x10xf32>
    %27 = arith.divf %25, %26 : vector<2x10xf32>
    %c0_17 = arith.constant 0 : index
    %c0_18 = arith.constant 0 : index
    %28 = vector.load %arg4[%c0_17, %c0_18] : memref<200x2xf32, #tpu.memory_space<vmem>>, vector<200x2xf32>
    %cst_19 = arith.constant dense<0.000000e+00> : vector<200x10xf32>
    %29 = tpu.matmul %28, %27, %cst_19 {dimension_numbers = #tpu.dot_dimension_numbers<[1], [0], [0], [1], [0, 0, 1, 1], [], []>} : vector<200x2xf32>, vector<2x10xf32>, vector<200x10xf32> -> vector<200x10xf32>
    %30 = arith.mulf %14, %29 : vector<200x10xf32>
    %c0_20 = arith.constant 0 : index
    %c0_21 = arith.constant 0 : index
    %31 = vector.load %arg7[%c0_20, %c0_21] : memref<2592x200xbf16, #tpu.memory_space<vmem>>, vector<2592x200xbf16>
    %32 = arith.extf %31 : vector<2592x200xbf16> to vector<2592x200xf32>
    %cst_22 = arith.constant dense<0.000000e+00> : vector<2592x10xf32>
    %33 = tpu.matmul %32, %30, %cst_22 {dimension_numbers = #tpu.dot_dimension_numbers<[1], [0], [0], [1], [0, 0, 1, 1], [], []>} : vector<2592x200xf32>, vector<200x10xf32>, vector<2592x10xf32> -> vector<2592x10xf32>
    %34 = vector.extract_strided_slice %33 {offsets = [0, 0], sizes = [288, 10], strides = [1, 1]} : vector<2592x10xf32> to vector<288x10xf32>
    %c0_23 = arith.constant 0 : index
    %c0_24 = arith.constant 0 : index
    %c0_25 = arith.constant 0 : index
    %35 = vector.load %arg8[%c0_23, %c0_24, %c0_25] : memref<9x10x20xf32, #tpu.memory_space<vmem>>, vector<1x10x20xf32>
    %36 = vector.shape_cast %35 : vector<1x10x20xf32> to vector<10x20xf32>
    %cst_26 = arith.constant dense<0.000000e+00> : vector<288x20xf32>
    %37 = tpu.matmul %34, %36, %cst_26 {dimension_numbers = #tpu.dot_dimension_numbers<[1], [0], [0], [1], [0, 0, 1, 1], [], []>} : vector<288x10xf32>, vector<10x20xf32>, vector<288x20xf32> -> vector<288x20xf32>
    %38 = vector.extract_strided_slice %33 {offsets = [288, 0], sizes = [288, 10], strides = [1, 1]} : vector<2592x10xf32> to vector<288x10xf32>
    %c1 = arith.constant 1 : index
    %c0_27 = arith.constant 0 : index
    %c0_28 = arith.constant 0 : index
    %39 = vector.load %arg8[%c1, %c0_27, %c0_28] : memref<9x10x20xf32, #tpu.memory_space<vmem>>, vector<1x10x20xf32>
    %40 = vector.shape_cast %39 : vector<1x10x20xf32> to vector<10x20xf32>
    %cst_29 = arith.constant dense<0.000000e+00> : vector<288x20xf32>
    %41 = tpu.matmul %38, %40, %cst_29 {dimension_numbers = #tpu.dot_dimension_numbers<[1], [0], [0], [1], [0, 0, 1, 1], [], []>} : vector<288x10xf32>, vector<10x20xf32>, vector<288x20xf32> -> vector<288x20xf32>
    %42 = arith.addf %37, %41 : vector<288x20xf32>
    %43 = vector.extract_strided_slice %33 {offsets = [576, 0], sizes = [288, 10], strides = [1, 1]} : vector<2592x10xf32> to vector<288x10xf32>
    %c2 = arith.constant 2 : index
    %c0_30 = arith.constant 0 : index
    %c0_31 = arith.constant 0 : index
    %44 = vector.load %arg8[%c2, %c0_30, %c0_31] : memref<9x10x20xf32, #tpu.memory_space<vmem>>, vector<1x10x20xf32>
    %45 = vector.shape_cast %44 : vector<1x10x20xf32> to vector<10x20xf32>
    %cst_32 = arith.constant dense<0.000000e+00> : vector<288x20xf32>
    %46 = tpu.matmul %43, %45, %cst_32 {dimension_numbers = #tpu.dot_dimension_numbers<[1], [0], [0], [1], [0, 0, 1, 1], [], []>} : vector<288x10xf32>, vector<10x20xf32>, vector<288x20xf32> -> vector<288x20xf32>
    %47 = arith.addf %42, %46 : vector<288x20xf32>
    %48 = vector.extract_strided_slice %33 {offsets = [864, 0], sizes = [288, 10], strides = [1, 1]} : vector<2592x10xf32> to vector<288x10xf32>
    %c3 = arith.constant 3 : index
    %c0_33 = arith.constant 0 : index
    %c0_34 = arith.constant 0 : index
    %49 = vector.load %arg8[%c3, %c0_33, %c0_34] : memref<9x10x20xf32, #tpu.memory_space<vmem>>, vector<1x10x20xf32>
    %50 = vector.shape_cast %49 : vector<1x10x20xf32> to vector<10x20xf32>
    %cst_35 = arith.constant dense<0.000000e+00> : vector<288x20xf32>
    %51 = tpu.matmul %48, %50, %cst_35 {dimension_numbers = #tpu.dot_dimension_numbers<[1], [0], [0], [1], [0, 0, 1, 1], [], []>} : vector<288x10xf32>, vector<10x20xf32>, vector<288x20xf32> -> vector<288x20xf32>
    %52 = arith.addf %47, %51 : vector<288x20xf32>
    %53 = vector.extract_strided_slice %33 {offsets = [1152, 0], sizes = [288, 10], strides = [1, 1]} : vector<2592x10xf32> to vector<288x10xf32>
    %c4 = arith.constant 4 : index
    %c0_36 = arith.constant 0 : index
    %c0_37 = arith.constant 0 : index
    %54 = vector.load %arg8[%c4, %c0_36, %c0_37] : memref<9x10x20xf32, #tpu.memory_space<vmem>>, vector<1x10x20xf32>
    %55 = vector.shape_cast %54 : vector<1x10x20xf32> to vector<10x20xf32>
    %cst_38 = arith.constant dense<0.000000e+00> : vector<288x20xf32>
    %56 = tpu.matmul %53, %55, %cst_38 {dimension_numbers = #tpu.dot_dimension_numbers<[1], [0], [0], [1], [0, 0, 1, 1], [], []>} : vector<288x10xf32>, vector<10x20xf32>, vector<288x20xf32> -> vector<288x20xf32>
    %57 = arith.addf %52, %56 : vector<288x20xf32>
    %58 = vector.extract_strided_slice %33 {offsets = [1440, 0], sizes = [288, 10], strides = [1, 1]} : vector<2592x10xf32> to vector<288x10xf32>
    %c5 = arith.constant 5 : index
    %c0_39 = arith.constant 0 : index
    %c0_40 = arith.constant 0 : index
    %59 = vector.load %arg8[%c5, %c0_39, %c0_40] : memref<9x10x20xf32, #tpu.memory_space<vmem>>, vector<1x10x20xf32>
    %60 = vector.shape_cast %59 : vector<1x10x20xf32> to vector<10x20xf32>
    %cst_41 = arith.constant dense<0.000000e+00> : vector<288x20xf32>
    %61 = tpu.matmul %58, %60, %cst_41 {dimension_numbers = #tpu.dot_dimension_numbers<[1], [0], [0], [1], [0, 0, 1, 1], [], []>} : vector<288x10xf32>, vector<10x20xf32>, vector<288x20xf32> -> vector<288x20xf32>
    %62 = arith.addf %57, %61 : vector<288x20xf32>
    %63 = vector.extract_strided_slice %33 {offsets = [1728, 0], sizes = [288, 10], strides = [1, 1]} : vector<2592x10xf32> to vector<288x10xf32>
    %c6 = arith.constant 6 : index
    %c0_42 = arith.constant 0 : index
    %c0_43 = arith.constant 0 : index
    %64 = vector.load %arg8[%c6, %c0_42, %c0_43] : memref<9x10x20xf32, #tpu.memory_space<vmem>>, vector<1x10x20xf32>
    %65 = vector.shape_cast %64 : vector<1x10x20xf32> to vector<10x20xf32>
    %cst_44 = arith.constant dense<0.000000e+00> : vector<288x20xf32>
    %66 = tpu.matmul %63, %65, %cst_44 {dimension_numbers = #tpu.dot_dimension_numbers<[1], [0], [0], [1], [0, 0, 1, 1], [], []>} : vector<288x10xf32>, vector<10x20xf32>, vector<288x20xf32> -> vector<288x20xf32>
    %67 = arith.addf %62, %66 : vector<288x20xf32>
    %68 = vector.extract_strided_slice %33 {offsets = [2016, 0], sizes = [288, 10], strides = [1, 1]} : vector<2592x10xf32> to vector<288x10xf32>
    %c7 = arith.constant 7 : index
    %c0_45 = arith.constant 0 : index
    %c0_46 = arith.constant 0 : index
    %69 = vector.load %arg8[%c7, %c0_45, %c0_46] : memref<9x10x20xf32, #tpu.memory_space<vmem>>, vector<1x10x20xf32>
    %70 = vector.shape_cast %69 : vector<1x10x20xf32> to vector<10x20xf32>
    %cst_47 = arith.constant dense<0.000000e+00> : vector<288x20xf32>
    %71 = tpu.matmul %68, %70, %cst_47 {dimension_numbers = #tpu.dot_dimension_numbers<[1], [0], [0], [1], [0, 0, 1, 1], [], []>} : vector<288x10xf32>, vector<10x20xf32>, vector<288x20xf32> -> vector<288x20xf32>
    %72 = arith.addf %67, %71 : vector<288x20xf32>
    %73 = vector.extract_strided_slice %33 {offsets = [2304, 0], sizes = [288, 10], strides = [1, 1]} : vector<2592x10xf32> to vector<288x10xf32>
    %c8 = arith.constant 8 : index
    %c0_48 = arith.constant 0 : index
    %c0_49 = arith.constant 0 : index
    %74 = vector.load %arg8[%c8, %c0_48, %c0_49] : memref<9x10x20xf32, #tpu.memory_space<vmem>>, vector<1x10x20xf32>
    %75 = vector.shape_cast %74 : vector<1x10x20xf32> to vector<10x20xf32>
    %cst_50 = arith.constant dense<0.000000e+00> : vector<288x20xf32>
    %76 = tpu.matmul %73, %75, %cst_50 {dimension_numbers = #tpu.dot_dimension_numbers<[1], [0], [0], [1], [0, 0, 1, 1], [], []>} : vector<288x10xf32>, vector<10x20xf32>, vector<288x20xf32> -> vector<288x20xf32>
    %77 = arith.addf %72, %76 : vector<288x20xf32>
    %c0_51 = arith.constant 0 : index
    %c0_52 = arith.constant 0 : index
    %78 = vector.load %arg9[%c0_51, %c0_52] : memref<1x20xf32, #tpu.memory_space<vmem>>, vector<1x20xf32>
    %79 = vector.broadcast %78 : vector<1x20xf32> to vector<288x20xf32>
    %80 = arith.addf %77, %79 : vector<288x20xf32>
    %cst_53 = arith.constant dense<0.000000e+00> : vector<20xf32>
    %81 = vector.multi_reduction <add>, %80, %cst_53 [0] : vector<288x20xf32> to vector<20xf32>
    %82 = vector.shape_cast %81 : vector<20xf32> to vector<1x20xf32>
    %cst_54 = arith.constant 2.880000e+02 : f32
    %83 = vector.broadcast %cst_54 : f32 to vector<1x20xf32>
    %84 = arith.divf %82, %83 : vector<1x20xf32>
    %85 = vector.broadcast %84 : vector<1x20xf32> to vector<288x20xf32>
    %86 = arith.subf %80, %85 : vector<288x20xf32>
    %87 = arith.mulf %86, %86 : vector<288x20xf32>
    %cst_55 = arith.constant dense<0.000000e+00> : vector<20xf32>
    %88 = vector.multi_reduction <add>, %87, %cst_55 [0] : vector<288x20xf32> to vector<20xf32>
    %89 = vector.shape_cast %88 : vector<20xf32> to vector<1x20xf32>
    %cst_56 = arith.constant 2.880000e+02 : f32
    %90 = vector.broadcast %cst_56 : f32 to vector<1x20xf32>
    %91 = arith.divf %89, %90 : vector<1x20xf32>
    %92 = vector.broadcast %84 : vector<1x20xf32> to vector<288x20xf32>
    %93 = arith.subf %80, %92 : vector<288x20xf32>
    %cst_57 = arith.constant 9.99999974E-6 : f32
    %94 = vector.broadcast %cst_57 : f32 to vector<1x20xf32>
    %95 = arith.addf %91, %94 : vector<1x20xf32>
    %96 = math.rsqrt %95 : vector<1x20xf32>
    %97 = vector.broadcast %96 : vector<1x20xf32> to vector<288x20xf32>
    %98 = arith.mulf %93, %97 : vector<288x20xf32>
    %c0_58 = arith.constant 0 : index
    %c0_59 = arith.constant 0 : index
    %99 = vector.load %arg10[%c0_58, %c0_59] : memref<1x20xf32, #tpu.memory_space<vmem>>, vector<1x20xf32>
    %100 = vector.broadcast %99 : vector<1x20xf32> to vector<288x20xf32>
    %101 = arith.mulf %98, %100 : vector<288x20xf32>
    %c0_60 = arith.constant 0 : index
    %c0_61 = arith.constant 0 : index
    %102 = vector.load %arg11[%c0_60, %c0_61] : memref<1x20xf32, #tpu.memory_space<vmem>>, vector<1x20xf32>
    %103 = vector.broadcast %102 : vector<1x20xf32> to vector<288x20xf32>
    %104 = arith.addf %101, %103 : vector<288x20xf32>
    %cst_62 = arith.constant 0.000000e+00 : f32
    %105 = vector.broadcast %cst_62 : f32 to vector<288x20xf32>
    %106 = arith.maximumf %104, %105 : vector<288x20xf32>
    %c0_63 = arith.constant 0 : index
    %c0_64 = arith.constant 0 : index
    %107 = vector.load %arg12[%c0_63, %c0_64] : memref<2x288xf32, #tpu.memory_space<vmem>>, vector<2x288xf32>
    %cst_65 = arith.constant dense<0.000000e+00> : vector<2x20xf32>
    %108 = tpu.matmul %107, %106, %cst_65 {dimension_numbers = #tpu.dot_dimension_numbers<[1], [0], [0], [1], [0, 0, 1, 1], [], []>} : vector<2x288xf32>, vector<288x20xf32>, vector<2x20xf32> -> vector<2x20xf32>
    %c0_66 = arith.constant 0 : index
    %c0_67 = arith.constant 0 : index
    %109 = vector.load %arg14[%c0_66, %c0_67] : memref<20x4xf32, #tpu.memory_space<vmem>>, vector<20x4xf32>
    %cst_68 = arith.constant dense<0.000000e+00> : vector<2x4xf32>
    %110 = tpu.matmul %108, %109, %cst_68 {dimension_numbers = #tpu.dot_dimension_numbers<[1], [0], [0], [1], [0, 0, 1, 1], [], []>} : vector<2x20xf32>, vector<20x4xf32>, vector<2x4xf32> -> vector<2x4xf32>
    %cst_69 = arith.constant 0.000000e+00 : f32
    %111 = vector.broadcast %cst_69 : f32 to vector<2x4xf32>
    %112 = arith.maximumf %110, %111 : vector<2x4xf32>
    %c0_70 = arith.constant 0 : index
    %c0_71 = arith.constant 0 : index
    %113 = vector.load %arg15[%c0_70, %c0_71] : memref<4x20xf32, #tpu.memory_space<vmem>>, vector<4x20xf32>
    %cst_72 = arith.constant dense<0.000000e+00> : vector<2x20xf32>
    %114 = tpu.matmul %112, %113, %cst_72 {dimension_numbers = #tpu.dot_dimension_numbers<[1], [0], [0], [1], [0, 0, 1, 1], [], []>} : vector<2x4xf32>, vector<4x20xf32>, vector<2x20xf32> -> vector<2x20xf32>
    %115 = arith.negf %114 : vector<2x20xf32>
    %116 = math.exp %115 : vector<2x20xf32>
    %cst_73 = arith.constant 1.000000e+00 : f32
    %117 = vector.broadcast %cst_73 : f32 to vector<2x20xf32>
    %118 = arith.addf %117, %116 : vector<2x20xf32>
    %119 = arith.divf %117, %118 : vector<2x20xf32>
    %c0_74 = arith.constant 0 : index
    %c0_75 = arith.constant 0 : index
    %120 = vector.load %arg13[%c0_74, %c0_75] : memref<288x2xf32, #tpu.memory_space<vmem>>, vector<288x2xf32>
    %cst_76 = arith.constant dense<0.000000e+00> : vector<288x20xf32>
    %121 = tpu.matmul %120, %119, %cst_76 {dimension_numbers = #tpu.dot_dimension_numbers<[1], [0], [0], [1], [0, 0, 1, 1], [], []>} : vector<288x2xf32>, vector<2x20xf32>, vector<288x20xf32> -> vector<288x20xf32>
    %122 = arith.mulf %106, %121 : vector<288x20xf32>
    %c0_77 = arith.constant 0 : index
    %c0_78 = arith.constant 0 : index
    %123 = vector.load %arg16[%c0_77, %c0_78] : memref<288x20xf32, #tpu.memory_space<vmem>>, vector<288x20xf32>
    tpu.vector_store %arg16[%c0_77, %c0_78], %122 {strides = array<i32>} : memref<288x20xf32, #tpu.memory_space<vmem>>, vector<288x20xf32>,
    return
  }
}

module attributes {stable_mosaic.version = 11 : i64} {
  func.func @head_kernel(%arg0: memref<2x2880xf32, #tpu.memory_space<vmem>>, %arg1: memref<2880x288xf32, #tpu.memory_space<vmem>>, %arg2: memref<1x288xf32, #tpu.memory_space<vmem>>, %arg3: memref<288x2xf32, #tpu.memory_space<vmem>>, %arg4: memref<1x2xf32, #tpu.memory_space<vmem>>, %arg5: memref<2x2xf32, #tpu.memory_space<vmem>>) attributes {dimension_semantics = [], scalar_prefetch = 0 : i64, scratch_operands = 0 : i64, tpu.core_type = #tpu.core_type<tc>} {
    %c0 = arith.constant 0 : index
    %c0_0 = arith.constant 0 : index
    %0 = vector.load %arg0[%c0, %c0_0] : memref<2x2880xf32, #tpu.memory_space<vmem>>, vector<2x2880xf32>
    %c0_1 = arith.constant 0 : index
    %c0_2 = arith.constant 0 : index
    %1 = vector.load %arg1[%c0_1, %c0_2] : memref<2880x288xf32, #tpu.memory_space<vmem>>, vector<2880x288xf32>
    %cst = arith.constant dense<0.000000e+00> : vector<2x288xf32>
    %2 = tpu.matmul %0, %1, %cst {dimension_numbers = #tpu.dot_dimension_numbers<[1], [0], [0], [1], [0, 0, 1, 1], [], []>} : vector<2x2880xf32>, vector<2880x288xf32>, vector<2x288xf32> -> vector<2x288xf32>
    %c0_3 = arith.constant 0 : index
    %c0_4 = arith.constant 0 : index
    %3 = vector.load %arg2[%c0_3, %c0_4] : memref<1x288xf32, #tpu.memory_space<vmem>>, vector<1x288xf32>
    %4 = vector.broadcast %3 : vector<1x288xf32> to vector<2x288xf32>
    %5 = arith.addf %2, %4 : vector<2x288xf32>
    %cst_5 = arith.constant 0.000000e+00 : f32
    %6 = vector.broadcast %cst_5 : f32 to vector<2x288xf32>
    %7 = arith.maximumf %5, %6 : vector<2x288xf32>
    %c0_6 = arith.constant 0 : index
    %c0_7 = arith.constant 0 : index
    %8 = vector.load %arg3[%c0_6, %c0_7] : memref<288x2xf32, #tpu.memory_space<vmem>>, vector<288x2xf32>
    %cst_8 = arith.constant dense<0.000000e+00> : vector<2x2xf32>
    %9 = tpu.matmul %7, %8, %cst_8 {dimension_numbers = #tpu.dot_dimension_numbers<[1], [0], [0], [1], [0, 0, 1, 1], [], []>} : vector<2x288xf32>, vector<288x2xf32>, vector<2x2xf32> -> vector<2x2xf32>
    %c0_9 = arith.constant 0 : index
    %c0_10 = arith.constant 0 : index
    %10 = vector.load %arg4[%c0_9, %c0_10] : memref<1x2xf32, #tpu.memory_space<vmem>>, vector<1x2xf32>
    %11 = vector.broadcast %10 : vector<1x2xf32> to vector<2x2xf32>
    %12 = arith.addf %9, %11 : vector<2x2xf32>
    %c0_11 = arith.constant 0 : index
    %c0_12 = arith.constant 0 : index
    %13 = vector.load %arg5[%c0_11, %c0_12] : memref<2x2xf32, #tpu.memory_space<vmem>>, vector<2x2xf32>
    tpu.vector_store %arg5[%c0_11, %c0_12], %12 {strides = array<i32>} : memref<2x2xf32, #tpu.memory_space<vmem>>, vector<2x2xf32>,
    return
  }
}

</mosaic_0001>

<llo_original>
// kernel: cnn_se_forward.3
$region0: #{cnn_se_forward.3}
  #allocation0 [shape = 'u32[]', space=smem, size = 0x4, offset = 0x4, fixed_abs, tag = 'smem constant byte address 0x4 - core index']
  #allocation1 [shape = 'u32[72,128]{1,0:T(1,128)}', space=vmem, size = 0x9000, scoped, tag = 'internal scratch']
  %s0 = inlined_call_operand.vmem [shape: f32[2,2880], index: 0, kind: input, shape index: {}]
  %s1 = inlined_call_operand.vmem [shape: f32[2880,288], index: 1, kind: input, shape index: {}]
  %s2 = inlined_call_operand.vmem [shape: f32[1,288], index: 2, kind: input, shape index: {}]
  %s3 = inlined_call_operand.vmem [shape: f32[288,2], index: 3, kind: input, shape index: {}]
  %s4 = inlined_call_operand.vmem [shape: f32[1,2], index: 4, kind: input, shape index: {}]
  %s5 = inlined_call_operand.hbm [shape: f32[2,2], index: 5, kind: output, shape index: {}]
  %s6 = sld [smem:[#allocation0]]
  $region30: #{cnn_se_forward.3} parent=0
    _
  %s8 = ssub.s32 1, %s6
  %s9 = scalar_select 0, %s8, %s6
  $region1: #{cnn_se_forward.3} parent=0
    #allocation2 [shape = 'u8[1024]{0}', space=vmem, size = 0x400, scoped, tag = 'output window, operand 0, single buffered']
    #allocation3 [shape = 's32[1]{0}', space=sflag, size = 0x4, scoped, tag = 'scoped memory for cnn_se_forward.3']
    %10 = vsyncpa [#allocation3], 0
    // Predicated region
    $region2: #{cnn_se_forward.3} parent=1 // pred_check
      _
    $region3: #{cnn_se_forward.3} parent=1 // pred_check_branch
      %12 = sbr.rel (0) target = $region5
    $region4: #{cnn_se_forward.3} parent=1 // pred_region
      _
    $region5: #{cnn_se_forward.3} parent=1 // pred_fallthru
      _
    // Predicated region
    $region6: #{cnn_se_forward.3} parent=1 // pred_check
      _
    $region7: #{cnn_se_forward.3} parent=1 // pred_check_branch
      %14 = sbr.rel (0) target = $region9
    $region8: #{cnn_se_forward.3} parent=1 // pred_region
      _
    $region9: #{cnn_se_forward.3} parent=1 // pred_fallthru
      _
    // Predicated region
    $region10: #{cnn_se_forward.3} parent=1 // pred_check
      _
    $region11: #{cnn_se_forward.3} parent=1 // pred_check_branch
      %16 = sbr.rel (0) target = $region13
    $region12: #{cnn_se_forward.3} parent=1 // pred_region
      _
    $region13: #{cnn_se_forward.3} parent=1 // pred_fallthru
      _
    // Predicated region
    $region14: #{cnn_se_forward.3} parent=1 // pred_check
      _
    $region15: #{cnn_se_forward.3} parent=1 // pred_check_branch
      %18 = sbr.rel (0) target = $region17
    $region16: #{cnn_se_forward.3} parent=1 // pred_region
      _
    $region17: #{cnn_se_forward.3} parent=1 // pred_fallthru
      _
    // Predicated region
    $region18: #{cnn_se_forward.3} parent=1 // pred_check
      _
    $region19: #{cnn_se_forward.3} parent=1 // pred_check_branch
      %20 = sbr.rel (0) target = $region21
    $region20: #{cnn_se_forward.3} parent=1 // pred_region
      _
    $region21: #{cnn_se_forward.3} parent=1 // pred_fallthru
      _
    %v21 = vld [vmem:[%s0] sm:$0xff]
    %v22 = vld [vmem:[%s0 + $0x8] sm:$0xff]
    %v23 = vld [vmem:[%s0 + $0x10] sm:$0xff]
    %v24 = vld [vmem:[%s0 + $0x18] sm:$0xff]
    %v25 = vld [vmem:[%s0 + $0x20] sm:$0xff]
    %v26 = vld [vmem:[%s0 + $0x28] sm:$0x3f]
    %v27 = vld [vmem:[%s1] sm:$0xff]
    %v28 = vld [vmem:[%s1 + $0x8] sm:$0xff]
    %v29 = vld [vmem:[%s1 + $0x10] sm:$0xff]
    %v30 = vld [vmem:[%s1 + $0x18] sm:$0xff]
    %v31 = vld [vmem:[%s1 + $0x20] sm:$0xff]
    %v32 = vld [vmem:[%s1 + $0x28] sm:$0xff]
    %v33 = vld [vmem:[%s1 + $0x30] sm:$0xff]
    %v34 = vld [vmem:[%s1 + $0x38] sm:$0xff]
    %v35 = vld [vmem:[%s1 + $0x40] sm:$0xff]
    %v36 = vld [vmem:[%s1 + $0x48] sm:$0xff]
    %v37 = vld [vmem:[%s1 + $0x50] sm:$0xff]
    %v38 = vld [vmem:[%s1 + $0x58] sm:$0xff]
    %v39 = vld [vmem:[%s1 + $0x60] sm:$0xff]
    %v40 = vld [vmem:[%s1 + $0x68] sm:$0xff]
    %v41 = vld [vmem:[%s1 + $0x70] sm:$0xff]
    %v42 = vld [vmem:[%s1 + $0x78] sm:$0xff]
    %v43 = vld [vmem:[%s1 + $0x80] sm:$0xff]
    %v44 = vld [vmem:[%s1 + $0x88] sm:$0xff]
    %v45 = vld [vmem:[%s1 + $0x90] sm:$0xff]
    %v46 = vld [vmem:[%s1 + $0x98] sm:$0xff]
    %v47 = vld [vmem:[%s1 + $0xa0] sm:$0xff]
    %v48 = vld [vmem:[%s1 + $0xa8] sm:$0xff]
    %v49 = vld [vmem:[%s1 + $0xb0] sm:$0xff]
    %v50 = vld [vmem:[%s1 + $0xb8] sm:$0xff]
    %v51 = vld [vmem:[%s1 + $0xc0] sm:$0xff]
    %v52 = vld [vmem:[%s1 + $0xc8] sm:$0xff]
    %v53 = vld [vmem:[%s1 + $0xd0] sm:$0xff]
    %v54 = vld [vmem:[%s1 + $0xd8] sm:$0xff]
    %v55 = vld [vmem:[%s1 + $0xe0] sm:$0xff]
    %v56 = vld [vmem:[%s1 + $0xe8] sm:$0xff]
    %v57 = vld [vmem:[%s1 + $0xf0] sm:$0xff]
    %v58 = vld [vmem:[%s1 + $0xf8] sm:$0xff]
    %v59 = vld [vmem:[%s1 + $0x100] sm:$0xff]
    %v60 = vld [vmem:[%s1 + $0x108] sm:$0xff]
    %v61 = vld [vmem:[%s1 + $0x110] sm:$0xff]
    %v62 = vld [vmem:[%s1 + $0x118] sm:$0xff]
    %v63 = vld [vmem:[%s1 + $0x120] sm:$0xff]
    %v64 = vld [vmem:[%s1 + $0x128] sm:$0xff]
    %v65 = vld [vmem:[%s1 + $0x130] sm:$0xff]
    %v66 = vld [vmem:[%s1 + $0x138] sm:$0xff]
    %v67 = vld [vmem:[%s1 + $0x140] sm:$0xff]
    %v68 = vld [vmem:[%s1 + $0x148] sm:$0xff]
    %v69 = vld [vmem:[%s1 + $0x150] sm:$0xff]
    %v70 = vld [vmem:[%s1 + $0x158] sm:$0xff]
    %v71 = vld [vmem:[%s1 + $0x160] sm:$0xff]
    %v72 = vld [vmem:[%s1 + $0x168] sm:$0xff]
    %v73 = vld [vmem:[%s1 + $0x170] sm:$0xff]
    %v74 = vld [vmem:[%s1 + $0x178] sm:$0xff]
    %v75 = vld [vmem:[%s1 + $0x180] sm:$0xff]
    %v76 = vld [vmem:[%s1 + $0x188] sm:$0xff]
    %v77 = vld [vmem:[%s1 + $0x190] sm:$0xff]
    %v78 = vld [vmem:[%s1 + $0x198] sm:$0xff]
    %v79 = vld [vmem:[%s1 + $0x1a0] sm:$0xff]
    %v80 = vld [vmem:[%s1 + $0x1a8] sm:$0xff]
    %v81 = vld [vmem:[%s1 + $0x1b0] sm:$0xff]
    %v82 = vld [vmem:[%s1 + $0x1b8] sm:$0xff]
    %v83 = vld [vmem:[%s1 + $0x1c0] sm:$0xff]
    %v84 = vld [vmem:[%s1 + $0x1c8] sm:$0xff]
    %v85 = vld [vmem:[%s1 + $0x1d0] sm:$0xff]
    %v86 = vld [vmem:[%s1 + $0x1d8] sm:$0xff]
    %v87 = vld [vmem:[%s1 + $0x1e0] sm:$0xff]
    %v88 = vld [vmem:[%s1 + $0x1e8] sm:$0xff]
    %v89 = vld [vmem:[%s1 + $0x1f0] sm:$0xff]
    %v90 = vld [vmem:[%s1 + $0x1f8] sm:$0xff]
    %v91 = vld [vmem:[%s1 + $0x200] sm:$0xff]
    %v92 = vld [vmem:[%s1 + $0x208] sm:$0xff]
    %v93 = vld [vmem:[%s1 + $0x210] sm:$0xff]
    %v94 = vld [vmem:[%s1 + $0x218] sm:$0xff]
    %v95 = vld [vmem:[%s1 + $0x220] sm:$0xff]
    %v96 = vld [vmem:[%s1 + $0x228] sm:$0xff]
    %v97 = vld [vmem:[%s1 + $0x230] sm:$0xff]
    %v98 = vld [vmem:[%s1 + $0x238] sm:$0xff]
    %v99 = vld [vmem:[%s1 + $0x240] sm:$0xff]
    %v100 = vld [vmem:[%s1 + $0x248] sm:$0xff]
    %v101 = vld [vmem:[%s1 + $0x250] sm:$0xff]
    %v102 = vld [vmem:[%s1 + $0x258] sm:$0xff]
    %v103 = vld [vmem:[%s1 + $0x260] sm:$0xff]
    %v104 = vld [vmem:[%s1 + $0x268] sm:$0xff]
    %v105 = vld [vmem:[%s1 + $0x270] sm:$0xff]
    %v106 = vld [vmem:[%s1 + $0x278] sm:$0xff]
    %v107 = vld [vmem:[%s1 + $0x280] sm:$0xff]
    %v108 = vld [vmem:[%s1 + $0x288] sm:$0xff]
    %v109 = vld [vmem:[%s1 + $0x290] sm:$0xff]
    %v110 = vld [vmem:[%s1 + $0x298] sm:$0xff]
    %v111 = vld [vmem:[%s1 + $0x2a0] sm:$0xff]
    %v112 = vld [vmem:[%s1 + $0x2a8] sm:$0xff]
    %v113 = vld [vmem:[%s1 + $0x2b0] sm:$0xff]
    %v114 = vld [vmem:[%s1 + $0x2b8] sm:$0xff]
    %v115 = vld [vmem:[%s1 + $0x2c0] sm:$0xff]
    %v116 = vld [vmem:[%s1 + $0x2c8] sm:$0xff]
    %v117 = vld [vmem:[%s1 + $0x2d0] sm:$0xff]
    %v118 = vld [vmem:[%s1 + $0x2d8] sm:$0xff]
    %v119 = vld [vmem:[%s1 + $0x2e0] sm:$0xff]
    %v120 = vld [vmem:[%s1 + $0x2e8] sm:$0xff]
    %v121 = vld [vmem:[%s1 + $0x2f0] sm:$0xff]
    %v122 = vld [vmem:[%s1 + $0x2f8] sm:$0xff]
    %v123 = vld [vmem:[%s1 + $0x300] sm:$0xff]
    %v124 = vld [vmem:[%s1 + $0x308] sm:$0xff]
    %v125 = vld [vmem:[%s1 + $0x310] sm:$0xff]
    %v126 = vld [vmem:[%s1 + $0x318] sm:$0xff]
    %v127 = vld [vmem:[%s1 + $0x320] sm:$0xff]
    %v128 = vld [vmem:[%s1 + $0x328] sm:$0xff]
    %v129 = vld [vmem:[%s1 + $0x330] sm:$0xff]
    %v130 = vld [vmem:[%s1 + $0x338] sm:$0xff]
    %v131 = vld [vmem:[%s1 + $0x340] sm:$0xff]
    %v132 = vld [vmem:[%s1 + $0x348] sm:$0xff]
    %v133 = vld [vmem:[%s1 + $0x350] sm:$0xff]
    %v134 = vld [vmem:[%s1 + $0x358] sm:$0xff]
    %v135 = vld [vmem:[%s1 + $0x360] sm:$0xff]
    %v136 = vld [vmem:[%s1 + $0x368] sm:$0xff]
    %v137 = vld [vmem:[%s1 + $0x370] sm:$0xff]
    %v138 = vld [vmem:[%s1 + $0x378] sm:$0xff]
    %v139 = vld [vmem:[%s1 + $0x380] sm:$0xff]
    %v140 = vld [vmem:[%s1 + $0x388] sm:$0xff]
    %v141 = vld [vmem:[%s1 + $0x390] sm:$0xff]
    %v142 = vld [vmem:[%s1 + $0x398] sm:$0xff]
    %v143 = vld [vmem:[%s1 + $0x3a0] sm:$0xff]
    %v144 = vld [vmem:[%s1 + $0x3a8] sm:$0xff]
    %v145 = vld [vmem:[%s1 + $0x3b0] sm:$0xff]
    %v146 = vld [vmem:[%s1 + $0x3b8] sm:$0xff]
    %v147 = vld [vmem:[%s1 + $0x3c0] sm:$0xff]
    %v148 = vld [vmem:[%s1 + $0x3c8] sm:$0xff]
    %v149 = vld [vmem:[%s1 + $0x3d0] sm:$0xff]
    %v150 = vld [vmem:[%s1 + $0x3d8] sm:$0xff]
    %v151 = vld [vmem:[%s1 + $0x3e0] sm:$0xff]
    %v152 = vld [vmem:[%s1 + $0x3e8] sm:$0xff]
    %v153 = vld [vmem:[%s1 + $0x3f0] sm:$0xff]
    %v154 = vld [vmem:[%s1 + $0x3f8] sm:$0xff]
    %v155 = vld [vmem:[%s1 + $0x400] sm:$0xff]
    %v156 = vld [vmem:[%s1 + $0x408] sm:$0xff]
    %v157 = vld [vmem:[%s1 + $0x410] sm:$0xff]
    %v158 = vld [vmem:[%s1 + $0x418] sm:$0xff]
    %v159 = vld [vmem:[%s1 + $0x420] sm:$0xff]
    %v160 = vld [vmem:[%s1 + $0x428] sm:$0xff]
    %v161 = vld [vmem:[%s1 + $0x430] sm:$0xff]
    %v162 = vld [vmem:[%s1 + $0x438] sm:$0xff]
    %v163 = vld [vmem:[%s1 + $0x440] sm:$0xff]
    %v164 = vld [vmem:[%s1 + $0x448] sm:$0xff]
    %v165 = vld [vmem:[%s1 + $0x450] sm:$0xff]
    %v166 = vld [vmem:[%s1 + $0x458] sm:$0xff]
    %v167 = vld [vmem:[%s1 + $0x460] sm:$0xff]
    %v168 = vld [vmem:[%s1 + $0x468] sm:$0xff]
    %v169 = vld [vmem:[%s1 + $0x470] sm:$0xff]
    %v170 = vld [vmem:[%s1 + $0x478] sm:$0xff]
    %v171 = vld [vmem:[%s1 + $0x480] sm:$0xff]
    %v172 = vld [vmem:[%s1 + $0x488] sm:$0xff]
    %v173 = vld [vmem:[%s1 + $0x490] sm:$0xff]
    %v174 = vld [vmem:[%s1 + $0x498] sm:$0xff]
    %v175 = vld [vmem:[%s1 + $0x4a0] sm:$0xff]
    %v176 = vld [vmem:[%s1 + $0x4a8] sm:$0xff]
    %v177 = vld [vmem:[%s1 + $0x4b0] sm:$0xff]
    %v178 = vld [vmem:[%s1 + $0x4b8] sm:$0xff]
    %v179 = vld [vmem:[%s1 + $0x4c0] sm:$0xff]
    %v180 = vld [vmem:[%s1 + $0x4c8] sm:$0xff]
    %v181 = vld [vmem:[%s1 + $0x4d0] sm:$0xff]
    %v182 = vld [vmem:[%s1 + $0x4d8] sm:$0xff]
    %v183 = vld [vmem:[%s1 + $0x4e0] sm:$0xff]
    %v184 = vld [vmem:[%s1 + $0x4e8] sm:$0xff]
    %v185 = vld [vmem:[%s1 + $0x4f0] sm:$0xff]
    %v186 = vld [vmem:[%s1 + $0x4f8] sm:$0xff]
    %v187 = vld [vmem:[%s1 + $0x500] sm:$0xff]
    %v188 = vld [vmem:[%s1 + $0x508] sm:$0xff]
    %v189 = vld [vmem:[%s1 + $0x510] sm:$0xff]
    %v190 = vld [vmem:[%s1 + $0x518] sm:$0xff]
    %v191 = vld [vmem:[%s1 + $0x520] sm:$0xff]
    %v192 = vld [vmem:[%s1 + $0x528] sm:$0xff]
    %v193 = vld [vmem:[%s1 + $0x530] sm:$0xff]
    %v194 = vld [vmem:[%s1 + $0x538] sm:$0xff]
    %v195 = vld [vmem:[%s1 + $0x540] sm:$0xff]
    %v196 = vld [vmem:[%s1 + $0x548] sm:$0xff]
    %v197 = vld [vmem:[%s1 + $0x550] sm:$0xff]
    %v198 = vld [vmem:[%s1 + $0x558] sm:$0xff]
    %v199 = vld [vmem:[%s1 + $0x560] sm:$0xff]
    %v200 = vld [vmem:[%s1 + $0x568] sm:$0xff]
    %v201 = vld [vmem:[%s1 + $0x570] sm:$0xff]
    %v202 = vld [vmem:[%s1 + $0x578] sm:$0xff]
    %v203 = vld [vmem:[%s1 + $0x580] sm:$0xff]
    %v204 = vld [vmem:[%s1 + $0x588] sm:$0xff]
    %v205 = vld [vmem:[%s1 + $0x590] sm:$0xff]
    %v206 = vld [vmem:[%s1 + $0x598] sm:$0xff]
    %v207 = vld [vmem:[%s1 + $0x5a0] sm:$0xff]
    %v208 = vld [vmem:[%s1 + $0x5a8] sm:$0xff]
    %v209 = vld [vmem:[%s1 + $0x5b0] sm:$0xff]
    %v210 = vld [vmem:[%s1 + $0x5b8] sm:$0xff]
    %v211 = vld [vmem:[%s1 + $0x5c0] sm:$0xff]
    %v212 = vld [vmem:[%s1 + $0x5c8] sm:$0xff]
    %v213 = vld [vmem:[%s1 + $0x5d0] sm:$0xff]
    %v214 = vld [vmem:[%s1 + $0x5d8] sm:$0xff]
    %v215 = vld [vmem:[%s1 + $0x5e0] sm:$0xff]
    %v216 = vld [vmem:[%s1 + $0x5e8] sm:$0xff]
    %v217 = vld [vmem:[%s1 + $0x5f0] sm:$0xff]
    %v218 = vld [vmem:[%s1 + $0x5f8] sm:$0xff]
    %v219 = vld [vmem:[%s1 + $0x600] sm:$0xff]
    %v220 = vld [vmem:[%s1 + $0x608] sm:$0xff]
    %v221 = vld [vmem:[%s1 + $0x610] sm:$0xff]
    %v222 = vld [vmem:[%s1 + $0x618] sm:$0xff]
    %v223 = vld [vmem:[%s1 + $0x620] sm:$0xff]
    %v224 = vld [vmem:[%s1 + $0x628] sm:$0xff]
    %v225 = vld [vmem:[%s1 + $0x630] sm:$0xff]
    %v226 = vld [vmem:[%s1 + $0x638] sm:$0xff]
    %v227 = vld [vmem:[%s1 + $0x640] sm:$0xff]
    %v228 = vld [vmem:[%s1 + $0x648] sm:$0xff]
    %v229 = vld [vmem:[%s1 + $0x650] sm:$0xff]
    %v230 = vld [vmem:[%s1 + $0x658] sm:$0xff]
    %v231 = vld [vmem:[%s1 + $0x660] sm:$0xff]
    %v232 = vld [vmem:[%s1 + $0x668] sm:$0xff]
    %v233 = vld [vmem:[%s1 + $0x670] sm:$0xff]
    %v234 = vld [vmem:[%s1 + $0x678] sm:$0xff]
    %v235 = vld [vmem:[%s1 + $0x680] sm:$0xff]
    %v236 = vld [vmem:[%s1 + $0x688] sm:$0xff]
    %v237 = vld [vmem:[%s1 + $0x690] sm:$0xff]
    %v238 = vld [vmem:[%s1 + $0x698] sm:$0xff]
    %v239 = vld [vmem:[%s1 + $0x6a0] sm:$0xff]
    %v240 = vld [vmem:[%s1 + $0x6a8] sm:$0xff]
    %v241 = vld [vmem:[%s1 + $0x6b0] sm:$0xff]
    %v242 = vld [vmem:[%s1 + $0x6b8] sm:$0xff]
    %v243 = vld [vmem:[%s1 + $0x6c0] sm:$0xff]
    %v244 = vld [vmem:[%s1 + $0x6c8] sm:$0xff]
    %v245 = vld [vmem:[%s1 + $0x6d0] sm:$0xff]
    %v246 = vld [vmem:[%s1 + $0x6d8] sm:$0xff]
    %v247 = vld [vmem:[%s1 + $0x6e0] sm:$0xff]
    %v248 = vld [vmem:[%s1 + $0x6e8] sm:$0xff]
    %v249 = vld [vmem:[%s1 + $0x6f0] sm:$0xff]
    %v250 = vld [vmem:[%s1 + $0x6f8] sm:$0xff]
    %v251 = vld [vmem:[%s1 + $0x700] sm:$0xff]
    %v252 = vld [vmem:[%s1 + $0x708] sm:$0xff]
    %v253 = vld [vmem:[%s1 + $0x710] sm:$0xff]
    %v254 = vld [vmem:[%s1 + $0x718] sm:$0xff]
    %v255 = vld [vmem:[%s1 + $0x720] sm:$0xff]
    %v256 = vld [vmem:[%s1 + $0x728] sm:$0xff]
    %v257 = vld [vmem:[%s1 + $0x730] sm:$0xff]
    %v258 = vld [vmem:[%s1 + $0x738] sm:$0xff]
    %v259 = vld [vmem:[%s1 + $0x740] sm:$0xff]
    %v260 = vld [vmem:[%s1 + $0x748] sm:$0xff]
    %v261 = vld [vmem:[%s1 + $0x750] sm:$0xff]
    %v262 = vld [vmem:[%s1 + $0x758] sm:$0xff]
    %v263 = vld [vmem:[%s1 + $0x760] sm:$0xff]
    %v264 = vld [vmem:[%s1 + $0x768] sm:$0xff]
    %v265 = vld [vmem:[%s1 + $0x770] sm:$0xff]
    %v266 = vld [vmem:[%s1 + $0x778] sm:$0xff]
    %v267 = vld [vmem:[%s1 + $0x780] sm:$0xff]
    %v268 = vld [vmem:[%s1 + $0x788] sm:$0xff]
    %v269 = vld [vmem:[%s1 + $0x790] sm:$0xff]
    %v270 = vld [vmem:[%s1 + $0x798] sm:$0xff]
    %v271 = vld [vmem:[%s1 + $0x7a0] sm:$0xff]
    %v272 = vld [vmem:[%s1 + $0x7a8] sm:$0xff]
    %v273 = vld [vmem:[%s1 + $0x7b0] sm:$0xff]
    %v274 = vld [vmem:[%s1 + $0x7b8] sm:$0xff]
    %v275 = vld [vmem:[%s1 + $0x7c0] sm:$0xff]
    %v276 = vld [vmem:[%s1 + $0x7c8] sm:$0xff]
    %v277 = vld [vmem:[%s1 + $0x7d0] sm:$0xff]
    %v278 = vld [vmem:[%s1 + $0x7d8] sm:$0xff]
    %v279 = vld [vmem:[%s1 + $0x7e0] sm:$0xff]
    %v280 = vld [vmem:[%s1 + $0x7e8] sm:$0xff]
    %v281 = vld [vmem:[%s1 + $0x7f0] sm:$0xff]
    %v282 = vld [vmem:[%s1 + $0x7f8] sm:$0xff]
    %v283 = vld [vmem:[%s1 + $0x800] sm:$0xff]
    %v284 = vld [vmem:[%s1 + $0x808] sm:$0xff]
    %v285 = vld [vmem:[%s1 + $0x810] sm:$0xff]
    %v286 = vld [vmem:[%s1 + $0x818] sm:$0xff]
    %v287 = vld [vmem:[%s1 + $0x820] sm:$0xff]
    %v288 = vld [vmem:[%s1 + $0x828] sm:$0xff]
    %v289 = vld [vmem:[%s1 + $0x830] sm:$0xff]
    %v290 = vld [vmem:[%s1 + $0x838] sm:$0xff]
    %v291 = vld [vmem:[%s1 + $0x840] sm:$0xff]
    %v292 = vld [vmem:[%s1 + $0x848] sm:$0xff]
    %v293 = vld [vmem:[%s1 + $0x850] sm:$0xff]
    %v294 = vld [vmem:[%s1 + $0x858] sm:$0xff]
    %v295 = vld [vmem:[%s1 + $0x860] sm:$0xff]
    %v296 = vld [vmem:[%s1 + $0x868] sm:$0xff]
    %v297 = vld [vmem:[%s1 + $0x870] sm:$0xff]
    %v298 = vld [vmem:[%s1 + $0x878] sm:$0xff]
    %v299 = vld [vmem:[%s1 + $0x880] sm:$0xff]
    %v300 = vld [vmem:[%s1 + $0x888] sm:$0xff]
    %v301 = vld [vmem:[%s1 + $0x890] sm:$0xff]
    %v302 = vld [vmem:[%s1 + $0x898] sm:$0xff]
    %v303 = vld [vmem:[%s1 + $0x8a0] sm:$0xff]
    %v304 = vld [vmem:[%s1 + $0x8a8] sm:$0xff]
    %v305 = vld [vmem:[%s1 + $0x8b0] sm:$0xff]
    %v306 = vld [vmem:[%s1 + $0x8b8] sm:$0xff]
    %v307 = vld [vmem:[%s1 + $0x8c0] sm:$0xff]
    %v308 = vld [vmem:[%s1 + $0x8c8] sm:$0xff]
    %v309 = vld [vmem:[%s1 + $0x8d0] sm:$0xff]
    %v310 = vld [vmem:[%s1 + $0x8d8] sm:$0xff]
    %v311 = vld [vmem:[%s1 + $0x8e0] sm:$0xff]
    %v312 = vld [vmem:[%s1 + $0x8e8] sm:$0xff]
    %v313 = vld [vmem:[%s1 + $0x8f0] sm:$0xff]
    %v314 = vld [vmem:[%s1 + $0x8f8] sm:$0xff]
    %v315 = vld [vmem:[%s1 + $0x900] sm:$0xff]
    %v316 = vld [vmem:[%s1 + $0x908] sm:$0xff]
    %v317 = vld [vmem:[%s1 + $0x910] sm:$0xff]
    %v318 = vld [vmem:[%s1 + $0x918] sm:$0xff]
    %v319 = vld [vmem:[%s1 + $0x920] sm:$0xff]
    %v320 = vld [vmem:[%s1 + $0x928] sm:$0xff]
    %v321 = vld [vmem:[%s1 + $0x930] sm:$0xff]
    %v322 = vld [vmem:[%s1 + $0x938] sm:$0xff]
    %v323 = vld [vmem:[%s1 + $0x940] sm:$0xff]
    %v324 = vld [vmem:[%s1 + $0x948] sm:$0xff]
    %v325 = vld [vmem:[%s1 + $0x950] sm:$0xff]
    %v326 = vld [vmem:[%s1 + $0x958] sm:$0xff]
    %v327 = vld [vmem:[%s1 + $0x960] sm:$0xff]
    %v328 = vld [vmem:[%s1 + $0x968] sm:$0xff]
    %v329 = vld [vmem:[%s1 + $0x970] sm:$0xff]
    %v330 = vld [vmem:[%s1 + $0x978] sm:$0xff]
    %v331 = vld [vmem:[%s1 + $0x980] sm:$0xff]
    %v332 = vld [vmem:[%s1 + $0x988] sm:$0xff]
    %v333 = vld [vmem:[%s1 + $0x990] sm:$0xff]
    %v334 = vld [vmem:[%s1 + $0x998] sm:$0xff]
    %v335 = vld [vmem:[%s1 + $0x9a0] sm:$0xff]
    %v336 = vld [vmem:[%s1 + $0x9a8] sm:$0xff]
    %v337 = vld [vmem:[%s1 + $0x9b0] sm:$0xff]
    %v338 = vld [vmem:[%s1 + $0x9b8] sm:$0xff]
    %v339 = vld [vmem:[%s1 + $0x9c0] sm:$0xff]
    %v340 = vld [vmem:[%s1 + $0x9c8] sm:$0xff]
    %v341 = vld [vmem:[%s1 + $0x9d0] sm:$0xff]
    %v342 = vld [vmem:[%s1 + $0x9d8] sm:$0xff]
    %v343 = vld [vmem:[%s1 + $0x9e0] sm:$0xff]
    %v344 = vld [vmem:[%s1 + $0x9e8] sm:$0xff]
    %v345 = vld [vmem:[%s1 + $0x9f0] sm:$0xff]
    %v346 = vld [vmem:[%s1 + $0x9f8] sm:$0xff]
    %v347 = vld [vmem:[%s1 + $0xa00] sm:$0xff]
    %v348 = vld [vmem:[%s1 + $0xa08] sm:$0xff]
    %v349 = vld [vmem:[%s1 + $0xa10] sm:$0xff]
    %v350 = vld [vmem:[%s1 + $0xa18] sm:$0xff]
    %v351 = vld [vmem:[%s1 + $0xa20] sm:$0xff]
    %v352 = vld [vmem:[%s1 + $0xa28] sm:$0xff]
    %v353 = vld [vmem:[%s1 + $0xa30] sm:$0xff]
    %v354 = vld [vmem:[%s1 + $0xa38] sm:$0xff]
    %v355 = vld [vmem:[%s1 + $0xa40] sm:$0xff]
    %v356 = vld [vmem:[%s1 + $0xa48] sm:$0xff]
    %v357 = vld [vmem:[%s1 + $0xa50] sm:$0xff]
    %v358 = vld [vmem:[%s1 + $0xa58] sm:$0xff]
    %v359 = vld [vmem:[%s1 + $0xa60] sm:$0xff]
    %v360 = vld [vmem:[%s1 + $0xa68] sm:$0xff]
    %v361 = vld [vmem:[%s1 + $0xa70] sm:$0xff]
    %v362 = vld [vmem:[%s1 + $0xa78] sm:$0xff]
    %v363 = vld [vmem:[%s1 + $0xa80] sm:$0xff]
    %v364 = vld [vmem:[%s1 + $0xa88] sm:$0xff]
    %v365 = vld [vmem:[%s1 + $0xa90] sm:$0xff]
    %v366 = vld [vmem:[%s1 + $0xa98] sm:$0xff]
    %v367 = vld [vmem:[%s1 + $0xaa0] sm:$0xff]
    %v368 = vld [vmem:[%s1 + $0xaa8] sm:$0xff]
    %v369 = vld [vmem:[%s1 + $0xab0] sm:$0xff]
    %v370 = vld [vmem:[%s1 + $0xab8] sm:$0xff]
    %v371 = vld [vmem:[%s1 + $0xac0] sm:$0xff]
    %v372 = vld [vmem:[%s1 + $0xac8] sm:$0xff]
    %v373 = vld [vmem:[%s1 + $0xad0] sm:$0xff]
    %v374 = vld [vmem:[%s1 + $0xad8] sm:$0xff]
    %v375 = vld [vmem:[%s1 + $0xae0] sm:$0xff]
    %v376 = vld [vmem:[%s1 + $0xae8] sm:$0xff]
    %v377 = vld [vmem:[%s1 + $0xaf0] sm:$0xff]
    %v378 = vld [vmem:[%s1 + $0xaf8] sm:$0xff]
    %v379 = vld [vmem:[%s1 + $0xb00] sm:$0xff]
    %v380 = vld [vmem:[%s1 + $0xb08] sm:$0xff]
    %v381 = vld [vmem:[%s1 + $0xb10] sm:$0xff]
    %v382 = vld [vmem:[%s1 + $0xb18] sm:$0xff]
    %v383 = vld [vmem:[%s1 + $0xb20] sm:$0xff]
    %v384 = vld [vmem:[%s1 + $0xb28] sm:$0xff]
    %v385 = vld [vmem:[%s1 + $0xb30] sm:$0xff]
    %v386 = vld [vmem:[%s1 + $0xb38] sm:$0xff]
    %v387 = vld [vmem:[%s1 + $0xb40] sm:$0xff]
    %v388 = vld [vmem:[%s1 + $0xb48] sm:$0xff]
    %v389 = vld [vmem:[%s1 + $0xb50] sm:$0xff]
    %v390 = vld [vmem:[%s1 + $0xb58] sm:$0xff]
    %v391 = vld [vmem:[%s1 + $0xb60] sm:$0xff]
    %v392 = vld [vmem:[%s1 + $0xb68] sm:$0xff]
    %v393 = vld [vmem:[%s1 + $0xb70] sm:$0xff]
    %v394 = vld [vmem:[%s1 + $0xb78] sm:$0xff]
    %v395 = vld [vmem:[%s1 + $0xb80] sm:$0xff]
    %v396 = vld [vmem:[%s1 + $0xb88] sm:$0xff]
    %v397 = vld [vmem:[%s1 + $0xb90] sm:$0xff]
    %v398 = vld [vmem:[%s1 + $0xb98] sm:$0xff]
    %v399 = vld [vmem:[%s1 + $0xba0] sm:$0xff]
    %v400 = vld [vmem:[%s1 + $0xba8] sm:$0xff]
    %v401 = vld [vmem:[%s1 + $0xbb0] sm:$0xff]
    %v402 = vld [vmem:[%s1 + $0xbb8] sm:$0xff]
    %v403 = vld [vmem:[%s1 + $0xbc0] sm:$0xff]
    %v404 = vld [vmem:[%s1 + $0xbc8] sm:$0xff]
    %v405 = vld [vmem:[%s1 + $0xbd0] sm:$0xff]
    %v406 = vld [vmem:[%s1 + $0xbd8] sm:$0xff]
    %v407 = vld [vmem:[%s1 + $0xbe0] sm:$0xff]
    %v408 = vld [vmem:[%s1 + $0xbe8] sm:$0xff]
    %v409 = vld [vmem:[%s1 + $0xbf0] sm:$0xff]
    %v410 = vld [vmem:[%s1 + $0xbf8] sm:$0xff]
    %v411 = vld [vmem:[%s1 + $0xc00] sm:$0xff]
    %v412 = vld [vmem:[%s1 + $0xc08] sm:$0xff]
    %v413 = vld [vmem:[%s1 + $0xc10] sm:$0xff]
    %v414 = vld [vmem:[%s1 + $0xc18] sm:$0xff]
    %v415 = vld [vmem:[%s1 + $0xc20] sm:$0xff]
    %v416 = vld [vmem:[%s1 + $0xc28] sm:$0xff]
    %v417 = vld [vmem:[%s1 + $0xc30] sm:$0xff]
    %v418 = vld [vmem:[%s1 + $0xc38] sm:$0xff]
    %v419 = vld [vmem:[%s1 + $0xc40] sm:$0xff]
    %v420 = vld [vmem:[%s1 + $0xc48] sm:$0xff]
    %v421 = vld [vmem:[%s1 + $0xc50] sm:$0xff]
    %v422 = vld [vmem:[%s1 + $0xc58] sm:$0xff]
    %v423 = vld [vmem:[%s1 + $0xc60] sm:$0xff]
    %v424 = vld [vmem:[%s1 + $0xc68] sm:$0xff]
    %v425 = vld [vmem:[%s1 + $0xc70] sm:$0xff]
    %v426 = vld [vmem:[%s1 + $0xc78] sm:$0xff]
    %v427 = vld [vmem:[%s1 + $0xc80] sm:$0xff]
    %v428 = vld [vmem:[%s1 + $0xc88] sm:$0xff]
    %v429 = vld [vmem:[%s1 + $0xc90] sm:$0xff]
    %v430 = vld [vmem:[%s1 + $0xc98] sm:$0xff]
    %v431 = vld [vmem:[%s1 + $0xca0] sm:$0xff]
    %v432 = vld [vmem:[%s1 + $0xca8] sm:$0xff]
    %v433 = vld [vmem:[%s1 + $0xcb0] sm:$0xff]
    %v434 = vld [vmem:[%s1 + $0xcb8] sm:$0xff]
    %v435 = vld [vmem:[%s1 + $0xcc0] sm:$0xff]
    %v436 = vld [vmem:[%s1 + $0xcc8] sm:$0xff]
    %v437 = vld [vmem:[%s1 + $0xcd0] sm:$0xff]
    %v438 = vld [vmem:[%s1 + $0xcd8] sm:$0xff]
    %v439 = vld [vmem:[%s1 + $0xce0] sm:$0xff]
    %v440 = vld [vmem:[%s1 + $0xce8] sm:$0xff]
    %v441 = vld [vmem:[%s1 + $0xcf0] sm:$0xff]
    %v442 = vld [vmem:[%s1 + $0xcf8] sm:$0xff]
    %v443 = vld [vmem:[%s1 + $0xd00] sm:$0xff]
    %v444 = vld [vmem:[%s1 + $0xd08] sm:$0xff]
    %v445 = vld [vmem:[%s1 + $0xd10] sm:$0xff]
    %v446 = vld [vmem:[%s1 + $0xd18] sm:$0xff]
    %v447 = vld [vmem:[%s1 + $0xd20] sm:$0xff]
    %v448 = vld [vmem:[%s1 + $0xd28] sm:$0xff]
    %v449 = vld [vmem:[%s1 + $0xd30] sm:$0xff]
    %v450 = vld [vmem:[%s1 + $0xd38] sm:$0xff]
    %v451 = vld [vmem:[%s1 + $0xd40] sm:$0xff]
    %v452 = vld [vmem:[%s1 + $0xd48] sm:$0xff]
    %v453 = vld [vmem:[%s1 + $0xd50] sm:$0xff]
    %v454 = vld [vmem:[%s1 + $0xd58] sm:$0xff]
    %v455 = vld [vmem:[%s1 + $0xd60] sm:$0xff]
    %v456 = vld [vmem:[%s1 + $0xd68] sm:$0xff]
    %v457 = vld [vmem:[%s1 + $0xd70] sm:$0xff]
    %v458 = vld [vmem:[%s1 + $0xd78] sm:$0xff]
    %v459 = vld [vmem:[%s1 + $0xd80] sm:$0xff]
    %v460 = vld [vmem:[%s1 + $0xd88] sm:$0xff]
    %v461 = vld [vmem:[%s1 + $0xd90] sm:$0xff]
    %v462 = vld [vmem:[%s1 + $0xd98] sm:$0xff]
    %v463 = vld [vmem:[%s1 + $0xda0] sm:$0xff]
    %v464 = vld [vmem:[%s1 + $0xda8] sm:$0xff]
    %v465 = vld [vmem:[%s1 + $0xdb0] sm:$0xff]
    %v466 = vld [vmem:[%s1 + $0xdb8] sm:$0xff]
    %v467 = vld [vmem:[%s1 + $0xdc0] sm:$0xff]
    %v468 = vld [vmem:[%s1 + $0xdc8] sm:$0xff]
    %v469 = vld [vmem:[%s1 + $0xdd0] sm:$0xff]
    %v470 = vld [vmem:[%s1 + $0xdd8] sm:$0xff]
    %v471 = vld [vmem:[%s1 + $0xde0] sm:$0xff]
    %v472 = vld [vmem:[%s1 + $0xde8] sm:$0xff]
    %v473 = vld [vmem:[%s1 + $0xdf0] sm:$0xff]
    %v474 = vld [vmem:[%s1 + $0xdf8] sm:$0xff]
    %v475 = vld [vmem:[%s1 + $0xe00] sm:$0xff]
    %v476 = vld [vmem:[%s1 + $0xe08] sm:$0xff]
    %v477 = vld [vmem:[%s1 + $0xe10] sm:$0xff]
    %v478 = vld [vmem:[%s1 + $0xe18] sm:$0xff]
    %v479 = vld [vmem:[%s1 + $0xe20] sm:$0xff]
    %v480 = vld [vmem:[%s1 + $0xe28] sm:$0xff]
    %v481 = vld [vmem:[%s1 + $0xe30] sm:$0xff]
    %v482 = vld [vmem:[%s1 + $0xe38] sm:$0xff]
    %v483 = vld [vmem:[%s1 + $0xe40] sm:$0xff]
    %v484 = vld [vmem:[%s1 + $0xe48] sm:$0xff]
    %v485 = vld [vmem:[%s1 + $0xe50] sm:$0xff]
    %v486 = vld [vmem:[%s1 + $0xe58] sm:$0xff]
    %v487 = vld [vmem:[%s1 + $0xe60] sm:$0xff]
    %v488 = vld [vmem:[%s1 + $0xe68] sm:$0xff]
    %v489 = vld [vmem:[%s1 + $0xe70] sm:$0xff]
    %v490 = vld [vmem:[%s1 + $0xe78] sm:$0xff]
    %v491 = vld [vmem:[%s1 + $0xe80] sm:$0xff]
    %v492 = vld [vmem:[%s1 + $0xe88] sm:$0xff]
    %v493 = vld [vmem:[%s1 + $0xe90] sm:$0xff]
    %v494 = vld [vmem:[%s1 + $0xe98] sm:$0xff]
    %v495 = vld [vmem:[%s1 + $0xea0] sm:$0xff]
    %v496 = vld [vmem:[%s1 + $0xea8] sm:$0xff]
    %v497 = vld [vmem:[%s1 + $0xeb0] sm:$0xff]
    %v498 = vld [vmem:[%s1 + $0xeb8] sm:$0xff]
    %v499 = vld [vmem:[%s1 + $0xec0] sm:$0xff]
    %v500 = vld [vmem:[%s1 + $0xec8] sm:$0xff]
    %v501 = vld [vmem:[%s1 + $0xed0] sm:$0xff]
    %v502 = vld [vmem:[%s1 + $0xed8] sm:$0xff]
    %v503 = vld [vmem:[%s1 + $0xee0] sm:$0xff]
    %v504 = vld [vmem:[%s1 + $0xee8] sm:$0xff]
    %v505 = vld [vmem:[%s1 + $0xef0] sm:$0xff]
    %v506 = vld [vmem:[%s1 + $0xef8] sm:$0xff]
    %v507 = vld [vmem:[%s1 + $0xf00] sm:$0xff]
    %v508 = vld [vmem:[%s1 + $0xf08] sm:$0xff]
    %v509 = vld [vmem:[%s1 + $0xf10] sm:$0xff]
    %v510 = vld [vmem:[%s1 + $0xf18] sm:$0xff]
    %v511 = vld [vmem:[%s1 + $0xf20] sm:$0xff]
    %v512 = vld [vmem:[%s1 + $0xf28] sm:$0xff]
    %v513 = vld [vmem:[%s1 + $0xf30] sm:$0xff]
    %v514 = vld [vmem:[%s1 + $0xf38] sm:$0xff]
    %v515 = vld [vmem:[%s1 + $0xf40] sm:$0xff]
    %v516 = vld [vmem:[%s1 + $0xf48] sm:$0xff]
    %v517 = vld [vmem:[%s1 + $0xf50] sm:$0xff]
    %v518 = vld [vmem:[%s1 + $0xf58] sm:$0xff]
    %v519 = vld [vmem:[%s1 + $0xf60] sm:$0xff]
    %v520 = vld [vmem:[%s1 + $0xf68] sm:$0xff]
    %v521 = vld [vmem:[%s1 + $0xf70] sm:$0xff]
    %v522 = vld [vmem:[%s1 + $0xf78] sm:$0xff]
    %v523 = vld [vmem:[%s1 + $0xf80] sm:$0xff]
    %v524 = vld [vmem:[%s1 + $0xf88] sm:$0xff]
    %v525 = vld [vmem:[%s1 + $0xf90] sm:$0xff]
    %v526 = vld [vmem:[%s1 + $0xf98] sm:$0xff]
    %v527 = vld [vmem:[%s1 + $0xfa0] sm:$0xff]
    %v528 = vld [vmem:[%s1 + $0xfa8] sm:$0xff]
    %v529 = vld [vmem:[%s1 + $0xfb0] sm:$0xff]
    %v530 = vld [vmem:[%s1 + $0xfb8] sm:$0xff]
    %v531 = vld [vmem:[%s1 + $0xfc0] sm:$0xff]
    %v532 = vld [vmem:[%s1 + $0xfc8] sm:$0xff]
    %v533 = vld [vmem:[%s1 + $0xfd0] sm:$0xff]
    %v534 = vld [vmem:[%s1 + $0xfd8] sm:$0xff]
    %v535 = vld [vmem:[%s1 + $0xfe0] sm:$0xff]
    %v536 = vld [vmem:[%s1 + $0xfe8] sm:$0xff]
    %v537 = vld [vmem:[%s1 + $0xff0] sm:$0xff]
    %v538 = vld [vmem:[%s1 + $0xff8] sm:$0xff]
    %v539 = vld [vmem:[%s1 + $0x1000] sm:$0xff]
    %v540 = vld [vmem:[%s1 + $0x1008] sm:$0xff]
    %v541 = vld [vmem:[%s1 + $0x1010] sm:$0xff]
    %v542 = vld [vmem:[%s1 + $0x1018] sm:$0xff]
    %v543 = vld [vmem:[%s1 + $0x1020] sm:$0xff]
    %v544 = vld [vmem:[%s1 + $0x1028] sm:$0xff]
    %v545 = vld [vmem:[%s1 + $0x1030] sm:$0xff]
    %v546 = vld [vmem:[%s1 + $0x1038] sm:$0xff]
    %v547 = vld [vmem:[%s1 + $0x1040] sm:$0xff]
    %v548 = vld [vmem:[%s1 + $0x1048] sm:$0xff]
    %v549 = vld [vmem:[%s1 + $0x1050] sm:$0xff]
    %v550 = vld [vmem:[%s1 + $0x1058] sm:$0xff]
    %v551 = vld [vmem:[%s1 + $0x1060] sm:$0xff]
    %v552 = vld [vmem:[%s1 + $0x1068] sm:$0xff]
    %v553 = vld [vmem:[%s1 + $0x1070] sm:$0xff]
    %v554 = vld [vmem:[%s1 + $0x1078] sm:$0xff]
    %v555 = vld [vmem:[%s1 + $0x1080] sm:$0xff]
    %v556 = vld [vmem:[%s1 + $0x1088] sm:$0xff]
    %v557 = vld [vmem:[%s1 + $0x1090] sm:$0xff]
    %v558 = vld [vmem:[%s1 + $0x1098] sm:$0xff]
    %v559 = vld [vmem:[%s1 + $0x10a0] sm:$0xff]
    %v560 = vld [vmem:[%s1 + $0x10a8] sm:$0xff]
    %v561 = vld [vmem:[%s1 + $0x10b0] sm:$0xff]
    %v562 = vld [vmem:[%s1 + $0x10b8] sm:$0xff]
    %v563 = vld [vmem:[%s1 + $0x10c0] sm:$0xff]
    %v564 = vld [vmem:[%s1 + $0x10c8] sm:$0xff]
    %v565 = vld [vmem:[%s1 + $0x10d0] sm:$0xff]
    %v566 = vld [vmem:[%s1 + $0x10d8] sm:$0xff]
    %v567 = vld [vmem:[%s1 + $0x10e0] sm:$0xff]
    %v568 = vld [vmem:[%s1 + $0x10e8] sm:$0xff]
    %v569 = vld [vmem:[%s1 + $0x10f0] sm:$0xff]
    %v570 = vld [vmem:[%s1 + $0x10f8] sm:$0xff]
    %v571 = vld [vmem:[%s1 + $0x1100] sm:$0xff]
    %v572 = vld [vmem:[%s1 + $0x1108] sm:$0xff]
    %v573 = vld [vmem:[%s1 + $0x1110] sm:$0xff]
    %v574 = vld [vmem:[%s1 + $0x1118] sm:$0xff]
    %v575 = vld [vmem:[%s1 + $0x1120] sm:$0xff]
    %v576 = vld [vmem:[%s1 + $0x1128] sm:$0xff]
    %v577 = vld [vmem:[%s1 + $0x1130] sm:$0xff]
    %v578 = vld [vmem:[%s1 + $0x1138] sm:$0xff]
    %v579 = vld [vmem:[%s1 + $0x1140] sm:$0xff]
    %v580 = vld [vmem:[%s1 + $0x1148] sm:$0xff]
    %v581 = vld [vmem:[%s1 + $0x1150] sm:$0xff]
    %v582 = vld [vmem:[%s1 + $0x1158] sm:$0xff]
    %v583 = vld [vmem:[%s1 + $0x1160] sm:$0xff]
    %v584 = vld [vmem:[%s1 + $0x1168] sm:$0xff]
    %v585 = vld [vmem:[%s1 + $0x1170] sm:$0xff]
    %v586 = vld [vmem:[%s1 + $0x1178] sm:$0xff]
    %v587 = vld [vmem:[%s1 + $0x1180] sm:$0xff]
    %v588 = vld [vmem:[%s1 + $0x1188] sm:$0xff]
    %v589 = vld [vmem:[%s1 + $0x1190] sm:$0xff]
    %v590 = vld [vmem:[%s1 + $0x1198] sm:$0xff]
    %v591 = vld [vmem:[%s1 + $0x11a0] sm:$0xff]
    %v592 = vld [vmem:[%s1 + $0x11a8] sm:$0xff]
    %v593 = vld [vmem:[%s1 + $0x11b0] sm:$0xff]
    %v594 = vld [vmem:[%s1 + $0x11b8] sm:$0xff]
    %v595 = vld [vmem:[%s1 + $0x11c0] sm:$0xff]
    %v596 = vld [vmem:[%s1 + $0x11c8] sm:$0xff]
    %v597 = vld [vmem:[%s1 + $0x11d0] sm:$0xff]
    %v598 = vld [vmem:[%s1 + $0x11d8] sm:$0xff]
    %v599 = vld [vmem:[%s1 + $0x11e0] sm:$0xff]
    %v600 = vld [vmem:[%s1 + $0x11e8] sm:$0xff]
    %v601 = vld [vmem:[%s1 + $0x11f0] sm:$0xff]
    %v602 = vld [vmem:[%s1 + $0x11f8] sm:$0xff]
    %v603 = vld [vmem:[%s1 + $0x1200] sm:$0xff]
    %v604 = vld [vmem:[%s1 + $0x1208] sm:$0xff]
    %v605 = vld [vmem:[%s1 + $0x1210] sm:$0xff]
    %v606 = vld [vmem:[%s1 + $0x1218] sm:$0xff]
    %v607 = vld [vmem:[%s1 + $0x1220] sm:$0xff]
    %v608 = vld [vmem:[%s1 + $0x1228] sm:$0xff]
    %v609 = vld [vmem:[%s1 + $0x1230] sm:$0xff]
    %v610 = vld [vmem:[%s1 + $0x1238] sm:$0xff]
    %v611 = vld [vmem:[%s1 + $0x1240] sm:$0xff]
    %v612 = vld [vmem:[%s1 + $0x1248] sm:$0xff]
    %v613 = vld [vmem:[%s1 + $0x1250] sm:$0xff]
    %v614 = vld [vmem:[%s1 + $0x1258] sm:$0xff]
    %v615 = vld [vmem:[%s1 + $0x1260] sm:$0xff]
    %v616 = vld [vmem:[%s1 + $0x1268] sm:$0xff]
    %v617 = vld [vmem:[%s1 + $0x1270] sm:$0xff]
    %v618 = vld [vmem:[%s1 + $0x1278] sm:$0xff]
    %v619 = vld [vmem:[%s1 + $0x1280] sm:$0xff]
    %v620 = vld [vmem:[%s1 + $0x1288] sm:$0xff]
    %v621 = vld [vmem:[%s1 + $0x1290] sm:$0xff]
    %v622 = vld [vmem:[%s1 + $0x1298] sm:$0xff]
    %v623 = vld [vmem:[%s1 + $0x12a0] sm:$0xff]
    %v624 = vld [vmem:[%s1 + $0x12a8] sm:$0xff]
    %v625 = vld [vmem:[%s1 + $0x12b0] sm:$0xff]
    %v626 = vld [vmem:[%s1 + $0x12b8] sm:$0xff]
    %v627 = vld [vmem:[%s1 + $0x12c0] sm:$0xff]
    %v628 = vld [vmem:[%s1 + $0x12c8] sm:$0xff]
    %v629 = vld [vmem:[%s1 + $0x12d0] sm:$0xff]
    %v630 = vld [vmem:[%s1 + $0x12d8] sm:$0xff]
    %v631 = vld [vmem:[%s1 + $0x12e0] sm:$0xff]
    %v632 = vld [vmem:[%s1 + $0x12e8] sm:$0xff]
    %v633 = vld [vmem:[%s1 + $0x12f0] sm:$0xff]
    %v634 = vld [vmem:[%s1 + $0x12f8] sm:$0xff]
    %v635 = vld [vmem:[%s1 + $0x1300] sm:$0xff]
    %v636 = vld [vmem:[%s1 + $0x1308] sm:$0xff]
    %v637 = vld [vmem:[%s1 + $0x1310] sm:$0xff]
    %v638 = vld [vmem:[%s1 + $0x1318] sm:$0xff]
    %v639 = vld [vmem:[%s1 + $0x1320] sm:$0xff]
    %v640 = vld [vmem:[%s1 + $0x1328] sm:$0xff]
    %v641 = vld [vmem:[%s1 + $0x1330] sm:$0xff]
    %v642 = vld [vmem:[%s1 + $0x1338] sm:$0xff]
    %v643 = vld [vmem:[%s1 + $0x1340] sm:$0xff]
    %v644 = vld [vmem:[%s1 + $0x1348] sm:$0xff]
    %v645 = vld [vmem:[%s1 + $0x1350] sm:$0xff]
    %v646 = vld [vmem:[%s1 + $0x1358] sm:$0xff]
    %v647 = vld [vmem:[%s1 + $0x1360] sm:$0xff]
    %v648 = vld [vmem:[%s1 + $0x1368] sm:$0xff]
    %v649 = vld [vmem:[%s1 + $0x1370] sm:$0xff]
    %v650 = vld [vmem:[%s1 + $0x1378] sm:$0xff]
    %v651 = vld [vmem:[%s1 + $0x1380] sm:$0xff]
    %v652 = vld [vmem:[%s1 + $0x1388] sm:$0xff]
    %v653 = vld [vmem:[%s1 + $0x1390] sm:$0xff]
    %v654 = vld [vmem:[%s1 + $0x1398] sm:$0xff]
    %v655 = vld [vmem:[%s1 + $0x13a0] sm:$0xff]
    %v656 = vld [vmem:[%s1 + $0x13a8] sm:$0xff]
    %v657 = vld [vmem:[%s1 + $0x13b0] sm:$0xff]
    %v658 = vld [vmem:[%s1 + $0x13b8] sm:$0xff]
    %v659 = vld [vmem:[%s1 + $0x13c0] sm:$0xff]
    %v660 = vld [vmem:[%s1 + $0x13c8] sm:$0xff]
    %v661 = vld [vmem:[%s1 + $0x13d0] sm:$0xff]
    %v662 = vld [vmem:[%s1 + $0x13d8] sm:$0xff]
    %v663 = vld [vmem:[%s1 + $0x13e0] sm:$0xff]
    %v664 = vld [vmem:[%s1 + $0x13e8] sm:$0xff]
    %v665 = vld [vmem:[%s1 + $0x13f0] sm:$0xff]
    %v666 = vld [vmem:[%s1 + $0x13f8] sm:$0xff]
    %v667 = vld [vmem:[%s1 + $0x1400] sm:$0xff]
    %v668 = vld [vmem:[%s1 + $0x1408] sm:$0xff]
    %v669 = vld [vmem:[%s1 + $0x1410] sm:$0xff]
    %v670 = vld [vmem:[%s1 + $0x1418] sm:$0xff]
    %v671 = vld [vmem:[%s1 + $0x1420] sm:$0xff]
    %v672 = vld [vmem:[%s1 + $0x1428] sm:$0xff]
    %v673 = vld [vmem:[%s1 + $0x1430] sm:$0xff]
    %v674 = vld [vmem:[%s1 + $0x1438] sm:$0xff]
    %v675 = vld [vmem:[%s1 + $0x1440] sm:$0xff]
    %v676 = vld [vmem:[%s1 + $0x1448] sm:$0xff]
    %v677 = vld [vmem:[%s1 + $0x1450] sm:$0xff]
    %v678 = vld [vmem:[%s1 + $0x1458] sm:$0xff]
    %v679 = vld [vmem:[%s1 + $0x1460] sm:$0xff]
    %v680 = vld [vmem:[%s1 + $0x1468] sm:$0xff]
    %v681 = vld [vmem:[%s1 + $0x1470] sm:$0xff]
    %v682 = vld [vmem:[%s1 + $0x1478] sm:$0xff]
    %v683 = vld [vmem:[%s1 + $0x1480] sm:$0xff]
    %v684 = vld [vmem:[%s1 + $0x1488] sm:$0xff]
    %v685 = vld [vmem:[%s1 + $0x1490] sm:$0xff]
    %v686 = vld [vmem:[%s1 + $0x1498] sm:$0xff]
    %v687 = vld [vmem:[%s1 + $0x14a0] sm:$0xff]
    %v688 = vld [vmem:[%s1 + $0x14a8] sm:$0xff]
    %v689 = vld [vmem:[%s1 + $0x14b0] sm:$0xff]
    %v690 = vld [vmem:[%s1 + $0x14b8] sm:$0xff]
    %v691 = vld [vmem:[%s1 + $0x14c0] sm:$0xff]
    %v692 = vld [vmem:[%s1 + $0x14c8] sm:$0xff]
    %v693 = vld [vmem:[%s1 + $0x14d0] sm:$0xff]
    %v694 = vld [vmem:[%s1 + $0x14d8] sm:$0xff]
    %v695 = vld [vmem:[%s1 + $0x14e0] sm:$0xff]
    %v696 = vld [vmem:[%s1 + $0x14e8] sm:$0xff]
    %v697 = vld [vmem:[%s1 + $0x14f0] sm:$0xff]
    %v698 = vld [vmem:[%s1 + $0x14f8] sm:$0xff]
    %v699 = vld [vmem:[%s1 + $0x1500] sm:$0xff]
    %v700 = vld [vmem:[%s1 + $0x1508] sm:$0xff]
    %v701 = vld [vmem:[%s1 + $0x1510] sm:$0xff]
    %v702 = vld [vmem:[%s1 + $0x1518] sm:$0xff]
    %v703 = vld [vmem:[%s1 + $0x1520] sm:$0xff]
    %v704 = vld [vmem:[%s1 + $0x1528] sm:$0xff]
    %v705 = vld [vmem:[%s1 + $0x1530] sm:$0xff]
    %v706 = vld [vmem:[%s1 + $0x1538] sm:$0xff]
    %v707 = vld [vmem:[%s1 + $0x1540] sm:$0xff]
    %v708 = vld [vmem:[%s1 + $0x1548] sm:$0xff]
    %v709 = vld [vmem:[%s1 + $0x1550] sm:$0xff]
    %v710 = vld [vmem:[%s1 + $0x1558] sm:$0xff]
    %v711 = vld [vmem:[%s1 + $0x1560] sm:$0xff]
    %v712 = vld [vmem:[%s1 + $0x1568] sm:$0xff]
    %v713 = vld [vmem:[%s1 + $0x1570] sm:$0xff]
    %v714 = vld [vmem:[%s1 + $0x1578] sm:$0xff]
    %v715 = vld [vmem:[%s1 + $0x1580] sm:$0xff]
    %v716 = vld [vmem:[%s1 + $0x1588] sm:$0xff]
    %v717 = vld [vmem:[%s1 + $0x1590] sm:$0xff]
    %v718 = vld [vmem:[%s1 + $0x1598] sm:$0xff]
    %v719 = vld [vmem:[%s1 + $0x15a0] sm:$0xff]
    %v720 = vld [vmem:[%s1 + $0x15a8] sm:$0xff]
    %v721 = vld [vmem:[%s1 + $0x15b0] sm:$0xff]
    %v722 = vld [vmem:[%s1 + $0x15b8] sm:$0xff]
    %v723 = vld [vmem:[%s1 + $0x15c0] sm:$0xff]
    %v724 = vld [vmem:[%s1 + $0x15c8] sm:$0xff]
    %v725 = vld [vmem:[%s1 + $0x15d0] sm:$0xff]
    %v726 = vld [vmem:[%s1 + $0x15d8] sm:$0xff]
    %v727 = vld [vmem:[%s1 + $0x15e0] sm:$0xff]
    %v728 = vld [vmem:[%s1 + $0x15e8] sm:$0xff]
    %v729 = vld [vmem:[%s1 + $0x15f0] sm:$0xff]
    %v730 = vld [vmem:[%s1 + $0x15f8] sm:$0xff]
    %v731 = vld [vmem:[%s1 + $0x1600] sm:$0xff]
    %v732 = vld [vmem:[%s1 + $0x1608] sm:$0xff]
    %v733 = vld [vmem:[%s1 + $0x1610] sm:$0xff]
    %v734 = vld [vmem:[%s1 + $0x1618] sm:$0xff]
    %v735 = vld [vmem:[%s1 + $0x1620] sm:$0xff]
    %v736 = vld [vmem:[%s1 + $0x1628] sm:$0xff]
    %v737 = vld [vmem:[%s1 + $0x1630] sm:$0xff]
    %v738 = vld [vmem:[%s1 + $0x1638] sm:$0xff]
    %v739 = vld [vmem:[%s1 + $0x1640] sm:$0xff]
    %v740 = vld [vmem:[%s1 + $0x1648] sm:$0xff]
    %v741 = vld [vmem:[%s1 + $0x1650] sm:$0xff]
    %v742 = vld [vmem:[%s1 + $0x1658] sm:$0xff]
    %v743 = vld [vmem:[%s1 + $0x1660] sm:$0xff]
    %v744 = vld [vmem:[%s1 + $0x1668] sm:$0xff]
    %v745 = vld [vmem:[%s1 + $0x1670] sm:$0xff]
    %v746 = vld [vmem:[%s1 + $0x1678] sm:$0xff]
    %v747 = vld [vmem:[%s1 + $0x1680] sm:$0xff]
    %v748 = vld [vmem:[%s1 + $0x1688] sm:$0xff]
    %v749 = vld [vmem:[%s1 + $0x1690] sm:$0xff]
    %v750 = vld [vmem:[%s1 + $0x1698] sm:$0xff]
    %v751 = vld [vmem:[%s1 + $0x16a0] sm:$0xff]
    %v752 = vld [vmem:[%s1 + $0x16a8] sm:$0xff]
    %v753 = vld [vmem:[%s1 + $0x16b0] sm:$0xff]
    %v754 = vld [vmem:[%s1 + $0x16b8] sm:$0xff]
    %v755 = vld [vmem:[%s1 + $0x16c0] sm:$0xff]
    %v756 = vld [vmem:[%s1 + $0x16c8] sm:$0xff]
    %v757 = vld [vmem:[%s1 + $0x16d0] sm:$0xff]
    %v758 = vld [vmem:[%s1 + $0x16d8] sm:$0xff]
    %v759 = vld [vmem:[%s1 + $0x16e0] sm:$0xff]
    %v760 = vld [vmem:[%s1 + $0x16e8] sm:$0xff]
    %v761 = vld [vmem:[%s1 + $0x16f0] sm:$0xff]
    %v762 = vld [vmem:[%s1 + $0x16f8] sm:$0xff]
    %v763 = vld [vmem:[%s1 + $0x1700] sm:$0xff]
    %v764 = vld [vmem:[%s1 + $0x1708] sm:$0xff]
    %v765 = vld [vmem:[%s1 + $0x1710] sm:$0xff]
    %v766 = vld [vmem:[%s1 + $0x1718] sm:$0xff]
    %v767 = vld [vmem:[%s1 + $0x1720] sm:$0xff]
    %v768 = vld [vmem:[%s1 + $0x1728] sm:$0xff]
    %v769 = vld [vmem:[%s1 + $0x1730] sm:$0xff]
    %v770 = vld [vmem:[%s1 + $0x1738] sm:$0xff]
    %v771 = vld [vmem:[%s1 + $0x1740] sm:$0xff]
    %v772 = vld [vmem:[%s1 + $0x1748] sm:$0xff]
    %v773 = vld [vmem:[%s1 + $0x1750] sm:$0xff]
    %v774 = vld [vmem:[%s1 + $0x1758] sm:$0xff]
    %v775 = vld [vmem:[%s1 + $0x1760] sm:$0xff]
    %v776 = vld [vmem:[%s1 + $0x1768] sm:$0xff]
    %v777 = vld [vmem:[%s1 + $0x1770] sm:$0xff]
    %v778 = vld [vmem:[%s1 + $0x1778] sm:$0xff]
    %v779 = vld [vmem:[%s1 + $0x1780] sm:$0xff]
    %v780 = vld [vmem:[%s1 + $0x1788] sm:$0xff]
    %v781 = vld [vmem:[%s1 + $0x1790] sm:$0xff]
    %v782 = vld [vmem:[%s1 + $0x1798] sm:$0xff]
    %v783 = vld [vmem:[%s1 + $0x17a0] sm:$0xff]
    %v784 = vld [vmem:[%s1 + $0x17a8] sm:$0xff]
    %v785 = vld [vmem:[%s1 + $0x17b0] sm:$0xff]
    %v786 = vld [vmem:[%s1 + $0x17b8] sm:$0xff]
    %v787 = vld [vmem:[%s1 + $0x17c0] sm:$0xff]
    %v788 = vld [vmem:[%s1 + $0x17c8] sm:$0xff]
    %v789 = vld [vmem:[%s1 + $0x17d0] sm:$0xff]
    %v790 = vld [vmem:[%s1 + $0x17d8] sm:$0xff]
    %v791 = vld [vmem:[%s1 + $0x17e0] sm:$0xff]
    %v792 = vld [vmem:[%s1 + $0x17e8] sm:$0xff]
    %v793 = vld [vmem:[%s1 + $0x17f0] sm:$0xff]
    %v794 = vld [vmem:[%s1 + $0x17f8] sm:$0xff]
    %v795 = vld [vmem:[%s1 + $0x1800] sm:$0xff]
    %v796 = vld [vmem:[%s1 + $0x1808] sm:$0xff]
    %v797 = vld [vmem:[%s1 + $0x1810] sm:$0xff]
    %v798 = vld [vmem:[%s1 + $0x1818] sm:$0xff]
    %v799 = vld [vmem:[%s1 + $0x1820] sm:$0xff]
    %v800 = vld [vmem:[%s1 + $0x1828] sm:$0xff]
    %v801 = vld [vmem:[%s1 + $0x1830] sm:$0xff]
    %v802 = vld [vmem:[%s1 + $0x1838] sm:$0xff]
    %v803 = vld [vmem:[%s1 + $0x1840] sm:$0xff]
    %v804 = vld [vmem:[%s1 + $0x1848] sm:$0xff]
    %v805 = vld [vmem:[%s1 + $0x1850] sm:$0xff]
    %v806 = vld [vmem:[%s1 + $0x1858] sm:$0xff]
    %v807 = vld [vmem:[%s1 + $0x1860] sm:$0xff]
    %v808 = vld [vmem:[%s1 + $0x1868] sm:$0xff]
    %v809 = vld [vmem:[%s1 + $0x1870] sm:$0xff]
    %v810 = vld [vmem:[%s1 + $0x1878] sm:$0xff]
    %v811 = vld [vmem:[%s1 + $0x1880] sm:$0xff]
    %v812 = vld [vmem:[%s1 + $0x1888] sm:$0xff]
    %v813 = vld [vmem:[%s1 + $0x1890] sm:$0xff]
    %v814 = vld [vmem:[%s1 + $0x1898] sm:$0xff]
    %v815 = vld [vmem:[%s1 + $0x18a0] sm:$0xff]
    %v816 = vld [vmem:[%s1 + $0x18a8] sm:$0xff]
    %v817 = vld [vmem:[%s1 + $0x18b0] sm:$0xff]
    %v818 = vld [vmem:[%s1 + $0x18b8] sm:$0xff]
    %v819 = vld [vmem:[%s1 + $0x18c0] sm:$0xff]
    %v820 = vld [vmem:[%s1 + $0x18c8] sm:$0xff]
    %v821 = vld [vmem:[%s1 + $0x18d0] sm:$0xff]
    %v822 = vld [vmem:[%s1 + $0x18d8] sm:$0xff]
    %v823 = vld [vmem:[%s1 + $0x18e0] sm:$0xff]
    %v824 = vld [vmem:[%s1 + $0x18e8] sm:$0xff]
    %v825 = vld [vmem:[%s1 + $0x18f0] sm:$0xff]
    %v826 = vld [vmem:[%s1 + $0x18f8] sm:$0xff]
    %v827 = vld [vmem:[%s1 + $0x1900] sm:$0xff]
    %v828 = vld [vmem:[%s1 + $0x1908] sm:$0xff]
    %v829 = vld [vmem:[%s1 + $0x1910] sm:$0xff]
    %v830 = vld [vmem:[%s1 + $0x1918] sm:$0xff]
    %v831 = vld [vmem:[%s1 + $0x1920] sm:$0xff]
    %v832 = vld [vmem:[%s1 + $0x1928] sm:$0xff]
    %v833 = vld [vmem:[%s1 + $0x1930] sm:$0xff]
    %v834 = vld [vmem:[%s1 + $0x1938] sm:$0xff]
    %v835 = vld [vmem:[%s1 + $0x1940] sm:$0xff]
    %v836 = vld [vmem:[%s1 + $0x1948] sm:$0xff]
    %v837 = vld [vmem:[%s1 + $0x1950] sm:$0xff]
    %v838 = vld [vmem:[%s1 + $0x1958] sm:$0xff]
    %v839 = vld [vmem:[%s1 + $0x1960] sm:$0xff]
    %v840 = vld [vmem:[%s1 + $0x1968] sm:$0xff]
    %v841 = vld [vmem:[%s1 + $0x1970] sm:$0xff]
    %v842 = vld [vmem:[%s1 + $0x1978] sm:$0xff]
    %v843 = vld [vmem:[%s1 + $0x1980] sm:$0xff]
    %v844 = vld [vmem:[%s1 + $0x1988] sm:$0xff]
    %v845 = vld [vmem:[%s1 + $0x1990] sm:$0xff]
    %v846 = vld [vmem:[%s1 + $0x1998] sm:$0xff]
    %v847 = vld [vmem:[%s1 + $0x19a0] sm:$0xff]
    %v848 = vld [vmem:[%s1 + $0x19a8] sm:$0xff]
    %v849 = vld [vmem:[%s1 + $0x19b0] sm:$0xff]
    %v850 = vld [vmem:[%s1 + $0x19b8] sm:$0xff]
    %v851 = vld [vmem:[%s1 + $0x19c0] sm:$0xff]
    %v852 = vld [vmem:[%s1 + $0x19c8] sm:$0xff]
    %v853 = vld [vmem:[%s1 + $0x19d0] sm:$0xff]
    %v854 = vld [vmem:[%s1 + $0x19d8] sm:$0xff]
    %v855 = vld [vmem:[%s1 + $0x19e0] sm:$0xff]
    %v856 = vld [vmem:[%s1 + $0x19e8] sm:$0xff]
    %v857 = vld [vmem:[%s1 + $0x19f0] sm:$0xff]
    %v858 = vld [vmem:[%s1 + $0x19f8] sm:$0xff]
    %v859 = vld [vmem:[%s1 + $0x1a00] sm:$0xff]
    %v860 = vld [vmem:[%s1 + $0x1a08] sm:$0xff]
    %v861 = vld [vmem:[%s1 + $0x1a10] sm:$0xff]
    %v862 = vld [vmem:[%s1 + $0x1a18] sm:$0xff]
    %v863 = vld [vmem:[%s1 + $0x1a20] sm:$0xff]
    %v864 = vld [vmem:[%s1 + $0x1a28] sm:$0xff]
    %v865 = vld [vmem:[%s1 + $0x1a30] sm:$0xff]
    %v866 = vld [vmem:[%s1 + $0x1a38] sm:$0xff]
    %v867 = vld [vmem:[%s1 + $0x1a40] sm:$0xff]
    %v868 = vld [vmem:[%s1 + $0x1a48] sm:$0xff]
    %v869 = vld [vmem:[%s1 + $0x1a50] sm:$0xff]
    %v870 = vld [vmem:[%s1 + $0x1a58] sm:$0xff]
    %v871 = vld [vmem:[%s1 + $0x1a60] sm:$0xff]
    %v872 = vld [vmem:[%s1 + $0x1a68] sm:$0xff]
    %v873 = vld [vmem:[%s1 + $0x1a70] sm:$0xff]
    %v874 = vld [vmem:[%s1 + $0x1a78] sm:$0xff]
    %v875 = vld [vmem:[%s1 + $0x1a80] sm:$0xff]
    %v876 = vld [vmem:[%s1 + $0x1a88] sm:$0xff]
    %v877 = vld [vmem:[%s1 + $0x1a90] sm:$0xff]
    %v878 = vld [vmem:[%s1 + $0x1a98] sm:$0xff]
    %v879 = vld [vmem:[%s1 + $0x1aa0] sm:$0xff]
    %v880 = vld [vmem:[%s1 + $0x1aa8] sm:$0xff]
    %v881 = vld [vmem:[%s1 + $0x1ab0] sm:$0xff]
    %v882 = vld [vmem:[%s1 + $0x1ab8] sm:$0xff]
    %v883 = vld [vmem:[%s1 + $0x1ac0] sm:$0xff]
    %v884 = vld [vmem:[%s1 + $0x1ac8] sm:$0xff]
    %v885 = vld [vmem:[%s1 + $0x1ad0] sm:$0xff]
    %v886 = vld [vmem:[%s1 + $0x1ad8] sm:$0xff]
    %v887 = vld [vmem:[%s1 + $0x1ae0] sm:$0xff]
    %v888 = vld [vmem:[%s1 + $0x1ae8] sm:$0xff]
    %v889 = vld [vmem:[%s1 + $0x1af0] sm:$0xff]
    %v890 = vld [vmem:[%s1 + $0x1af8] sm:$0xff]
    %v891 = vld [vmem:[%s1 + $0x1b00] sm:$0xff]
    %v892 = vld [vmem:[%s1 + $0x1b08] sm:$0xff]
    %v893 = vld [vmem:[%s1 + $0x1b10] sm:$0xff]
    %v894 = vld [vmem:[%s1 + $0x1b18] sm:$0xff]
    %v895 = vld [vmem:[%s1 + $0x1b20] sm:$0xff]
    %v896 = vld [vmem:[%s1 + $0x1b28] sm:$0xff]
    %v897 = vld [vmem:[%s1 + $0x1b30] sm:$0xff]
    %v898 = vld [vmem:[%s1 + $0x1b38] sm:$0xff]
    %v899 = vld [vmem:[%s1 + $0x1b40] sm:$0xff]
    %v900 = vld [vmem:[%s1 + $0x1b48] sm:$0xff]
    %v901 = vld [vmem:[%s1 + $0x1b50] sm:$0xff]
    %v902 = vld [vmem:[%s1 + $0x1b58] sm:$0xff]
    %v903 = vld [vmem:[%s1 + $0x1b60] sm:$0xff]
    %v904 = vld [vmem:[%s1 + $0x1b68] sm:$0xff]
    %v905 = vld [vmem:[%s1 + $0x1b70] sm:$0xff]
    %v906 = vld [vmem:[%s1 + $0x1b78] sm:$0xff]
    %v907 = vld [vmem:[%s1 + $0x1b80] sm:$0xff]
    %v908 = vld [vmem:[%s1 + $0x1b88] sm:$0xff]
    %v909 = vld [vmem:[%s1 + $0x1b90] sm:$0xff]
    %v910 = vld [vmem:[%s1 + $0x1b98] sm:$0xff]
    %v911 = vld [vmem:[%s1 + $0x1ba0] sm:$0xff]
    %v912 = vld [vmem:[%s1 + $0x1ba8] sm:$0xff]
    %v913 = vld [vmem:[%s1 + $0x1bb0] sm:$0xff]
    %v914 = vld [vmem:[%s1 + $0x1bb8] sm:$0xff]
    %v915 = vld [vmem:[%s1 + $0x1bc0] sm:$0xff]
    %v916 = vld [vmem:[%s1 + $0x1bc8] sm:$0xff]
    %v917 = vld [vmem:[%s1 + $0x1bd0] sm:$0xff]
    %v918 = vld [vmem:[%s1 + $0x1bd8] sm:$0xff]
    %v919 = vld [vmem:[%s1 + $0x1be0] sm:$0xff]
    %v920 = vld [vmem:[%s1 + $0x1be8] sm:$0xff]
    %v921 = vld [vmem:[%s1 + $0x1bf0] sm:$0xff]
    %v922 = vld [vmem:[%s1 + $0x1bf8] sm:$0xff]
    %v923 = vld [vmem:[%s1 + $0x1c00] sm:$0xff]
    %v924 = vld [vmem:[%s1 + $0x1c08] sm:$0xff]
    %v925 = vld [vmem:[%s1 + $0x1c10] sm:$0xff]
    %v926 = vld [vmem:[%s1 + $0x1c18] sm:$0xff]
    %v927 = vld [vmem:[%s1 + $0x1c20] sm:$0xff]
    %v928 = vld [vmem:[%s1 + $0x1c28] sm:$0xff]
    %v929 = vld [vmem:[%s1 + $0x1c30] sm:$0xff]
    %v930 = vld [vmem:[%s1 + $0x1c38] sm:$0xff]
    %v931 = vld [vmem:[%s1 + $0x1c40] sm:$0xff]
    %v932 = vld [vmem:[%s1 + $0x1c48] sm:$0xff]
    %v933 = vld [vmem:[%s1 + $0x1c50] sm:$0xff]
    %v934 = vld [vmem:[%s1 + $0x1c58] sm:$0xff]
    %v935 = vld [vmem:[%s1 + $0x1c60] sm:$0xff]
    %v936 = vld [vmem:[%s1 + $0x1c68] sm:$0xff]
    %v937 = vld [vmem:[%s1 + $0x1c70] sm:$0xff]
    %v938 = vld [vmem:[%s1 + $0x1c78] sm:$0xff]
    %v939 = vld [vmem:[%s1 + $0x1c80] sm:$0xff]
    %v940 = vld [vmem:[%s1 + $0x1c88] sm:$0xff]
    %v941 = vld [vmem:[%s1 + $0x1c90] sm:$0xff]
    %v942 = vld [vmem:[%s1 + $0x1c98] sm:$0xff]
    %v943 = vld [vmem:[%s1 + $0x1ca0] sm:$0xff]
    %v944 = vld [vmem:[%s1 + $0x1ca8] sm:$0xff]
    %v945 = vld [vmem:[%s1 + $0x1cb0] sm:$0xff]
    %v946 = vld [vmem:[%s1 + $0x1cb8] sm:$0xff]
    %v947 = vld [vmem:[%s1 + $0x1cc0] sm:$0xff]
    %v948 = vld [vmem:[%s1 + $0x1cc8] sm:$0xff]
    %v949 = vld [vmem:[%s1 + $0x1cd0] sm:$0xff]
    %v950 = vld [vmem:[%s1 + $0x1cd8] sm:$0xff]
    %v951 = vld [vmem:[%s1 + $0x1ce0] sm:$0xff]
    %v952 = vld [vmem:[%s1 + $0x1ce8] sm:$0xff]
    %v953 = vld [vmem:[%s1 + $0x1cf0] sm:$0xff]
    %v954 = vld [vmem:[%s1 + $0x1cf8] sm:$0xff]
    %v955 = vld [vmem:[%s1 + $0x1d00] sm:$0xff]
    %v956 = vld [vmem:[%s1 + $0x1d08] sm:$0xff]
    %v957 = vld [vmem:[%s1 + $0x1d10] sm:$0xff]
    %v958 = vld [vmem:[%s1 + $0x1d18] sm:$0xff]
    %v959 = vld [vmem:[%s1 + $0x1d20] sm:$0xff]
    %v960 = vld [vmem:[%s1 + $0x1d28] sm:$0xff]
    %v961 = vld [vmem:[%s1 + $0x1d30] sm:$0xff]
    %v962 = vld [vmem:[%s1 + $0x1d38] sm:$0xff]
    %v963 = vld [vmem:[%s1 + $0x1d40] sm:$0xff]
    %v964 = vld [vmem:[%s1 + $0x1d48] sm:$0xff]
    %v965 = vld [vmem:[%s1 + $0x1d50] sm:$0xff]
    %v966 = vld [vmem:[%s1 + $0x1d58] sm:$0xff]
    %v967 = vld [vmem:[%s1 + $0x1d60] sm:$0xff]
    %v968 = vld [vmem:[%s1 + $0x1d68] sm:$0xff]
    %v969 = vld [vmem:[%s1 + $0x1d70] sm:$0xff]
    %v970 = vld [vmem:[%s1 + $0x1d78] sm:$0xff]
    %v971 = vld [vmem:[%s1 + $0x1d80] sm:$0xff]
    %v972 = vld [vmem:[%s1 + $0x1d88] sm:$0xff]
    %v973 = vld [vmem:[%s1 + $0x1d90] sm:$0xff]
    %v974 = vld [vmem:[%s1 + $0x1d98] sm:$0xff]
    %v975 = vld [vmem:[%s1 + $0x1da0] sm:$0xff]
    %v976 = vld [vmem:[%s1 + $0x1da8] sm:$0xff]
    %v977 = vld [vmem:[%s1 + $0x1db0] sm:$0xff]
    %v978 = vld [vmem:[%s1 + $0x1db8] sm:$0xff]
    %v979 = vld [vmem:[%s1 + $0x1dc0] sm:$0xff]
    %v980 = vld [vmem:[%s1 + $0x1dc8] sm:$0xff]
    %v981 = vld [vmem:[%s1 + $0x1dd0] sm:$0xff]
    %v982 = vld [vmem:[%s1 + $0x1dd8] sm:$0xff]
    %v983 = vld [vmem:[%s1 + $0x1de0] sm:$0xff]
    %v984 = vld [vmem:[%s1 + $0x1de8] sm:$0xff]
    %v985 = vld [vmem:[%s1 + $0x1df0] sm:$0xff]
    %v986 = vld [vmem:[%s1 + $0x1df8] sm:$0xff]
    %v987 = vld [vmem:[%s1 + $0x1e00] sm:$0xff]
    %v988 = vld [vmem:[%s1 + $0x1e08] sm:$0xff]
    %v989 = vld [vmem:[%s1 + $0x1e10] sm:$0xff]
    %v990 = vld [vmem:[%s1 + $0x1e18] sm:$0xff]
    %v991 = vld [vmem:[%s1 + $0x1e20] sm:$0xff]
    %v992 = vld [vmem:[%s1 + $0x1e28] sm:$0xff]
    %v993 = vld [vmem:[%s1 + $0x1e30] sm:$0xff]
    %v994 = vld [vmem:[%s1 + $0x1e38] sm:$0xff]
    %v995 = vld [vmem:[%s1 + $0x1e40] sm:$0xff]
    %v996 = vld [vmem:[%s1 + $0x1e48] sm:$0xff]
    %v997 = vld [vmem:[%s1 + $0x1e50] sm:$0xff]
    %v998 = vld [vmem:[%s1 + $0x1e58] sm:$0xff]
    %v999 = vld [vmem:[%s1 + $0x1e60] sm:$0xff]
    %v1000 = vld [vmem:[%s1 + $0x1e68] sm:$0xff]
    %v1001 = vld [vmem:[%s1 + $0x1e70] sm:$0xff]
    %v1002 = vld [vmem:[%s1 + $0x1e78] sm:$0xff]
    %v1003 = vld [vmem:[%s1 + $0x1e80] sm:$0xff]
    %v1004 = vld [vmem:[%s1 + $0x1e88] sm:$0xff]
    %v1005 = vld [vmem:[%s1 + $0x1e90] sm:$0xff]
    %v1006 = vld [vmem:[%s1 + $0x1e98] sm:$0xff]
    %v1007 = vld [vmem:[%s1 + $0x1ea0] sm:$0xff]
    %v1008 = vld [vmem:[%s1 + $0x1ea8] sm:$0xff]
    %v1009 = vld [vmem:[%s1 + $0x1eb0] sm:$0xff]
    %v1010 = vld [vmem:[%s1 + $0x1eb8] sm:$0xff]
    %v1011 = vld [vmem:[%s1 + $0x1ec0] sm:$0xff]
    %v1012 = vld [vmem:[%s1 + $0x1ec8] sm:$0xff]
    %v1013 = vld [vmem:[%s1 + $0x1ed0] sm:$0xff]
    %v1014 = vld [vmem:[%s1 + $0x1ed8] sm:$0xff]
    %v1015 = vld [vmem:[%s1 + $0x1ee0] sm:$0xff]
    %v1016 = vld [vmem:[%s1 + $0x1ee8] sm:$0xff]
    %v1017 = vld [vmem:[%s1 + $0x1ef0] sm:$0xff]
    %v1018 = vld [vmem:[%s1 + $0x1ef8] sm:$0xff]
    %v1019 = vld [vmem:[%s1 + $0x1f00] sm:$0xff]
    %v1020 = vld [vmem:[%s1 + $0x1f08] sm:$0xff]
    %v1021 = vld [vmem:[%s1 + $0x1f10] sm:$0xff]
    %v1022 = vld [vmem:[%s1 + $0x1f18] sm:$0xff]
    %v1023 = vld [vmem:[%s1 + $0x1f20] sm:$0xff]
    %v1024 = vld [vmem:[%s1 + $0x1f28] sm:$0xff]
    %v1025 = vld [vmem:[%s1 + $0x1f30] sm:$0xff]
    %v1026 = vld [vmem:[%s1 + $0x1f38] sm:$0xff]
    %v1027 = vld [vmem:[%s1 + $0x1f40] sm:$0xff]
    %v1028 = vld [vmem:[%s1 + $0x1f48] sm:$0xff]
    %v1029 = vld [vmem:[%s1 + $0x1f50] sm:$0xff]
    %v1030 = vld [vmem:[%s1 + $0x1f58] sm:$0xff]
    %v1031 = vld [vmem:[%s1 + $0x1f60] sm:$0xff]
    %v1032 = vld [vmem:[%s1 + $0x1f68] sm:$0xff]
    %v1033 = vld [vmem:[%s1 + $0x1f70] sm:$0xff]
    %v1034 = vld [vmem:[%s1 + $0x1f78] sm:$0xff]
    %v1035 = vld [vmem:[%s1 + $0x1f80] sm:$0xff]
    %v1036 = vld [vmem:[%s1 + $0x1f88] sm:$0xff]
    %v1037 = vld [vmem:[%s1 + $0x1f90] sm:$0xff]
    %v1038 = vld [vmem:[%s1 + $0x1f98] sm:$0xff]
    %v1039 = vld [vmem:[%s1 + $0x1fa0] sm:$0xff]
    %v1040 = vld [vmem:[%s1 + $0x1fa8] sm:$0xff]
    %v1041 = vld [vmem:[%s1 + $0x1fb0] sm:$0xff]
    %v1042 = vld [vmem:[%s1 + $0x1fb8] sm:$0xff]
    %v1043 = vld [vmem:[%s1 + $0x1fc0] sm:$0xff]
    %v1044 = vld [vmem:[%s1 + $0x1fc8] sm:$0xff]
    %v1045 = vld [vmem:[%s1 + $0x1fd0] sm:$0xff]
    %v1046 = vld [vmem:[%s1 + $0x1fd8] sm:$0xff]
    %v1047 = vld [vmem:[%s1 + $0x1fe0] sm:$0xff]
    %v1048 = vld [vmem:[%s1 + $0x1fe8] sm:$0xff]
    %v1049 = vld [vmem:[%s1 + $0x1ff0] sm:$0xff]
    %v1050 = vld [vmem:[%s1 + $0x1ff8] sm:$0xff]
    %v1051 = vld [vmem:[%s1 + $0x2000] sm:$0xff]
    %v1052 = vld [vmem:[%s1 + $0x2008] sm:$0xff]
    %v1053 = vld [vmem:[%s1 + $0x2010] sm:$0xff]
    %v1054 = vld [vmem:[%s1 + $0x2018] sm:$0xff]
    %v1055 = vld [vmem:[%s1 + $0x2020] sm:$0xff]
    %v1056 = vld [vmem:[%s1 + $0x2028] sm:$0xff]
    %v1057 = vld [vmem:[%s1 + $0x2030] sm:$0xff]
    %v1058 = vld [vmem:[%s1 + $0x2038] sm:$0xff]
    %v1059 = vld [vmem:[%s1 + $0x2040] sm:$0xff]
    %v1060 = vld [vmem:[%s1 + $0x2048] sm:$0xff]
    %v1061 = vld [vmem:[%s1 + $0x2050] sm:$0xff]
    %v1062 = vld [vmem:[%s1 + $0x2058] sm:$0xff]
    %v1063 = vld [vmem:[%s1 + $0x2060] sm:$0xff]
    %v1064 = vld [vmem:[%s1 + $0x2068] sm:$0xff]
    %v1065 = vld [vmem:[%s1 + $0x2070] sm:$0xff]
    %v1066 = vld [vmem:[%s1 + $0x2078] sm:$0xff]
    %v1067 = vld [vmem:[%s1 + $0x2080] sm:$0xff]
    %v1068 = vld [vmem:[%s1 + $0x2088] sm:$0xff]
    %v1069 = vld [vmem:[%s1 + $0x2090] sm:$0xff]
    %v1070 = vld [vmem:[%s1 + $0x2098] sm:$0xff]
    %v1071 = vld [vmem:[%s1 + $0x20a0] sm:$0xff]
    %v1072 = vld [vmem:[%s1 + $0x20a8] sm:$0xff]
    %v1073 = vld [vmem:[%s1 + $0x20b0] sm:$0xff]
    %v1074 = vld [vmem:[%s1 + $0x20b8] sm:$0xff]
    %v1075 = vld [vmem:[%s1 + $0x20c0] sm:$0xff]
    %v1076 = vld [vmem:[%s1 + $0x20c8] sm:$0xff]
    %v1077 = vld [vmem:[%s1 + $0x20d0] sm:$0xff]
    %v1078 = vld [vmem:[%s1 + $0x20d8] sm:$0xff]
    %v1079 = vld [vmem:[%s1 + $0x20e0] sm:$0xff]
    %v1080 = vld [vmem:[%s1 + $0x20e8] sm:$0xff]
    %v1081 = vld [vmem:[%s1 + $0x20f0] sm:$0xff]
    %v1082 = vld [vmem:[%s1 + $0x20f8] sm:$0xff]
    %v1083 = vld [vmem:[%s1 + $0x2100] sm:$0xff]
    %v1084 = vld [vmem:[%s1 + $0x2108] sm:$0xff]
    %v1085 = vld [vmem:[%s1 + $0x2110] sm:$0xff]
    %v1086 = vld [vmem:[%s1 + $0x2118] sm:$0xff]
    %v1087 = vld [vmem:[%s1 + $0x2120] sm:$0xff]
    %v1088 = vld [vmem:[%s1 + $0x2128] sm:$0xff]
    %v1089 = vld [vmem:[%s1 + $0x2130] sm:$0xff]
    %v1090 = vld [vmem:[%s1 + $0x2138] sm:$0xff]
    %v1091 = vld [vmem:[%s1 + $0x2140] sm:$0xff]
    %v1092 = vld [vmem:[%s1 + $0x2148] sm:$0xff]
    %v1093 = vld [vmem:[%s1 + $0x2150] sm:$0xff]
    %v1094 = vld [vmem:[%s1 + $0x2158] sm:$0xff]
    %v1095 = vld [vmem:[%s1 + $0x2160] sm:$0xff]
    %v1096 = vld [vmem:[%s1 + $0x2168] sm:$0xff]
    %v1097 = vld [vmem:[%s1 + $0x2170] sm:$0xff]
    %v1098 = vld [vmem:[%s1 + $0x2178] sm:$0xff]
    %v1099 = vld [vmem:[%s1 + $0x2180] sm:$0xff]
    %v1100 = vld [vmem:[%s1 + $0x2188] sm:$0xff]
    %v1101 = vld [vmem:[%s1 + $0x2190] sm:$0xff]
    %v1102 = vld [vmem:[%s1 + $0x2198] sm:$0xff]
    %v1103 = vld [vmem:[%s1 + $0x21a0] sm:$0xff]
    %v1104 = vld [vmem:[%s1 + $0x21a8] sm:$0xff]
    %v1105 = vld [vmem:[%s1 + $0x21b0] sm:$0xff]
    %v1106 = vld [vmem:[%s1 + $0x21b8] sm:$0xff]
    %v1107 = vld [vmem:[%s2] sm:$0x7]
    %v1109 = vperm.slane %v1107, 0
    %v1110 = vperm.slane %v1107, 1
    %v1111 = vperm.slane %v1107, 2
    %1121 = vst [vmem:[#allocation1] ss:$4 sm:$0xff] %v21
    %s1122 = scalar_lea.vmem [#allocation1], 32
    %1123 = vst [vmem:[%s1122] ss:$4 sm:$0xff] %v22
    %v1124 = vld.sshfl [vmem:[#allocation1] sm:$0xff pattern:$0x73625140]
    %v1125 = vld.sshfl [vmem:[#allocation1 + $0x8] sm:$0xff pattern:$0x73625140]
    %v1126 = vld.sshfl [vmem:[#allocation1 + $0x10] sm:$0xff pattern:$0x73625140]
    %v1127 = vld.sshfl [vmem:[#allocation1 + $0x18] sm:$0xff pattern:$0x73625140]
    %v1128 = vld.sshfl [vmem:[#allocation1 + $0x20] sm:$0xff pattern:$0x73625140]
    %v1129 = vld.sshfl [vmem:[#allocation1 + $0x28] sm:$0xff pattern:$0x73625140]
    %v1130 = vld.sshfl [vmem:[#allocation1 + $0x30] sm:$0xff pattern:$0x73625140]
    %v1131 = vld.sshfl [vmem:[#allocation1 + $0x38] sm:$0xff pattern:$0x73625140]
    %1132 = vst [vmem:[#allocation1] ss:$4 sm:$0xff] %v23
    %1133 = vst [vmem:[%s1122] ss:$4 sm:$0xff] %v24
    %v1134 = vld.sshfl [vmem:[#allocation1] sm:$0xff pattern:$0x73625140]
    %v1135 = vld.sshfl [vmem:[#allocation1 + $0x8] sm:$0xff pattern:$0x73625140]
    %v1136 = vld.sshfl [vmem:[#allocation1 + $0x10] sm:$0xff pattern:$0x73625140]
    %v1137 = vld.sshfl [vmem:[#allocation1 + $0x18] sm:$0xff pattern:$0x73625140]
    %v1138 = vld.sshfl [vmem:[#allocation1 + $0x20] sm:$0xff pattern:$0x73625140]
    %v1139 = vld.sshfl [vmem:[#allocation1 + $0x28] sm:$0xff pattern:$0x73625140]
    %v1140 = vld.sshfl [vmem:[#allocation1 + $0x30] sm:$0xff pattern:$0x73625140]
    %v1141 = vld.sshfl [vmem:[#allocation1 + $0x38] sm:$0xff pattern:$0x73625140]
    %1142 = vst [vmem:[#allocation1] ss:$4 sm:$0xff] %v25
    %1143 = vst [vmem:[%s1122] ss:$4 sm:$0xff] %v26
    %v1144 = vld.sshfl [vmem:[#allocation1] sm:$0xff pattern:$0x73625140]
    %v1145 = vld.sshfl [vmem:[#allocation1 + $0x8] sm:$0xff pattern:$0x73625140]
    %v1146 = vld.sshfl [vmem:[#allocation1 + $0x10] sm:$0xff pattern:$0x73625140]
    %v1147 = vld.sshfl [vmem:[#allocation1 + $0x18] sm:$0xff pattern:$0x73625140]
    %v1148 = vld.sshfl [vmem:[#allocation1 + $0x20] sm:$0xff pattern:$0x73625140]
    %v1149 = vld.sshfl [vmem:[#allocation1 + $0x28] sm:$0xff pattern:$0x73625140]
    %v1150 = vld.sshfl [vmem:[#allocation1 + $0x30] sm:$0xff pattern:$0x73625140]
    %vm1173 = vcmask 523264
    %v1174 = vsel %vm1173, %v1150, 0
    %1176 = vmatpush.msra.mxu0 %v72
    %1177 = vmatpush.msra.mxu0 %v69
    %1178 = vmatpush.msra.mxu0 %v66
    %1179 = vmatpush.msra.mxu0 %v63
    %1180 = vmatpush.msra.mxu0 %v60
    %1181 = vmatpush.msra.mxu0 %v57
    %1182 = vmatpush.msra.mxu0 %v54
    %1183 = vmatpush.msra.mxu0 %v51
    %1184 = vmatpush.msra.mxu0 %v48
    %1185 = vmatpush.msra.mxu0 %v45
    %1186 = vmatpush.msra.mxu0 %v42
    %1187 = vmatpush.msra.mxu0 %v39
    %1188 = vmatpush.msra.mxu0 %v36
    %1189 = vmatpush.msra.mxu0 %v33
    %1190 = vmatpush.msra.mxu0 %v30
    %1191 = vmatpush.msra.mxu0 %v27
    %1192 = vmatmul.f32.gmra.mxu0 %v1124
    %v1193 = vpop.f32.mrf.mxu0
    %v1194 = vadd.f32 %v1109, %v1193
    %1195 = vdwg.mxu0
    %1196 = vmatpush.msra.mxu0 %v120
    %1197 = vmatpush.msra.mxu0 %v117
    %1198 = vmatpush.msra.mxu0 %v114
    %1199 = vmatpush.msra.mxu0 %v111
    %1200 = vmatpush.msra.mxu0 %v108
    %1201 = vmatpush.msra.mxu0 %v105
    %1202 = vmatpush.msra.mxu0 %v102
    %1203 = vmatpush.msra.mxu0 %v99
    %1204 = vmatpush.msra.mxu0 %v96
    %1205 = vmatpush.msra.mxu0 %v93
    %1206 = vmatpush.msra.mxu0 %v90
    %1207 = vmatpush.msra.mxu0 %v87
    %1208 = vmatpush.msra.mxu0 %v84
    %1209 = vmatpush.msra.mxu0 %v81
    %1210 = vmatpush.msra.mxu0 %v78
    %1211 = vmatpush.msra.mxu0 %v75
    %1212 = vmatmul.f32.gmra.mxu0 %v1125
    %v1213 = vpop.f32.mrf.mxu0
    %v1214 = vadd.f32 %v1194, %v1213
    %1215 = vdwg.mxu0
    %1216 = vmatpush.msra.mxu0 %v168
    %1217 = vmatpush.msra.mxu0 %v165
    %1218 = vmatpush.msra.mxu0 %v162
    %1219 = vmatpush.msra.mxu0 %v159
    %1220 = vmatpush.msra.mxu0 %v156
    %1221 = vmatpush.msra.mxu0 %v153
    %1222 = vmatpush.msra.mxu0 %v150
    %1223 = vmatpush.msra.mxu0 %v147
    %1224 = vmatpush.msra.mxu0 %v144
    %1225 = vmatpush.msra.mxu0 %v141
    %1226 = vmatpush.msra.mxu0 %v138
    %1227 = vmatpush.msra.mxu0 %v135
    %1228 = vmatpush.msra.mxu0 %v132
    %1229 = vmatpush.msra.mxu0 %v129
    %1230 = vmatpush.msra.mxu0 %v126
    %1231 = vmatpush.msra.mxu0 %v123
    %1232 = vmatmul.f32.gmra.mxu0 %v1126
    %v1233 = vpop.f32.mrf.mxu0
    %v1234 = vadd.f32 %v1214, %v1233
    %1235 = vdwg.mxu0
    %1236 = vmatpush.msra.mxu0 %v216
    %1237 = vmatpush.msra.mxu0 %v213
    %1238 = vmatpush.msra.mxu0 %v210
    %1239 = vmatpush.msra.mxu0 %v207
    %1240 = vmatpush.msra.mxu0 %v204
    %1241 = vmatpush.msra.mxu0 %v201
    %1242 = vmatpush.msra.mxu0 %v198
    %1243 = vmatpush.msra.mxu0 %v195
    %1244 = vmatpush.msra.mxu0 %v192
    %1245 = vmatpush.msra.mxu0 %v189
    %1246 = vmatpush.msra.mxu0 %v186
    %1247 = vmatpush.msra.mxu0 %v183
    %1248 = vmatpush.msra.mxu0 %v180
    %1249 = vmatpush.msra.mxu0 %v177
    %1250 = vmatpush.msra.mxu0 %v174
    %1251 = vmatpush.msra.mxu0 %v171
    %1252 = vmatmul.f32.gmra.mxu0 %v1127
    %v1253 = vpop.f32.mrf.mxu0
    %v1254 = vadd.f32 %v1234, %v1253
    %1255 = vdwg.mxu0
    %1256 = vmatpush.msra.mxu0 %v264
    %1257 = vmatpush.msra.mxu0 %v261
    %1258 = vmatpush.msra.mxu0 %v258
    %1259 = vmatpush.msra.mxu0 %v255
    %1260 = vmatpush.msra.mxu0 %v252
    %1261 = vmatpush.msra.mxu0 %v249
    %1262 = vmatpush.msra.mxu0 %v246
    %1263 = vmatpush.msra.mxu0 %v243
    %1264 = vmatpush.msra.mxu0 %v240
    %1265 = vmatpush.msra.mxu0 %v237
    %1266 = vmatpush.msra.mxu0 %v234
    %1267 = vmatpush.msra.mxu0 %v231
    %1268 = vmatpush.msra.mxu0 %v228
    %1269 = vmatpush.msra.mxu0 %v225
    %1270 = vmatpush.msra.mxu0 %v222
    %1271 = vmatpush.msra.mxu0 %v219
    %1272 = vmatmul.f32.gmra.mxu0 %v1128
    %v1273 = vpop.f32.mrf.mxu0
    %v1274 = vadd.f32 %v1254, %v1273
    %1275 = vdwg.mxu0
    %1276 = vmatpush.msra.mxu0 %v312
    %1277 = vmatpush.msra.mxu0 %v309
    %1278 = vmatpush.msra.mxu0 %v306
    %1279 = vmatpush.msra.mxu0 %v303
    %1280 = vmatpush.msra.mxu0 %v300
    %1281 = vmatpush.msra.mxu0 %v297
    %1282 = vmatpush.msra.mxu0 %v294
    %1283 = vmatpush.msra.mxu0 %v291
    %1284 = vmatpush.msra.mxu0 %v288
    %1285 = vmatpush.msra.mxu0 %v285
    %1286 = vmatpush.msra.mxu0 %v282
    %1287 = vmatpush.msra.mxu0 %v279
    %1288 = vmatpush.msra.mxu0 %v276
    %1289 = vmatpush.msra.mxu0 %v273
    %1290 = vmatpush.msra.mxu0 %v270
    %1291 = vmatpush.msra.mxu0 %v267
    %1292 = vmatmul.f32.gmra.mxu0 %v1129
    %v1293 = vpop.f32.mrf.mxu0
    %v1294 = vadd.f32 %v1274, %v1293
    %1295 = vdwg.mxu0
    %1296 = vmatpush.msra.mxu0 %v360
    %1297 = vmatpush.msra.mxu0 %v357
    %1298 = vmatpush.msra.mxu0 %v354
    %1299 = vmatpush.msra.mxu0 %v351
    %1300 = vmatpush.msra.mxu0 %v348
    %1301 = vmatpush.msra.mxu0 %v345
    %1302 = vmatpush.msra.mxu0 %v342
    %1303 = vmatpush.msra.mxu0 %v339
    %1304 = vmatpush.msra.mxu0 %v336
    %1305 = vmatpush.msra.mxu0 %v333
    %1306 = vmatpush.msra.mxu0 %v330
    %1307 = vmatpush.msra.mxu0 %v327
    %1308 = vmatpush.msra.mxu0 %v324
    %1309 = vmatpush.msra.mxu0 %v321
    %1310 = vmatpush.msra.mxu0 %v318
    %1311 = vmatpush.msra.mxu0 %v315
    %1312 = vmatmul.f32.gmra.mxu0 %v1130
    %v1313 = vpop.f32.mrf.mxu0
    %v1314 = vadd.f32 %v1294, %v1313
    %1315 = vdwg.mxu0
    %1316 = vmatpush.msra.mxu0 %v408
    %1317 = vmatpush.msra.mxu0 %v405
    %1318 = vmatpush.msra.mxu0 %v402
    %1319 = vmatpush.msra.mxu0 %v399
    %1320 = vmatpush.msra.mxu0 %v396
    %1321 = vmatpush.msra.mxu0 %v393
    %1322 = vmatpush.msra.mxu0 %v390
    %1323 = vmatpush.msra.mxu0 %v387
    %1324 = vmatpush.msra.mxu0 %v384
    %1325 = vmatpush.msra.mxu0 %v381
    %1326 = vmatpush.msra.mxu0 %v378
    %1327 = vmatpush.msra.mxu0 %v375
    %1328 = vmatpush.msra.mxu0 %v372
    %1329 = vmatpush.msra.mxu0 %v369
    %1330 = vmatpush.msra.mxu0 %v366
    %1331 = vmatpush.msra.mxu0 %v363
    %1332 = vmatmul.f32.gmra.mxu0 %v1131
    %v1333 = vpop.f32.mrf.mxu0
    %v1334 = vadd.f32 %v1314, %v1333
    %1335 = vdwg.mxu0
    %1336 = vmatpush.msra.mxu0 %v456
    %1337 = vmatpush.msra.mxu0 %v453
    %1338 = vmatpush.msra.mxu0 %v450
    %1339 = vmatpush.msra.mxu0 %v447
    %1340 = vmatpush.msra.mxu0 %v444
    %1341 = vmatpush.msra.mxu0 %v441
    %1342 = vmatpush.msra.mxu0 %v438
    %1343 = vmatpush.msra.mxu0 %v435
    %1344 = vmatpush.msra.mxu0 %v432
    %1345 = vmatpush.msra.mxu0 %v429
    %1346 = vmatpush.msra.mxu0 %v426
    %1347 = vmatpush.msra.mxu0 %v423
    %1348 = vmatpush.msra.mxu0 %v420
    %1349 = vmatpush.msra.mxu0 %v417
    %1350 = vmatpush.msra.mxu0 %v414
    %1351 = vmatpush.msra.mxu0 %v411
    %1352 = vmatmul.f32.gmra.mxu0 %v1134
    %v1353 = vpop.f32.mrf.mxu0
    %v1354 = vadd.f32 %v1334, %v1353
    %1355 = vdwg.mxu0
    %1356 = vmatpush.msra.mxu0 %v504
    %1357 = vmatpush.msra.mxu0 %v501
    %1358 = vmatpush.msra.mxu0 %v498
    %1359 = vmatpush.msra.mxu0 %v495
    %1360 = vmatpush.msra.mxu0 %v492
    %1361 = vmatpush.msra.mxu0 %v489
    %1362 = vmatpush.msra.mxu0 %v486
    %1363 = vmatpush.msra.mxu0 %v483
    %1364 = vmatpush.msra.mxu0 %v480
    %1365 = vmatpush.msra.mxu0 %v477
    %1366 = vmatpush.msra.mxu0 %v474
    %1367 = vmatpush.msra.mxu0 %v471
    %1368 = vmatpush.msra.mxu0 %v468
    %1369 = vmatpush.msra.mxu0 %v465
    %1370 = vmatpush.msra.mxu0 %v462
    %1371 = vmatpush.msra.mxu0 %v459
    %1372 = vmatmul.f32.gmra.mxu0 %v1135
    %v1373 = vpop.f32.mrf.mxu0
    %v1374 = vadd.f32 %v1354, %v1373
    %1375 = vdwg.mxu0
    %1376 = vmatpush.msra.mxu0 %v552
    %1377 = vmatpush.msra.mxu0 %v549
    %1378 = vmatpush.msra.mxu0 %v546
    %1379 = vmatpush.msra.mxu0 %v543
    %1380 = vmatpush.msra.mxu0 %v540
    %1381 = vmatpush.msra.mxu0 %v537
    %1382 = vmatpush.msra.mxu0 %v534
    %1383 = vmatpush.msra.mxu0 %v531
    %1384 = vmatpush.msra.mxu0 %v528
    %1385 = vmatpush.msra.mxu0 %v525
    %1386 = vmatpush.msra.mxu0 %v522
    %1387 = vmatpush.msra.mxu0 %v519
    %1388 = vmatpush.msra.mxu0 %v516
    %1389 = vmatpush.msra.mxu0 %v513
    %1390 = vmatpush.msra.mxu0 %v510
    %1391 = vmatpush.msra.mxu0 %v507
    %1392 = vmatmul.f32.gmra.mxu0 %v1136
    %v1393 = vpop.f32.mrf.mxu0
    %v1394 = vadd.f32 %v1374, %v1393
    %1395 = vdwg.mxu0
    %1396 = vmatpush.msra.mxu0 %v600
    %1397 = vmatpush.msra.mxu0 %v597
    %1398 = vmatpush.msra.mxu0 %v594
    %1399 = vmatpush.msra.mxu0 %v591
    %1400 = vmatpush.msra.mxu0 %v588
    %1401 = vmatpush.msra.mxu0 %v585
    %1402 = vmatpush.msra.mxu0 %v582
    %1403 = vmatpush.msra.mxu0 %v579
    %1404 = vmatpush.msra.mxu0 %v576
    %1405 = vmatpush.msra.mxu0 %v573
    %1406 = vmatpush.msra.mxu0 %v570
    %1407 = vmatpush.msra.mxu0 %v567
    %1408 = vmatpush.msra.mxu0 %v564
    %1409 = vmatpush.msra.mxu0 %v561
    %1410 = vmatpush.msra.mxu0 %v558
    %1411 = vmatpush.msra.mxu0 %v555
    %1412 = vmatmul.f32.gmra.mxu0 %v1137
    %v1413 = vpop.f32.mrf.mxu0
    %v1414 = vadd.f32 %v1394, %v1413
    %1415 = vdwg.mxu0
    %1416 = vmatpush.msra.mxu0 %v648
    %1417 = vmatpush.msra.mxu0 %v645
    %1418 = vmatpush.msra.mxu0 %v642
    %1419 = vmatpush.msra.mxu0 %v639
    %1420 = vmatpush.msra.mxu0 %v636
    %1421 = vmatpush.msra.mxu0 %v633
    %1422 = vmatpush.msra.mxu0 %v630
    %1423 = vmatpush.msra.mxu0 %v627
    %1424 = vmatpush.msra.mxu0 %v624
    %1425 = vmatpush.msra.mxu0 %v621
    %1426 = vmatpush.msra.mxu0 %v618
    %1427 = vmatpush.msra.mxu0 %v615
    %1428 = vmatpush.msra.mxu0 %v612
    %1429 = vmatpush.msra.mxu0 %v609
    %1430 = vmatpush.msra.mxu0 %v606
    %1431 = vmatpush.msra.mxu0 %v603
    %1432 = vmatmul.f32.gmra.mxu0 %v1138
    %v1433 = vpop.f32.mrf.mxu0
    %v1434 = vadd.f32 %v1414, %v1433
    %1435 = vdwg.mxu0
    %1436 = vmatpush.msra.mxu0 %v696
    %1437 = vmatpush.msra.mxu0 %v693
    %1438 = vmatpush.msra.mxu0 %v690
    %1439 = vmatpush.msra.mxu0 %v687
    %1440 = vmatpush.msra.mxu0 %v684
    %1441 = vmatpush.msra.mxu0 %v681
    %1442 = vmatpush.msra.mxu0 %v678
    %1443 = vmatpush.msra.mxu0 %v675
    %1444 = vmatpush.msra.mxu0 %v672
    %1445 = vmatpush.msra.mxu0 %v669
    %1446 = vmatpush.msra.mxu0 %v666
    %1447 = vmatpush.msra.mxu0 %v663
    %1448 = vmatpush.msra.mxu0 %v660
    %1449 = vmatpush.msra.mxu0 %v657
    %1450 = vmatpush.msra.mxu0 %v654
    %1451 = vmatpush.msra.mxu0 %v651
    %1452 = vmatmul.f32.gmra.mxu0 %v1139
    %v1453 = vpop.f32.mrf.mxu0
    %v1454 = vadd.f32 %v1434, %v1453
    %1455 = vdwg.mxu0
    %1456 = vmatpush.msra.mxu0 %v744
    %1457 = vmatpush.msra.mxu0 %v741
    %1458 = vmatpush.msra.mxu0 %v738
    %1459 = vmatpush.msra.mxu0 %v735
    %1460 = vmatpush.msra.mxu0 %v732
    %1461 = vmatpush.msra.mxu0 %v729
    %1462 = vmatpush.msra.mxu0 %v726
    %1463 = vmatpush.msra.mxu0 %v723
    %1464 = vmatpush.msra.mxu0 %v720
    %1465 = vmatpush.msra.mxu0 %v717
    %1466 = vmatpush.msra.mxu0 %v714
    %1467 = vmatpush.msra.mxu0 %v711
    %1468 = vmatpush.msra.mxu0 %v708
    %1469 = vmatpush.msra.mxu0 %v705
    %1470 = vmatpush.msra.mxu0 %v702
    %1471 = vmatpush.msra.mxu0 %v699
    %1472 = vmatmul.f32.gmra.mxu0 %v1140
    %v1473 = vpop.f32.mrf.mxu0
    %v1474 = vadd.f32 %v1454, %v1473
    %1475 = vdwg.mxu0
    %1476 = vmatpush.msra.mxu0 %v792
    %1477 = vmatpush.msra.mxu0 %v789
    %1478 = vmatpush.msra.mxu0 %v786
    %1479 = vmatpush.msra.mxu0 %v783
    %1480 = vmatpush.msra.mxu0 %v780
    %1481 = vmatpush.msra.mxu0 %v777
    %1482 = vmatpush.msra.mxu0 %v774
    %1483 = vmatpush.msra.mxu0 %v771
    %1484 = vmatpush.msra.mxu0 %v768
    %1485 = vmatpush.msra.mxu0 %v765
    %1486 = vmatpush.msra.mxu0 %v762
    %1487 = vmatpush.msra.mxu0 %v759
    %1488 = vmatpush.msra.mxu0 %v756
    %1489 = vmatpush.msra.mxu0 %v753
    %1490 = vmatpush.msra.mxu0 %v750
    %1491 = vmatpush.msra.mxu0 %v747
    %1492 = vmatmul.f32.gmra.mxu0 %v1141
    %v1493 = vpop.f32.mrf.mxu0
    %v1494 = vadd.f32 %v1474, %v1493
    %1495 = vdwg.mxu0
    %1496 = vmatpush.msra.mxu0 %v840
    %1497 = vmatpush.msra.mxu0 %v837
    %1498 = vmatpush.msra.mxu0 %v834
    %1499 = vmatpush.msra.mxu0 %v831
    %1500 = vmatpush.msra.mxu0 %v828
    %1501 = vmatpush.msra.mxu0 %v825
    %1502 = vmatpush.msra.mxu0 %v822
    %1503 = vmatpush.msra.mxu0 %v819
    %1504 = vmatpush.msra.mxu0 %v816
    %1505 = vmatpush.msra.mxu0 %v813
    %1506 = vmatpush.msra.mxu0 %v810
    %1507 = vmatpush.msra.mxu0 %v807
    %1508 = vmatpush.msra.mxu0 %v804
    %1509 = vmatpush.msra.mxu0 %v801
    %1510 = vmatpush.msra.mxu0 %v798
    %1511 = vmatpush.msra.mxu0 %v795
    %1512 = vmatmul.f32.gmra.mxu0 %v1144
    %v1513 = vpop.f32.mrf.mxu0
    %v1514 = vadd.f32 %v1494, %v1513
    %1515 = vdwg.mxu0
    %1516 = vmatpush.msra.mxu0 %v888
    %1517 = vmatpush.msra.mxu0 %v885
    %1518 = vmatpush.msra.mxu0 %v882
    %1519 = vmatpush.msra.mxu0 %v879
    %1520 = vmatpush.msra.mxu0 %v876
    %1521 = vmatpush.msra.mxu0 %v873
    %1522 = vmatpush.msra.mxu0 %v870
    %1523 = vmatpush.msra.mxu0 %v867
    %1524 = vmatpush.msra.mxu0 %v864
    %1525 = vmatpush.msra.mxu0 %v861
    %1526 = vmatpush.msra.mxu0 %v858
    %1527 = vmatpush.msra.mxu0 %v855
    %1528 = vmatpush.msra.mxu0 %v852
    %1529 = vmatpush.msra.mxu0 %v849
    %1530 = vmatpush.msra.mxu0 %v846
    %1531 = vmatpush.msra.mxu0 %v843
    %1532 = vmatmul.f32.gmra.mxu0 %v1145
    %v1533 = vpop.f32.mrf.mxu0
    %v1534 = vadd.f32 %v1514, %v1533
    %1535 = vdwg.mxu0
    %1536 = vmatpush.msra.mxu0 %v936
    %1537 = vmatpush.msra.mxu0 %v933
    %1538 = vmatpush.msra.mxu0 %v930
    %1539 = vmatpush.msra.mxu0 %v927
    %1540 = vmatpush.msra.mxu0 %v924
    %1541 = vmatpush.msra.mxu0 %v921
    %1542 = vmatpush.msra.mxu0 %v918
    %1543 = vmatpush.msra.mxu0 %v915
    %1544 = vmatpush.msra.mxu0 %v912
    %1545 = vmatpush.msra.mxu0 %v909
    %1546 = vmatpush.msra.mxu0 %v906
    %1547 = vmatpush.msra.mxu0 %v903
    %1548 = vmatpush.msra.mxu0 %v900
    %1549 = vmatpush.msra.mxu0 %v897
    %1550 = vmatpush.msra.mxu0 %v894
    %1551 = vmatpush.msra.mxu0 %v891
    %1552 = vmatmul.f32.gmra.mxu0 %v1146
    %v1553 = vpop.f32.mrf.mxu0
    %v1554 = vadd.f32 %v1534, %v1553
    %1555 = vdwg.mxu0
    %1556 = vmatpush.msra.mxu0 %v984
    %1557 = vmatpush.msra.mxu0 %v981
    %1558 = vmatpush.msra.mxu0 %v978
    %1559 = vmatpush.msra.mxu0 %v975
    %1560 = vmatpush.msra.mxu0 %v972
    %1561 = vmatpush.msra.mxu0 %v969
    %1562 = vmatpush.msra.mxu0 %v966
    %1563 = vmatpush.msra.mxu0 %v963
    %1564 = vmatpush.msra.mxu0 %v960
    %1565 = vmatpush.msra.mxu0 %v957
    %1566 = vmatpush.msra.mxu0 %v954
    %1567 = vmatpush.msra.mxu0 %v951
    %1568 = vmatpush.msra.mxu0 %v948
    %1569 = vmatpush.msra.mxu0 %v945
    %1570 = vmatpush.msra.mxu0 %v942
    %1571 = vmatpush.msra.mxu0 %v939
    %1572 = vmatmul.f32.gmra.mxu0 %v1147
    %v1573 = vpop.f32.mrf.mxu0
    %v1574 = vadd.f32 %v1554, %v1573
    %1575 = vdwg.mxu0
    %1576 = vmatpush.msra.mxu0 %v1032
    %1577 = vmatpush.msra.mxu0 %v1029
    %1578 = vmatpush.msra.mxu0 %v1026
    %1579 = vmatpush.msra.mxu0 %v1023
    %1580 = vmatpush.msra.mxu0 %v1020
    %1581 = vmatpush.msra.mxu0 %v1017
    %1582 = vmatpush.msra.mxu0 %v1014
    %1583 = vmatpush.msra.mxu0 %v1011
    %1584 = vmatpush.msra.mxu0 %v1008
    %1585 = vmatpush.msra.mxu0 %v1005
    %1586 = vmatpush.msra.mxu0 %v1002
    %1587 = vmatpush.msra.mxu0 %v999
    %1588 = vmatpush.msra.mxu0 %v996
    %1589 = vmatpush.msra.mxu0 %v993
    %1590 = vmatpush.msra.mxu0 %v990
    %1591 = vmatpush.msra.mxu0 %v987
    %1592 = vmatmul.f32.gmra.mxu0 %v1148
    %v1593 = vpop.f32.mrf.mxu0
    %v1594 = vadd.f32 %v1574, %v1593
    %1595 = vdwg.mxu0
    %1596 = vmatpush.msra.mxu0 %v1080
    %1597 = vmatpush.msra.mxu0 %v1077
    %1598 = vmatpush.msra.mxu0 %v1074
    %1599 = vmatpush.msra.mxu0 %v1071
    %1600 = vmatpush.msra.mxu0 %v1068
    %1601 = vmatpush.msra.mxu0 %v1065
    %1602 = vmatpush.msra.mxu0 %v1062
    %1603 = vmatpush.msra.mxu0 %v1059
    %1604 = vmatpush.msra.mxu0 %v1056
    %1605 = vmatpush.msra.mxu0 %v1053
    %1606 = vmatpush.msra.mxu0 %v1050
    %1607 = vmatpush.msra.mxu0 %v1047
    %1608 = vmatpush.msra.mxu0 %v1044
    %1609 = vmatpush.msra.mxu0 %v1041
    %1610 = vmatpush.msra.mxu0 %v1038
    %1611 = vmatpush.msra.mxu0 %v1035
    %1612 = vmatmul.f32.gmra.mxu0 %v1149
    %v1613 = vpop.f32.mrf.mxu0
    %v1614 = vadd.f32 %v1594, %v1613
    %1615 = vdwg.mxu0
    %1616 = vmatpush.msra.mxu0 0.0
    %1617 = vmatpush.msra.mxu0 0.0
    %1618 = vmatpush.msra.mxu0 0.0
    %1619 = vmatpush.msra.mxu0 0.0
    %1620 = vmatpush.msra.mxu0 0.0
    %1621 = vmatpush.msra.mxu0 0.0
    %1622 = vmatpush.msra.mxu0 0.0
    %1623 = vmatpush.msra.mxu0 0.0
    %1624 = vmatpush.msra.mxu0 %v1104
    %1625 = vmatpush.msra.mxu0 %v1101
    %1626 = vmatpush.msra.mxu0 %v1098
    %1627 = vmatpush.msra.mxu0 %v1095
    %1628 = vmatpush.msra.mxu0 %v1092
    %1629 = vmatpush.msra.mxu0 %v1089
    %1630 = vmatpush.msra.mxu0 %v1086
    %1631 = vmatpush.msra.mxu0 %v1083
    %1632 = vmatmul.f32.gmra.mxu0 %v1174
    %v1633 = vpop.f32.mrf.mxu0
    %v1634 = vadd.f32 %v1614, %v1633
    %1635 = vdwg.mxu0
    %1636 = vmatpush.msra.mxu0 %v73
    %1637 = vmatpush.msra.mxu0 %v70
    %1638 = vmatpush.msra.mxu0 %v67
    %1639 = vmatpush.msra.mxu0 %v64
    %1640 = vmatpush.msra.mxu0 %v61
    %1641 = vmatpush.msra.mxu0 %v58
    %1642 = vmatpush.msra.mxu0 %v55
    %1643 = vmatpush.msra.mxu0 %v52
    %1644 = vmatpush.msra.mxu0 %v49
    %1645 = vmatpush.msra.mxu0 %v46
    %1646 = vmatpush.msra.mxu0 %v43
    %1647 = vmatpush.msra.mxu0 %v40
    %1648 = vmatpush.msra.mxu0 %v37
    %1649 = vmatpush.msra.mxu0 %v34
    %1650 = vmatpush.msra.mxu0 %v31
    %1651 = vmatpush.msra.mxu0 %v28
    %1652 = vmatmul.f32.gmra.mxu0 %v1124
    %v1653 = vpop.f32.mrf.mxu0
    %v1654 = vadd.f32 %v1110, %v1653
    %1655 = vdwg.mxu0
    %1656 = vmatpush.msra.mxu0 %v121
    %1657 = vmatpush.msra.mxu0 %v118
    %1658 = vmatpush.msra.mxu0 %v115
    %1659 = vmatpush.msra.mxu0 %v112
    %1660 = vmatpush.msra.mxu0 %v109
    %1661 = vmatpush.msra.mxu0 %v106
    %1662 = vmatpush.msra.mxu0 %v103
    %1663 = vmatpush.msra.mxu0 %v100
    %1664 = vmatpush.msra.mxu0 %v97
    %1665 = vmatpush.msra.mxu0 %v94
    %1666 = vmatpush.msra.mxu0 %v91
    %1667 = vmatpush.msra.mxu0 %v88
    %1668 = vmatpush.msra.mxu0 %v85
    %1669 = vmatpush.msra.mxu0 %v82
    %1670 = vmatpush.msra.mxu0 %v79
    %1671 = vmatpush.msra.mxu0 %v76
    %1672 = vmatmul.f32.gmra.mxu0 %v1125
    %v1673 = vpop.f32.mrf.mxu0
    %v1674 = vadd.f32 %v1654, %v1673
    %1675 = vdwg.mxu0
    %1676 = vmatpush.msra.mxu0 %v169
    %1677 = vmatpush.msra.mxu0 %v166
    %1678 = vmatpush.msra.mxu0 %v163
    %1679 = vmatpush.msra.mxu0 %v160
    %1680 = vmatpush.msra.mxu0 %v157
    %1681 = vmatpush.msra.mxu0 %v154
    %1682 = vmatpush.msra.mxu0 %v151
    %1683 = vmatpush.msra.mxu0 %v148
    %1684 = vmatpush.msra.mxu0 %v145
    %1685 = vmatpush.msra.mxu0 %v142
    %1686 = vmatpush.msra.mxu0 %v139
    %1687 = vmatpush.msra.mxu0 %v136
    %1688 = vmatpush.msra.mxu0 %v133
    %1689 = vmatpush.msra.mxu0 %v130
    %1690 = vmatpush.msra.mxu0 %v127
    %1691 = vmatpush.msra.mxu0 %v124
    %1692 = vmatmul.f32.gmra.mxu0 %v1126
    %v1693 = vpop.f32.mrf.mxu0
    %v1694 = vadd.f32 %v1674, %v1693
    %1695 = vdwg.mxu0
    %1696 = vmatpush.msra.mxu0 %v217
    %1697 = vmatpush.msra.mxu0 %v214
    %1698 = vmatpush.msra.mxu0 %v211
    %1699 = vmatpush.msra.mxu0 %v208
    %1700 = vmatpush.msra.mxu0 %v205
    %1701 = vmatpush.msra.mxu0 %v202
    %1702 = vmatpush.msra.mxu0 %v199
    %1703 = vmatpush.msra.mxu0 %v196
    %1704 = vmatpush.msra.mxu0 %v193
    %1705 = vmatpush.msra.mxu0 %v190
    %1706 = vmatpush.msra.mxu0 %v187
    %1707 = vmatpush.msra.mxu0 %v184
    %1708 = vmatpush.msra.mxu0 %v181
    %1709 = vmatpush.msra.mxu0 %v178
    %1710 = vmatpush.msra.mxu0 %v175
    %1711 = vmatpush.msra.mxu0 %v172
    %1712 = vmatmul.f32.gmra.mxu0 %v1127
    %v1713 = vpop.f32.mrf.mxu0
    %v1714 = vadd.f32 %v1694, %v1713
    %1715 = vdwg.mxu0
    %1716 = vmatpush.msra.mxu0 %v265
    %1717 = vmatpush.msra.mxu0 %v262
    %1718 = vmatpush.msra.mxu0 %v259
    %1719 = vmatpush.msra.mxu0 %v256
    %1720 = vmatpush.msra.mxu0 %v253
    %1721 = vmatpush.msra.mxu0 %v250
    %1722 = vmatpush.msra.mxu0 %v247
    %1723 = vmatpush.msra.mxu0 %v244
    %1724 = vmatpush.msra.mxu0 %v241
    %1725 = vmatpush.msra.mxu0 %v238
    %1726 = vmatpush.msra.mxu0 %v235
    %1727 = vmatpush.msra.mxu0 %v232
    %1728 = vmatpush.msra.mxu0 %v229
    %1729 = vmatpush.msra.mxu0 %v226
    %1730 = vmatpush.msra.mxu0 %v223
    %1731 = vmatpush.msra.mxu0 %v220
    %1732 = vmatmul.f32.gmra.mxu0 %v1128
    %v1733 = vpop.f32.mrf.mxu0
    %v1734 = vadd.f32 %v1714, %v1733
    %1735 = vdwg.mxu0
    %1736 = vmatpush.msra.mxu0 %v313
    %1737 = vmatpush.msra.mxu0 %v310
    %1738 = vmatpush.msra.mxu0 %v307
    %1739 = vmatpush.msra.mxu0 %v304
    %1740 = vmatpush.msra.mxu0 %v301
    %1741 = vmatpush.msra.mxu0 %v298
    %1742 = vmatpush.msra.mxu0 %v295
    %1743 = vmatpush.msra.mxu0 %v292
    %1744 = vmatpush.msra.mxu0 %v289
    %1745 = vmatpush.msra.mxu0 %v286
    %1746 = vmatpush.msra.mxu0 %v283
    %1747 = vmatpush.msra.mxu0 %v280
    %1748 = vmatpush.msra.mxu0 %v277
    %1749 = vmatpush.msra.mxu0 %v274
    %1750 = vmatpush.msra.mxu0 %v271
    %1751 = vmatpush.msra.mxu0 %v268
    %1752 = vmatmul.f32.gmra.mxu0 %v1129
    %v1753 = vpop.f32.mrf.mxu0
    %v1754 = vadd.f32 %v1734, %v1753
    %1755 = vdwg.mxu0
    %1756 = vmatpush.msra.mxu0 %v361
    %1757 = vmatpush.msra.mxu0 %v358
    %1758 = vmatpush.msra.mxu0 %v355
    %1759 = vmatpush.msra.mxu0 %v352
    %1760 = vmatpush.msra.mxu0 %v349
    %1761 = vmatpush.msra.mxu0 %v346
    %1762 = vmatpush.msra.mxu0 %v343
    %1763 = vmatpush.msra.mxu0 %v340
    %1764 = vmatpush.msra.mxu0 %v337
    %1765 = vmatpush.msra.mxu0 %v334
    %1766 = vmatpush.msra.mxu0 %v331
    %1767 = vmatpush.msra.mxu0 %v328
    %1768 = vmatpush.msra.mxu0 %v325
    %1769 = vmatpush.msra.mxu0 %v322
    %1770 = vmatpush.msra.mxu0 %v319
    %1771 = vmatpush.msra.mxu0 %v316
    %1772 = vmatmul.f32.gmra.mxu0 %v1130
    %v1773 = vpop.f32.mrf.mxu0
    %v1774 = vadd.f32 %v1754, %v1773
    %1775 = vdwg.mxu0
    %1776 = vmatpush.msra.mxu0 %v409
    %1777 = vmatpush.msra.mxu0 %v406
    %1778 = vmatpush.msra.mxu0 %v403
    %1779 = vmatpush.msra.mxu0 %v400
    %1780 = vmatpush.msra.mxu0 %v397
    %1781 = vmatpush.msra.mxu0 %v394
    %1782 = vmatpush.msra.mxu0 %v391
    %1783 = vmatpush.msra.mxu0 %v388
    %1784 = vmatpush.msra.mxu0 %v385
    %1785 = vmatpush.msra.mxu0 %v382
    %1786 = vmatpush.msra.mxu0 %v379
    %1787 = vmatpush.msra.mxu0 %v376
    %1788 = vmatpush.msra.mxu0 %v373
    %1789 = vmatpush.msra.mxu0 %v370
    %1790 = vmatpush.msra.mxu0 %v367
    %1791 = vmatpush.msra.mxu0 %v364
    %1792 = vmatmul.f32.gmra.mxu0 %v1131
    %v1793 = vpop.f32.mrf.mxu0
    %v1794 = vadd.f32 %v1774, %v1793
    %1795 = vdwg.mxu0
    %1796 = vmatpush.msra.mxu0 %v457
    %1797 = vmatpush.msra.mxu0 %v454
    %1798 = vmatpush.msra.mxu0 %v451
    %1799 = vmatpush.msra.mxu0 %v448
    %1800 = vmatpush.msra.mxu0 %v445
    %1801 = vmatpush.msra.mxu0 %v442
    %1802 = vmatpush.msra.mxu0 %v439
    %1803 = vmatpush.msra.mxu0 %v436
    %1804 = vmatpush.msra.mxu0 %v433
    %1805 = vmatpush.msra.mxu0 %v430
    %1806 = vmatpush.msra.mxu0 %v427
    %1807 = vmatpush.msra.mxu0 %v424
    %1808 = vmatpush.msra.mxu0 %v421
    %1809 = vmatpush.msra.mxu0 %v418
    %1810 = vmatpush.msra.mxu0 %v415
    %1811 = vmatpush.msra.mxu0 %v412
    %1812 = vmatmul.f32.gmra.mxu0 %v1134
    %v1813 = vpop.f32.mrf.mxu0
    %v1814 = vadd.f32 %v1794, %v1813
    %1815 = vdwg.mxu0
    %1816 = vmatpush.msra.mxu0 %v505
    %1817 = vmatpush.msra.mxu0 %v502
    %1818 = vmatpush.msra.mxu0 %v499
    %1819 = vmatpush.msra.mxu0 %v496
    %1820 = vmatpush.msra.mxu0 %v493
    %1821 = vmatpush.msra.mxu0 %v490
    %1822 = vmatpush.msra.mxu0 %v487
    %1823 = vmatpush.msra.mxu0 %v484
    %1824 = vmatpush.msra.mxu0 %v481
    %1825 = vmatpush.msra.mxu0 %v478
    %1826 = vmatpush.msra.mxu0 %v475
    %1827 = vmatpush.msra.mxu0 %v472
    %1828 = vmatpush.msra.mxu0 %v469
    %1829 = vmatpush.msra.mxu0 %v466
    %1830 = vmatpush.msra.mxu0 %v463
    %1831 = vmatpush.msra.mxu0 %v460
    %1832 = vmatmul.f32.gmra.mxu0 %v1135
    %v1833 = vpop.f32.mrf.mxu0
    %v1834 = vadd.f32 %v1814, %v1833
    %1835 = vdwg.mxu0
    %1836 = vmatpush.msra.mxu0 %v553
    %1837 = vmatpush.msra.mxu0 %v550
    %1838 = vmatpush.msra.mxu0 %v547
    %1839 = vmatpush.msra.mxu0 %v544
    %1840 = vmatpush.msra.mxu0 %v541
    %1841 = vmatpush.msra.mxu0 %v538
    %1842 = vmatpush.msra.mxu0 %v535
    %1843 = vmatpush.msra.mxu0 %v532
    %1844 = vmatpush.msra.mxu0 %v529
    %1845 = vmatpush.msra.mxu0 %v526
    %1846 = vmatpush.msra.mxu0 %v523
    %1847 = vmatpush.msra.mxu0 %v520
    %1848 = vmatpush.msra.mxu0 %v517
    %1849 = vmatpush.msra.mxu0 %v514
    %1850 = vmatpush.msra.mxu0 %v511
    %1851 = vmatpush.msra.mxu0 %v508
    %1852 = vmatmul.f32.gmra.mxu0 %v1136
    %v1853 = vpop.f32.mrf.mxu0
    %v1854 = vadd.f32 %v1834, %v1853
    %1855 = vdwg.mxu0
    %1856 = vmatpush.msra.mxu0 %v601
    %1857 = vmatpush.msra.mxu0 %v598
    %1858 = vmatpush.msra.mxu0 %v595
    %1859 = vmatpush.msra.mxu0 %v592
    %1860 = vmatpush.msra.mxu0 %v589
    %1861 = vmatpush.msra.mxu0 %v586
    %1862 = vmatpush.msra.mxu0 %v583
    %1863 = vmatpush.msra.mxu0 %v580
    %1864 = vmatpush.msra.mxu0 %v577
    %1865 = vmatpush.msra.mxu0 %v574
    %1866 = vmatpush.msra.mxu0 %v571
    %1867 = vmatpush.msra.mxu0 %v568
    %1868 = vmatpush.msra.mxu0 %v565
    %1869 = vmatpush.msra.mxu0 %v562
    %1870 = vmatpush.msra.mxu0 %v559
    %1871 = vmatpush.msra.mxu0 %v556
    %1872 = vmatmul.f32.gmra.mxu0 %v1137
    %v1873 = vpop.f32.mrf.mxu0
    %v1874 = vadd.f32 %v1854, %v1873
    %1875 = vdwg.mxu0
    %1876 = vmatpush.msra.mxu0 %v649
    %1877 = vmatpush.msra.mxu0 %v646
    %1878 = vmatpush.msra.mxu0 %v643
    %1879 = vmatpush.msra.mxu0 %v640
    %1880 = vmatpush.msra.mxu0 %v637
    %1881 = vmatpush.msra.mxu0 %v634
    %1882 = vmatpush.msra.mxu0 %v631
    %1883 = vmatpush.msra.mxu0 %v628
    %1884 = vmatpush.msra.mxu0 %v625
    %1885 = vmatpush.msra.mxu0 %v622
    %1886 = vmatpush.msra.mxu0 %v619
    %1887 = vmatpush.msra.mxu0 %v616
    %1888 = vmatpush.msra.mxu0 %v613
    %1889 = vmatpush.msra.mxu0 %v610
    %1890 = vmatpush.msra.mxu0 %v607
    %1891 = vmatpush.msra.mxu0 %v604
    %1892 = vmatmul.f32.gmra.mxu0 %v1138
    %v1893 = vpop.f32.mrf.mxu0
    %v1894 = vadd.f32 %v1874, %v1893
    %1895 = vdwg.mxu0
    %1896 = vmatpush.msra.mxu0 %v697
    %1897 = vmatpush.msra.mxu0 %v694
    %1898 = vmatpush.msra.mxu0 %v691
    %1899 = vmatpush.msra.mxu0 %v688
    %1900 = vmatpush.msra.mxu0 %v685
    %1901 = vmatpush.msra.mxu0 %v682
    %1902 = vmatpush.msra.mxu0 %v679
    %1903 = vmatpush.msra.mxu0 %v676
    %1904 = vmatpush.msra.mxu0 %v673
    %1905 = vmatpush.msra.mxu0 %v670
    %1906 = vmatpush.msra.mxu0 %v667
    %1907 = vmatpush.msra.mxu0 %v664
    %1908 = vmatpush.msra.mxu0 %v661
    %1909 = vmatpush.msra.mxu0 %v658
    %1910 = vmatpush.msra.mxu0 %v655
    %1911 = vmatpush.msra.mxu0 %v652
    %1912 = vmatmul.f32.gmra.mxu0 %v1139
    %v1913 = vpop.f32.mrf.mxu0
    %v1914 = vadd.f32 %v1894, %v1913
    %1915 = vdwg.mxu0
    %1916 = vmatpush.msra.mxu0 %v745
    %1917 = vmatpush.msra.mxu0 %v742
    %1918 = vmatpush.msra.mxu0 %v739
    %1919 = vmatpush.msra.mxu0 %v736
    %1920 = vmatpush.msra.mxu0 %v733
    %1921 = vmatpush.msra.mxu0 %v730
    %1922 = vmatpush.msra.mxu0 %v727
    %1923 = vmatpush.msra.mxu0 %v724
    %1924 = vmatpush.msra.mxu0 %v721
    %1925 = vmatpush.msra.mxu0 %v718
    %1926 = vmatpush.msra.mxu0 %v715
    %1927 = vmatpush.msra.mxu0 %v712
    %1928 = vmatpush.msra.mxu0 %v709
    %1929 = vmatpush.msra.mxu0 %v706
    %1930 = vmatpush.msra.mxu0 %v703
    %1931 = vmatpush.msra.mxu0 %v700
    %1932 = vmatmul.f32.gmra.mxu0 %v1140
    %v1933 = vpop.f32.mrf.mxu0
    %v1934 = vadd.f32 %v1914, %v1933
    %1935 = vdwg.mxu0
    %1936 = vmatpush.msra.mxu0 %v793
    %1937 = vmatpush.msra.mxu0 %v790
    %1938 = vmatpush.msra.mxu0 %v787
    %1939 = vmatpush.msra.mxu0 %v784
    %1940 = vmatpush.msra.mxu0 %v781
    %1941 = vmatpush.msra.mxu0 %v778
    %1942 = vmatpush.msra.mxu0 %v775
    %1943 = vmatpush.msra.mxu0 %v772
    %1944 = vmatpush.msra.mxu0 %v769
    %1945 = vmatpush.msra.mxu0 %v766
    %1946 = vmatpush.msra.mxu0 %v763
    %1947 = vmatpush.msra.mxu0 %v760
    %1948 = vmatpush.msra.mxu0 %v757
    %1949 = vmatpush.msra.mxu0 %v754
    %1950 = vmatpush.msra.mxu0 %v751
    %1951 = vmatpush.msra.mxu0 %v748
    %1952 = vmatmul.f32.gmra.mxu0 %v1141
    %v1953 = vpop.f32.mrf.mxu0
    %v1954 = vadd.f32 %v1934, %v1953
    %1955 = vdwg.mxu0
    %1956 = vmatpush.msra.mxu0 %v841
    %1957 = vmatpush.msra.mxu0 %v838
    %1958 = vmatpush.msra.mxu0 %v835
    %1959 = vmatpush.msra.mxu0 %v832
    %1960 = vmatpush.msra.mxu0 %v829
    %1961 = vmatpush.msra.mxu0 %v826
    %1962 = vmatpush.msra.mxu0 %v823
    %1963 = vmatpush.msra.mxu0 %v820
    %1964 = vmatpush.msra.mxu0 %v817
    %1965 = vmatpush.msra.mxu0 %v814
    %1966 = vmatpush.msra.mxu0 %v811
    %1967 = vmatpush.msra.mxu0 %v808
    %1968 = vmatpush.msra.mxu0 %v805
    %1969 = vmatpush.msra.mxu0 %v802
    %1970 = vmatpush.msra.mxu0 %v799
    %1971 = vmatpush.msra.mxu0 %v796
    %1972 = vmatmul.f32.gmra.mxu0 %v1144
    %v1973 = vpop.f32.mrf.mxu0
    %v1974 = vadd.f32 %v1954, %v1973
    %1975 = vdwg.mxu0
    %1976 = vmatpush.msra.mxu0 %v889
    %1977 = vmatpush.msra.mxu0 %v886
    %1978 = vmatpush.msra.mxu0 %v883
    %1979 = vmatpush.msra.mxu0 %v880
    %1980 = vmatpush.msra.mxu0 %v877
    %1981 = vmatpush.msra.mxu0 %v874
    %1982 = vmatpush.msra.mxu0 %v871
    %1983 = vmatpush.msra.mxu0 %v868
    %1984 = vmatpush.msra.mxu0 %v865
    %1985 = vmatpush.msra.mxu0 %v862
    %1986 = vmatpush.msra.mxu0 %v859
    %1987 = vmatpush.msra.mxu0 %v856
    %1988 = vmatpush.msra.mxu0 %v853
    %1989 = vmatpush.msra.mxu0 %v850
    %1990 = vmatpush.msra.mxu0 %v847
    %1991 = vmatpush.msra.mxu0 %v844
    %1992 = vmatmul.f32.gmra.mxu0 %v1145
    %v1993 = vpop.f32.mrf.mxu0
    %v1994 = vadd.f32 %v1974, %v1993
    %1995 = vdwg.mxu0
    %1996 = vmatpush.msra.mxu0 %v937
    %1997 = vmatpush.msra.mxu0 %v934
    %1998 = vmatpush.msra.mxu0 %v931
    %1999 = vmatpush.msra.mxu0 %v928
    %2000 = vmatpush.msra.mxu0 %v925
    %2001 = vmatpush.msra.mxu0 %v922
    %2002 = vmatpush.msra.mxu0 %v919
    %2003 = vmatpush.msra.mxu0 %v916
    %2004 = vmatpush.msra.mxu0 %v913
    %2005 = vmatpush.msra.mxu0 %v910
    %2006 = vmatpush.msra.mxu0 %v907
    %2007 = vmatpush.msra.mxu0 %v904
    %2008 = vmatpush.msra.mxu0 %v901
    %2009 = vmatpush.msra.mxu0 %v898
    %2010 = vmatpush.msra.mxu0 %v895
    %2011 = vmatpush.msra.mxu0 %v892
    %2012 = vmatmul.f32.gmra.mxu0 %v1146
    %v2013 = vpop.f32.mrf.mxu0
    %v2014 = vadd.f32 %v1994, %v2013
    %2015 = vdwg.mxu0
    %2016 = vmatpush.msra.mxu0 %v985
    %2017 = vmatpush.msra.mxu0 %v982
    %2018 = vmatpush.msra.mxu0 %v979
    %2019 = vmatpush.msra.mxu0 %v976
    %2020 = vmatpush.msra.mxu0 %v973
    %2021 = vmatpush.msra.mxu0 %v970
    %2022 = vmatpush.msra.mxu0 %v967
    %2023 = vmatpush.msra.mxu0 %v964
    %2024 = vmatpush.msra.mxu0 %v961
    %2025 = vmatpush.msra.mxu0 %v958
    %2026 = vmatpush.msra.mxu0 %v955
    %2027 = vmatpush.msra.mxu0 %v952
    %2028 = vmatpush.msra.mxu0 %v949
    %2029 = vmatpush.msra.mxu0 %v946
    %2030 = vmatpush.msra.mxu0 %v943
    %2031 = vmatpush.msra.mxu0 %v940
    %2032 = vmatmul.f32.gmra.mxu0 %v1147
    %v2033 = vpop.f32.mrf.mxu0
    %v2034 = vadd.f32 %v2014, %v2033
    %2035 = vdwg.mxu0
    %2036 = vmatpush.msra.mxu0 %v1033
    %2037 = vmatpush.msra.mxu0 %v1030
    %2038 = vmatpush.msra.mxu0 %v1027
    %2039 = vmatpush.msra.mxu0 %v1024
    %2040 = vmatpush.msra.mxu0 %v1021
    %2041 = vmatpush.msra.mxu0 %v1018
    %2042 = vmatpush.msra.mxu0 %v1015
    %2043 = vmatpush.msra.mxu0 %v1012
    %2044 = vmatpush.msra.mxu0 %v1009
    %2045 = vmatpush.msra.mxu0 %v1006
    %2046 = vmatpush.msra.mxu0 %v1003
    %2047 = vmatpush.msra.mxu0 %v1000
    %2048 = vmatpush.msra.mxu0 %v997
    %2049 = vmatpush.msra.mxu0 %v994
    %2050 = vmatpush.msra.mxu0 %v991
    %2051 = vmatpush.msra.mxu0 %v988
    %2052 = vmatmul.f32.gmra.mxu0 %v1148
    %v2053 = vpop.f32.mrf.mxu0
    %v2054 = vadd.f32 %v2034, %v2053
    %2055 = vdwg.mxu0
    %2056 = vmatpush.msra.mxu0 %v1081
    %2057 = vmatpush.msra.mxu0 %v1078
    %2058 = vmatpush.msra.mxu0 %v1075
    %2059 = vmatpush.msra.mxu0 %v1072
    %2060 = vmatpush.msra.mxu0 %v1069
    %2061 = vmatpush.msra.mxu0 %v1066
    %2062 = vmatpush.msra.mxu0 %v1063
    %2063 = vmatpush.msra.mxu0 %v1060
    %2064 = vmatpush.msra.mxu0 %v1057
    %2065 = vmatpush.msra.mxu0 %v1054
    %2066 = vmatpush.msra.mxu0 %v1051
    %2067 = vmatpush.msra.mxu0 %v1048
    %2068 = vmatpush.msra.mxu0 %v1045
    %2069 = vmatpush.msra.mxu0 %v1042
    %2070 = vmatpush.msra.mxu0 %v1039
    %2071 = vmatpush.msra.mxu0 %v1036
    %2072 = vmatmul.f32.gmra.mxu0 %v1149
    %v2073 = vpop.f32.mrf.mxu0
    %v2074 = vadd.f32 %v2054, %v2073
    %2075 = vdwg.mxu0
    %2076 = vmatpush.msra.mxu0 0.0
    %2077 = vmatpush.msra.mxu0 0.0
    %2078 = vmatpush.msra.mxu0 0.0
    %2079 = vmatpush.msra.mxu0 0.0
    %2080 = vmatpush.msra.mxu0 0.0
    %2081 = vmatpush.msra.mxu0 0.0
    %2082 = vmatpush.msra.mxu0 0.0
    %2083 = vmatpush.msra.mxu0 0.0
    %2084 = vmatpush.msra.mxu0 %v1105
    %2085 = vmatpush.msra.mxu0 %v1102
    %2086 = vmatpush.msra.mxu0 %v1099
    %2087 = vmatpush.msra.mxu0 %v1096
    %2088 = vmatpush.msra.mxu0 %v1093
    %2089 = vmatpush.msra.mxu0 %v1090
    %2090 = vmatpush.msra.mxu0 %v1087
    %2091 = vmatpush.msra.mxu0 %v1084
    %2092 = vmatmul.f32.gmra.mxu0 %v1174
    %v2093 = vpop.f32.mrf.mxu0
    %v2094 = vadd.f32 %v2074, %v2093
    %2095 = vdwg.mxu0
    %2096 = vmatpush.msra.mxu0 %v74
    %2097 = vmatpush.msra.mxu0 %v71
    %2098 = vmatpush.msra.mxu0 %v68
    %2099 = vmatpush.msra.mxu0 %v65
    %2100 = vmatpush.msra.mxu0 %v62
    %2101 = vmatpush.msra.mxu0 %v59
    %2102 = vmatpush.msra.mxu0 %v56
    %2103 = vmatpush.msra.mxu0 %v53
    %2104 = vmatpush.msra.mxu0 %v50
    %2105 = vmatpush.msra.mxu0 %v47
    %2106 = vmatpush.msra.mxu0 %v44
    %2107 = vmatpush.msra.mxu0 %v41
    %2108 = vmatpush.msra.mxu0 %v38
    %2109 = vmatpush.msra.mxu0 %v35
    %2110 = vmatpush.msra.mxu0 %v32
    %2111 = vmatpush.msra.mxu0 %v29
    %2112 = vmatmul.f32.gmra.mxu0 %v1124
    %v2113 = vpop.f32.mrf.mxu0
    %v2114 = vadd.f32 %v1111, %v2113
    %2115 = vdwg.mxu0
    %2116 = vmatpush.msra.mxu0 %v122
    %2117 = vmatpush.msra.mxu0 %v119
    %2118 = vmatpush.msra.mxu0 %v116
    %2119 = vmatpush.msra.mxu0 %v113
    %2120 = vmatpush.msra.mxu0 %v110
    %2121 = vmatpush.msra.mxu0 %v107
    %2122 = vmatpush.msra.mxu0 %v104
    %2123 = vmatpush.msra.mxu0 %v101
    %2124 = vmatpush.msra.mxu0 %v98
    %2125 = vmatpush.msra.mxu0 %v95
    %2126 = vmatpush.msra.mxu0 %v92
    %2127 = vmatpush.msra.mxu0 %v89
    %2128 = vmatpush.msra.mxu0 %v86
    %2129 = vmatpush.msra.mxu0 %v83
    %2130 = vmatpush.msra.mxu0 %v80
    %2131 = vmatpush.msra.mxu0 %v77
    %2132 = vmatmul.f32.gmra.mxu0 %v1125
    %v2133 = vpop.f32.mrf.mxu0
    %v2134 = vadd.f32 %v2114, %v2133
    %2135 = vdwg.mxu0
    %2136 = vmatpush.msra.mxu0 %v170
    %2137 = vmatpush.msra.mxu0 %v167
    %2138 = vmatpush.msra.mxu0 %v164
    %2139 = vmatpush.msra.mxu0 %v161
    %2140 = vmatpush.msra.mxu0 %v158
    %2141 = vmatpush.msra.mxu0 %v155
    %2142 = vmatpush.msra.mxu0 %v152
    %2143 = vmatpush.msra.mxu0 %v149
    %2144 = vmatpush.msra.mxu0 %v146
    %2145 = vmatpush.msra.mxu0 %v143
    %2146 = vmatpush.msra.mxu0 %v140
    %2147 = vmatpush.msra.mxu0 %v137
    %2148 = vmatpush.msra.mxu0 %v134
    %2149 = vmatpush.msra.mxu0 %v131
    %2150 = vmatpush.msra.mxu0 %v128
    %2151 = vmatpush.msra.mxu0 %v125
    %2152 = vmatmul.f32.gmra.mxu0 %v1126
    %v2153 = vpop.f32.mrf.mxu0
    %v2154 = vadd.f32 %v2134, %v2153
    %2155 = vdwg.mxu0
    %2156 = vmatpush.msra.mxu0 %v218
    %2157 = vmatpush.msra.mxu0 %v215
    %2158 = vmatpush.msra.mxu0 %v212
    %2159 = vmatpush.msra.mxu0 %v209
    %2160 = vmatpush.msra.mxu0 %v206
    %2161 = vmatpush.msra.mxu0 %v203
    %2162 = vmatpush.msra.mxu0 %v200
    %2163 = vmatpush.msra.mxu0 %v197
    %2164 = vmatpush.msra.mxu0 %v194
    %2165 = vmatpush.msra.mxu0 %v191
    %2166 = vmatpush.msra.mxu0 %v188
    %2167 = vmatpush.msra.mxu0 %v185
    %2168 = vmatpush.msra.mxu0 %v182
    %2169 = vmatpush.msra.mxu0 %v179
    %2170 = vmatpush.msra.mxu0 %v176
    %2171 = vmatpush.msra.mxu0 %v173
    %2172 = vmatmul.f32.gmra.mxu0 %v1127
    %v2173 = vpop.f32.mrf.mxu0
    %v2174 = vadd.f32 %v2154, %v2173
    %2175 = vdwg.mxu0
    %2176 = vmatpush.msra.mxu0 %v266
    %2177 = vmatpush.msra.mxu0 %v263
    %2178 = vmatpush.msra.mxu0 %v260
    %2179 = vmatpush.msra.mxu0 %v257
    %2180 = vmatpush.msra.mxu0 %v254
    %2181 = vmatpush.msra.mxu0 %v251
    %2182 = vmatpush.msra.mxu0 %v248
    %2183 = vmatpush.msra.mxu0 %v245
    %2184 = vmatpush.msra.mxu0 %v242
    %2185 = vmatpush.msra.mxu0 %v239
    %2186 = vmatpush.msra.mxu0 %v236
    %2187 = vmatpush.msra.mxu0 %v233
    %2188 = vmatpush.msra.mxu0 %v230
    %2189 = vmatpush.msra.mxu0 %v227
    %2190 = vmatpush.msra.mxu0 %v224
    %2191 = vmatpush.msra.mxu0 %v221
    %2192 = vmatmul.f32.gmra.mxu0 %v1128
    %v2193 = vpop.f32.mrf.mxu0
    %v2194 = vadd.f32 %v2174, %v2193
    %2195 = vdwg.mxu0
    %2196 = vmatpush.msra.mxu0 %v314
    %2197 = vmatpush.msra.mxu0 %v311
    %2198 = vmatpush.msra.mxu0 %v308
    %2199 = vmatpush.msra.mxu0 %v305
    %2200 = vmatpush.msra.mxu0 %v302
    %2201 = vmatpush.msra.mxu0 %v299
    %2202 = vmatpush.msra.mxu0 %v296
    %2203 = vmatpush.msra.mxu0 %v293
    %2204 = vmatpush.msra.mxu0 %v290
    %2205 = vmatpush.msra.mxu0 %v287
    %2206 = vmatpush.msra.mxu0 %v284
    %2207 = vmatpush.msra.mxu0 %v281
    %2208 = vmatpush.msra.mxu0 %v278
    %2209 = vmatpush.msra.mxu0 %v275
    %2210 = vmatpush.msra.mxu0 %v272
    %2211 = vmatpush.msra.mxu0 %v269
    %2212 = vmatmul.f32.gmra.mxu0 %v1129
    %v2213 = vpop.f32.mrf.mxu0
    %v2214 = vadd.f32 %v2194, %v2213
    %2215 = vdwg.mxu0
    %2216 = vmatpush.msra.mxu0 %v362
    %2217 = vmatpush.msra.mxu0 %v359
    %2218 = vmatpush.msra.mxu0 %v356
    %2219 = vmatpush.msra.mxu0 %v353
    %2220 = vmatpush.msra.mxu0 %v350
    %2221 = vmatpush.msra.mxu0 %v347
    %2222 = vmatpush.msra.mxu0 %v344
    %2223 = vmatpush.msra.mxu0 %v341
    %2224 = vmatpush.msra.mxu0 %v338
    %2225 = vmatpush.msra.mxu0 %v335
    %2226 = vmatpush.msra.mxu0 %v332
    %2227 = vmatpush.msra.mxu0 %v329
    %2228 = vmatpush.msra.mxu0 %v326
    %2229 = vmatpush.msra.mxu0 %v323
    %2230 = vmatpush.msra.mxu0 %v320
    %2231 = vmatpush.msra.mxu0 %v317
    %2232 = vmatmul.f32.gmra.mxu0 %v1130
    %v2233 = vpop.f32.mrf.mxu0
    %v2234 = vadd.f32 %v2214, %v2233
    %2235 = vdwg.mxu0
    %2236 = vmatpush.msra.mxu0 %v410
    %2237 = vmatpush.msra.mxu0 %v407
    %2238 = vmatpush.msra.mxu0 %v404
    %2239 = vmatpush.msra.mxu0 %v401
    %2240 = vmatpush.msra.mxu0 %v398
    %2241 = vmatpush.msra.mxu0 %v395
    %2242 = vmatpush.msra.mxu0 %v392
    %2243 = vmatpush.msra.mxu0 %v389
    %2244 = vmatpush.msra.mxu0 %v386
    %2245 = vmatpush.msra.mxu0 %v383
    %2246 = vmatpush.msra.mxu0 %v380
    %2247 = vmatpush.msra.mxu0 %v377
    %2248 = vmatpush.msra.mxu0 %v374
    %2249 = vmatpush.msra.mxu0 %v371
    %2250 = vmatpush.msra.mxu0 %v368
    %2251 = vmatpush.msra.mxu0 %v365
    %2252 = vmatmul.f32.gmra.mxu0 %v1131
    %v2253 = vpop.f32.mrf.mxu0
    %v2254 = vadd.f32 %v2234, %v2253
    %2255 = vdwg.mxu0
    %2256 = vmatpush.msra.mxu0 %v458
    %2257 = vmatpush.msra.mxu0 %v455
    %2258 = vmatpush.msra.mxu0 %v452
    %2259 = vmatpush.msra.mxu0 %v449
    %2260 = vmatpush.msra.mxu0 %v446
    %2261 = vmatpush.msra.mxu0 %v443
    %2262 = vmatpush.msra.mxu0 %v440
    %2263 = vmatpush.msra.mxu0 %v437
    %2264 = vmatpush.msra.mxu0 %v434
    %2265 = vmatpush.msra.mxu0 %v431
    %2266 = vmatpush.msra.mxu0 %v428
    %2267 = vmatpush.msra.mxu0 %v425
    %2268 = vmatpush.msra.mxu0 %v422
    %2269 = vmatpush.msra.mxu0 %v419
    %2270 = vmatpush.msra.mxu0 %v416
    %2271 = vmatpush.msra.mxu0 %v413
    %2272 = vmatmul.f32.gmra.mxu0 %v1134
    %v2273 = vpop.f32.mrf.mxu0
    %v2274 = vadd.f32 %v2254, %v2273
    %2275 = vdwg.mxu0
    %2276 = vmatpush.msra.mxu0 %v506
    %2277 = vmatpush.msra.mxu0 %v503
    %2278 = vmatpush.msra.mxu0 %v500
    %2279 = vmatpush.msra.mxu0 %v497
    %2280 = vmatpush.msra.mxu0 %v494
    %2281 = vmatpush.msra.mxu0 %v491
    %2282 = vmatpush.msra.mxu0 %v488
    %2283 = vmatpush.msra.mxu0 %v485
    %2284 = vmatpush.msra.mxu0 %v482
    %2285 = vmatpush.msra.mxu0 %v479
    %2286 = vmatpush.msra.mxu0 %v476
    %2287 = vmatpush.msra.mxu0 %v473
    %2288 = vmatpush.msra.mxu0 %v470
    %2289 = vmatpush.msra.mxu0 %v467
    %2290 = vmatpush.msra.mxu0 %v464
    %2291 = vmatpush.msra.mxu0 %v461
    %2292 = vmatmul.f32.gmra.mxu0 %v1135
    %v2293 = vpop.f32.mrf.mxu0
    %v2294 = vadd.f32 %v2274, %v2293
    %2295 = vdwg.mxu0
    %2296 = vmatpush.msra.mxu0 %v554
    %2297 = vmatpush.msra.mxu0 %v551
    %2298 = vmatpush.msra.mxu0 %v548
    %2299 = vmatpush.msra.mxu0 %v545
    %2300 = vmatpush.msra.mxu0 %v542
    %2301 = vmatpush.msra.mxu0 %v539
    %2302 = vmatpush.msra.mxu0 %v536
    %2303 = vmatpush.msra.mxu0 %v533
    %2304 = vmatpush.msra.mxu0 %v530
    %2305 = vmatpush.msra.mxu0 %v527
    %2306 = vmatpush.msra.mxu0 %v524
    %2307 = vmatpush.msra.mxu0 %v521
    %2308 = vmatpush.msra.mxu0 %v518
    %2309 = vmatpush.msra.mxu0 %v515
    %2310 = vmatpush.msra.mxu0 %v512
    %2311 = vmatpush.msra.mxu0 %v509
    %2312 = vmatmul.f32.gmra.mxu0 %v1136
    %v2313 = vpop.f32.mrf.mxu0
    %v2314 = vadd.f32 %v2294, %v2313
    %2315 = vdwg.mxu0
    %2316 = vmatpush.msra.mxu0 %v602
    %2317 = vmatpush.msra.mxu0 %v599
    %2318 = vmatpush.msra.mxu0 %v596
    %2319 = vmatpush.msra.mxu0 %v593
    %2320 = vmatpush.msra.mxu0 %v590
    %2321 = vmatpush.msra.mxu0 %v587
    %2322 = vmatpush.msra.mxu0 %v584
    %2323 = vmatpush.msra.mxu0 %v581
    %2324 = vmatpush.msra.mxu0 %v578
    %2325 = vmatpush.msra.mxu0 %v575
    %2326 = vmatpush.msra.mxu0 %v572
    %2327 = vmatpush.msra.mxu0 %v569
    %2328 = vmatpush.msra.mxu0 %v566
    %2329 = vmatpush.msra.mxu0 %v563
    %2330 = vmatpush.msra.mxu0 %v560
    %2331 = vmatpush.msra.mxu0 %v557
    %2332 = vmatmul.f32.gmra.mxu0 %v1137
    %v2333 = vpop.f32.mrf.mxu0
    %v2334 = vadd.f32 %v2314, %v2333
    %2335 = vdwg.mxu0
    %2336 = vmatpush.msra.mxu0 %v650
    %2337 = vmatpush.msra.mxu0 %v647
    %2338 = vmatpush.msra.mxu0 %v644
    %2339 = vmatpush.msra.mxu0 %v641
    %2340 = vmatpush.msra.mxu0 %v638
    %2341 = vmatpush.msra.mxu0 %v635
    %2342 = vmatpush.msra.mxu0 %v632
    %2343 = vmatpush.msra.mxu0 %v629
    %2344 = vmatpush.msra.mxu0 %v626
    %2345 = vmatpush.msra.mxu0 %v623
    %2346 = vmatpush.msra.mxu0 %v620
    %2347 = vmatpush.msra.mxu0 %v617
    %2348 = vmatpush.msra.mxu0 %v614
    %2349 = vmatpush.msra.mxu0 %v611
    %2350 = vmatpush.msra.mxu0 %v608
    %2351 = vmatpush.msra.mxu0 %v605
    %2352 = vmatmul.f32.gmra.mxu0 %v1138
    %v2353 = vpop.f32.mrf.mxu0
    %v2354 = vadd.f32 %v2334, %v2353
    %2355 = vdwg.mxu0
    %2356 = vmatpush.msra.mxu0 %v698
    %2357 = vmatpush.msra.mxu0 %v695
    %2358 = vmatpush.msra.mxu0 %v692
    %2359 = vmatpush.msra.mxu0 %v689
    %2360 = vmatpush.msra.mxu0 %v686
    %2361 = vmatpush.msra.mxu0 %v683
    %2362 = vmatpush.msra.mxu0 %v680
    %2363 = vmatpush.msra.mxu0 %v677
    %2364 = vmatpush.msra.mxu0 %v674
    %2365 = vmatpush.msra.mxu0 %v671
    %2366 = vmatpush.msra.mxu0 %v668
    %2367 = vmatpush.msra.mxu0 %v665
    %2368 = vmatpush.msra.mxu0 %v662
    %2369 = vmatpush.msra.mxu0 %v659
    %2370 = vmatpush.msra.mxu0 %v656
    %2371 = vmatpush.msra.mxu0 %v653
    %2372 = vmatmul.f32.gmra.mxu0 %v1139
    %v2373 = vpop.f32.mrf.mxu0
    %v2374 = vadd.f32 %v2354, %v2373
    %2375 = vdwg.mxu0
    %2376 = vmatpush.msra.mxu0 %v746
    %2377 = vmatpush.msra.mxu0 %v743
    %2378 = vmatpush.msra.mxu0 %v740
    %2379 = vmatpush.msra.mxu0 %v737
    %2380 = vmatpush.msra.mxu0 %v734
    %2381 = vmatpush.msra.mxu0 %v731
    %2382 = vmatpush.msra.mxu0 %v728
    %2383 = vmatpush.msra.mxu0 %v725
    %2384 = vmatpush.msra.mxu0 %v722
    %2385 = vmatpush.msra.mxu0 %v719
    %2386 = vmatpush.msra.mxu0 %v716
    %2387 = vmatpush.msra.mxu0 %v713
    %2388 = vmatpush.msra.mxu0 %v710
    %2389 = vmatpush.msra.mxu0 %v707
    %2390 = vmatpush.msra.mxu0 %v704
    %2391 = vmatpush.msra.mxu0 %v701
    %2392 = vmatmul.f32.gmra.mxu0 %v1140
    %v2393 = vpop.f32.mrf.mxu0
    %v2394 = vadd.f32 %v2374, %v2393
    %2395 = vdwg.mxu0
    %2396 = vmatpush.msra.mxu0 %v794
    %2397 = vmatpush.msra.mxu0 %v791
    %2398 = vmatpush.msra.mxu0 %v788
    %2399 = vmatpush.msra.mxu0 %v785
    %2400 = vmatpush.msra.mxu0 %v782
    %2401 = vmatpush.msra.mxu0 %v779
    %2402 = vmatpush.msra.mxu0 %v776
    %2403 = vmatpush.msra.mxu0 %v773
    %2404 = vmatpush.msra.mxu0 %v770
    %2405 = vmatpush.msra.mxu0 %v767
    %2406 = vmatpush.msra.mxu0 %v764
    %2407 = vmatpush.msra.mxu0 %v761
    %2408 = vmatpush.msra.mxu0 %v758
    %2409 = vmatpush.msra.mxu0 %v755
    %2410 = vmatpush.msra.mxu0 %v752
    %2411 = vmatpush.msra.mxu0 %v749
    %2412 = vmatmul.f32.gmra.mxu0 %v1141
    %v2413 = vpop.f32.mrf.mxu0
    %v2414 = vadd.f32 %v2394, %v2413
    %2415 = vdwg.mxu0
    %2416 = vmatpush.msra.mxu0 %v842
    %2417 = vmatpush.msra.mxu0 %v839
    %2418 = vmatpush.msra.mxu0 %v836
    %2419 = vmatpush.msra.mxu0 %v833
    %2420 = vmatpush.msra.mxu0 %v830
    %2421 = vmatpush.msra.mxu0 %v827
    %2422 = vmatpush.msra.mxu0 %v824
    %2423 = vmatpush.msra.mxu0 %v821
    %2424 = vmatpush.msra.mxu0 %v818
    %2425 = vmatpush.msra.mxu0 %v815
    %2426 = vmatpush.msra.mxu0 %v812
    %2427 = vmatpush.msra.mxu0 %v809
    %2428 = vmatpush.msra.mxu0 %v806
    %2429 = vmatpush.msra.mxu0 %v803
    %2430 = vmatpush.msra.mxu0 %v800
    %2431 = vmatpush.msra.mxu0 %v797
    %2432 = vmatmul.f32.gmra.mxu0 %v1144
    %v2433 = vpop.f32.mrf.mxu0
    %v2434 = vadd.f32 %v2414, %v2433
    %2435 = vdwg.mxu0
    %2436 = vmatpush.msra.mxu0 %v890
    %2437 = vmatpush.msra.mxu0 %v887
    %2438 = vmatpush.msra.mxu0 %v884
    %2439 = vmatpush.msra.mxu0 %v881
    %2440 = vmatpush.msra.mxu0 %v878
    %2441 = vmatpush.msra.mxu0 %v875
    %2442 = vmatpush.msra.mxu0 %v872
    %2443 = vmatpush.msra.mxu0 %v869
    %2444 = vmatpush.msra.mxu0 %v866
    %2445 = vmatpush.msra.mxu0 %v863
    %2446 = vmatpush.msra.mxu0 %v860
    %2447 = vmatpush.msra.mxu0 %v857
    %2448 = vmatpush.msra.mxu0 %v854
    %2449 = vmatpush.msra.mxu0 %v851
    %2450 = vmatpush.msra.mxu0 %v848
    %2451 = vmatpush.msra.mxu0 %v845
    %2452 = vmatmul.f32.gmra.mxu0 %v1145
    %v2453 = vpop.f32.mrf.mxu0
    %v2454 = vadd.f32 %v2434, %v2453
    %2455 = vdwg.mxu0
    %2456 = vmatpush.msra.mxu0 %v938
    %2457 = vmatpush.msra.mxu0 %v935
    %2458 = vmatpush.msra.mxu0 %v932
    %2459 = vmatpush.msra.mxu0 %v929
    %2460 = vmatpush.msra.mxu0 %v926
    %2461 = vmatpush.msra.mxu0 %v923
    %2462 = vmatpush.msra.mxu0 %v920
    %2463 = vmatpush.msra.mxu0 %v917
    %2464 = vmatpush.msra.mxu0 %v914
    %2465 = vmatpush.msra.mxu0 %v911
    %2466 = vmatpush.msra.mxu0 %v908
    %2467 = vmatpush.msra.mxu0 %v905
    %2468 = vmatpush.msra.mxu0 %v902
    %2469 = vmatpush.msra.mxu0 %v899
    %2470 = vmatpush.msra.mxu0 %v896
    %2471 = vmatpush.msra.mxu0 %v893
    %2472 = vmatmul.f32.gmra.mxu0 %v1146
    %v2473 = vpop.f32.mrf.mxu0
    %v2474 = vadd.f32 %v2454, %v2473
    %2475 = vdwg.mxu0
    %2476 = vmatpush.msra.mxu0 %v986
    %2477 = vmatpush.msra.mxu0 %v983
    %2478 = vmatpush.msra.mxu0 %v980
    %2479 = vmatpush.msra.mxu0 %v977
    %2480 = vmatpush.msra.mxu0 %v974
    %2481 = vmatpush.msra.mxu0 %v971
    %2482 = vmatpush.msra.mxu0 %v968
    %2483 = vmatpush.msra.mxu0 %v965
    %2484 = vmatpush.msra.mxu0 %v962
    %2485 = vmatpush.msra.mxu0 %v959
    %2486 = vmatpush.msra.mxu0 %v956
    %2487 = vmatpush.msra.mxu0 %v953
    %2488 = vmatpush.msra.mxu0 %v950
    %2489 = vmatpush.msra.mxu0 %v947
    %2490 = vmatpush.msra.mxu0 %v944
    %2491 = vmatpush.msra.mxu0 %v941
    %2492 = vmatmul.f32.gmra.mxu0 %v1147
    %v2493 = vpop.f32.mrf.mxu0
    %v2494 = vadd.f32 %v2474, %v2493
    %2495 = vdwg.mxu0
    %2496 = vmatpush.msra.mxu0 %v1034
    %2497 = vmatpush.msra.mxu0 %v1031
    %2498 = vmatpush.msra.mxu0 %v1028
    %2499 = vmatpush.msra.mxu0 %v1025
    %2500 = vmatpush.msra.mxu0 %v1022
    %2501 = vmatpush.msra.mxu0 %v1019
    %2502 = vmatpush.msra.mxu0 %v1016
    %2503 = vmatpush.msra.mxu0 %v1013
    %2504 = vmatpush.msra.mxu0 %v1010
    %2505 = vmatpush.msra.mxu0 %v1007
    %2506 = vmatpush.msra.mxu0 %v1004
    %2507 = vmatpush.msra.mxu0 %v1001
    %2508 = vmatpush.msra.mxu0 %v998
    %2509 = vmatpush.msra.mxu0 %v995
    %2510 = vmatpush.msra.mxu0 %v992
    %2511 = vmatpush.msra.mxu0 %v989
    %2512 = vmatmul.f32.gmra.mxu0 %v1148
    %v2513 = vpop.f32.mrf.mxu0
    %v2514 = vadd.f32 %v2494, %v2513
    %2515 = vdwg.mxu0
    %2516 = vmatpush.msra.mxu0 %v1082
    %2517 = vmatpush.msra.mxu0 %v1079
    %2518 = vmatpush.msra.mxu0 %v1076
    %2519 = vmatpush.msra.mxu0 %v1073
    %2520 = vmatpush.msra.mxu0 %v1070
    %2521 = vmatpush.msra.mxu0 %v1067
    %2522 = vmatpush.msra.mxu0 %v1064
    %2523 = vmatpush.msra.mxu0 %v1061
    %2524 = vmatpush.msra.mxu0 %v1058
    %2525 = vmatpush.msra.mxu0 %v1055
    %2526 = vmatpush.msra.mxu0 %v1052
    %2527 = vmatpush.msra.mxu0 %v1049
    %2528 = vmatpush.msra.mxu0 %v1046
    %2529 = vmatpush.msra.mxu0 %v1043
    %2530 = vmatpush.msra.mxu0 %v1040
    %2531 = vmatpush.msra.mxu0 %v1037
    %2532 = vmatmul.f32.gmra.mxu0 %v1149
    %v2533 = vpop.f32.mrf.mxu0
    %v2534 = vadd.f32 %v2514, %v2533
    %2535 = vdwg.mxu0
    %2536 = vmatpush.msra.mxu0 0.0
    %2537 = vmatpush.msra.mxu0 0.0
    %2538 = vmatpush.msra.mxu0 0.0
    %2539 = vmatpush.msra.mxu0 0.0
    %2540 = vmatpush.msra.mxu0 0.0
    %2541 = vmatpush.msra.mxu0 0.0
    %2542 = vmatpush.msra.mxu0 0.0
    %2543 = vmatpush.msra.mxu0 0.0
    %2544 = vmatpush.msra.mxu0 %v1106
    %2545 = vmatpush.msra.mxu0 %v1103
    %2546 = vmatpush.msra.mxu0 %v1100
    %2547 = vmatpush.msra.mxu0 %v1097
    %2548 = vmatpush.msra.mxu0 %v1094
    %2549 = vmatpush.msra.mxu0 %v1091
    %2550 = vmatpush.msra.mxu0 %v1088
    %2551 = vmatpush.msra.mxu0 %v1085
    %2552 = vmatmul.f32.gmra.mxu0 %v1174
    %v2553 = vpop.f32.mrf.mxu0
    %v2554 = vadd.f32 %v2534, %v2553
    %2555 = vdwg.mxu0
    %v2556 = vmax.f32 %v1634, 0.0
    %v2557 = vmax.f32 %v2094, 0.0
    %v2558 = vmax.f32 %v2554, 0.0
    %v2559 = vld [vmem:[%s3] sm:$0xff]
    %v2560 = vld [vmem:[%s3 + $0x8] sm:$0xff]
    %v2561 = vld [vmem:[%s3 + $0x10] sm:$0xff]
    %v2562 = vld [vmem:[%s3 + $0x18] sm:$0xff]
    %v2563 = vld [vmem:[%s3 + $0x20] sm:$0xff]
    %v2564 = vld [vmem:[%s3 + $0x28] sm:$0xff]
    %v2565 = vld [vmem:[%s3 + $0x30] sm:$0xff]
    %v2566 = vld [vmem:[%s3 + $0x38] sm:$0xff]
    %v2567 = vld [vmem:[%s3 + $0x40] sm:$0xff]
    %v2568 = vld [vmem:[%s3 + $0x48] sm:$0xff]
    %v2569 = vld [vmem:[%s3 + $0x50] sm:$0xff]
    %v2570 = vld [vmem:[%s3 + $0x58] sm:$0xff]
    %v2571 = vld [vmem:[%s3 + $0x60] sm:$0xff]
    %v2572 = vld [vmem:[%s3 + $0x68] sm:$0xff]
    %v2573 = vld [vmem:[%s3 + $0x70] sm:$0xff]
    %v2574 = vld [vmem:[%s3 + $0x78] sm:$0xff]
    %v2575 = vld [vmem:[%s3 + $0x80] sm:$0xff]
    %v2576 = vld [vmem:[%s3 + $0x88] sm:$0xff]
    %v2577 = vld [vmem:[%s3 + $0x90] sm:$0xff]
    %v2578 = vld [vmem:[%s3 + $0x98] sm:$0xff]
    %v2579 = vld [vmem:[%s3 + $0xa0] sm:$0xff]
    %v2580 = vld [vmem:[%s3 + $0xa8] sm:$0xff]
    %v2581 = vld [vmem:[%s3 + $0xb0] sm:$0xff]
    %v2582 = vld [vmem:[%s3 + $0xb8] sm:$0xff]
    %v2583 = vld [vmem:[%s3 + $0xc0] sm:$0xff]
    %v2584 = vld [vmem:[%s3 + $0xc8] sm:$0xff]
    %v2585 = vld [vmem:[%s3 + $0xd0] sm:$0xff]
    %v2586 = vld [vmem:[%s3 + $0xd8] sm:$0xff]
    %v2587 = vld [vmem:[%s3 + $0xe0] sm:$0xff]
    %v2588 = vld [vmem:[%s3 + $0xe8] sm:$0xff]
    %v2589 = vld [vmem:[%s3 + $0xf0] sm:$0xff]
    %v2590 = vld [vmem:[%s3 + $0xf8] sm:$0xff]
    %v2591 = vld [vmem:[%s3 + $0x100] sm:$0xff]
    %v2592 = vld [vmem:[%s3 + $0x108] sm:$0xff]
    %v2593 = vld [vmem:[%s3 + $0x110] sm:$0xff]
    %v2594 = vld [vmem:[%s3 + $0x118] sm:$0xff]
    %v2595 = vld [vmem:[%s4] sm:$0x1]
    %v2597 = vperm.slane %v2595, 0
    %vm2599 = vcmask 261120
    %v2601 = vsel %vm2599, %v2558, 0
    %2603 = vmatpush.msra.mxu0 %v2574
    %2604 = vmatpush.msra.mxu0 %v2573
    %2605 = vmatpush.msra.mxu0 %v2572
    %2606 = vmatpush.msra.mxu0 %v2571
    %2607 = vmatpush.msra.mxu0 %v2570
    %2608 = vmatpush.msra.mxu0 %v2569
    %2609 = vmatpush.msra.mxu0 %v2568
    %2610 = vmatpush.msra.mxu0 %v2567
    %2611 = vmatpush.msra.mxu0 %v2566
    %2612 = vmatpush.msra.mxu0 %v2565
    %2613 = vmatpush.msra.mxu0 %v2564
    %2614 = vmatpush.msra.mxu0 %v2563
    %2615 = vmatpush.msra.mxu0 %v2562
    %2616 = vmatpush.msra.mxu0 %v2561
    %2617 = vmatpush.msra.mxu0 %v2560
    %2618 = vmatpush.msra.mxu0 %v2559
    %2619 = vmatmul.f32.gmra.mxu0 %v2556
    %v2620 = vpop.f32.mrf.mxu0
    %v2621 = vadd.f32 %v2597, %v2620
    %2622 = vdwg.mxu0
    %2623 = vmatpush.msra.mxu0 %v2590
    %2624 = vmatpush.msra.mxu0 %v2589
    %2625 = vmatpush.msra.mxu0 %v2588
    %2626 = vmatpush.msra.mxu0 %v2587
    %2627 = vmatpush.msra.mxu0 %v2586
    %2628 = vmatpush.msra.mxu0 %v2585
    %2629 = vmatpush.msra.mxu0 %v2584
    %2630 = vmatpush.msra.mxu0 %v2583
    %2631 = vmatpush.msra.mxu0 %v2582
    %2632 = vmatpush.msra.mxu0 %v2581
    %2633 = vmatpush.msra.mxu0 %v2580
    %2634 = vmatpush.msra.mxu0 %v2579
    %2635 = vmatpush.msra.mxu0 %v2578
    %2636 = vmatpush.msra.mxu0 %v2577
    %2637 = vmatpush.msra.mxu0 %v2576
    %2638 = vmatpush.msra.mxu0 %v2575
    %2639 = vmatmul.f32.gmra.mxu0 %v2557
    %v2640 = vpop.f32.mrf.mxu0
    %v2641 = vadd.f32 %v2621, %v2640
    %2642 = vdwg.mxu0
    %2643 = vmatpush.msra.mxu0 0.0
    %2644 = vmatpush.msra.mxu0 0.0
    %2645 = vmatpush.msra.mxu0 0.0
    %2646 = vmatpush.msra.mxu0 0.0
    %2647 = vmatpush.msra.mxu0 0.0
    %2648 = vmatpush.msra.mxu0 0.0
    %2649 = vmatpush.msra.mxu0 0.0
    %2650 = vmatpush.msra.mxu0 0.0
    %2651 = vmatpush.msra.mxu0 0.0
    %2652 = vmatpush.msra.mxu0 0.0
    %2653 = vmatpush.msra.mxu0 0.0
    %2654 = vmatpush.msra.mxu0 0.0
    %2655 = vmatpush.msra.mxu0 %v2594
    %2656 = vmatpush.msra.mxu0 %v2593
    %2657 = vmatpush.msra.mxu0 %v2592
    %2658 = vmatpush.msra.mxu0 %v2591
    %2659 = vmatmul.f32.gmra.mxu0 %v2601
    %v2660 = vpop.f32.mrf.mxu0
    %v2661 = vadd.f32 %v2641, %v2660
    %2662 = vdwg.mxu0
    %vm2663 = vcmask 9216
    %2664 = vst.msk [vmem:[#allocation2] sm:$0x3] %vm2663, %v2661
    // Predicated region
    $region22: #{cnn_se_forward.3} parent=1 // pred_check
      _
    $region23: #{cnn_se_forward.3} parent=1 // pred_check_branch
      %2666 = sbr.rel (0) target = $region25
    $region24: #{cnn_se_forward.3} parent=1 // pred_region
      %2668 = vsyncadd [#allocation3], 0
      %s2670 = sshll.u32 [#allocation2], 4
      %s2671 = int_to_ptr.vmem [resolvable:$true] %s2670
      %s2672 = sshll.u32 %s5, 4
      %s2673 = int_to_ptr.hbm [resolvable:$true] %s2672
      %2675 = dma.vmem_to_hbm [thread:$0]  %s2671, 32, %s2673, [#allocation3]
    $region25: #{cnn_se_forward.3} parent=1 // pred_fallthru
      _
    // Predicated region
    $region26: #{cnn_se_forward.3} parent=1 // pred_check
      _
    $region27: #{cnn_se_forward.3} parent=1 // pred_check_branch
      %2677 = sbr.rel (0) target = $region29
    $region28: #{cnn_se_forward.3} parent=1 // pred_region
      %2679 = dma.done [#allocation3], 32
    $region29: #{cnn_se_forward.3} parent=1 // pred_fallthru
      _
    %2680 = vsyncpa [#allocation3], 1

// kernel: cnn_se_forward.2
$region0: #{cnn_se_forward.2}
  #allocation0 [shape = 'u32[]', space=smem, size = 0x4, offset = 0x4, fixed_abs, tag = 'smem constant byte address 0x4 - core index']
  #allocation1 [shape = 'u32[72,128]{1,0:T(1,128)}', space=vmem, size = 0x9000, scoped, tag = 'internal scratch']
  %s0 = inlined_call_operand.vmem [shape: f32[800,25], index: 0, kind: input, shape index: {}]
  %s1 = inlined_call_operand.vmem [shape: f32[25,10], index: 1, kind: input, shape index: {}]
  %s2 = inlined_call_operand.vmem [shape: f32[1,10], index: 2, kind: input, shape index: {}]
  %s3 = inlined_call_operand.vmem [shape: f32[2,200], index: 3, kind: input, shape index: {}]
  %s4 = inlined_call_operand.vmem [shape: f32[200,2], index: 4, kind: input, shape index: {}]
  %s5 = inlined_call_operand.vmem [shape: f32[10,2], index: 5, kind: input, shape index: {}]
  %s6 = inlined_call_operand.vmem [shape: f32[2,10], index: 6, kind: input, shape index: {}]
  %s7 = inlined_call_operand.vmem [shape: bf16[2592,200], index: 7, kind: input, shape index: {}]
  %s8 = inlined_call_operand.vmem [shape: f32[9,10,20], index: 8, kind: input, shape index: {}]
  %s9 = inlined_call_operand.vmem [shape: f32[1,20], index: 9, kind: input, shape index: {}]
  %s10 = inlined_call_operand.vmem [shape: f32[1,20], index: 10, kind: input, shape index: {}]
  %s11 = inlined_call_operand.vmem [shape: f32[1,20], index: 11, kind: input, shape index: {}]
  %s12 = inlined_call_operand.vmem [shape: f32[2,288], index: 12, kind: input, shape index: {}]
  %s13 = inlined_call_operand.vmem [shape: f32[288,2], index: 13, kind: input, shape index: {}]
  %s14 = inlined_call_operand.vmem [shape: f32[20,4], index: 14, kind: input, shape index: {}]
  %s15 = inlined_call_operand.vmem [shape: f32[4,20], index: 15, kind: input, shape index: {}]
  %s16 = inlined_call_operand.vmem [shape: f32[288,20], index: 16, kind: output, shape index: {}]
  %s17 = sld [smem:[#allocation0]]
  $region74: #{cnn_se_forward.2} parent=0
    _
  %s19 = ssub.s32 1, %s17
  %s20 = scalar_select 0, %s19, %s17
  // Predicated region
  $region2: #{cnn_se_forward.2} parent=0 // pred_check
    _
  $region3: #{cnn_se_forward.2} parent=0 // pred_check_branch
    %22 = sbr.rel (0) target = $region5
  $region4: #{cnn_se_forward.2} parent=0 // pred_region
    _
  $region5: #{cnn_se_forward.2} parent=0 // pred_fallthru
    _
  // Predicated region
  $region6: #{cnn_se_forward.2} parent=0 // pred_check
    _
  $region7: #{cnn_se_forward.2} parent=0 // pred_check_branch
    %24 = sbr.rel (0) target = $region9
  $region8: #{cnn_se_forward.2} parent=0 // pred_region
    _
  $region9: #{cnn_se_forward.2} parent=0 // pred_fallthru
    _
  // Predicated region
  $region10: #{cnn_se_forward.2} parent=0 // pred_check
    _
  $region11: #{cnn_se_forward.2} parent=0 // pred_check_branch
    %26 = sbr.rel (0) target = $region13
  $region12: #{cnn_se_forward.2} parent=0 // pred_region
    _
  $region13: #{cnn_se_forward.2} parent=0 // pred_fallthru
    _
  // Predicated region
  $region14: #{cnn_se_forward.2} parent=0 // pred_check
    _
  $region15: #{cnn_se_forward.2} parent=0 // pred_check_branch
    %28 = sbr.rel (0) target = $region17
  $region16: #{cnn_se_forward.2} parent=0 // pred_region
    _
  $region17: #{cnn_se_forward.2} parent=0 // pred_fallthru
    _
  // Predicated region
  $region18: #{cnn_se_forward.2} parent=0 // pred_check
    _
  $region19: #{cnn_se_forward.2} parent=0 // pred_check_branch
    %30 = sbr.rel (0) target = $region21
  $region20: #{cnn_se_forward.2} parent=0 // pred_region
    _
  $region21: #{cnn_se_forward.2} parent=0 // pred_fallthru
    _
  // Predicated region
  $region22: #{cnn_se_forward.2} parent=0 // pred_check
    _
  $region23: #{cnn_se_forward.2} parent=0 // pred_check_branch
    %32 = sbr.rel (0) target = $region25
  $region24: #{cnn_se_forward.2} parent=0 // pred_region
    _
  $region25: #{cnn_se_forward.2} parent=0 // pred_fallthru
    _
  // Predicated region
  $region26: #{cnn_se_forward.2} parent=0 // pred_check
    _
  $region27: #{cnn_se_forward.2} parent=0 // pred_check_branch
    %34 = sbr.rel (0) target = $region29
  $region28: #{cnn_se_forward.2} parent=0 // pred_region
    _
  $region29: #{cnn_se_forward.2} parent=0 // pred_fallthru
    _
  // Predicated region
  $region30: #{cnn_se_forward.2} parent=0 // pred_check
    _
  $region31: #{cnn_se_forward.2} parent=0 // pred_check_branch
    %36 = sbr.rel (0) target = $region33
  $region32: #{cnn_se_forward.2} parent=0 // pred_region
    _
  $region33: #{cnn_se_forward.2} parent=0 // pred_fallthru
    _
  // Predicated region
  $region34: #{cnn_se_forward.2} parent=0 // pred_check
    _
  $region35: #{cnn_se_forward.2} parent=0 // pred_check_branch
    %38 = sbr.rel (0) target = $region37
  $region36: #{cnn_se_forward.2} parent=0 // pred_region
    _
  $region37: #{cnn_se_forward.2} parent=0 // pred_fallthru
    _
  // Predicated region
  $region38: #{cnn_se_forward.2} parent=0 // pred_check
    _
  $region39: #{cnn_se_forward.2} parent=0 // pred_check_branch
    %40 = sbr.rel (0) target = $region41
  $region40: #{cnn_se_forward.2} parent=0 // pred_region
    _
  $region41: #{cnn_se_forward.2} parent=0 // pred_fallthru
    _
  // Predicated region
  $region42: #{cnn_se_forward.2} parent=0 // pred_check
    _
  $region43: #{cnn_se_forward.2} parent=0 // pred_check_branch
    %42 = sbr.rel (0) target = $region45
  $region44: #{cnn_se_forward.2} parent=0 // pred_region
    _
  $region45: #{cnn_se_forward.2} parent=0 // pred_fallthru
    _
  // Predicated region
  $region46: #{cnn_se_forward.2} parent=0 // pred_check
    _
  $region47: #{cnn_se_forward.2} parent=0 // pred_check_branch
    %44 = sbr.rel (0) target = $region49
  $region48: #{cnn_se_forward.2} parent=0 // pred_region
    _
  $region49: #{cnn_se_forward.2} parent=0 // pred_fallthru
    _
  // Predicated region
  $region50: #{cnn_se_forward.2} parent=0 // pred_check
    _
  $region51: #{cnn_se_forward.2} parent=0 // pred_check_branch
    %46 = sbr.rel (0) target = $region53
  $region52: #{cnn_se_forward.2} parent=0 // pred_region
    _
  $region53: #{cnn_se_forward.2} parent=0 // pred_fallthru
    _
  // Predicated region
  $region54: #{cnn_se_forward.2} parent=0 // pred_check
    _
  $region55: #{cnn_se_forward.2} parent=0 // pred_check_branch
    %48 = sbr.rel (0) target = $region57
  $region56: #{cnn_se_forward.2} parent=0 // pred_region
    _
  $region57: #{cnn_se_forward.2} parent=0 // pred_fallthru
    _
  // Predicated region
  $region58: #{cnn_se_forward.2} parent=0 // pred_check
    _
  $region59: #{cnn_se_forward.2} parent=0 // pred_check_branch
    %50 = sbr.rel (0) target = $region61
  $region60: #{cnn_se_forward.2} parent=0 // pred_region
    _
  $region61: #{cnn_se_forward.2} parent=0 // pred_fallthru
    _
  // Predicated region
  $region62: #{cnn_se_forward.2} parent=0 // pred_check
    _
  $region63: #{cnn_se_forward.2} parent=0 // pred_check_branch
    %52 = sbr.rel (0) target = $region65
  $region64: #{cnn_se_forward.2} parent=0 // pred_region
    _
  $region65: #{cnn_se_forward.2} parent=0 // pred_fallthru
    _
  %v53 = vld [vmem:[%s0] sm:$0xff]
  %v54 = vld [vmem:[%s0 + $0x8] sm:$0xff]
  %v55 = vld [vmem:[%s0 + $0x10] sm:$0xff]
  %v56 = vld [vmem:[%s0 + $0x18] sm:$0xff]
  %v57 = vld [vmem:[%s0 + $0x20] sm:$0xff]
  %v58 = vld [vmem:[%s0 + $0x28] sm:$0xff]
  %v59 = vld [vmem:[%s0 + $0x30] sm:$0xff]
  %v60 = vld [vmem:[%s0 + $0x38] sm:$0xff]
  %v61 = vld [vmem:[%s0 + $0x40] sm:$0xff]
  %v62 = vld [vmem:[%s0 + $0x48] sm:$0xff]
  %v63 = vld [vmem:[%s0 + $0x50] sm:$0xff]
  %v64 = vld [vmem:[%s0 + $0x58] sm:$0xff]
  %v65 = vld [vmem:[%s0 + $0x60] sm:$0xff]
  %v66 = vld [vmem:[%s0 + $0x68] sm:$0xff]
  %v67 = vld [vmem:[%s0 + $0x70] sm:$0xff]
  %v68 = vld [vmem:[%s0 + $0x78] sm:$0xff]
  %v69 = vld [vmem:[%s0 + $0x80] sm:$0xff]
  %v70 = vld [vmem:[%s0 + $0x88] sm:$0xff]
  %v71 = vld [vmem:[%s0 + $0x90] sm:$0xff]
  %v72 = vld [vmem:[%s0 + $0x98] sm:$0xff]
  %v73 = vld [vmem:[%s0 + $0xa0] sm:$0xff]
  %v74 = vld [vmem:[%s0 + $0xa8] sm:$0xff]
  %v75 = vld [vmem:[%s0 + $0xb0] sm:$0xff]
  %v76 = vld [vmem:[%s0 + $0xb8] sm:$0xff]
  %v77 = vld [vmem:[%s0 + $0xc0] sm:$0xff]
  %v78 = vld [vmem:[%s0 + $0xc8] sm:$0xff]
  %v79 = vld [vmem:[%s0 + $0xd0] sm:$0xff]
  %v80 = vld [vmem:[%s0 + $0xd8] sm:$0xff]
  %v81 = vld [vmem:[%s0 + $0xe0] sm:$0xff]
  %v82 = vld [vmem:[%s0 + $0xe8] sm:$0xff]
  %v83 = vld [vmem:[%s0 + $0xf0] sm:$0xff]
  %v84 = vld [vmem:[%s0 + $0xf8] sm:$0xff]
  %v85 = vld [vmem:[%s0 + $0x100] sm:$0xff]
  %v86 = vld [vmem:[%s0 + $0x108] sm:$0xff]
  %v87 = vld [vmem:[%s0 + $0x110] sm:$0xff]
  %v88 = vld [vmem:[%s0 + $0x118] sm:$0xff]
  %v89 = vld [vmem:[%s0 + $0x120] sm:$0xff]
  %v90 = vld [vmem:[%s0 + $0x128] sm:$0xff]
  %v91 = vld [vmem:[%s0 + $0x130] sm:$0xff]
  %v92 = vld [vmem:[%s0 + $0x138] sm:$0xff]
  %v93 = vld [vmem:[%s0 + $0x140] sm:$0xff]
  %v94 = vld [vmem:[%s0 + $0x148] sm:$0xff]
  %v95 = vld [vmem:[%s0 + $0x150] sm:$0xff]
  %v96 = vld [vmem:[%s0 + $0x158] sm:$0xff]
  %v97 = vld [vmem:[%s0 + $0x160] sm:$0xff]
  %v98 = vld [vmem:[%s0 + $0x168] sm:$0xff]
  %v99 = vld [vmem:[%s0 + $0x170] sm:$0xff]
  %v100 = vld [vmem:[%s0 + $0x178] sm:$0xff]
  %v101 = vld [vmem:[%s0 + $0x180] sm:$0xff]
  %v102 = vld [vmem:[%s0 + $0x188] sm:$0xff]
  %v103 = vld [vmem:[%s0 + $0x190] sm:$0xff]
  %v104 = vld [vmem:[%s0 + $0x198] sm:$0xff]
  %v105 = vld [vmem:[%s0 + $0x1a0] sm:$0xff]
  %v106 = vld [vmem:[%s0 + $0x1a8] sm:$0xff]
  %v107 = vld [vmem:[%s0 + $0x1b0] sm:$0xff]
  %v108 = vld [vmem:[%s0 + $0x1b8] sm:$0xff]
  %v109 = vld [vmem:[%s0 + $0x1c0] sm:$0xff]
  %v110 = vld [vmem:[%s0 + $0x1c8] sm:$0xff]
  %v111 = vld [vmem:[%s0 + $0x1d0] sm:$0xff]
  %v112 = vld [vmem:[%s0 + $0x1d8] sm:$0xff]
  %v113 = vld [vmem:[%s0 + $0x1e0] sm:$0xff]
  %v114 = vld [vmem:[%s0 + $0x1e8] sm:$0xff]
  %v115 = vld [vmem:[%s0 + $0x1f0] sm:$0xff]
  %v116 = vld [vmem:[%s0 + $0x1f8] sm:$0xff]
  %v117 = vld [vmem:[%s0 + $0x200] sm:$0xff]
  %v118 = vld [vmem:[%s0 + $0x208] sm:$0xff]
  %v119 = vld [vmem:[%s0 + $0x210] sm:$0xff]
  %v120 = vld [vmem:[%s0 + $0x218] sm:$0xff]
  %v121 = vld [vmem:[%s0 + $0x220] sm:$0xff]
  %v122 = vld [vmem:[%s0 + $0x228] sm:$0xff]
  %v123 = vld [vmem:[%s0 + $0x230] sm:$0xff]
  %v124 = vld [vmem:[%s0 + $0x238] sm:$0xff]
  %v125 = vld [vmem:[%s0 + $0x240] sm:$0xff]
  %v126 = vld [vmem:[%s0 + $0x248] sm:$0xff]
  %v127 = vld [vmem:[%s0 + $0x250] sm:$0xff]
  %v128 = vld [vmem:[%s0 + $0x258] sm:$0xff]
  %v129 = vld [vmem:[%s0 + $0x260] sm:$0xff]
  %v130 = vld [vmem:[%s0 + $0x268] sm:$0xff]
  %v131 = vld [vmem:[%s0 + $0x270] sm:$0xff]
  %v132 = vld [vmem:[%s0 + $0x278] sm:$0xff]
  %v133 = vld [vmem:[%s0 + $0x280] sm:$0xff]
  %v134 = vld [vmem:[%s0 + $0x288] sm:$0xff]
  %v135 = vld [vmem:[%s0 + $0x290] sm:$0xff]
  %v136 = vld [vmem:[%s0 + $0x298] sm:$0xff]
  %v137 = vld [vmem:[%s0 + $0x2a0] sm:$0xff]
  %v138 = vld [vmem:[%s0 + $0x2a8] sm:$0xff]
  %v139 = vld [vmem:[%s0 + $0x2b0] sm:$0xff]
  %v140 = vld [vmem:[%s0 + $0x2b8] sm:$0xff]
  %v141 = vld [vmem:[%s0 + $0x2c0] sm:$0xff]
  %v142 = vld [vmem:[%s0 + $0x2c8] sm:$0xff]
  %v143 = vld [vmem:[%s0 + $0x2d0] sm:$0xff]
  %v144 = vld [vmem:[%s0 + $0x2d8] sm:$0xff]
  %v145 = vld [vmem:[%s0 + $0x2e0] sm:$0xff]
  %v146 = vld [vmem:[%s0 + $0x2e8] sm:$0xff]
  %v147 = vld [vmem:[%s0 + $0x2f0] sm:$0xff]
  %v148 = vld [vmem:[%s0 + $0x2f8] sm:$0xff]
  %v149 = vld [vmem:[%s0 + $0x300] sm:$0xff]
  %v150 = vld [vmem:[%s0 + $0x308] sm:$0xff]
  %v151 = vld [vmem:[%s0 + $0x310] sm:$0xff]
  %v152 = vld [vmem:[%s0 + $0x318] sm:$0xff]
  %v153 = vld [vmem:[%s1] sm:$0xff]
  %v154 = vld [vmem:[%s1 + $0x8] sm:$0xff]
  %v155 = vld [vmem:[%s1 + $0x10] sm:$0xff]
  %v156 = vld [vmem:[%s1 + $0x18] sm:$0x1]
  %vm157 = vcmask 203776
  %v159 = vsel %vm157, %v53, 0
  %v162 = vsel %vm157, %v54, 0
  %v165 = vsel %vm157, %v55, 0
  %v168 = vsel %vm157, %v56, 0
  %v171 = vsel %vm157, %v57, 0
  %v174 = vsel %vm157, %v58, 0
  %v177 = vsel %vm157, %v59, 0
  %v180 = vsel %vm157, %v60, 0
  %v183 = vsel %vm157, %v61, 0
  %v186 = vsel %vm157, %v62, 0
  %v189 = vsel %vm157, %v63, 0
  %v192 = vsel %vm157, %v64, 0
  %v195 = vsel %vm157, %v65, 0
  %v198 = vsel %vm157, %v66, 0
  %v201 = vsel %vm157, %v67, 0
  %v204 = vsel %vm157, %v68, 0
  %v207 = vsel %vm157, %v69, 0
  %v210 = vsel %vm157, %v70, 0
  %v213 = vsel %vm157, %v71, 0
  %v216 = vsel %vm157, %v72, 0
  %v219 = vsel %vm157, %v73, 0
  %v222 = vsel %vm157, %v74, 0
  %v225 = vsel %vm157, %v75, 0
  %v228 = vsel %vm157, %v76, 0
  %v231 = vsel %vm157, %v77, 0
  %v234 = vsel %vm157, %v78, 0
  %v237 = vsel %vm157, %v79, 0
  %v240 = vsel %vm157, %v80, 0
  %v243 = vsel %vm157, %v81, 0
  %v246 = vsel %vm157, %v82, 0
  %v249 = vsel %vm157, %v83, 0
  %v252 = vsel %vm157, %v84, 0
  %v255 = vsel %vm157, %v85, 0
  %v258 = vsel %vm157, %v86, 0
  %v261 = vsel %vm157, %v87, 0
  %v264 = vsel %vm157, %v88, 0
  %v267 = vsel %vm157, %v89, 0
  %v270 = vsel %vm157, %v90, 0
  %v273 = vsel %vm157, %v91, 0
  %v276 = vsel %vm157, %v92, 0
  %v279 = vsel %vm157, %v93, 0
  %v282 = vsel %vm157, %v94, 0
  %v285 = vsel %vm157, %v95, 0
  %v288 = vsel %vm157, %v96, 0
  %v291 = vsel %vm157, %v97, 0
  %v294 = vsel %vm157, %v98, 0
  %v297 = vsel %vm157, %v99, 0
  %v300 = vsel %vm157, %v100, 0
  %v303 = vsel %vm157, %v101, 0
  %v306 = vsel %vm157, %v102, 0
  %v309 = vsel %vm157, %v103, 0
  %v312 = vsel %vm157, %v104, 0
  %v315 = vsel %vm157, %v105, 0
  %v318 = vsel %vm157, %v106, 0
  %v321 = vsel %vm157, %v107, 0
  %v324 = vsel %vm157, %v108, 0
  %v327 = vsel %vm157, %v109, 0
  %v330 = vsel %vm157, %v110, 0
  %v333 = vsel %vm157, %v111, 0
  %v336 = vsel %vm157, %v112, 0
  %v339 = vsel %vm157, %v113, 0
  %v342 = vsel %vm157, %v114, 0
  %v345 = vsel %vm157, %v115, 0
  %v348 = vsel %vm157, %v116, 0
  %v351 = vsel %vm157, %v117, 0
  %v354 = vsel %vm157, %v118, 0
  %v357 = vsel %vm157, %v119, 0
  %v360 = vsel %vm157, %v120, 0
  %v363 = vsel %vm157, %v121, 0
  %v366 = vsel %vm157, %v122, 0
  %v369 = vsel %vm157, %v123, 0
  %v372 = vsel %vm157, %v124, 0
  %v375 = vsel %vm157, %v125, 0
  %v378 = vsel %vm157, %v126, 0
  %v381 = vsel %vm157, %v127, 0
  %v384 = vsel %vm157, %v128, 0
  %v387 = vsel %vm157, %v129, 0
  %v390 = vsel %vm157, %v130, 0
  %v393 = vsel %vm157, %v131, 0
  %v396 = vsel %vm157, %v132, 0
  %v399 = vsel %vm157, %v133, 0
  %v402 = vsel %vm157, %v134, 0
  %v405 = vsel %vm157, %v135, 0
  %v408 = vsel %vm157, %v136, 0
  %v411 = vsel %vm157, %v137, 0
  %v414 = vsel %vm157, %v138, 0
  %v417 = vsel %vm157, %v139, 0
  %v420 = vsel %vm157, %v140, 0
  %v423 = vsel %vm157, %v141, 0
  %v426 = vsel %vm157, %v142, 0
  %v429 = vsel %vm157, %v143, 0
  %v432 = vsel %vm157, %v144, 0
  %v435 = vsel %vm157, %v145, 0
  %v438 = vsel %vm157, %v146, 0
  %v441 = vsel %vm157, %v147, 0
  %v444 = vsel %vm157, %v148, 0
  %v447 = vsel %vm157, %v149, 0
  %v450 = vsel %vm157, %v150, 0
  %v453 = vsel %vm157, %v151, 0
  %v456 = vsel %vm157, %v152, 0
  %vm458 = vcmask 1040384
  %v460 = vsel %vm458, %v156, 0
  %462 = vmatpush.msra.mxu0 0.0
  %463 = vmatpush.msra.mxu0 0.0
  %464 = vmatpush.msra.mxu0 0.0
  %465 = vmatpush.msra.mxu0 0.0
  %466 = vmatpush.msra.mxu0 0.0
  %467 = vmatpush.msra.mxu0 0.0
  %468 = vmatpush.msra.mxu0 0.0
  %469 = vmatpush.msra.mxu0 0.0
  %470 = vmatpush.msra.mxu0 0.0
  %471 = vmatpush.msra.mxu0 0.0
  %472 = vmatpush.msra.mxu0 0.0
  %473 = vmatpush.msra.mxu0 0.0
  %474 = vmatpush.msra.mxu0 %v460
  %475 = vmatpush.msra.mxu0 %v155
  %476 = vmatpush.msra.mxu0 %v154
  %477 = vmatpush.msra.mxu0 %v153
  %478 = vmatmul.f32.gmra.mxu0 %v159
  %v479 = vpop.f32.mrf.mxu0
  %v480 = vadd.f32 0.0, %v479
  %481 = vmatmul.f32.gmra.mxu0 %v162
  %v482 = vpop.f32.mrf.mxu0
  %v483 = vadd.f32 0.0, %v482
  %484 = vmatmul.f32.gmra.mxu0 %v165
  %v485 = vpop.f32.mrf.mxu0
  %v486 = vadd.f32 0.0, %v485
  %487 = vmatmul.f32.gmra.mxu0 %v168
  %v488 = vpop.f32.mrf.mxu0
  %v489 = vadd.f32 0.0, %v488
  %490 = vmatmul.f32.gmra.mxu0 %v171
  %v491 = vpop.f32.mrf.mxu0
  %v492 = vadd.f32 0.0, %v491
  %493 = vmatmul.f32.gmra.mxu0 %v174
  %v494 = vpop.f32.mrf.mxu0
  %v495 = vadd.f32 0.0, %v494
  %496 = vmatmul.f32.gmra.mxu0 %v177
  %v497 = vpop.f32.mrf.mxu0
  %v498 = vadd.f32 0.0, %v497
  %499 = vmatmul.f32.gmra.mxu0 %v180
  %v500 = vpop.f32.mrf.mxu0
  %v501 = vadd.f32 0.0, %v500
  %502 = vmatmul.f32.gmra.mxu0 %v183
  %v503 = vpop.f32.mrf.mxu0
  %v504 = vadd.f32 0.0, %v503
  %505 = vmatmul.f32.gmra.mxu0 %v186
  %v506 = vpop.f32.mrf.mxu0
  %v507 = vadd.f32 0.0, %v506
  %508 = vmatmul.f32.gmra.mxu0 %v189
  %v509 = vpop.f32.mrf.mxu0
  %v510 = vadd.f32 0.0, %v509
  %511 = vmatmul.f32.gmra.mxu0 %v192
  %v512 = vpop.f32.mrf.mxu0
  %v513 = vadd.f32 0.0, %v512
  %514 = vmatmul.f32.gmra.mxu0 %v195
  %v515 = vpop.f32.mrf.mxu0
  %v516 = vadd.f32 0.0, %v515
  %517 = vmatmul.f32.gmra.mxu0 %v198
  %v518 = vpop.f32.mrf.mxu0
  %v519 = vadd.f32 0.0, %v518
  %520 = vmatmul.f32.gmra.mxu0 %v201
  %v521 = vpop.f32.mrf.mxu0
  %v522 = vadd.f32 0.0, %v521
  %523 = vmatmul.f32.gmra.mxu0 %v204
  %v524 = vpop.f32.mrf.mxu0
  %v525 = vadd.f32 0.0, %v524
  %526 = vmatmul.f32.gmra.mxu0 %v207
  %v527 = vpop.f32.mrf.mxu0
  %v528 = vadd.f32 0.0, %v527
  %529 = vmatmul.f32.gmra.mxu0 %v210
  %v530 = vpop.f32.mrf.mxu0
  %v531 = vadd.f32 0.0, %v530
  %532 = vmatmul.f32.gmra.mxu0 %v213
  %v533 = vpop.f32.mrf.mxu0
  %v534 = vadd.f32 0.0, %v533
  %535 = vmatmul.f32.gmra.mxu0 %v216
  %v536 = vpop.f32.mrf.mxu0
  %v537 = vadd.f32 0.0, %v536
  %538 = vmatmul.f32.gmra.mxu0 %v219
  %v539 = vpop.f32.mrf.mxu0
  %v540 = vadd.f32 0.0, %v539
  %541 = vmatmul.f32.gmra.mxu0 %v222
  %v542 = vpop.f32.mrf.mxu0
  %v543 = vadd.f32 0.0, %v542
  %544 = vmatmul.f32.gmra.mxu0 %v225
  %v545 = vpop.f32.mrf.mxu0
  %v546 = vadd.f32 0.0, %v545
  %547 = vmatmul.f32.gmra.mxu0 %v228
  %v548 = vpop.f32.mrf.mxu0
  %v549 = vadd.f32 0.0, %v548
  %550 = vmatmul.f32.gmra.mxu0 %v231
  %v551 = vpop.f32.mrf.mxu0
  %v552 = vadd.f32 0.0, %v551
  %553 = vmatmul.f32.gmra.mxu0 %v234
  %v554 = vpop.f32.mrf.mxu0
  %v555 = vadd.f32 0.0, %v554
  %556 = vmatmul.f32.gmra.mxu0 %v237
  %v557 = vpop.f32.mrf.mxu0
  %v558 = vadd.f32 0.0, %v557
  %559 = vmatmul.f32.gmra.mxu0 %v240
  %v560 = vpop.f32.mrf.mxu0
  %v561 = vadd.f32 0.0, %v560
  %562 = vmatmul.f32.gmra.mxu0 %v243
  %v563 = vpop.f32.mrf.mxu0
  %v564 = vadd.f32 0.0, %v563
  %565 = vmatmul.f32.gmra.mxu0 %v246
  %v566 = vpop.f32.mrf.mxu0
  %v567 = vadd.f32 0.0, %v566
  %568 = vmatmul.f32.gmra.mxu0 %v249
  %v569 = vpop.f32.mrf.mxu0
  %v570 = vadd.f32 0.0, %v569
  %571 = vmatmul.f32.gmra.mxu0 %v252
  %v572 = vpop.f32.mrf.mxu0
  %v573 = vadd.f32 0.0, %v572
  %574 = vmatmul.f32.gmra.mxu0 %v255
  %v575 = vpop.f32.mrf.mxu0
  %v576 = vadd.f32 0.0, %v575
  %577 = vmatmul.f32.gmra.mxu0 %v258
  %v578 = vpop.f32.mrf.mxu0
  %v579 = vadd.f32 0.0, %v578
  %580 = vmatmul.f32.gmra.mxu0 %v261
  %v581 = vpop.f32.mrf.mxu0
  %v582 = vadd.f32 0.0, %v581
  %583 = vmatmul.f32.gmra.mxu0 %v264
  %v584 = vpop.f32.mrf.mxu0
  %v585 = vadd.f32 0.0, %v584
  %586 = vmatmul.f32.gmra.mxu0 %v267
  %v587 = vpop.f32.mrf.mxu0
  %v588 = vadd.f32 0.0, %v587
  %589 = vmatmul.f32.gmra.mxu0 %v270
  %v590 = vpop.f32.mrf.mxu0
  %v591 = vadd.f32 0.0, %v590
  %592 = vmatmul.f32.gmra.mxu0 %v273
  %v593 = vpop.f32.mrf.mxu0
  %v594 = vadd.f32 0.0, %v593
  %595 = vmatmul.f32.gmra.mxu0 %v276
  %v596 = vpop.f32.mrf.mxu0
  %v597 = vadd.f32 0.0, %v596
  %598 = vmatmul.f32.gmra.mxu0 %v279
  %v599 = vpop.f32.mrf.mxu0
  %v600 = vadd.f32 0.0, %v599
  %601 = vmatmul.f32.gmra.mxu0 %v282
  %v602 = vpop.f32.mrf.mxu0
  %v603 = vadd.f32 0.0, %v602
  %604 = vmatmul.f32.gmra.mxu0 %v285
  %v605 = vpop.f32.mrf.mxu0
  %v606 = vadd.f32 0.0, %v605
  %607 = vmatmul.f32.gmra.mxu0 %v288
  %v608 = vpop.f32.mrf.mxu0
  %v609 = vadd.f32 0.0, %v608
  %610 = vmatmul.f32.gmra.mxu0 %v291
  %v611 = vpop.f32.mrf.mxu0
  %v612 = vadd.f32 0.0, %v611
  %613 = vmatmul.f32.gmra.mxu0 %v294
  %v614 = vpop.f32.mrf.mxu0
  %v615 = vadd.f32 0.0, %v614
  %616 = vmatmul.f32.gmra.mxu0 %v297
  %v617 = vpop.f32.mrf.mxu0
  %v618 = vadd.f32 0.0, %v617
  %619 = vmatmul.f32.gmra.mxu0 %v300
  %v620 = vpop.f32.mrf.mxu0
  %v621 = vadd.f32 0.0, %v620
  %622 = vmatmul.f32.gmra.mxu0 %v303
  %v623 = vpop.f32.mrf.mxu0
  %v624 = vadd.f32 0.0, %v623
  %625 = vmatmul.f32.gmra.mxu0 %v306
  %v626 = vpop.f32.mrf.mxu0
  %v627 = vadd.f32 0.0, %v626
  %628 = vmatmul.f32.gmra.mxu0 %v309
  %v629 = vpop.f32.mrf.mxu0
  %v630 = vadd.f32 0.0, %v629
  %631 = vmatmul.f32.gmra.mxu0 %v312
  %v632 = vpop.f32.mrf.mxu0
  %v633 = vadd.f32 0.0, %v632
  %634 = vmatmul.f32.gmra.mxu0 %v315
  %v635 = vpop.f32.mrf.mxu0
  %v636 = vadd.f32 0.0, %v635
  %637 = vmatmul.f32.gmra.mxu0 %v318
  %v638 = vpop.f32.mrf.mxu0
  %v639 = vadd.f32 0.0, %v638
  %640 = vmatmul.f32.gmra.mxu0 %v321
  %v641 = vpop.f32.mrf.mxu0
  %v642 = vadd.f32 0.0, %v641
  %643 = vmatmul.f32.gmra.mxu0 %v324
  %v644 = vpop.f32.mrf.mxu0
  %v645 = vadd.f32 0.0, %v644
  %646 = vmatmul.f32.gmra.mxu0 %v327
  %v647 = vpop.f32.mrf.mxu0
  %v648 = vadd.f32 0.0, %v647
  %649 = vmatmul.f32.gmra.mxu0 %v330
  %v650 = vpop.f32.mrf.mxu0
  %v651 = vadd.f32 0.0, %v650
  %652 = vmatmul.f32.gmra.mxu0 %v333
  %v653 = vpop.f32.mrf.mxu0
  %v654 = vadd.f32 0.0, %v653
  %655 = vmatmul.f32.gmra.mxu0 %v336
  %v656 = vpop.f32.mrf.mxu0
  %v657 = vadd.f32 0.0, %v656
  %658 = vmatmul.f32.gmra.mxu0 %v339
  %v659 = vpop.f32.mrf.mxu0
  %v660 = vadd.f32 0.0, %v659
  %661 = vmatmul.f32.gmra.mxu0 %v342
  %v662 = vpop.f32.mrf.mxu0
  %v663 = vadd.f32 0.0, %v662
  %664 = vmatmul.f32.gmra.mxu0 %v345
  %v665 = vpop.f32.mrf.mxu0
  %v666 = vadd.f32 0.0, %v665
  %667 = vmatmul.f32.gmra.mxu0 %v348
  %v668 = vpop.f32.mrf.mxu0
  %v669 = vadd.f32 0.0, %v668
  %670 = vmatmul.f32.gmra.mxu0 %v351
  %v671 = vpop.f32.mrf.mxu0
  %v672 = vadd.f32 0.0, %v671
  %673 = vmatmul.f32.gmra.mxu0 %v354
  %v674 = vpop.f32.mrf.mxu0
  %v675 = vadd.f32 0.0, %v674
  %676 = vmatmul.f32.gmra.mxu0 %v357
  %v677 = vpop.f32.mrf.mxu0
  %v678 = vadd.f32 0.0, %v677
  %679 = vmatmul.f32.gmra.mxu0 %v360
  %v680 = vpop.f32.mrf.mxu0
  %v681 = vadd.f32 0.0, %v680
  %682 = vmatmul.f32.gmra.mxu0 %v363
  %v683 = vpop.f32.mrf.mxu0
  %v684 = vadd.f32 0.0, %v683
  %685 = vmatmul.f32.gmra.mxu0 %v366
  %v686 = vpop.f32.mrf.mxu0
  %v687 = vadd.f32 0.0, %v686
  %688 = vmatmul.f32.gmra.mxu0 %v369
  %v689 = vpop.f32.mrf.mxu0
  %v690 = vadd.f32 0.0, %v689
  %691 = vmatmul.f32.gmra.mxu0 %v372
  %v692 = vpop.f32.mrf.mxu0
  %v693 = vadd.f32 0.0, %v692
  %694 = vmatmul.f32.gmra.mxu0 %v375
  %v695 = vpop.f32.mrf.mxu0
  %v696 = vadd.f32 0.0, %v695
  %697 = vmatmul.f32.gmra.mxu0 %v378
  %v698 = vpop.f32.mrf.mxu0
  %v699 = vadd.f32 0.0, %v698
  %700 = vmatmul.f32.gmra.mxu0 %v381
  %v701 = vpop.f32.mrf.mxu0
  %v702 = vadd.f32 0.0, %v701
  %703 = vmatmul.f32.gmra.mxu0 %v384
  %v704 = vpop.f32.mrf.mxu0
  %v705 = vadd.f32 0.0, %v704
  %706 = vmatmul.f32.gmra.mxu0 %v387
  %v707 = vpop.f32.mrf.mxu0
  %v708 = vadd.f32 0.0, %v707
  %709 = vmatmul.f32.gmra.mxu0 %v390
  %v710 = vpop.f32.mrf.mxu0
  %v711 = vadd.f32 0.0, %v710
  %712 = vmatmul.f32.gmra.mxu0 %v393
  %v713 = vpop.f32.mrf.mxu0
  %v714 = vadd.f32 0.0, %v713
  %715 = vmatmul.f32.gmra.mxu0 %v396
  %v716 = vpop.f32.mrf.mxu0
  %v717 = vadd.f32 0.0, %v716
  %718 = vmatmul.f32.gmra.mxu0 %v399
  %v719 = vpop.f32.mrf.mxu0
  %v720 = vadd.f32 0.0, %v719
  %721 = vmatmul.f32.gmra.mxu0 %v402
  %v722 = vpop.f32.mrf.mxu0
  %v723 = vadd.f32 0.0, %v722
  %724 = vmatmul.f32.gmra.mxu0 %v405
  %v725 = vpop.f32.mrf.mxu0
  %v726 = vadd.f32 0.0, %v725
  %727 = vmatmul.f32.gmra.mxu0 %v408
  %v728 = vpop.f32.mrf.mxu0
  %v729 = vadd.f32 0.0, %v728
  %730 = vmatmul.f32.gmra.mxu0 %v411
  %v731 = vpop.f32.mrf.mxu0
  %v732 = vadd.f32 0.0, %v731
  %733 = vmatmul.f32.gmra.mxu0 %v414
  %v734 = vpop.f32.mrf.mxu0
  %v735 = vadd.f32 0.0, %v734
  %736 = vmatmul.f32.gmra.mxu0 %v417
  %v737 = vpop.f32.mrf.mxu0
  %v738 = vadd.f32 0.0, %v737
  %739 = vmatmul.f32.gmra.mxu0 %v420
  %v740 = vpop.f32.mrf.mxu0
  %v741 = vadd.f32 0.0, %v740
  %742 = vmatmul.f32.gmra.mxu0 %v423
  %v743 = vpop.f32.mrf.mxu0
  %v744 = vadd.f32 0.0, %v743
  %745 = vmatmul.f32.gmra.mxu0 %v426
  %v746 = vpop.f32.mrf.mxu0
  %v747 = vadd.f32 0.0, %v746
  %748 = vmatmul.f32.gmra.mxu0 %v429
  %v749 = vpop.f32.mrf.mxu0
  %v750 = vadd.f32 0.0, %v749
  %751 = vmatmul.f32.gmra.mxu0 %v432
  %v752 = vpop.f32.mrf.mxu0
  %v753 = vadd.f32 0.0, %v752
  %754 = vmatmul.f32.gmra.mxu0 %v435
  %v755 = vpop.f32.mrf.mxu0
  %v756 = vadd.f32 0.0, %v755
  %757 = vmatmul.f32.gmra.mxu0 %v438
  %v758 = vpop.f32.mrf.mxu0
  %v759 = vadd.f32 0.0, %v758
  %760 = vmatmul.f32.gmra.mxu0 %v441
  %v761 = vpop.f32.mrf.mxu0
  %v762 = vadd.f32 0.0, %v761
  %763 = vmatmul.f32.gmra.mxu0 %v444
  %v764 = vpop.f32.mrf.mxu0
  %v765 = vadd.f32 0.0, %v764
  %766 = vmatmul.f32.gmra.mxu0 %v447
  %v767 = vpop.f32.mrf.mxu0
  %v768 = vadd.f32 0.0, %v767
  %769 = vmatmul.f32.gmra.mxu0 %v450
  %v770 = vpop.f32.mrf.mxu0
  %v771 = vadd.f32 0.0, %v770
  %772 = vmatmul.f32.gmra.mxu0 %v453
  %v773 = vpop.f32.mrf.mxu0
  %v774 = vadd.f32 0.0, %v773
  %775 = vmatmul.f32.gmra.mxu0 %v456
  %v776 = vpop.f32.mrf.mxu0
  %v777 = vadd.f32 0.0, %v776
  %778 = vdwg.mxu0
  %v779 = vmax.f32 %v480, %v555
  %v780 = vmax.f32 %v483, %v558
  %v781 = vmax.f32 %v486, %v561
  %v782 = vmax.f32 %v489, %v564
  %v783 = vmax.f32 %v492, %v567
  %v784 = vmax.f32 %v495, %v570
  %v785 = vmax.f32 %v498, %v573
  %v786 = vmax.f32 %v501, %v576
  %v787 = vmax.f32 %v504, %v579
  %v788 = vmax.f32 %v507, %v582
  %v789 = vmax.f32 %v510, %v585
  %v790 = vmax.f32 %v513, %v588
  %v791 = vmax.f32 %v516, %v591
  %v792 = vmax.f32 %v519, %v594
  %v793 = vmax.f32 %v522, %v597
  %v794 = vmax.f32 %v525, %v600
  %v795 = vmax.f32 %v528, %v603
  %v796 = vmax.f32 %v531, %v606
  %v797 = vmax.f32 %v534, %v609
  %v798 = vmax.f32 %v537, %v612
  %v799 = vmax.f32 %v540, %v615
  %v800 = vmax.f32 %v543, %v618
  %v801 = vmax.f32 %v546, %v621
  %v802 = vmax.f32 %v549, %v624
  %v803 = vmax.f32 %v552, %v627
  %v804 = vmax.f32 %v630, %v705
  %v805 = vmax.f32 %v633, %v708
  %v806 = vmax.f32 %v636, %v711
  %v807 = vmax.f32 %v639, %v714
  %v808 = vmax.f32 %v642, %v717
  %v809 = vmax.f32 %v645, %v720
  %v810 = vmax.f32 %v648, %v723
  %v811 = vmax.f32 %v651, %v726
  %v812 = vmax.f32 %v654, %v729
  %v813 = vmax.f32 %v657, %v732
  %v814 = vmax.f32 %v660, %v735
  %v815 = vmax.f32 %v663, %v738
  %v816 = vmax.f32 %v666, %v741
  %v817 = vmax.f32 %v669, %v744
  %v818 = vmax.f32 %v672, %v747
  %v819 = vmax.f32 %v675, %v750
  %v820 = vmax.f32 %v678, %v753
  %v821 = vmax.f32 %v681, %v756
  %v822 = vmax.f32 %v684, %v759
  %v823 = vmax.f32 %v687, %v762
  %v824 = vmax.f32 %v690, %v765
  %v825 = vmax.f32 %v693, %v768
  %v826 = vmax.f32 %v696, %v771
  %v827 = vmax.f32 %v699, %v774
  %v828 = vmax.f32 %v702, %v777
  %v829 = vmax.f32 %v779, %v804
  %v830 = vmax.f32 %v780, %v805
  %v831 = vmax.f32 %v781, %v806
  %v832 = vmax.f32 %v782, %v807
  %v833 = vmax.f32 %v783, %v808
  %v834 = vmax.f32 %v784, %v809
  %v835 = vmax.f32 %v785, %v810
  %v836 = vmax.f32 %v786, %v811
  %v837 = vmax.f32 %v787, %v812
  %v838 = vmax.f32 %v788, %v813
  %v839 = vmax.f32 %v789, %v814
  %v840 = vmax.f32 %v790, %v815
  %v841 = vmax.f32 %v791, %v816
  %v842 = vmax.f32 %v792, %v817
  %v843 = vmax.f32 %v793, %v818
  %v844 = vmax.f32 %v794, %v819
  %v845 = vmax.f32 %v795, %v820
  %v846 = vmax.f32 %v796, %v821
  %v847 = vmax.f32 %v797, %v822
  %v848 = vmax.f32 %v798, %v823
  %v849 = vmax.f32 %v799, %v824
  %v850 = vmax.f32 %v800, %v825
  %v851 = vmax.f32 %v801, %v826
  %v852 = vmax.f32 %v802, %v827
  %v853 = vmax.f32 %v803, %v828
  %v854 = vld [vmem:[%s2] sm:$0x1]
  %v856 = vperm.slane %v854, 0
  %v858 = vadd.f32 %v829, %v856
  %v859 = vadd.f32 %v830, %v856
  %v860 = vadd.f32 %v831, %v856
  %v861 = vadd.f32 %v832, %v856
  %v862 = vadd.f32 %v833, %v856
  %v863 = vadd.f32 %v834, %v856
  %v864 = vadd.f32 %v835, %v856
  %v865 = vadd.f32 %v836, %v856
  %v866 = vadd.f32 %v837, %v856
  %v867 = vadd.f32 %v838, %v856
  %v868 = vadd.f32 %v839, %v856
  %v869 = vadd.f32 %v840, %v856
  %v870 = vadd.f32 %v841, %v856
  %v871 = vadd.f32 %v842, %v856
  %v872 = vadd.f32 %v843, %v856
  %v873 = vadd.f32 %v844, %v856
  %v874 = vadd.f32 %v845, %v856
  %v875 = vadd.f32 %v846, %v856
  %v876 = vadd.f32 %v847, %v856
  %v877 = vadd.f32 %v848, %v856
  %v878 = vadd.f32 %v849, %v856
  %v879 = vadd.f32 %v850, %v856
  %v880 = vadd.f32 %v851, %v856
  %v881 = vadd.f32 %v852, %v856
  %v882 = vadd.f32 %v853, %v856
  %v883 = vmax.f32 %v858, 0.0
  %v884 = vmax.f32 %v859, 0.0
  %v885 = vmax.f32 %v860, 0.0
  %v886 = vmax.f32 %v861, 0.0
  %v887 = vmax.f32 %v862, 0.0
  %v888 = vmax.f32 %v863, 0.0
  %v889 = vmax.f32 %v864, 0.0
  %v890 = vmax.f32 %v865, 0.0
  %v891 = vmax.f32 %v866, 0.0
  %v892 = vmax.f32 %v867, 0.0
  %v893 = vmax.f32 %v868, 0.0
  %v894 = vmax.f32 %v869, 0.0
  %v895 = vmax.f32 %v870, 0.0
  %v896 = vmax.f32 %v871, 0.0
  %v897 = vmax.f32 %v872, 0.0
  %v898 = vmax.f32 %v873, 0.0
  %v899 = vmax.f32 %v874, 0.0
  %v900 = vmax.f32 %v875, 0.0
  %v901 = vmax.f32 %v876, 0.0
  %v902 = vmax.f32 %v877, 0.0
  %v903 = vmax.f32 %v878, 0.0
  %v904 = vmax.f32 %v879, 0.0
  %v905 = vmax.f32 %v880, 0.0
  %v906 = vmax.f32 %v881, 0.0
  %v907 = vmax.f32 %v882, 0.0
  %v908 = vld [vmem:[%s3] sm:$0xf]
  %910 = vst [vmem:[#allocation1] ss:$4 sm:$0xff] %v908
  %v911 = vld.sshfl [vmem:[#allocation1] sm:$0xff pattern:$0x73625140]
  %v912 = vld.sshfl [vmem:[#allocation1 + $0x8] sm:$0xff pattern:$0x73625140]
  %vm914 = vcmask 588800
  %v915 = vsel %vm914, %v912, 0
  %917 = vmatpush.msra.mxu0 %v898
  %918 = vmatpush.msra.mxu0 %v897
  %919 = vmatpush.msra.mxu0 %v896
  %920 = vmatpush.msra.mxu0 %v895
  %921 = vmatpush.msra.mxu0 %v894
  %922 = vmatpush.msra.mxu0 %v893
  %923 = vmatpush.msra.mxu0 %v892
  %924 = vmatpush.msra.mxu0 %v891
  %925 = vmatpush.msra.mxu0 %v890
  %926 = vmatpush.msra.mxu0 %v889
  %927 = vmatpush.msra.mxu0 %v888
  %928 = vmatpush.msra.mxu0 %v887
  %929 = vmatpush.msra.mxu0 %v886
  %930 = vmatpush.msra.mxu0 %v885
  %931 = vmatpush.msra.mxu0 %v884
  %932 = vmatpush.msra.mxu0 %v883
  %933 = vmatmul.f32.gmra.mxu0 %v911
  %v934 = vpop.f32.mrf.mxu0
  %v935 = vadd.f32 0.0, %v934
  %936 = vdwg.mxu0
  %937 = vmatpush.msra.mxu0 0.0
  %938 = vmatpush.msra.mxu0 0.0
  %939 = vmatpush.msra.mxu0 0.0
  %940 = vmatpush.msra.mxu0 0.0
  %941 = vmatpush.msra.mxu0 0.0
  %942 = vmatpush.msra.mxu0 0.0
  %943 = vmatpush.msra.mxu0 0.0
  %944 = vmatpush.msra.mxu0 %v907
  %945 = vmatpush.msra.mxu0 %v906
  %946 = vmatpush.msra.mxu0 %v905
  %947 = vmatpush.msra.mxu0 %v904
  %948 = vmatpush.msra.mxu0 %v903
  %949 = vmatpush.msra.mxu0 %v902
  %950 = vmatpush.msra.mxu0 %v901
  %951 = vmatpush.msra.mxu0 %v900
  %952 = vmatpush.msra.mxu0 %v899
  %953 = vmatmul.f32.gmra.mxu0 %v915
  %v954 = vpop.f32.mrf.mxu0
  %v955 = vadd.f32 %v935, %v954
  %956 = vdwg.mxu0
  %v957 = vld [vmem:[%s5] sm:$0xff]
  %v958 = vld [vmem:[%s5 + $0x8] sm:$0x3]
  %vm959 = vcmask 80896
  %v961 = vsel %vm959, %v955, 0
  %vm963 = vcmask 1041408
  %v965 = vsel %vm963, %v958, 0
  %967 = vmatpush.msra.mxu0 0.0
  %968 = vmatpush.msra.mxu0 0.0
  %969 = vmatpush.msra.mxu0 0.0
  %970 = vmatpush.msra.mxu0 0.0
  %971 = vmatpush.msra.mxu0 0.0
  %972 = vmatpush.msra.mxu0 0.0
  %973 = vmatpush.msra.mxu0 0.0
  %974 = vmatpush.msra.mxu0 0.0
  %975 = vmatpush.msra.mxu0 0.0
  %976 = vmatpush.msra.mxu0 0.0
  %977 = vmatpush.msra.mxu0 0.0
  %978 = vmatpush.msra.mxu0 0.0
  %979 = vmatpush.msra.mxu0 0.0
  %980 = vmatpush.msra.mxu0 0.0
  %981 = vmatpush.msra.mxu0 %v965
  %982 = vmatpush.msra.mxu0 %v957
  %983 = vmatmul.f32.gmra.mxu0 %v961
  %v984 = vpop.f32.mrf.mxu0
  %v985 = vadd.f32 0.0, %v984
  %986 = vdwg.mxu0
  %v987 = vmax.f32 %v985, 0.0
  %v988 = vld [vmem:[%s6] sm:$0x3]
  %vm989 = vcmask 15360
  %v991 = vsel %vm989, %v987, 0
  %v994 = vsel %vm963, %v988, 0
  %996 = vmatpush.msra.mxu0 0.0
  %997 = vmatpush.msra.mxu0 0.0
  %998 = vmatpush.msra.mxu0 0.0
  %999 = vmatpush.msra.mxu0 0.0
  %1000 = vmatpush.msra.mxu0 0.0
  %1001 = vmatpush.msra.mxu0 0.0
  %1002 = vmatpush.msra.mxu0 0.0
  %1003 = vmatpush.msra.mxu0 0.0
  %1004 = vmatpush.msra.mxu0 0.0
  %1005 = vmatpush.msra.mxu0 0.0
  %1006 = vmatpush.msra.mxu0 0.0
  %1007 = vmatpush.msra.mxu0 0.0
  %1008 = vmatpush.msra.mxu0 0.0
  %1009 = vmatpush.msra.mxu0 0.0
  %1010 = vmatpush.msra.mxu0 0.0
  %1011 = vmatpush.msra.mxu0 %v994
  %1012 = vmatmul.f32.gmra.mxu0 %v991
  %v1013 = vpop.f32.mrf.mxu0
  %v1014 = vadd.f32 0.0, %v1013
  %1015 = vdwg.mxu0
  %v1016 = vxor.u32 %v1014, 2147483648
  %v1017 = vmul.f32 %v1016, 1.442695
  %v1018 = vpow.pop %v1017
  %v1019 = vadd.f32 %v1018, 1.0
  %v1020 = vrcp.pop %v1019
  %v1021 = vmul.f32 %v1019, %v1020
  %v1022 = vsub.f32 1.0, %v1021
  %v1023 = vmul.f32 %v1020, %v1022
  %v1024 = vadd.f32 %v1020, %v1023
  %vm1025 = vweird.f32 %v1019
  %vm1026 = vweird.f32 %v1020
  %vm1027 = vmor %vm1025, %vm1026
  %v1028 = vsel %vm1027, %v1020, %v1024
  %v1029 = vand.u32 2147483647, %v1019
  %vm1030 = vcmp.eq.f32.partialorder %v1029, 8.507059e+37
  %v1031 = vand.u32 %v1019, 2147483648
  %v1032 = vor.u32 1.1754944e-38, %v1031
  %v1033 = vsel %vm1030, %v1032, %v1028
  %v1034 = vmul.f32 1.0, %v1033
  %v1035 = vld [vmem:[%s4] sm:$0xff]
  %v1036 = vld [vmem:[%s4 + $0x8] sm:$0xff]
  %v1037 = vld [vmem:[%s4 + $0x10] sm:$0xff]
  %v1038 = vld [vmem:[%s4 + $0x18] sm:$0xff]
  %v1039 = vld [vmem:[%s4 + $0x20] sm:$0xff]
  %v1040 = vld [vmem:[%s4 + $0x28] sm:$0xff]
  %v1041 = vld [vmem:[%s4 + $0x30] sm:$0xff]
  %v1042 = vld [vmem:[%s4 + $0x38] sm:$0xff]
  %v1043 = vld [vmem:[%s4 + $0x40] sm:$0xff]
  %v1044 = vld [vmem:[%s4 + $0x48] sm:$0xff]
  %v1045 = vld [vmem:[%s4 + $0x50] sm:$0xff]
  %v1046 = vld [vmem:[%s4 + $0x58] sm:$0xff]
  %v1047 = vld [vmem:[%s4 + $0x60] sm:$0xff]
  %v1048 = vld [vmem:[%s4 + $0x68] sm:$0xff]
  %v1049 = vld [vmem:[%s4 + $0x70] sm:$0xff]
  %v1050 = vld [vmem:[%s4 + $0x78] sm:$0xff]
  %v1051 = vld [vmem:[%s4 + $0x80] sm:$0xff]
  %v1052 = vld [vmem:[%s4 + $0x88] sm:$0xff]
  %v1053 = vld [vmem:[%s4 + $0x90] sm:$0xff]
  %v1054 = vld [vmem:[%s4 + $0x98] sm:$0xff]
  %v1055 = vld [vmem:[%s4 + $0xa0] sm:$0xff]
  %v1056 = vld [vmem:[%s4 + $0xa8] sm:$0xff]
  %v1057 = vld [vmem:[%s4 + $0xb0] sm:$0xff]
  %v1058 = vld [vmem:[%s4 + $0xb8] sm:$0xff]
  %v1059 = vld [vmem:[%s4 + $0xc0] sm:$0xff]
  %v1061 = vsel %vm989, %v1035, 0
  %v1064 = vsel %vm989, %v1036, 0
  %v1067 = vsel %vm989, %v1037, 0
  %v1070 = vsel %vm989, %v1038, 0
  %v1073 = vsel %vm989, %v1039, 0
  %v1076 = vsel %vm989, %v1040, 0
  %v1079 = vsel %vm989, %v1041, 0
  %v1082 = vsel %vm989, %v1042, 0
  %v1085 = vsel %vm989, %v1043, 0
  %v1088 = vsel %vm989, %v1044, 0
  %v1091 = vsel %vm989, %v1045, 0
  %v1094 = vsel %vm989, %v1046, 0
  %v1097 = vsel %vm989, %v1047, 0
  %v1100 = vsel %vm989, %v1048, 0
  %v1103 = vsel %vm989, %v1049, 0
  %v1106 = vsel %vm989, %v1050, 0
  %v1109 = vsel %vm989, %v1051, 0
  %v1112 = vsel %vm989, %v1052, 0
  %v1115 = vsel %vm989, %v1053, 0
  %v1118 = vsel %vm989, %v1054, 0
  %v1121 = vsel %vm989, %v1055, 0
  %v1124 = vsel %vm989, %v1056, 0
  %v1127 = vsel %vm989, %v1057, 0
  %v1130 = vsel %vm989, %v1058, 0
  %v1133 = vsel %vm989, %v1059, 0
  %v1136 = vsel %vm963, %v1034, 0
  %1138 = vmatpush.msra.mxu0 0.0
  %1139 = vmatpush.msra.mxu0 0.0
  %1140 = vmatpush.msra.mxu0 0.0
  %1141 = vmatpush.msra.mxu0 0.0
  %1142 = vmatpush.msra.mxu0 0.0
  %1143 = vmatpush.msra.mxu0 0.0
  %1144 = vmatpush.msra.mxu0 0.0
  %1145 = vmatpush.msra.mxu0 0.0
  %1146 = vmatpush.msra.mxu0 0.0
  %1147 = vmatpush.msra.mxu0 0.0
  %1148 = vmatpush.msra.mxu0 0.0
  %1149 = vmatpush.msra.mxu0 0.0
  %1150 = vmatpush.msra.mxu0 0.0
  %1151 = vmatpush.msra.mxu0 0.0
  %1152 = vmatpush.msra.mxu0 0.0
  %1153 = vmatpush.msra.mxu0 %v1136
  %1154 = vmatmul.f32.gmra.mxu0 %v1061
  %v1155 = vpop.f32.mrf.mxu0
  %v1156 = vadd.f32 0.0, %v1155
  %1157 = vmatmul.f32.gmra.mxu0 %v1064
  %v1158 = vpop.f32.mrf.mxu0
  %v1159 = vadd.f32 0.0, %v1158
  %1160 = vmatmul.f32.gmra.mxu0 %v1067
  %v1161 = vpop.f32.mrf.mxu0
  %v1162 = vadd.f32 0.0, %v1161
  %1163 = vmatmul.f32.gmra.mxu0 %v1070
  %v1164 = vpop.f32.mrf.mxu0
  %v1165 = vadd.f32 0.0, %v1164
  %1166 = vmatmul.f32.gmra.mxu0 %v1073
  %v1167 = vpop.f32.mrf.mxu0
  %v1168 = vadd.f32 0.0, %v1167
  %1169 = vmatmul.f32.gmra.mxu0 %v1076
  %v1170 = vpop.f32.mrf.mxu0
  %v1171 = vadd.f32 0.0, %v1170
  %1172 = vmatmul.f32.gmra.mxu0 %v1079
  %v1173 = vpop.f32.mrf.mxu0
  %v1174 = vadd.f32 0.0, %v1173
  %1175 = vmatmul.f32.gmra.mxu0 %v1082
  %v1176 = vpop.f32.mrf.mxu0
  %v1177 = vadd.f32 0.0, %v1176
  %1178 = vmatmul.f32.gmra.mxu0 %v1085
  %v1179 = vpop.f32.mrf.mxu0
  %v1180 = vadd.f32 0.0, %v1179
  %1181 = vmatmul.f32.gmra.mxu0 %v1088
  %v1182 = vpop.f32.mrf.mxu0
  %v1183 = vadd.f32 0.0, %v1182
  %1184 = vmatmul.f32.gmra.mxu0 %v1091
  %v1185 = vpop.f32.mrf.mxu0
  %v1186 = vadd.f32 0.0, %v1185
  %1187 = vmatmul.f32.gmra.mxu0 %v1094
  %v1188 = vpop.f32.mrf.mxu0
  %v1189 = vadd.f32 0.0, %v1188
  %1190 = vmatmul.f32.gmra.mxu0 %v1097
  %v1191 = vpop.f32.mrf.mxu0
  %v1192 = vadd.f32 0.0, %v1191
  %1193 = vmatmul.f32.gmra.mxu0 %v1100
  %v1194 = vpop.f32.mrf.mxu0
  %v1195 = vadd.f32 0.0, %v1194
  %1196 = vmatmul.f32.gmra.mxu0 %v1103
  %v1197 = vpop.f32.mrf.mxu0
  %v1198 = vadd.f32 0.0, %v1197
  %1199 = vmatmul.f32.gmra.mxu0 %v1106
  %v1200 = vpop.f32.mrf.mxu0
  %v1201 = vadd.f32 0.0, %v1200
  %1202 = vmatmul.f32.gmra.mxu0 %v1109
  %v1203 = vpop.f32.mrf.mxu0
  %v1204 = vadd.f32 0.0, %v1203
  %1205 = vmatmul.f32.gmra.mxu0 %v1112
  %v1206 = vpop.f32.mrf.mxu0
  %v1207 = vadd.f32 0.0, %v1206
  %1208 = vmatmul.f32.gmra.mxu0 %v1115
  %v1209 = vpop.f32.mrf.mxu0
  %v1210 = vadd.f32 0.0, %v1209
  %1211 = vmatmul.f32.gmra.mxu0 %v1118
  %v1212 = vpop.f32.mrf.mxu0
  %v1213 = vadd.f32 0.0, %v1212
  %1214 = vmatmul.f32.gmra.mxu0 %v1121
  %v1215 = vpop.f32.mrf.mxu0
  %v1216 = vadd.f32 0.0, %v1215
  %1217 = vmatmul.f32.gmra.mxu0 %v1124
  %v1218 = vpop.f32.mrf.mxu0
  %v1219 = vadd.f32 0.0, %v1218
  %1220 = vmatmul.f32.gmra.mxu0 %v1127
  %v1221 = vpop.f32.mrf.mxu0
  %v1222 = vadd.f32 0.0, %v1221
  %1223 = vmatmul.f32.gmra.mxu0 %v1130
  %v1224 = vpop.f32.mrf.mxu0
  %v1225 = vadd.f32 0.0, %v1224
  %1226 = vmatmul.f32.gmra.mxu0 %v1133
  %v1227 = vpop.f32.mrf.mxu0
  %v1228 = vadd.f32 0.0, %v1227
  %1229 = vdwg.mxu0
  %v1230 = vmul.f32 %v883, %v1156
  %v1231 = vmul.f32 %v884, %v1159
  %v1232 = vmul.f32 %v885, %v1162
  %v1233 = vmul.f32 %v886, %v1165
  %v1234 = vmul.f32 %v887, %v1168
  %v1235 = vmul.f32 %v888, %v1171
  %v1236 = vmul.f32 %v889, %v1174
  %v1237 = vmul.f32 %v890, %v1177
  %v1238 = vmul.f32 %v891, %v1180
  %v1239 = vmul.f32 %v892, %v1183
  %v1240 = vmul.f32 %v893, %v1186
  %v1241 = vmul.f32 %v894, %v1189
  %v1242 = vmul.f32 %v895, %v1192
  %v1243 = vmul.f32 %v896, %v1195
  %v1244 = vmul.f32 %v897, %v1198
  %v1245 = vmul.f32 %v898, %v1201
  %v1246 = vmul.f32 %v899, %v1204
  %v1247 = vmul.f32 %v900, %v1207
  %v1248 = vmul.f32 %v901, %v1210
  %v1249 = vmul.f32 %v902, %v1213
  %v1250 = vmul.f32 %v903, %v1216
  %v1251 = vmul.f32 %v904, %v1219
  %v1252 = vmul.f32 %v905, %v1222
  %v1253 = vmul.f32 %v906, %v1225
  %v1254 = vmul.f32 %v907, %v1228
  %v1255 = vld [vmem:[%s7] sm:$0xff]
  %v1256 = vld [vmem:[%s7 + $0x8] sm:$0xff]
  %v1257 = vld [vmem:[%s7 + $0x10] sm:$0xff]
  %v1258 = vld [vmem:[%s7 + $0x18] sm:$0xff]
  %v1259 = vld [vmem:[%s7 + $0x20] sm:$0xff]
  %v1260 = vld [vmem:[%s7 + $0x28] sm:$0xff]
  %v1261 = vld [vmem:[%s7 + $0x30] sm:$0xff]
  %v1262 = vld [vmem:[%s7 + $0x38] sm:$0xff]
  %v1263 = vld [vmem:[%s7 + $0x40] sm:$0xff]
  %v1264 = vld [vmem:[%s7 + $0x48] sm:$0xff]
  %v1265 = vld [vmem:[%s7 + $0x50] sm:$0xff]
  %v1266 = vld [vmem:[%s7 + $0x58] sm:$0xff]
  %v1267 = vld [vmem:[%s7 + $0x60] sm:$0xff]
  %v1268 = vld [vmem:[%s7 + $0x68] sm:$0xff]
  %v1269 = vld [vmem:[%s7 + $0x70] sm:$0xff]
  %v1270 = vld [vmem:[%s7 + $0x78] sm:$0xff]
  %v1271 = vld [vmem:[%s7 + $0x80] sm:$0xff]
  %v1272 = vld [vmem:[%s7 + $0x88] sm:$0xff]
  %v1273 = vld [vmem:[%s7 + $0x90] sm:$0xff]
  %v1274 = vld [vmem:[%s7 + $0x98] sm:$0xff]
  %v1275 = vld [vmem:[%s7 + $0xa0] sm:$0xff]
  %v1276 = vld [vmem:[%s7 + $0xa8] sm:$0xff]
  %v1277 = vld [vmem:[%s7 + $0xb0] sm:$0xff]
  %v1278 = vld [vmem:[%s7 + $0xb8] sm:$0xff]
  %v1279 = vld [vmem:[%s7 + $0xc0] sm:$0xff]
  %v1280 = vld [vmem:[%s7 + $0xc8] sm:$0xff]
  %v1281 = vld [vmem:[%s7 + $0xd0] sm:$0xff]
  %v1282 = vld [vmem:[%s7 + $0xd8] sm:$0xff]
  %v1283 = vld [vmem:[%s7 + $0xe0] sm:$0xff]
  %v1284 = vld [vmem:[%s7 + $0xe8] sm:$0xff]
  %v1285 = vld [vmem:[%s7 + $0xf0] sm:$0xff]
  %v1286 = vld [vmem:[%s7 + $0xf8] sm:$0xff]
  %v1287 = vld [vmem:[%s7 + $0x100] sm:$0xff]
  %v1288 = vld [vmem:[%s7 + $0x108] sm:$0xff]
  %v1289 = vld [vmem:[%s7 + $0x110] sm:$0xff]
  %v1290 = vld [vmem:[%s7 + $0x118] sm:$0xff]
  %v1291 = vld [vmem:[%s7 + $0x120] sm:$0xff]
  %v1292 = vld [vmem:[%s7 + $0x128] sm:$0xff]
  %v1293 = vld [vmem:[%s7 + $0x130] sm:$0xff]
  %v1294 = vld [vmem:[%s7 + $0x138] sm:$0xff]
  %v1295 = vld [vmem:[%s7 + $0x140] sm:$0xff]
  %v1296 = vld [vmem:[%s7 + $0x148] sm:$0xff]
  %v1297 = vld [vmem:[%s7 + $0x150] sm:$0xff]
  %v1298 = vld [vmem:[%s7 + $0x158] sm:$0xff]
  %v1299 = vld [vmem:[%s7 + $0x160] sm:$0xff]
  %v1300 = vld [vmem:[%s7 + $0x168] sm:$0xff]
  %v1301 = vld [vmem:[%s7 + $0x170] sm:$0xff]
  %v1302 = vld [vmem:[%s7 + $0x178] sm:$0xff]
  %v1303 = vld [vmem:[%s7 + $0x180] sm:$0xff]
  %v1304 = vld [vmem:[%s7 + $0x188] sm:$0xff]
  %v1305 = vld [vmem:[%s7 + $0x190] sm:$0xff]
  %v1306 = vld [vmem:[%s7 + $0x198] sm:$0xff]
  %v1307 = vld [vmem:[%s7 + $0x1a0] sm:$0xff]
  %v1308 = vld [vmem:[%s7 + $0x1a8] sm:$0xff]
  %v1309 = vld [vmem:[%s7 + $0x1b0] sm:$0xff]
  %v1310 = vld [vmem:[%s7 + $0x1b8] sm:$0xff]
  %v1311 = vld [vmem:[%s7 + $0x1c0] sm:$0xff]
  %v1312 = vld [vmem:[%s7 + $0x1c8] sm:$0xff]
  %v1313 = vld [vmem:[%s7 + $0x1d0] sm:$0xff]
  %v1314 = vld [vmem:[%s7 + $0x1d8] sm:$0xff]
  %v1315 = vld [vmem:[%s7 + $0x1e0] sm:$0xff]
  %v1316 = vld [vmem:[%s7 + $0x1e8] sm:$0xff]
  %v1317 = vld [vmem:[%s7 + $0x1f0] sm:$0xff]
  %v1318 = vld [vmem:[%s7 + $0x1f8] sm:$0xff]
  %v1319 = vld [vmem:[%s7 + $0x200] sm:$0xff]
  %v1320 = vld [vmem:[%s7 + $0x208] sm:$0xff]
  %v1321 = vld [vmem:[%s7 + $0x210] sm:$0xff]
  %v1322 = vld [vmem:[%s7 + $0x218] sm:$0xff]
  %v1323 = vld [vmem:[%s7 + $0x220] sm:$0xff]
  %v1324 = vld [vmem:[%s7 + $0x228] sm:$0xff]
  %v1325 = vld [vmem:[%s7 + $0x230] sm:$0xff]
  %v1326 = vld [vmem:[%s7 + $0x238] sm:$0xff]
  %v1327 = vld [vmem:[%s7 + $0x240] sm:$0xff]
  %v1328 = vld [vmem:[%s7 + $0x248] sm:$0xff]
  %v1329 = vld [vmem:[%s7 + $0x250] sm:$0xff]
  %v1330 = vld [vmem:[%s7 + $0x258] sm:$0xff]
  %v1331 = vld [vmem:[%s7 + $0x260] sm:$0xff]
  %v1332 = vld [vmem:[%s7 + $0x268] sm:$0xff]
  %v1333 = vld [vmem:[%s7 + $0x270] sm:$0xff]
  %v1334 = vld [vmem:[%s7 + $0x278] sm:$0xff]
  %v1335 = vld [vmem:[%s7 + $0x280] sm:$0xff]
  %v1336 = vld [vmem:[%s7 + $0x288] sm:$0xff]
  %v1337 = vld [vmem:[%s7 + $0x290] sm:$0xff]
  %v1338 = vld [vmem:[%s7 + $0x298] sm:$0xff]
  %v1339 = vld [vmem:[%s7 + $0x2a0] sm:$0xff]
  %v1340 = vld [vmem:[%s7 + $0x2a8] sm:$0xff]
  %v1341 = vld [vmem:[%s7 + $0x2b0] sm:$0xff]
  %v1342 = vld [vmem:[%s7 + $0x2b8] sm:$0xff]
  %v1343 = vld [vmem:[%s7 + $0x2c0] sm:$0xff]
  %v1344 = vld [vmem:[%s7 + $0x2c8] sm:$0xff]
  %v1345 = vld [vmem:[%s7 + $0x2d0] sm:$0xff]
  %v1346 = vld [vmem:[%s7 + $0x2d8] sm:$0xff]
  %v1347 = vld [vmem:[%s7 + $0x2e0] sm:$0xff]
  %v1348 = vld [vmem:[%s7 + $0x2e8] sm:$0xff]
  %v1349 = vld [vmem:[%s7 + $0x2f0] sm:$0xff]
  %v1350 = vld [vmem:[%s7 + $0x2f8] sm:$0xff]
  %v1351 = vld [vmem:[%s7 + $0x300] sm:$0xff]
  %v1352 = vld [vmem:[%s7 + $0x308] sm:$0xff]
  %v1353 = vld [vmem:[%s7 + $0x310] sm:$0xff]
  %v1354 = vld [vmem:[%s7 + $0x318] sm:$0xff]
  %v1355 = vld [vmem:[%s7 + $0x320] sm:$0xff]
  %v1356 = vld [vmem:[%s7 + $0x328] sm:$0xff]
  %v1357 = vld [vmem:[%s7 + $0x330] sm:$0xff]
  %v1358 = vld [vmem:[%s7 + $0x338] sm:$0xff]
  %v1359 = vld [vmem:[%s7 + $0x340] sm:$0xff]
  %v1360 = vld [vmem:[%s7 + $0x348] sm:$0xff]
  %v1361 = vld [vmem:[%s7 + $0x350] sm:$0xff]
  %v1362 = vld [vmem:[%s7 + $0x358] sm:$0xff]
  %v1363 = vld [vmem:[%s7 + $0x360] sm:$0xff]
  %v1364 = vld [vmem:[%s7 + $0x368] sm:$0xff]
  %v1365 = vld [vmem:[%s7 + $0x370] sm:$0xff]
  %v1366 = vld [vmem:[%s7 + $0x378] sm:$0xff]
  %v1367 = vld [vmem:[%s7 + $0x380] sm:$0xff]
  %v1368 = vld [vmem:[%s7 + $0x388] sm:$0xff]
  %v1369 = vld [vmem:[%s7 + $0x390] sm:$0xff]
  %v1370 = vld [vmem:[%s7 + $0x398] sm:$0xff]
  %v1371 = vld [vmem:[%s7 + $0x3a0] sm:$0xff]
  %v1372 = vld [vmem:[%s7 + $0x3a8] sm:$0xff]
  %v1373 = vld [vmem:[%s7 + $0x3b0] sm:$0xff]
  %v1374 = vld [vmem:[%s7 + $0x3b8] sm:$0xff]
  %v1375 = vld [vmem:[%s7 + $0x3c0] sm:$0xff]
  %v1376 = vld [vmem:[%s7 + $0x3c8] sm:$0xff]
  %v1377 = vld [vmem:[%s7 + $0x3d0] sm:$0xff]
  %v1378 = vld [vmem:[%s7 + $0x3d8] sm:$0xff]
  %v1379 = vld [vmem:[%s7 + $0x3e0] sm:$0xff]
  %v1380 = vld [vmem:[%s7 + $0x3e8] sm:$0xff]
  %v1381 = vld [vmem:[%s7 + $0x3f0] sm:$0xff]
  %v1382 = vld [vmem:[%s7 + $0x3f8] sm:$0xff]
  %v1383 = vld [vmem:[%s7 + $0x400] sm:$0xff]
  %v1384 = vld [vmem:[%s7 + $0x408] sm:$0xff]
  %v1385 = vld [vmem:[%s7 + $0x410] sm:$0xff]
  %v1386 = vld [vmem:[%s7 + $0x418] sm:$0xff]
  %v1387 = vld [vmem:[%s7 + $0x420] sm:$0xff]
  %v1388 = vld [vmem:[%s7 + $0x428] sm:$0xff]
  %v1389 = vld [vmem:[%s7 + $0x430] sm:$0xff]
  %v1390 = vld [vmem:[%s7 + $0x438] sm:$0xff]
  %v1391 = vld [vmem:[%s7 + $0x440] sm:$0xff]
  %v1392 = vld [vmem:[%s7 + $0x448] sm:$0xff]
  %v1393 = vld [vmem:[%s7 + $0x450] sm:$0xff]
  %v1394 = vld [vmem:[%s7 + $0x458] sm:$0xff]
  %v1395 = vld [vmem:[%s7 + $0x460] sm:$0xff]
  %v1396 = vld [vmem:[%s7 + $0x468] sm:$0xff]
  %v1397 = vld [vmem:[%s7 + $0x470] sm:$0xff]
  %v1398 = vld [vmem:[%s7 + $0x478] sm:$0xff]
  %v1399 = vld [vmem:[%s7 + $0x480] sm:$0xff]
  %v1400 = vld [vmem:[%s7 + $0x488] sm:$0xff]
  %v1401 = vld [vmem:[%s7 + $0x490] sm:$0xff]
  %v1402 = vld [vmem:[%s7 + $0x498] sm:$0xff]
  %v1403 = vld [vmem:[%s7 + $0x4a0] sm:$0xff]
  %v1404 = vld [vmem:[%s7 + $0x4a8] sm:$0xff]
  %v1405 = vld [vmem:[%s7 + $0x4b0] sm:$0xff]
  %v1406 = vld [vmem:[%s7 + $0x4b8] sm:$0xff]
  %v1407 = vld [vmem:[%s7 + $0x4c0] sm:$0xff]
  %v1408 = vld [vmem:[%s7 + $0x4c8] sm:$0xff]
  %v1409 = vld [vmem:[%s7 + $0x4d0] sm:$0xff]
  %v1410 = vld [vmem:[%s7 + $0x4d8] sm:$0xff]
  %v1411 = vld [vmem:[%s7 + $0x4e0] sm:$0xff]
  %v1412 = vld [vmem:[%s7 + $0x4e8] sm:$0xff]
  %v1413 = vld [vmem:[%s7 + $0x4f0] sm:$0xff]
  %v1414 = vld [vmem:[%s7 + $0x4f8] sm:$0xff]
  %v1415 = vld [vmem:[%s7 + $0x500] sm:$0xff]
  %v1416 = vld [vmem:[%s7 + $0x508] sm:$0xff]
  %v1417 = vld [vmem:[%s7 + $0x510] sm:$0xff]
  %v1418 = vld [vmem:[%s7 + $0x518] sm:$0xff]
  %v1419 = vld [vmem:[%s7 + $0x520] sm:$0xff]
  %v1420 = vld [vmem:[%s7 + $0x528] sm:$0xff]
  %v1421 = vld [vmem:[%s7 + $0x530] sm:$0xff]
  %v1422 = vld [vmem:[%s7 + $0x538] sm:$0xff]
  %v1423 = vld [vmem:[%s7 + $0x540] sm:$0xff]
  %v1424 = vld [vmem:[%s7 + $0x548] sm:$0xff]
  %v1425 = vld [vmem:[%s7 + $0x550] sm:$0xff]
  %v1426 = vld [vmem:[%s7 + $0x558] sm:$0xff]
  %v1427 = vld [vmem:[%s7 + $0x560] sm:$0xff]
  %v1428 = vld [vmem:[%s7 + $0x568] sm:$0xff]
  %v1429 = vld [vmem:[%s7 + $0x570] sm:$0xff]
  %v1430 = vld [vmem:[%s7 + $0x578] sm:$0xff]
  %v1431 = vld [vmem:[%s7 + $0x580] sm:$0xff]
  %v1432 = vld [vmem:[%s7 + $0x588] sm:$0xff]
  %v1433 = vld [vmem:[%s7 + $0x590] sm:$0xff]
  %v1434 = vld [vmem:[%s7 + $0x598] sm:$0xff]
  %v1435 = vld [vmem:[%s7 + $0x5a0] sm:$0xff]
  %v1436 = vld [vmem:[%s7 + $0x5a8] sm:$0xff]
  %v1437 = vld [vmem:[%s7 + $0x5b0] sm:$0xff]
  %v1438 = vld [vmem:[%s7 + $0x5b8] sm:$0xff]
  %v1439 = vld [vmem:[%s7 + $0x5c0] sm:$0xff]
  %v1440 = vld [vmem:[%s7 + $0x5c8] sm:$0xff]
  %v1441 = vld [vmem:[%s7 + $0x5d0] sm:$0xff]
  %v1442 = vld [vmem:[%s7 + $0x5d8] sm:$0xff]
  %v1443 = vld [vmem:[%s7 + $0x5e0] sm:$0xff]
  %v1444 = vld [vmem:[%s7 + $0x5e8] sm:$0xff]
  %v1445 = vld [vmem:[%s7 + $0x5f0] sm:$0xff]
  %v1446 = vld [vmem:[%s7 + $0x5f8] sm:$0xff]
  %v1447 = vld [vmem:[%s7 + $0x600] sm:$0xff]
  %v1448 = vld [vmem:[%s7 + $0x608] sm:$0xff]
  %v1449 = vld [vmem:[%s7 + $0x610] sm:$0xff]
  %v1450 = vld [vmem:[%s7 + $0x618] sm:$0xff]
  %v1451 = vld [vmem:[%s7 + $0x620] sm:$0xff]
  %v1452 = vld [vmem:[%s7 + $0x628] sm:$0xff]
  %v1453 = vld [vmem:[%s7 + $0x630] sm:$0xff]
  %v1454 = vld [vmem:[%s7 + $0x638] sm:$0xff]
  %v1455 = vld [vmem:[%s7 + $0x640] sm:$0xff]
  %v1456 = vld [vmem:[%s7 + $0x648] sm:$0xff]
  %v1457 = vld [vmem:[%s7 + $0x650] sm:$0xff]
  %v1458 = vld [vmem:[%s7 + $0x658] sm:$0xff]
  %v1459 = vld [vmem:[%s7 + $0x660] sm:$0xff]
  %v1460 = vld [vmem:[%s7 + $0x668] sm:$0xff]
  %v1461 = vld [vmem:[%s7 + $0x670] sm:$0xff]
  %v1462 = vld [vmem:[%s7 + $0x678] sm:$0xff]
  %v1463 = vld [vmem:[%s7 + $0x680] sm:$0xff]
  %v1464 = vld [vmem:[%s7 + $0x688] sm:$0xff]
  %v1465 = vld [vmem:[%s7 + $0x690] sm:$0xff]
  %v1466 = vld [vmem:[%s7 + $0x698] sm:$0xff]
  %v1467 = vld [vmem:[%s7 + $0x6a0] sm:$0xff]
  %v1468 = vld [vmem:[%s7 + $0x6a8] sm:$0xff]
  %v1469 = vld [vmem:[%s7 + $0x6b0] sm:$0xff]
  %v1470 = vld [vmem:[%s7 + $0x6b8] sm:$0xff]
  %v1471 = vld [vmem:[%s7 + $0x6c0] sm:$0xff]
  %v1472 = vld [vmem:[%s7 + $0x6c8] sm:$0xff]
  %v1473 = vld [vmem:[%s7 + $0x6d0] sm:$0xff]
  %v1474 = vld [vmem:[%s7 + $0x6d8] sm:$0xff]
  %v1475 = vld [vmem:[%s7 + $0x6e0] sm:$0xff]
  %v1476 = vld [vmem:[%s7 + $0x6e8] sm:$0xff]
  %v1477 = vld [vmem:[%s7 + $0x6f0] sm:$0xff]
  %v1478 = vld [vmem:[%s7 + $0x6f8] sm:$0xff]
  %v1479 = vld [vmem:[%s7 + $0x700] sm:$0xff]
  %v1480 = vld [vmem:[%s7 + $0x708] sm:$0xff]
  %v1481 = vld [vmem:[%s7 + $0x710] sm:$0xff]
  %v1482 = vld [vmem:[%s7 + $0x718] sm:$0xff]
  %v1483 = vld [vmem:[%s7 + $0x720] sm:$0xff]
  %v1484 = vld [vmem:[%s7 + $0x728] sm:$0xff]
  %v1485 = vld [vmem:[%s7 + $0x730] sm:$0xff]
  %v1486 = vld [vmem:[%s7 + $0x738] sm:$0xff]
  %v1487 = vld [vmem:[%s7 + $0x740] sm:$0xff]
  %v1488 = vld [vmem:[%s7 + $0x748] sm:$0xff]
  %v1489 = vld [vmem:[%s7 + $0x750] sm:$0xff]
  %v1490 = vld [vmem:[%s7 + $0x758] sm:$0xff]
  %v1491 = vld [vmem:[%s7 + $0x760] sm:$0xff]
  %v1492 = vld [vmem:[%s7 + $0x768] sm:$0xff]
  %v1493 = vld [vmem:[%s7 + $0x770] sm:$0xff]
  %v1494 = vld [vmem:[%s7 + $0x778] sm:$0xff]
  %v1495 = vld [vmem:[%s7 + $0x780] sm:$0xff]
  %v1496 = vld [vmem:[%s7 + $0x788] sm:$0xff]
  %v1497 = vld [vmem:[%s7 + $0x790] sm:$0xff]
  %v1498 = vld [vmem:[%s7 + $0x798] sm:$0xff]
  %v1499 = vld [vmem:[%s7 + $0x7a0] sm:$0xff]
  %v1500 = vld [vmem:[%s7 + $0x7a8] sm:$0xff]
  %v1501 = vld [vmem:[%s7 + $0x7b0] sm:$0xff]
  %v1502 = vld [vmem:[%s7 + $0x7b8] sm:$0xff]
  %v1503 = vld [vmem:[%s7 + $0x7c0] sm:$0xff]
  %v1504 = vld [vmem:[%s7 + $0x7c8] sm:$0xff]
  %v1505 = vld [vmem:[%s7 + $0x7d0] sm:$0xff]
  %v1506 = vld [vmem:[%s7 + $0x7d8] sm:$0xff]
  %v1507 = vld [vmem:[%s7 + $0x7e0] sm:$0xff]
  %v1508 = vld [vmem:[%s7 + $0x7e8] sm:$0xff]
  %v1509 = vld [vmem:[%s7 + $0x7f0] sm:$0xff]
  %v1510 = vld [vmem:[%s7 + $0x7f8] sm:$0xff]
  %v1511 = vld [vmem:[%s7 + $0x800] sm:$0xff]
  %v1512 = vld [vmem:[%s7 + $0x808] sm:$0xff]
  %v1513 = vld [vmem:[%s7 + $0x810] sm:$0xff]
  %v1514 = vld [vmem:[%s7 + $0x818] sm:$0xff]
  %v1515 = vld [vmem:[%s7 + $0x820] sm:$0xff]
  %v1516 = vld [vmem:[%s7 + $0x828] sm:$0xff]
  %v1517 = vld [vmem:[%s7 + $0x830] sm:$0xff]
  %v1518 = vld [vmem:[%s7 + $0x838] sm:$0xff]
  %v1519 = vld [vmem:[%s7 + $0x840] sm:$0xff]
  %v1520 = vld [vmem:[%s7 + $0x848] sm:$0xff]
  %v1521 = vld [vmem:[%s7 + $0x850] sm:$0xff]
  %v1522 = vld [vmem:[%s7 + $0x858] sm:$0xff]
  %v1523 = vld [vmem:[%s7 + $0x860] sm:$0xff]
  %v1524 = vld [vmem:[%s7 + $0x868] sm:$0xff]
  %v1525 = vld [vmem:[%s7 + $0x870] sm:$0xff]
  %v1526 = vld [vmem:[%s7 + $0x878] sm:$0xff]
  %v1527 = vld [vmem:[%s7 + $0x880] sm:$0xff]
  %v1528 = vld [vmem:[%s7 + $0x888] sm:$0xff]
  %v1529 = vld [vmem:[%s7 + $0x890] sm:$0xff]
  %v1530 = vld [vmem:[%s7 + $0x898] sm:$0xff]
  %v1531 = vld [vmem:[%s7 + $0x8a0] sm:$0xff]
  %v1532 = vld [vmem:[%s7 + $0x8a8] sm:$0xff]
  %v1533 = vld [vmem:[%s7 + $0x8b0] sm:$0xff]
  %v1534 = vld [vmem:[%s7 + $0x8b8] sm:$0xff]
  %v1535 = vld [vmem:[%s7 + $0x8c0] sm:$0xff]
  %v1536 = vld [vmem:[%s7 + $0x8c8] sm:$0xff]
  %v1537 = vld [vmem:[%s7 + $0x8d0] sm:$0xff]
  %v1538 = vld [vmem:[%s7 + $0x8d8] sm:$0xff]
  %v1539 = vld [vmem:[%s7 + $0x8e0] sm:$0xff]
  %v1540 = vld [vmem:[%s7 + $0x8e8] sm:$0xff]
  %v1541 = vld [vmem:[%s7 + $0x8f0] sm:$0xff]
  %v1542 = vld [vmem:[%s7 + $0x8f8] sm:$0xff]
  %v1543 = vld [vmem:[%s7 + $0x900] sm:$0xff]
  %v1544 = vld [vmem:[%s7 + $0x908] sm:$0xff]
  %v1545 = vld [vmem:[%s7 + $0x910] sm:$0xff]
  %v1546 = vld [vmem:[%s7 + $0x918] sm:$0xff]
  %v1547 = vld [vmem:[%s7 + $0x920] sm:$0xff]
  %v1548 = vld [vmem:[%s7 + $0x928] sm:$0xff]
  %v1549 = vld [vmem:[%s7 + $0x930] sm:$0xff]
  %v1550 = vld [vmem:[%s7 + $0x938] sm:$0xff]
  %v1551 = vld [vmem:[%s7 + $0x940] sm:$0xff]
  %v1552 = vld [vmem:[%s7 + $0x948] sm:$0xff]
  %v1553 = vld [vmem:[%s7 + $0x950] sm:$0xff]
  %v1554 = vld [vmem:[%s7 + $0x958] sm:$0xff]
  %v1555 = vld [vmem:[%s7 + $0x960] sm:$0xff]
  %v1556 = vld [vmem:[%s7 + $0x968] sm:$0xff]
  %v1557 = vld [vmem:[%s7 + $0x970] sm:$0xff]
  %v1558 = vld [vmem:[%s7 + $0x978] sm:$0xff]
  %v1559 = vld [vmem:[%s7 + $0x980] sm:$0xff]
  %v1560 = vld [vmem:[%s7 + $0x988] sm:$0xff]
  %v1561 = vld [vmem:[%s7 + $0x990] sm:$0xff]
  %v1562 = vld [vmem:[%s7 + $0x998] sm:$0xff]
  %v1563 = vld [vmem:[%s7 + $0x9a0] sm:$0xff]
  %v1564 = vld [vmem:[%s7 + $0x9a8] sm:$0xff]
  %v1565 = vld [vmem:[%s7 + $0x9b0] sm:$0xff]
  %v1566 = vld [vmem:[%s7 + $0x9b8] sm:$0xff]
  %v1567 = vld [vmem:[%s7 + $0x9c0] sm:$0xff]
  %v1568 = vld [vmem:[%s7 + $0x9c8] sm:$0xff]
  %v1569 = vld [vmem:[%s7 + $0x9d0] sm:$0xff]
  %v1570 = vld [vmem:[%s7 + $0x9d8] sm:$0xff]
  %v1571 = vld [vmem:[%s7 + $0x9e0] sm:$0xff]
  %v1572 = vld [vmem:[%s7 + $0x9e8] sm:$0xff]
  %v1573 = vld [vmem:[%s7 + $0x9f0] sm:$0xff]
  %v1574 = vld [vmem:[%s7 + $0x9f8] sm:$0xff]
  %v1575 = vld [vmem:[%s7 + $0xa00] sm:$0xff]
  %v1576 = vld [vmem:[%s7 + $0xa08] sm:$0xff]
  %v1577 = vld [vmem:[%s7 + $0xa10] sm:$0xff]
  %v1578 = vld [vmem:[%s7 + $0xa18] sm:$0xff]
  %v1579 = vunpack.c.l.bf16 %v1255
  %v1580 = vunpack.c.h.bf16 %v1255
  %v1581 = vunpack.c.l.bf16 %v1256
  %v1582 = vunpack.c.h.bf16 %v1256
  %v1583 = vunpack.c.l.bf16 %v1257
  %v1584 = vunpack.c.h.bf16 %v1257
  %v1585 = vunpack.c.l.bf16 %v1258
  %v1586 = vunpack.c.h.bf16 %v1258
  %v1587 = vunpack.c.l.bf16 %v1259
  %v1588 = vunpack.c.h.bf16 %v1259
  %v1589 = vunpack.c.l.bf16 %v1260
  %v1590 = vunpack.c.h.bf16 %v1260
  %v1591 = vunpack.c.l.bf16 %v1261
  %v1592 = vunpack.c.h.bf16 %v1261
  %v1593 = vunpack.c.l.bf16 %v1262
  %v1594 = vunpack.c.h.bf16 %v1262
  %v1595 = vunpack.c.l.bf16 %v1263
  %v1596 = vunpack.c.h.bf16 %v1263
  %v1597 = vunpack.c.l.bf16 %v1264
  %v1598 = vunpack.c.h.bf16 %v1264
  %v1599 = vunpack.c.l.bf16 %v1265
  %v1600 = vunpack.c.h.bf16 %v1265
  %v1601 = vunpack.c.l.bf16 %v1266
  %v1602 = vunpack.c.h.bf16 %v1266
  %v1603 = vunpack.c.l.bf16 %v1267
  %v1604 = vunpack.c.h.bf16 %v1267
  %v1605 = vunpack.c.l.bf16 %v1268
  %v1606 = vunpack.c.h.bf16 %v1268
  %v1607 = vunpack.c.l.bf16 %v1269
  %v1608 = vunpack.c.h.bf16 %v1269
  %v1609 = vunpack.c.l.bf16 %v1270
  %v1610 = vunpack.c.h.bf16 %v1270
  %v1611 = vunpack.c.l.bf16 %v1271
  %v1612 = vunpack.c.h.bf16 %v1271
  %v1613 = vunpack.c.l.bf16 %v1272
  %v1614 = vunpack.c.h.bf16 %v1272
  %v1615 = vunpack.c.l.bf16 %v1273
  %v1616 = vunpack.c.h.bf16 %v1273
  %v1617 = vunpack.c.l.bf16 %v1274
  %v1618 = vunpack.c.h.bf16 %v1274
  %v1619 = vunpack.c.l.bf16 %v1275
  %v1620 = vunpack.c.h.bf16 %v1275
  %v1621 = vunpack.c.l.bf16 %v1276
  %v1622 = vunpack.c.h.bf16 %v1276
  %v1623 = vunpack.c.l.bf16 %v1277
  %v1624 = vunpack.c.h.bf16 %v1277
  %v1625 = vunpack.c.l.bf16 %v1278
  %v1626 = vunpack.c.h.bf16 %v1278
  %v1627 = vunpack.c.l.bf16 %v1279
  %v1628 = vunpack.c.h.bf16 %v1279
  %v1629 = vunpack.c.l.bf16 %v1280
  %v1630 = vunpack.c.h.bf16 %v1280
  %v1631 = vunpack.c.l.bf16 %v1281
  %v1632 = vunpack.c.h.bf16 %v1281
  %v1633 = vunpack.c.l.bf16 %v1282
  %v1634 = vunpack.c.h.bf16 %v1282
  %v1635 = vunpack.c.l.bf16 %v1283
  %v1636 = vunpack.c.h.bf16 %v1283
  %v1637 = vunpack.c.l.bf16 %v1284
  %v1638 = vunpack.c.h.bf16 %v1284
  %v1639 = vunpack.c.l.bf16 %v1285
  %v1640 = vunpack.c.h.bf16 %v1285
  %v1641 = vunpack.c.l.bf16 %v1286
  %v1642 = vunpack.c.h.bf16 %v1286
  %v1643 = vunpack.c.l.bf16 %v1287
  %v1644 = vunpack.c.h.bf16 %v1287
  %v1645 = vunpack.c.l.bf16 %v1288
  %v1646 = vunpack.c.h.bf16 %v1288
  %v1647 = vunpack.c.l.bf16 %v1289
  %v1648 = vunpack.c.h.bf16 %v1289
  %v1649 = vunpack.c.l.bf16 %v1290
  %v1650 = vunpack.c.h.bf16 %v1290
  %v1651 = vunpack.c.l.bf16 %v1291
  %v1652 = vunpack.c.h.bf16 %v1291
  %v1653 = vunpack.c.l.bf16 %v1292
  %v1654 = vunpack.c.h.bf16 %v1292
  %v1655 = vunpack.c.l.bf16 %v1293
  %v1656 = vunpack.c.h.bf16 %v1293
  %v1657 = vunpack.c.l.bf16 %v1294
  %v1658 = vunpack.c.h.bf16 %v1294
  %v1659 = vunpack.c.l.bf16 %v1295
  %v1660 = vunpack.c.h.bf16 %v1295
  %v1661 = vunpack.c.l.bf16 %v1296
  %v1662 = vunpack.c.h.bf16 %v1296
  %v1663 = vunpack.c.l.bf16 %v1297
  %v1664 = vunpack.c.h.bf16 %v1297
  %v1665 = vunpack.c.l.bf16 %v1298
  %v1666 = vunpack.c.h.bf16 %v1298
  %v1667 = vunpack.c.l.bf16 %v1299
  %v1668 = vunpack.c.h.bf16 %v1299
  %v1669 = vunpack.c.l.bf16 %v1300
  %v1670 = vunpack.c.h.bf16 %v1300
  %v1671 = vunpack.c.l.bf16 %v1301
  %v1672 = vunpack.c.h.bf16 %v1301
  %v1673 = vunpack.c.l.bf16 %v1302
  %v1674 = vunpack.c.h.bf16 %v1302
  %v1675 = vunpack.c.l.bf16 %v1303
  %v1676 = vunpack.c.h.bf16 %v1303
  %v1677 = vunpack.c.l.bf16 %v1304
  %v1678 = vunpack.c.h.bf16 %v1304
  %v1679 = vunpack.c.l.bf16 %v1305
  %v1680 = vunpack.c.h.bf16 %v1305
  %v1681 = vunpack.c.l.bf16 %v1306
  %v1682 = vunpack.c.h.bf16 %v1306
  %v1683 = vunpack.c.l.bf16 %v1307
  %v1684 = vunpack.c.h.bf16 %v1307
  %v1685 = vunpack.c.l.bf16 %v1308
  %v1686 = vunpack.c.h.bf16 %v1308
  %v1687 = vunpack.c.l.bf16 %v1309
  %v1688 = vunpack.c.h.bf16 %v1309
  %v1689 = vunpack.c.l.bf16 %v1310
  %v1690 = vunpack.c.h.bf16 %v1310
  %v1691 = vunpack.c.l.bf16 %v1311
  %v1692 = vunpack.c.h.bf16 %v1311
  %v1693 = vunpack.c.l.bf16 %v1312
  %v1694 = vunpack.c.h.bf16 %v1312
  %v1695 = vunpack.c.l.bf16 %v1313
  %v1696 = vunpack.c.h.bf16 %v1313
  %v1697 = vunpack.c.l.bf16 %v1314
  %v1698 = vunpack.c.h.bf16 %v1314
  %v1699 = vunpack.c.l.bf16 %v1315
  %v1700 = vunpack.c.h.bf16 %v1315
  %v1701 = vunpack.c.l.bf16 %v1316
  %v1702 = vunpack.c.h.bf16 %v1316
  %v1703 = vunpack.c.l.bf16 %v1317
  %v1704 = vunpack.c.h.bf16 %v1317
  %v1705 = vunpack.c.l.bf16 %v1318
  %v1706 = vunpack.c.h.bf16 %v1318
  %v1707 = vunpack.c.l.bf16 %v1319
  %v1708 = vunpack.c.h.bf16 %v1319
  %v1709 = vunpack.c.l.bf16 %v1320
  %v1710 = vunpack.c.h.bf16 %v1320
  %v1711 = vunpack.c.l.bf16 %v1321
  %v1712 = vunpack.c.h.bf16 %v1321
  %v1713 = vunpack.c.l.bf16 %v1322
  %v1714 = vunpack.c.h.bf16 %v1322
  %v1715 = vunpack.c.l.bf16 %v1323
  %v1716 = vunpack.c.h.bf16 %v1323
  %v1717 = vunpack.c.l.bf16 %v1324
  %v1718 = vunpack.c.h.bf16 %v1324
  %v1719 = vunpack.c.l.bf16 %v1325
  %v1720 = vunpack.c.h.bf16 %v1325
  %v1721 = vunpack.c.l.bf16 %v1326
  %v1722 = vunpack.c.h.bf16 %v1326
  %v1723 = vunpack.c.l.bf16 %v1327
  %v1724 = vunpack.c.h.bf16 %v1327
  %v1725 = vunpack.c.l.bf16 %v1328
  %v1726 = vunpack.c.h.bf16 %v1328
  %v1727 = vunpack.c.l.bf16 %v1329
  %v1728 = vunpack.c.h.bf16 %v1329
  %v1729 = vunpack.c.l.bf16 %v1330
  %v1730 = vunpack.c.h.bf16 %v1330
  %v1731 = vunpack.c.l.bf16 %v1331
  %v1732 = vunpack.c.h.bf16 %v1331
  %v1733 = vunpack.c.l.bf16 %v1332
  %v1734 = vunpack.c.h.bf16 %v1332
  %v1735 = vunpack.c.l.bf16 %v1333
  %v1736 = vunpack.c.h.bf16 %v1333
  %v1737 = vunpack.c.l.bf16 %v1334
  %v1738 = vunpack.c.h.bf16 %v1334
  %v1739 = vunpack.c.l.bf16 %v1335
  %v1740 = vunpack.c.h.bf16 %v1335
  %v1741 = vunpack.c.l.bf16 %v1336
  %v1742 = vunpack.c.h.bf16 %v1336
  %v1743 = vunpack.c.l.bf16 %v1337
  %v1744 = vunpack.c.h.bf16 %v1337
  %v1745 = vunpack.c.l.bf16 %v1338
  %v1746 = vunpack.c.h.bf16 %v1338
  %v1747 = vunpack.c.l.bf16 %v1339
  %v1748 = vunpack.c.h.bf16 %v1339
  %v1749 = vunpack.c.l.bf16 %v1340
  %v1750 = vunpack.c.h.bf16 %v1340
  %v1751 = vunpack.c.l.bf16 %v1341
  %v1752 = vunpack.c.h.bf16 %v1341
  %v1753 = vunpack.c.l.bf16 %v1342
  %v1754 = vunpack.c.h.bf16 %v1342
  %v1755 = vunpack.c.l.bf16 %v1343
  %v1756 = vunpack.c.h.bf16 %v1343
  %v1757 = vunpack.c.l.bf16 %v1344
  %v1758 = vunpack.c.h.bf16 %v1344
  %v1759 = vunpack.c.l.bf16 %v1345
  %v1760 = vunpack.c.h.bf16 %v1345
  %v1761 = vunpack.c.l.bf16 %v1346
  %v1762 = vunpack.c.h.bf16 %v1346
  %v1763 = vunpack.c.l.bf16 %v1347
  %v1764 = vunpack.c.h.bf16 %v1347
  %v1765 = vunpack.c.l.bf16 %v1348
  %v1766 = vunpack.c.h.bf16 %v1348
  %v1767 = vunpack.c.l.bf16 %v1349
  %v1768 = vunpack.c.h.bf16 %v1349
  %v1769 = vunpack.c.l.bf16 %v1350
  %v1770 = vunpack.c.h.bf16 %v1350
  %v1771 = vunpack.c.l.bf16 %v1351
  %v1772 = vunpack.c.h.bf16 %v1351
  %v1773 = vunpack.c.l.bf16 %v1352
  %v1774 = vunpack.c.h.bf16 %v1352
  %v1775 = vunpack.c.l.bf16 %v1353
  %v1776 = vunpack.c.h.bf16 %v1353
  %v1777 = vunpack.c.l.bf16 %v1354
  %v1778 = vunpack.c.h.bf16 %v1354
  %v1779 = vunpack.c.l.bf16 %v1355
  %v1780 = vunpack.c.h.bf16 %v1355
  %v1781 = vunpack.c.l.bf16 %v1356
  %v1782 = vunpack.c.h.bf16 %v1356
  %v1783 = vunpack.c.l.bf16 %v1357
  %v1784 = vunpack.c.h.bf16 %v1357
  %v1785 = vunpack.c.l.bf16 %v1358
  %v1786 = vunpack.c.h.bf16 %v1358
  %v1787 = vunpack.c.l.bf16 %v1359
  %v1788 = vunpack.c.h.bf16 %v1359
  %v1789 = vunpack.c.l.bf16 %v1360
  %v1790 = vunpack.c.h.bf16 %v1360
  %v1791 = vunpack.c.l.bf16 %v1361
  %v1792 = vunpack.c.h.bf16 %v1361
  %v1793 = vunpack.c.l.bf16 %v1362
  %v1794 = vunpack.c.h.bf16 %v1362
  %v1795 = vunpack.c.l.bf16 %v1363
  %v1796 = vunpack.c.h.bf16 %v1363
  %v1797 = vunpack.c.l.bf16 %v1364
  %v1798 = vunpack.c.h.bf16 %v1364
  %v1799 = vunpack.c.l.bf16 %v1365
  %v1800 = vunpack.c.h.bf16 %v1365
  %v1801 = vunpack.c.l.bf16 %v1366
  %v1802 = vunpack.c.h.bf16 %v1366
  %v1803 = vunpack.c.l.bf16 %v1367
  %v1804 = vunpack.c.h.bf16 %v1367
  %v1805 = vunpack.c.l.bf16 %v1368
  %v1806 = vunpack.c.h.bf16 %v1368
  %v1807 = vunpack.c.l.bf16 %v1369
  %v1808 = vunpack.c.h.bf16 %v1369
  %v1809 = vunpack.c.l.bf16 %v1370
  %v1810 = vunpack.c.h.bf16 %v1370
  %v1811 = vunpack.c.l.bf16 %v1371
  %v1812 = vunpack.c.h.bf16 %v1371
  %v1813 = vunpack.c.l.bf16 %v1372
  %v1814 = vunpack.c.h.bf16 %v1372
  %v1815 = vunpack.c.l.bf16 %v1373
  %v1816 = vunpack.c.h.bf16 %v1373
  %v1817 = vunpack.c.l.bf16 %v1374
  %v1818 = vunpack.c.h.bf16 %v1374
  %v1819 = vunpack.c.l.bf16 %v1375
  %v1820 = vunpack.c.h.bf16 %v1375
  %v1821 = vunpack.c.l.bf16 %v1376
  %v1822 = vunpack.c.h.bf16 %v1376
  %v1823 = vunpack.c.l.bf16 %v1377
  %v1824 = vunpack.c.h.bf16 %v1377
  %v1825 = vunpack.c.l.bf16 %v1378
  %v1826 = vunpack.c.h.bf16 %v1378
  %v1827 = vunpack.c.l.bf16 %v1379
  %v1828 = vunpack.c.h.bf16 %v1379
  %v1829 = vunpack.c.l.bf16 %v1380
  %v1830 = vunpack.c.h.bf16 %v1380
  %v1831 = vunpack.c.l.bf16 %v1381
  %v1832 = vunpack.c.h.bf16 %v1381
  %v1833 = vunpack.c.l.bf16 %v1382
  %v1834 = vunpack.c.h.bf16 %v1382
  %v1835 = vunpack.c.l.bf16 %v1383
  %v1836 = vunpack.c.h.bf16 %v1383
  %v1837 = vunpack.c.l.bf16 %v1384
  %v1838 = vunpack.c.h.bf16 %v1384
  %v1839 = vunpack.c.l.bf16 %v1385
  %v1840 = vunpack.c.h.bf16 %v1385
  %v1841 = vunpack.c.l.bf16 %v1386
  %v1842 = vunpack.c.h.bf16 %v1386
  %v1843 = vunpack.c.l.bf16 %v1387
  %v1844 = vunpack.c.h.bf16 %v1387
  %v1845 = vunpack.c.l.bf16 %v1388
  %v1846 = vunpack.c.h.bf16 %v1388
  %v1847 = vunpack.c.l.bf16 %v1389
  %v1848 = vunpack.c.h.bf16 %v1389
  %v1849 = vunpack.c.l.bf16 %v1390
  %v1850 = vunpack.c.h.bf16 %v1390
  %v1851 = vunpack.c.l.bf16 %v1391
  %v1852 = vunpack.c.h.bf16 %v1391
  %v1853 = vunpack.c.l.bf16 %v1392
  %v1854 = vunpack.c.h.bf16 %v1392
  %v1855 = vunpack.c.l.bf16 %v1393
  %v1856 = vunpack.c.h.bf16 %v1393
  %v1857 = vunpack.c.l.bf16 %v1394
  %v1858 = vunpack.c.h.bf16 %v1394
  %v1859 = vunpack.c.l.bf16 %v1395
  %v1860 = vunpack.c.h.bf16 %v1395
  %v1861 = vunpack.c.l.bf16 %v1396
  %v1862 = vunpack.c.h.bf16 %v1396
  %v1863 = vunpack.c.l.bf16 %v1397
  %v1864 = vunpack.c.h.bf16 %v1397
  %v1865 = vunpack.c.l.bf16 %v1398
  %v1866 = vunpack.c.h.bf16 %v1398
  %v1867 = vunpack.c.l.bf16 %v1399
  %v1868 = vunpack.c.h.bf16 %v1399
  %v1869 = vunpack.c.l.bf16 %v1400
  %v1870 = vunpack.c.h.bf16 %v1400
  %v1871 = vunpack.c.l.bf16 %v1401
  %v1872 = vunpack.c.h.bf16 %v1401
  %v1873 = vunpack.c.l.bf16 %v1402
  %v1874 = vunpack.c.h.bf16 %v1402
  %v1875 = vunpack.c.l.bf16 %v1403
  %v1876 = vunpack.c.h.bf16 %v1403
  %v1877 = vunpack.c.l.bf16 %v1404
  %v1878 = vunpack.c.h.bf16 %v1404
  %v1879 = vunpack.c.l.bf16 %v1405
  %v1880 = vunpack.c.h.bf16 %v1405
  %v1881 = vunpack.c.l.bf16 %v1406
  %v1882 = vunpack.c.h.bf16 %v1406
  %v1883 = vunpack.c.l.bf16 %v1407
  %v1884 = vunpack.c.h.bf16 %v1407
  %v1885 = vunpack.c.l.bf16 %v1408
  %v1886 = vunpack.c.h.bf16 %v1408
  %v1887 = vunpack.c.l.bf16 %v1409
  %v1888 = vunpack.c.h.bf16 %v1409
  %v1889 = vunpack.c.l.bf16 %v1410
  %v1890 = vunpack.c.h.bf16 %v1410
  %v1891 = vunpack.c.l.bf16 %v1411
  %v1892 = vunpack.c.h.bf16 %v1411
  %v1893 = vunpack.c.l.bf16 %v1412
  %v1894 = vunpack.c.h.bf16 %v1412
  %v1895 = vunpack.c.l.bf16 %v1413
  %v1896 = vunpack.c.h.bf16 %v1413
  %v1897 = vunpack.c.l.bf16 %v1414
  %v1898 = vunpack.c.h.bf16 %v1414
  %v1899 = vunpack.c.l.bf16 %v1415
  %v1900 = vunpack.c.h.bf16 %v1415
  %v1901 = vunpack.c.l.bf16 %v1416
  %v1902 = vunpack.c.h.bf16 %v1416
  %v1903 = vunpack.c.l.bf16 %v1417
  %v1904 = vunpack.c.h.bf16 %v1417
  %v1905 = vunpack.c.l.bf16 %v1418
  %v1906 = vunpack.c.h.bf16 %v1418
  %v1907 = vunpack.c.l.bf16 %v1419
  %v1908 = vunpack.c.h.bf16 %v1419
  %v1909 = vunpack.c.l.bf16 %v1420
  %v1910 = vunpack.c.h.bf16 %v1420
  %v1911 = vunpack.c.l.bf16 %v1421
  %v1912 = vunpack.c.h.bf16 %v1421
  %v1913 = vunpack.c.l.bf16 %v1422
  %v1914 = vunpack.c.h.bf16 %v1422
  %v1915 = vunpack.c.l.bf16 %v1423
  %v1916 = vunpack.c.h.bf16 %v1423
  %v1917 = vunpack.c.l.bf16 %v1424
  %v1918 = vunpack.c.h.bf16 %v1424
  %v1919 = vunpack.c.l.bf16 %v1425
  %v1920 = vunpack.c.h.bf16 %v1425
  %v1921 = vunpack.c.l.bf16 %v1426
  %v1922 = vunpack.c.h.bf16 %v1426
  %v1923 = vunpack.c.l.bf16 %v1427
  %v1924 = vunpack.c.h.bf16 %v1427
  %v1925 = vunpack.c.l.bf16 %v1428
  %v1926 = vunpack.c.h.bf16 %v1428
  %v1927 = vunpack.c.l.bf16 %v1429
  %v1928 = vunpack.c.h.bf16 %v1429
  %v1929 = vunpack.c.l.bf16 %v1430
  %v1930 = vunpack.c.h.bf16 %v1430
  %v1931 = vunpack.c.l.bf16 %v1431
  %v1932 = vunpack.c.h.bf16 %v1431
  %v1933 = vunpack.c.l.bf16 %v1432
  %v1934 = vunpack.c.h.bf16 %v1432
  %v1935 = vunpack.c.l.bf16 %v1433
  %v1936 = vunpack.c.h.bf16 %v1433
  %v1937 = vunpack.c.l.bf16 %v1434
  %v1938 = vunpack.c.h.bf16 %v1434
  %v1939 = vunpack.c.l.bf16 %v1435
  %v1940 = vunpack.c.h.bf16 %v1435
  %v1941 = vunpack.c.l.bf16 %v1436
  %v1942 = vunpack.c.h.bf16 %v1436
  %v1943 = vunpack.c.l.bf16 %v1437
  %v1944 = vunpack.c.h.bf16 %v1437
  %v1945 = vunpack.c.l.bf16 %v1438
  %v1946 = vunpack.c.h.bf16 %v1438
  %v1947 = vunpack.c.l.bf16 %v1439
  %v1948 = vunpack.c.h.bf16 %v1439
  %v1949 = vunpack.c.l.bf16 %v1440
  %v1950 = vunpack.c.h.bf16 %v1440
  %v1951 = vunpack.c.l.bf16 %v1441
  %v1952 = vunpack.c.h.bf16 %v1441
  %v1953 = vunpack.c.l.bf16 %v1442
  %v1954 = vunpack.c.h.bf16 %v1442
  %v1955 = vunpack.c.l.bf16 %v1443
  %v1956 = vunpack.c.h.bf16 %v1443
  %v1957 = vunpack.c.l.bf16 %v1444
  %v1958 = vunpack.c.h.bf16 %v1444
  %v1959 = vunpack.c.l.bf16 %v1445
  %v1960 = vunpack.c.h.bf16 %v1445
  %v1961 = vunpack.c.l.bf16 %v1446
  %v1962 = vunpack.c.h.bf16 %v1446
  %v1963 = vunpack.c.l.bf16 %v1447
  %v1964 = vunpack.c.h.bf16 %v1447
  %v1965 = vunpack.c.l.bf16 %v1448
  %v1966 = vunpack.c.h.bf16 %v1448
  %v1967 = vunpack.c.l.bf16 %v1449
  %v1968 = vunpack.c.h.bf16 %v1449
  %v1969 = vunpack.c.l.bf16 %v1450
  %v1970 = vunpack.c.h.bf16 %v1450
  %v1971 = vunpack.c.l.bf16 %v1451
  %v1972 = vunpack.c.h.bf16 %v1451
  %v1973 = vunpack.c.l.bf16 %v1452
  %v1974 = vunpack.c.h.bf16 %v1452
  %v1975 = vunpack.c.l.bf16 %v1453
  %v1976 = vunpack.c.h.bf16 %v1453
  %v1977 = vunpack.c.l.bf16 %v1454
  %v1978 = vunpack.c.h.bf16 %v1454
  %v1979 = vunpack.c.l.bf16 %v1455
  %v1980 = vunpack.c.h.bf16 %v1455
  %v1981 = vunpack.c.l.bf16 %v1456
  %v1982 = vunpack.c.h.bf16 %v1456
  %v1983 = vunpack.c.l.bf16 %v1457
  %v1984 = vunpack.c.h.bf16 %v1457
  %v1985 = vunpack.c.l.bf16 %v1458
  %v1986 = vunpack.c.h.bf16 %v1458
  %v1987 = vunpack.c.l.bf16 %v1459
  %v1988 = vunpack.c.h.bf16 %v1459
  %v1989 = vunpack.c.l.bf16 %v1460
  %v1990 = vunpack.c.h.bf16 %v1460
  %v1991 = vunpack.c.l.bf16 %v1461
  %v1992 = vunpack.c.h.bf16 %v1461
  %v1993 = vunpack.c.l.bf16 %v1462
  %v1994 = vunpack.c.h.bf16 %v1462
  %v1995 = vunpack.c.l.bf16 %v1463
  %v1996 = vunpack.c.h.bf16 %v1463
  %v1997 = vunpack.c.l.bf16 %v1464
  %v1998 = vunpack.c.h.bf16 %v1464
  %v1999 = vunpack.c.l.bf16 %v1465
  %v2000 = vunpack.c.h.bf16 %v1465
  %v2001 = vunpack.c.l.bf16 %v1466
  %v2002 = vunpack.c.h.bf16 %v1466
  %v2003 = vunpack.c.l.bf16 %v1467
  %v2004 = vunpack.c.h.bf16 %v1467
  %v2005 = vunpack.c.l.bf16 %v1468
  %v2006 = vunpack.c.h.bf16 %v1468
  %v2007 = vunpack.c.l.bf16 %v1469
  %v2008 = vunpack.c.h.bf16 %v1469
  %v2009 = vunpack.c.l.bf16 %v1470
  %v2010 = vunpack.c.h.bf16 %v1470
  %v2011 = vunpack.c.l.bf16 %v1471
  %v2012 = vunpack.c.h.bf16 %v1471
  %v2013 = vunpack.c.l.bf16 %v1472
  %v2014 = vunpack.c.h.bf16 %v1472
  %v2015 = vunpack.c.l.bf16 %v1473
  %v2016 = vunpack.c.h.bf16 %v1473
  %v2017 = vunpack.c.l.bf16 %v1474
  %v2018 = vunpack.c.h.bf16 %v1474
  %v2019 = vunpack.c.l.bf16 %v1475
  %v2020 = vunpack.c.h.bf16 %v1475
  %v2021 = vunpack.c.l.bf16 %v1476
  %v2022 = vunpack.c.h.bf16 %v1476
  %v2023 = vunpack.c.l.bf16 %v1477
  %v2024 = vunpack.c.h.bf16 %v1477
  %v2025 = vunpack.c.l.bf16 %v1478
  %v2026 = vunpack.c.h.bf16 %v1478
  %v2027 = vunpack.c.l.bf16 %v1479
  %v2028 = vunpack.c.h.bf16 %v1479
  %v2029 = vunpack.c.l.bf16 %v1480
  %v2030 = vunpack.c.h.bf16 %v1480
  %v2031 = vunpack.c.l.bf16 %v1481
  %v2032 = vunpack.c.h.bf16 %v1481
  %v2033 = vunpack.c.l.bf16 %v1482
  %v2034 = vunpack.c.h.bf16 %v1482
  %v2035 = vunpack.c.l.bf16 %v1483
  %v2036 = vunpack.c.h.bf16 %v1483
  %v2037 = vunpack.c.l.bf16 %v1484
  %v2038 = vunpack.c.h.bf16 %v1484
  %v2039 = vunpack.c.l.bf16 %v1485
  %v2040 = vunpack.c.h.bf16 %v1485
  %v2041 = vunpack.c.l.bf16 %v1486
  %v2042 = vunpack.c.h.bf16 %v1486
  %v2043 = vunpack.c.l.bf16 %v1487
  %v2044 = vunpack.c.h.bf16 %v1487
  %v2045 = vunpack.c.l.bf16 %v1488
  %v2046 = vunpack.c.h.bf16 %v1488
  %v2047 = vunpack.c.l.bf16 %v1489
  %v2048 = vunpack.c.h.bf16 %v1489
  %v2049 = vunpack.c.l.bf16 %v1490
  %v2050 = vunpack.c.h.bf16 %v1490
  %v2051 = vunpack.c.l.bf16 %v1491
  %v2052 = vunpack.c.h.bf16 %v1491
  %v2053 = vunpack.c.l.bf16 %v1492
  %v2054 = vunpack.c.h.bf16 %v1492
  %v2055 = vunpack.c.l.bf16 %v1493
  %v2056 = vunpack.c.h.bf16 %v1493
  %v2057 = vunpack.c.l.bf16 %v1494
  %v2058 = vunpack.c.h.bf16 %v1494
  %v2059 = vunpack.c.l.bf16 %v1495
  %v2060 = vunpack.c.h.bf16 %v1495
  %v2061 = vunpack.c.l.bf16 %v1496
  %v2062 = vunpack.c.h.bf16 %v1496
  %v2063 = vunpack.c.l.bf16 %v1497
  %v2064 = vunpack.c.h.bf16 %v1497
  %v2065 = vunpack.c.l.bf16 %v1498
  %v2066 = vunpack.c.h.bf16 %v1498
  %v2067 = vunpack.c.l.bf16 %v1499
  %v2068 = vunpack.c.h.bf16 %v1499
  %v2069 = vunpack.c.l.bf16 %v1500
  %v2070 = vunpack.c.h.bf16 %v1500
  %v2071 = vunpack.c.l.bf16 %v1501
  %v2072 = vunpack.c.h.bf16 %v1501
  %v2073 = vunpack.c.l.bf16 %v1502
  %v2074 = vunpack.c.h.bf16 %v1502
  %v2075 = vunpack.c.l.bf16 %v1503
  %v2076 = vunpack.c.h.bf16 %v1503
  %v2077 = vunpack.c.l.bf16 %v1504
  %v2078 = vunpack.c.h.bf16 %v1504
  %v2079 = vunpack.c.l.bf16 %v1505
  %v2080 = vunpack.c.h.bf16 %v1505
  %v2081 = vunpack.c.l.bf16 %v1506
  %v2082 = vunpack.c.h.bf16 %v1506
  %v2083 = vunpack.c.l.bf16 %v1507
  %v2084 = vunpack.c.h.bf16 %v1507
  %v2085 = vunpack.c.l.bf16 %v1508
  %v2086 = vunpack.c.h.bf16 %v1508
  %v2087 = vunpack.c.l.bf16 %v1509
  %v2088 = vunpack.c.h.bf16 %v1509
  %v2089 = vunpack.c.l.bf16 %v1510
  %v2090 = vunpack.c.h.bf16 %v1510
  %v2091 = vunpack.c.l.bf16 %v1511
  %v2092 = vunpack.c.h.bf16 %v1511
  %v2093 = vunpack.c.l.bf16 %v1512
  %v2094 = vunpack.c.h.bf16 %v1512
  %v2095 = vunpack.c.l.bf16 %v1513
  %v2096 = vunpack.c.h.bf16 %v1513
  %v2097 = vunpack.c.l.bf16 %v1514
  %v2098 = vunpack.c.h.bf16 %v1514
  %v2099 = vunpack.c.l.bf16 %v1515
  %v2100 = vunpack.c.h.bf16 %v1515
  %v2101 = vunpack.c.l.bf16 %v1516
  %v2102 = vunpack.c.h.bf16 %v1516
  %v2103 = vunpack.c.l.bf16 %v1517
  %v2104 = vunpack.c.h.bf16 %v1517
  %v2105 = vunpack.c.l.bf16 %v1518
  %v2106 = vunpack.c.h.bf16 %v1518
  %v2107 = vunpack.c.l.bf16 %v1519
  %v2108 = vunpack.c.h.bf16 %v1519
  %v2109 = vunpack.c.l.bf16 %v1520
  %v2110 = vunpack.c.h.bf16 %v1520
  %v2111 = vunpack.c.l.bf16 %v1521
  %v2112 = vunpack.c.h.bf16 %v1521
  %v2113 = vunpack.c.l.bf16 %v1522
  %v2114 = vunpack.c.h.bf16 %v1522
  %v2115 = vunpack.c.l.bf16 %v1523
  %v2116 = vunpack.c.h.bf16 %v1523
  %v2117 = vunpack.c.l.bf16 %v1524
  %v2118 = vunpack.c.h.bf16 %v1524
  %v2119 = vunpack.c.l.bf16 %v1525
  %v2120 = vunpack.c.h.bf16 %v1525
  %v2121 = vunpack.c.l.bf16 %v1526
  %v2122 = vunpack.c.h.bf16 %v1526
  %v2123 = vunpack.c.l.bf16 %v1527
  %v2124 = vunpack.c.h.bf16 %v1527
  %v2125 = vunpack.c.l.bf16 %v1528
  %v2126 = vunpack.c.h.bf16 %v1528
  %v2127 = vunpack.c.l.bf16 %v1529
  %v2128 = vunpack.c.h.bf16 %v1529
  %v2129 = vunpack.c.l.bf16 %v1530
  %v2130 = vunpack.c.h.bf16 %v1530
  %v2131 = vunpack.c.l.bf16 %v1531
  %v2132 = vunpack.c.h.bf16 %v1531
  %v2133 = vunpack.c.l.bf16 %v1532
  %v2134 = vunpack.c.h.bf16 %v1532
  %v2135 = vunpack.c.l.bf16 %v1533
  %v2136 = vunpack.c.h.bf16 %v1533
  %v2137 = vunpack.c.l.bf16 %v1534
  %v2138 = vunpack.c.h.bf16 %v1534
  %v2139 = vunpack.c.l.bf16 %v1535
  %v2140 = vunpack.c.h.bf16 %v1535
  %v2141 = vunpack.c.l.bf16 %v1536
  %v2142 = vunpack.c.h.bf16 %v1536
  %v2143 = vunpack.c.l.bf16 %v1537
  %v2144 = vunpack.c.h.bf16 %v1537
  %v2145 = vunpack.c.l.bf16 %v1538
  %v2146 = vunpack.c.h.bf16 %v1538
  %v2147 = vunpack.c.l.bf16 %v1539
  %v2148 = vunpack.c.h.bf16 %v1539
  %v2149 = vunpack.c.l.bf16 %v1540
  %v2150 = vunpack.c.h.bf16 %v1540
  %v2151 = vunpack.c.l.bf16 %v1541
  %v2152 = vunpack.c.h.bf16 %v1541
  %v2153 = vunpack.c.l.bf16 %v1542
  %v2154 = vunpack.c.h.bf16 %v1542
  %v2155 = vunpack.c.l.bf16 %v1543
  %v2156 = vunpack.c.h.bf16 %v1543
  %v2157 = vunpack.c.l.bf16 %v1544
  %v2158 = vunpack.c.h.bf16 %v1544
  %v2159 = vunpack.c.l.bf16 %v1545
  %v2160 = vunpack.c.h.bf16 %v1545
  %v2161 = vunpack.c.l.bf16 %v1546
  %v2162 = vunpack.c.h.bf16 %v1546
  %v2163 = vunpack.c.l.bf16 %v1547
  %v2164 = vunpack.c.h.bf16 %v1547
  %v2165 = vunpack.c.l.bf16 %v1548
  %v2166 = vunpack.c.h.bf16 %v1548
  %v2167 = vunpack.c.l.bf16 %v1549
  %v2168 = vunpack.c.h.bf16 %v1549
  %v2169 = vunpack.c.l.bf16 %v1550
  %v2170 = vunpack.c.h.bf16 %v1550
  %v2171 = vunpack.c.l.bf16 %v1551
  %v2172 = vunpack.c.h.bf16 %v1551
  %v2173 = vunpack.c.l.bf16 %v1552
  %v2174 = vunpack.c.h.bf16 %v1552
  %v2175 = vunpack.c.l.bf16 %v1553
  %v2176 = vunpack.c.h.bf16 %v1553
  %v2177 = vunpack.c.l.bf16 %v1554
  %v2178 = vunpack.c.h.bf16 %v1554
  %v2179 = vunpack.c.l.bf16 %v1555
  %v2180 = vunpack.c.h.bf16 %v1555
  %v2181 = vunpack.c.l.bf16 %v1556
  %v2182 = vunpack.c.h.bf16 %v1556
  %v2183 = vunpack.c.l.bf16 %v1557
  %v2184 = vunpack.c.h.bf16 %v1557
  %v2185 = vunpack.c.l.bf16 %v1558
  %v2186 = vunpack.c.h.bf16 %v1558
  %v2187 = vunpack.c.l.bf16 %v1559
  %v2188 = vunpack.c.h.bf16 %v1559
  %v2189 = vunpack.c.l.bf16 %v1560
  %v2190 = vunpack.c.h.bf16 %v1560
  %v2191 = vunpack.c.l.bf16 %v1561
  %v2192 = vunpack.c.h.bf16 %v1561
  %v2193 = vunpack.c.l.bf16 %v1562
  %v2194 = vunpack.c.h.bf16 %v1562
  %v2195 = vunpack.c.l.bf16 %v1563
  %v2196 = vunpack.c.h.bf16 %v1563
  %v2197 = vunpack.c.l.bf16 %v1564
  %v2198 = vunpack.c.h.bf16 %v1564
  %v2199 = vunpack.c.l.bf16 %v1565
  %v2200 = vunpack.c.h.bf16 %v1565
  %v2201 = vunpack.c.l.bf16 %v1566
  %v2202 = vunpack.c.h.bf16 %v1566
  %v2203 = vunpack.c.l.bf16 %v1567
  %v2204 = vunpack.c.h.bf16 %v1567
  %v2205 = vunpack.c.l.bf16 %v1568
  %v2206 = vunpack.c.h.bf16 %v1568
  %v2207 = vunpack.c.l.bf16 %v1569
  %v2208 = vunpack.c.h.bf16 %v1569
  %v2209 = vunpack.c.l.bf16 %v1570
  %v2210 = vunpack.c.h.bf16 %v1570
  %v2211 = vunpack.c.l.bf16 %v1571
  %v2212 = vunpack.c.h.bf16 %v1571
  %v2213 = vunpack.c.l.bf16 %v1572
  %v2214 = vunpack.c.h.bf16 %v1572
  %v2215 = vunpack.c.l.bf16 %v1573
  %v2216 = vunpack.c.h.bf16 %v1573
  %v2217 = vunpack.c.l.bf16 %v1574
  %v2218 = vunpack.c.h.bf16 %v1574
  %v2219 = vunpack.c.l.bf16 %v1575
  %v2220 = vunpack.c.h.bf16 %v1575
  %v2221 = vunpack.c.l.bf16 %v1576
  %v2222 = vunpack.c.h.bf16 %v1576
  %v2223 = vunpack.c.l.bf16 %v1577
  %v2224 = vunpack.c.h.bf16 %v1577
  %v2225 = vunpack.c.l.bf16 %v1578
  %v2226 = vunpack.c.h.bf16 %v1578
  %v2228 = vsel %vm914, %v1580, 0
  %v2231 = vsel %vm914, %v1582, 0
  %v2234 = vsel %vm914, %v1584, 0
  %v2237 = vsel %vm914, %v1586, 0
  %v2240 = vsel %vm914, %v1588, 0
  %v2243 = vsel %vm914, %v1590, 0
  %v2246 = vsel %vm914, %v1592, 0
  %v2249 = vsel %vm914, %v1594, 0
  %v2252 = vsel %vm914, %v1596, 0
  %v2255 = vsel %vm914, %v1598, 0
  %v2258 = vsel %vm914, %v1600, 0
  %v2261 = vsel %vm914, %v1602, 0
  %v2264 = vsel %vm914, %v1604, 0
  %v2267 = vsel %vm914, %v1606, 0
  %v2270 = vsel %vm914, %v1608, 0
  %v2273 = vsel %vm914, %v1610, 0
  %v2276 = vsel %vm914, %v1612, 0
  %v2279 = vsel %vm914, %v1614, 0
  %v2282 = vsel %vm914, %v1616, 0
  %v2285 = vsel %vm914, %v1618, 0
  %v2288 = vsel %vm914, %v1620, 0
  %v2291 = vsel %vm914, %v1622, 0
  %v2294 = vsel %vm914, %v1624, 0
  %v2297 = vsel %vm914, %v1626, 0
  %v2300 = vsel %vm914, %v1628, 0
  %v2303 = vsel %vm914, %v1630, 0
  %v2306 = vsel %vm914, %v1632, 0
  %v2309 = vsel %vm914, %v1634, 0
  %v2312 = vsel %vm914, %v1636, 0
  %v2315 = vsel %vm914, %v1638, 0
  %v2318 = vsel %vm914, %v1640, 0
  %v2321 = vsel %vm914, %v1642, 0
  %v2324 = vsel %vm914, %v1644, 0
  %v2327 = vsel %vm914, %v1646, 0
  %v2330 = vsel %vm914, %v1648, 0
  %v2333 = vsel %vm914, %v1650, 0
  %v2336 = vsel %vm914, %v1652, 0
  %v2339 = vsel %vm914, %v1654, 0
  %v2342 = vsel %vm914, %v1656, 0
  %v2345 = vsel %vm914, %v1658, 0
  %v2348 = vsel %vm914, %v1660, 0
  %v2351 = vsel %vm914, %v1662, 0
  %v2354 = vsel %vm914, %v1664, 0
  %v2357 = vsel %vm914, %v1666, 0
  %v2360 = vsel %vm914, %v1668, 0
  %v2363 = vsel %vm914, %v1670, 0
  %v2366 = vsel %vm914, %v1672, 0
  %v2369 = vsel %vm914, %v1674, 0
  %v2372 = vsel %vm914, %v1676, 0
  %v2375 = vsel %vm914, %v1678, 0
  %v2378 = vsel %vm914, %v1680, 0
  %v2381 = vsel %vm914, %v1682, 0
  %v2384 = vsel %vm914, %v1684, 0
  %v2387 = vsel %vm914, %v1686, 0
  %v2390 = vsel %vm914, %v1688, 0
  %v2393 = vsel %vm914, %v1690, 0
  %v2396 = vsel %vm914, %v1692, 0
  %v2399 = vsel %vm914, %v1694, 0
  %v2402 = vsel %vm914, %v1696, 0
  %v2405 = vsel %vm914, %v1698, 0
  %v2408 = vsel %vm914, %v1700, 0
  %v2411 = vsel %vm914, %v1702, 0
  %v2414 = vsel %vm914, %v1704, 0
  %v2417 = vsel %vm914, %v1706, 0
  %v2420 = vsel %vm914, %v1708, 0
  %v2423 = vsel %vm914, %v1710, 0
  %v2426 = vsel %vm914, %v1712, 0
  %v2429 = vsel %vm914, %v1714, 0
  %v2432 = vsel %vm914, %v1716, 0
  %v2435 = vsel %vm914, %v1718, 0
  %v2438 = vsel %vm914, %v1720, 0
  %v2441 = vsel %vm914, %v1722, 0
  %v2444 = vsel %vm914, %v1724, 0
  %v2447 = vsel %vm914, %v1726, 0
  %v2450 = vsel %vm914, %v1728, 0
  %v2453 = vsel %vm914, %v1730, 0
  %v2456 = vsel %vm914, %v1732, 0
  %v2459 = vsel %vm914, %v1734, 0
  %v2462 = vsel %vm914, %v1736, 0
  %v2465 = vsel %vm914, %v1738, 0
  %v2468 = vsel %vm914, %v1740, 0
  %v2471 = vsel %vm914, %v1742, 0
  %v2474 = vsel %vm914, %v1744, 0
  %v2477 = vsel %vm914, %v1746, 0
  %v2480 = vsel %vm914, %v1748, 0
  %v2483 = vsel %vm914, %v1750, 0
  %v2486 = vsel %vm914, %v1752, 0
  %v2489 = vsel %vm914, %v1754, 0
  %v2492 = vsel %vm914, %v1756, 0
  %v2495 = vsel %vm914, %v1758, 0
  %v2498 = vsel %vm914, %v1760, 0
  %v2501 = vsel %vm914, %v1762, 0
  %v2504 = vsel %vm914, %v1764, 0
  %v2507 = vsel %vm914, %v1766, 0
  %v2510 = vsel %vm914, %v1768, 0
  %v2513 = vsel %vm914, %v1770, 0
  %v2516 = vsel %vm914, %v1772, 0
  %v2519 = vsel %vm914, %v1774, 0
  %v2522 = vsel %vm914, %v1776, 0
  %v2525 = vsel %vm914, %v1778, 0
  %v2528 = vsel %vm914, %v1780, 0
  %v2531 = vsel %vm914, %v1782, 0
  %v2534 = vsel %vm914, %v1784, 0
  %v2537 = vsel %vm914, %v1786, 0
  %v2540 = vsel %vm914, %v1788, 0
  %v2543 = vsel %vm914, %v1790, 0
  %v2546 = vsel %vm914, %v1792, 0
  %v2549 = vsel %vm914, %v1794, 0
  %v2552 = vsel %vm914, %v1796, 0
  %v2555 = vsel %vm914, %v1798, 0
  %v2558 = vsel %vm914, %v1800, 0
  %v2561 = vsel %vm914, %v1802, 0
  %v2564 = vsel %vm914, %v1804, 0
  %v2567 = vsel %vm914, %v1806, 0
  %v2570 = vsel %vm914, %v1808, 0
  %v2573 = vsel %vm914, %v1810, 0
  %v2576 = vsel %vm914, %v1812, 0
  %v2579 = vsel %vm914, %v1814, 0
  %v2582 = vsel %vm914, %v1816, 0
  %v2585 = vsel %vm914, %v1818, 0
  %v2588 = vsel %vm914, %v1820, 0
  %v2591 = vsel %vm914, %v1822, 0
  %v2594 = vsel %vm914, %v1824, 0
  %v2597 = vsel %vm914, %v1826, 0
  %v2600 = vsel %vm914, %v1828, 0
  %v2603 = vsel %vm914, %v1830, 0
  %v2606 = vsel %vm914, %v1832, 0
  %v2609 = vsel %vm914, %v1834, 0
  %v2612 = vsel %vm914, %v1836, 0
  %v2615 = vsel %vm914, %v1838, 0
  %v2618 = vsel %vm914, %v1840, 0
  %v2621 = vsel %vm914, %v1842, 0
  %v2624 = vsel %vm914, %v1844, 0
  %v2627 = vsel %vm914, %v1846, 0
  %v2630 = vsel %vm914, %v1848, 0
  %v2633 = vsel %vm914, %v1850, 0
  %v2636 = vsel %vm914, %v1852, 0
  %v2639 = vsel %vm914, %v1854, 0
  %v2642 = vsel %vm914, %v1856, 0
  %v2645 = vsel %vm914, %v1858, 0
  %v2648 = vsel %vm914, %v1860, 0
  %v2651 = vsel %vm914, %v1862, 0
  %v2654 = vsel %vm914, %v1864, 0
  %v2657 = vsel %vm914, %v1866, 0
  %v2660 = vsel %vm914, %v1868, 0
  %v2663 = vsel %vm914, %v1870, 0
  %v2666 = vsel %vm914, %v1872, 0
  %v2669 = vsel %vm914, %v1874, 0
  %v2672 = vsel %vm914, %v1876, 0
  %v2675 = vsel %vm914, %v1878, 0
  %v2678 = vsel %vm914, %v1880, 0
  %v2681 = vsel %vm914, %v1882, 0
  %v2684 = vsel %vm914, %v1884, 0
  %v2687 = vsel %vm914, %v1886, 0
  %v2690 = vsel %vm914, %v1888, 0
  %v2693 = vsel %vm914, %v1890, 0
  %v2696 = vsel %vm914, %v1892, 0
  %v2699 = vsel %vm914, %v1894, 0
  %v2702 = vsel %vm914, %v1896, 0
  %v2705 = vsel %vm914, %v1898, 0
  %v2708 = vsel %vm914, %v1900, 0
  %v2711 = vsel %vm914, %v1902, 0
  %v2714 = vsel %vm914, %v1904, 0
  %v2717 = vsel %vm914, %v1906, 0
  %v2720 = vsel %vm914, %v1908, 0
  %v2723 = vsel %vm914, %v1910, 0
  %v2726 = vsel %vm914, %v1912, 0
  %v2729 = vsel %vm914, %v1914, 0
  %v2732 = vsel %vm914, %v1916, 0
  %v2735 = vsel %vm914, %v1918, 0
  %v2738 = vsel %vm914, %v1920, 0
  %v2741 = vsel %vm914, %v1922, 0
  %v2744 = vsel %vm914, %v1924, 0
  %v2747 = vsel %vm914, %v1926, 0
  %v2750 = vsel %vm914, %v1928, 0
  %v2753 = vsel %vm914, %v1930, 0
  %v2756 = vsel %vm914, %v1932, 0
  %v2759 = vsel %vm914, %v1934, 0
  %v2762 = vsel %vm914, %v1936, 0
  %v2765 = vsel %vm914, %v1938, 0
  %v2768 = vsel %vm914, %v1940, 0
  %v2771 = vsel %vm914, %v1942, 0
  %v2774 = vsel %vm914, %v1944, 0
  %v2777 = vsel %vm914, %v1946, 0
  %v2780 = vsel %vm914, %v1948, 0
  %v2783 = vsel %vm914, %v1950, 0
  %v2786 = vsel %vm914, %v1952, 0
  %v2789 = vsel %vm914, %v1954, 0
  %v2792 = vsel %vm914, %v1956, 0
  %v2795 = vsel %vm914, %v1958, 0
  %v2798 = vsel %vm914, %v1960, 0
  %v2801 = vsel %vm914, %v1962, 0
  %v2804 = vsel %vm914, %v1964, 0
  %v2807 = vsel %vm914, %v1966, 0
  %v2810 = vsel %vm914, %v1968, 0
  %v2813 = vsel %vm914, %v1970, 0
  %v2816 = vsel %vm914, %v1972, 0
  %v2819 = vsel %vm914, %v1974, 0
  %v2822 = vsel %vm914, %v1976, 0
  %v2825 = vsel %vm914, %v1978, 0
  %v2828 = vsel %vm914, %v1980, 0
  %v2831 = vsel %vm914, %v1982, 0
  %v2834 = vsel %vm914, %v1984, 0
  %v2837 = vsel %vm914, %v1986, 0
  %v2840 = vsel %vm914, %v1988, 0
  %v2843 = vsel %vm914, %v1990, 0
  %v2846 = vsel %vm914, %v1992, 0
  %v2849 = vsel %vm914, %v1994, 0
  %v2852 = vsel %vm914, %v1996, 0
  %v2855 = vsel %vm914, %v1998, 0
  %v2858 = vsel %vm914, %v2000, 0
  %v2861 = vsel %vm914, %v2002, 0
  %v2864 = vsel %vm914, %v2004, 0
  %v2867 = vsel %vm914, %v2006, 0
  %v2870 = vsel %vm914, %v2008, 0
  %v2873 = vsel %vm914, %v2010, 0
  %v2876 = vsel %vm914, %v2012, 0
  %v2879 = vsel %vm914, %v2014, 0
  %v2882 = vsel %vm914, %v2016, 0
  %v2885 = vsel %vm914, %v2018, 0
  %v2888 = vsel %vm914, %v2020, 0
  %v2891 = vsel %vm914, %v2022, 0
  %v2894 = vsel %vm914, %v2024, 0
  %v2897 = vsel %vm914, %v2026, 0
  %v2900 = vsel %vm914, %v2028, 0
  %v2903 = vsel %vm914, %v2030, 0
  %v2906 = vsel %vm914, %v2032, 0
  %v2909 = vsel %vm914, %v2034, 0
  %v2912 = vsel %vm914, %v2036, 0
  %v2915 = vsel %vm914, %v2038, 0
  %v2918 = vsel %vm914, %v2040, 0
  %v2921 = vsel %vm914, %v2042, 0
  %v2924 = vsel %vm914, %v2044, 0
  %v2927 = vsel %vm914, %v2046, 0
  %v2930 = vsel %vm914, %v2048, 0
  %v2933 = vsel %vm914, %v2050, 0
  %v2936 = vsel %vm914, %v2052, 0
  %v2939 = vsel %vm914, %v2054, 0
  %v2942 = vsel %vm914, %v2056, 0
  %v2945 = vsel %vm914, %v2058, 0
  %v2948 = vsel %vm914, %v2060, 0
  %v2951 = vsel %vm914, %v2062, 0
  %v2954 = vsel %vm914, %v2064, 0
  %v2957 = vsel %vm914, %v2066, 0
  %v2960 = vsel %vm914, %v2068, 0
  %v2963 = vsel %vm914, %v2070, 0
  %v2966 = vsel %vm914, %v2072, 0
  %v2969 = vsel %vm914, %v2074, 0
  %v2972 = vsel %vm914, %v2076, 0
  %v2975 = vsel %vm914, %v2078, 0
  %v2978 = vsel %vm914, %v2080, 0
  %v2981 = vsel %vm914, %v2082, 0
  %v2984 = vsel %vm914, %v2084, 0
  %v2987 = vsel %vm914, %v2086, 0
  %v2990 = vsel %vm914, %v2088, 0
  %v2993 = vsel %vm914, %v2090, 0
  %v2996 = vsel %vm914, %v2092, 0
  %v2999 = vsel %vm914, %v2094, 0
  %v3002 = vsel %vm914, %v2096, 0
  %v3005 = vsel %vm914, %v2098, 0
  %v3008 = vsel %vm914, %v2100, 0
  %v3011 = vsel %vm914, %v2102, 0
  %v3014 = vsel %vm914, %v2104, 0
  %v3017 = vsel %vm914, %v2106, 0
  %v3020 = vsel %vm914, %v2108, 0
  %v3023 = vsel %vm914, %v2110, 0
  %v3026 = vsel %vm914, %v2112, 0
  %v3029 = vsel %vm914, %v2114, 0
  %v3032 = vsel %vm914, %v2116, 0
  %v3035 = vsel %vm914, %v2118, 0
  %v3038 = vsel %vm914, %v2120, 0
  %v3041 = vsel %vm914, %v2122, 0
  %v3044 = vsel %vm914, %v2124, 0
  %v3047 = vsel %vm914, %v2126, 0
  %v3050 = vsel %vm914, %v2128, 0
  %v3053 = vsel %vm914, %v2130, 0
  %v3056 = vsel %vm914, %v2132, 0
  %v3059 = vsel %vm914, %v2134, 0
  %v3062 = vsel %vm914, %v2136, 0
  %v3065 = vsel %vm914, %v2138, 0
  %v3068 = vsel %vm914, %v2140, 0
  %v3071 = vsel %vm914, %v2142, 0
  %v3074 = vsel %vm914, %v2144, 0
  %v3077 = vsel %vm914, %v2146, 0
  %v3080 = vsel %vm914, %v2148, 0
  %v3083 = vsel %vm914, %v2150, 0
  %v3086 = vsel %vm914, %v2152, 0
  %v3089 = vsel %vm914, %v2154, 0
  %v3092 = vsel %vm914, %v2156, 0
  %v3095 = vsel %vm914, %v2158, 0
  %v3098 = vsel %vm914, %v2160, 0
  %v3101 = vsel %vm914, %v2162, 0
  %v3104 = vsel %vm914, %v2164, 0
  %v3107 = vsel %vm914, %v2166, 0
  %v3110 = vsel %vm914, %v2168, 0
  %v3113 = vsel %vm914, %v2170, 0
  %v3116 = vsel %vm914, %v2172, 0
  %v3119 = vsel %vm914, %v2174, 0
  %v3122 = vsel %vm914, %v2176, 0
  %v3125 = vsel %vm914, %v2178, 0
  %v3128 = vsel %vm914, %v2180, 0
  %v3131 = vsel %vm914, %v2182, 0
  %v3134 = vsel %vm914, %v2184, 0
  %v3137 = vsel %vm914, %v2186, 0
  %v3140 = vsel %vm914, %v2188, 0
  %v3143 = vsel %vm914, %v2190, 0
  %v3146 = vsel %vm914, %v2192, 0
  %v3149 = vsel %vm914, %v2194, 0
  %v3152 = vsel %vm914, %v2196, 0
  %v3155 = vsel %vm914, %v2198, 0
  %v3158 = vsel %vm914, %v2200, 0
  %v3161 = vsel %vm914, %v2202, 0
  %v3164 = vsel %vm914, %v2204, 0
  %v3167 = vsel %vm914, %v2206, 0
  %v3170 = vsel %vm914, %v2208, 0
  %v3173 = vsel %vm914, %v2210, 0
  %v3176 = vsel %vm914, %v2212, 0
  %v3179 = vsel %vm914, %v2214, 0
  %v3182 = vsel %vm914, %v2216, 0
  %v3185 = vsel %vm914, %v2218, 0
  %v3188 = vsel %vm914, %v2220, 0
  %v3191 = vsel %vm914, %v2222, 0
  %v3194 = vsel %vm914, %v2224, 0
  %v3197 = vsel %vm914, %v2226, 0
  %3199 = vmatpush.msra.mxu0 %v1245
  %3200 = vmatpush.msra.mxu0 %v1244
  %3201 = vmatpush.msra.mxu0 %v1243
  %3202 = vmatpush.msra.mxu0 %v1242
  %3203 = vmatpush.msra.mxu0 %v1241
  %3204 = vmatpush.msra.mxu0 %v1240
  %3205 = vmatpush.msra.mxu0 %v1239
  %3206 = vmatpush.msra.mxu0 %v1238
  %3207 = vmatpush.msra.mxu0 %v1237
  %3208 = vmatpush.msra.mxu0 %v1236
  %3209 = vmatpush.msra.mxu0 %v1235
  %3210 = vmatpush.msra.mxu0 %v1234
  %3211 = vmatpush.msra.mxu0 %v1233
  %3212 = vmatpush.msra.mxu0 %v1232
  %3213 = vmatpush.msra.mxu0 %v1231
  %3214 = vmatpush.msra.mxu0 %v1230
  %3215 = vmatmul.f32.gmra.mxu0 %v1579
  %v3216 = vpop.f32.mrf.mxu0
  %v3217 = vadd.f32 0.0, %v3216
  %3218 = vmatmul.f32.gmra.mxu0 %v1581
  %v3219 = vpop.f32.mrf.mxu0
  %v3220 = vadd.f32 0.0, %v3219
  %3221 = vmatmul.f32.gmra.mxu0 %v1583
  %v3222 = vpop.f32.mrf.mxu0
  %v3223 = vadd.f32 0.0, %v3222
  %3224 = vmatmul.f32.gmra.mxu0 %v1585
  %v3225 = vpop.f32.mrf.mxu0
  %v3226 = vadd.f32 0.0, %v3225
  %3227 = vmatmul.f32.gmra.mxu0 %v1587
  %v3228 = vpop.f32.mrf.mxu0
  %v3229 = vadd.f32 0.0, %v3228
  %3230 = vmatmul.f32.gmra.mxu0 %v1589
  %v3231 = vpop.f32.mrf.mxu0
  %v3232 = vadd.f32 0.0, %v3231
  %3233 = vmatmul.f32.gmra.mxu0 %v1591
  %v3234 = vpop.f32.mrf.mxu0
  %v3235 = vadd.f32 0.0, %v3234
  %3236 = vmatmul.f32.gmra.mxu0 %v1593
  %v3237 = vpop.f32.mrf.mxu0
  %v3238 = vadd.f32 0.0, %v3237
  %3239 = vmatmul.f32.gmra.mxu0 %v1595
  %v3240 = vpop.f32.mrf.mxu0
  %v3241 = vadd.f32 0.0, %v3240
  %3242 = vmatmul.f32.gmra.mxu0 %v1597
  %v3243 = vpop.f32.mrf.mxu0
  %v3244 = vadd.f32 0.0, %v3243
  %3245 = vmatmul.f32.gmra.mxu0 %v1599
  %v3246 = vpop.f32.mrf.mxu0
  %v3247 = vadd.f32 0.0, %v3246
  %3248 = vmatmul.f32.gmra.mxu0 %v1601
  %v3249 = vpop.f32.mrf.mxu0
  %v3250 = vadd.f32 0.0, %v3249
  %3251 = vmatmul.f32.gmra.mxu0 %v1603
  %v3252 = vpop.f32.mrf.mxu0
  %v3253 = vadd.f32 0.0, %v3252
  %3254 = vmatmul.f32.gmra.mxu0 %v1605
  %v3255 = vpop.f32.mrf.mxu0
  %v3256 = vadd.f32 0.0, %v3255
  %3257 = vmatmul.f32.gmra.mxu0 %v1607
  %v3258 = vpop.f32.mrf.mxu0
  %v3259 = vadd.f32 0.0, %v3258
  %3260 = vmatmul.f32.gmra.mxu0 %v1609
  %v3261 = vpop.f32.mrf.mxu0
  %v3262 = vadd.f32 0.0, %v3261
  %3263 = vmatmul.f32.gmra.mxu0 %v1611
  %v3264 = vpop.f32.mrf.mxu0
  %v3265 = vadd.f32 0.0, %v3264
  %3266 = vmatmul.f32.gmra.mxu0 %v1613
  %v3267 = vpop.f32.mrf.mxu0
  %v3268 = vadd.f32 0.0, %v3267
  %3269 = vmatmul.f32.gmra.mxu0 %v1615
  %v3270 = vpop.f32.mrf.mxu0
  %v3271 = vadd.f32 0.0, %v3270
  %3272 = vmatmul.f32.gmra.mxu0 %v1617
  %v3273 = vpop.f32.mrf.mxu0
  %v3274 = vadd.f32 0.0, %v3273
  %3275 = vmatmul.f32.gmra.mxu0 %v1619
  %v3276 = vpop.f32.mrf.mxu0
  %v3277 = vadd.f32 0.0, %v3276
  %3278 = vmatmul.f32.gmra.mxu0 %v1621
  %v3279 = vpop.f32.mrf.mxu0
  %v3280 = vadd.f32 0.0, %v3279
  %3281 = vmatmul.f32.gmra.mxu0 %v1623
  %v3282 = vpop.f32.mrf.mxu0
  %v3283 = vadd.f32 0.0, %v3282
  %3284 = vmatmul.f32.gmra.mxu0 %v1625
  %v3285 = vpop.f32.mrf.mxu0
  %v3286 = vadd.f32 0.0, %v3285
  %3287 = vmatmul.f32.gmra.mxu0 %v1627
  %v3288 = vpop.f32.mrf.mxu0
  %v3289 = vadd.f32 0.0, %v3288
  %3290 = vmatmul.f32.gmra.mxu0 %v1629
  %v3291 = vpop.f32.mrf.mxu0
  %v3292 = vadd.f32 0.0, %v3291
  %3293 = vmatmul.f32.gmra.mxu0 %v1631
  %v3294 = vpop.f32.mrf.mxu0
  %v3295 = vadd.f32 0.0, %v3294
  %3296 = vmatmul.f32.gmra.mxu0 %v1633
  %v3297 = vpop.f32.mrf.mxu0
  %v3298 = vadd.f32 0.0, %v3297
  %3299 = vmatmul.f32.gmra.mxu0 %v1635
  %v3300 = vpop.f32.mrf.mxu0
  %v3301 = vadd.f32 0.0, %v3300
  %3302 = vmatmul.f32.gmra.mxu0 %v1637
  %v3303 = vpop.f32.mrf.mxu0
  %v3304 = vadd.f32 0.0, %v3303
  %3305 = vmatmul.f32.gmra.mxu0 %v1639
  %v3306 = vpop.f32.mrf.mxu0
  %v3307 = vadd.f32 0.0, %v3306
  %3308 = vmatmul.f32.gmra.mxu0 %v1641
  %v3309 = vpop.f32.mrf.mxu0
  %v3310 = vadd.f32 0.0, %v3309
  %3311 = vmatmul.f32.gmra.mxu0 %v1643
  %v3312 = vpop.f32.mrf.mxu0
  %v3313 = vadd.f32 0.0, %v3312
  %3314 = vmatmul.f32.gmra.mxu0 %v1645
  %v3315 = vpop.f32.mrf.mxu0
  %v3316 = vadd.f32 0.0, %v3315
  %3317 = vmatmul.f32.gmra.mxu0 %v1647
  %v3318 = vpop.f32.mrf.mxu0
  %v3319 = vadd.f32 0.0, %v3318
  %3320 = vmatmul.f32.gmra.mxu0 %v1649
  %v3321 = vpop.f32.mrf.mxu0
  %v3322 = vadd.f32 0.0, %v3321
  %3323 = vmatmul.f32.gmra.mxu0 %v1651
  %v3324 = vpop.f32.mrf.mxu0
  %v3325 = vadd.f32 0.0, %v3324
  %3326 = vmatmul.f32.gmra.mxu0 %v1653
  %v3327 = vpop.f32.mrf.mxu0
  %v3328 = vadd.f32 0.0, %v3327
  %3329 = vmatmul.f32.gmra.mxu0 %v1655
  %v3330 = vpop.f32.mrf.mxu0
  %v3331 = vadd.f32 0.0, %v3330
  %3332 = vmatmul.f32.gmra.mxu0 %v1657
  %v3333 = vpop.f32.mrf.mxu0
  %v3334 = vadd.f32 0.0, %v3333
  %3335 = vmatmul.f32.gmra.mxu0 %v1659
  %v3336 = vpop.f32.mrf.mxu0
  %v3337 = vadd.f32 0.0, %v3336
  %3338 = vmatmul.f32.gmra.mxu0 %v1661
  %v3339 = vpop.f32.mrf.mxu0
  %v3340 = vadd.f32 0.0, %v3339
  %3341 = vmatmul.f32.gmra.mxu0 %v1663
  %v3342 = vpop.f32.mrf.mxu0
  %v3343 = vadd.f32 0.0, %v3342
  %3344 = vmatmul.f32.gmra.mxu0 %v1665
  %v3345 = vpop.f32.mrf.mxu0
  %v3346 = vadd.f32 0.0, %v3345
  %3347 = vmatmul.f32.gmra.mxu0 %v1667
  %v3348 = vpop.f32.mrf.mxu0
  %v3349 = vadd.f32 0.0, %v3348
  %3350 = vmatmul.f32.gmra.mxu0 %v1669
  %v3351 = vpop.f32.mrf.mxu0
  %v3352 = vadd.f32 0.0, %v3351
  %3353 = vmatmul.f32.gmra.mxu0 %v1671
  %v3354 = vpop.f32.mrf.mxu0
  %v3355 = vadd.f32 0.0, %v3354
  %3356 = vmatmul.f32.gmra.mxu0 %v1673
  %v3357 = vpop.f32.mrf.mxu0
  %v3358 = vadd.f32 0.0, %v3357
  %3359 = vmatmul.f32.gmra.mxu0 %v1675
  %v3360 = vpop.f32.mrf.mxu0
  %v3361 = vadd.f32 0.0, %v3360
  %3362 = vmatmul.f32.gmra.mxu0 %v1677
  %v3363 = vpop.f32.mrf.mxu0
  %v3364 = vadd.f32 0.0, %v3363
  %3365 = vmatmul.f32.gmra.mxu0 %v1679
  %v3366 = vpop.f32.mrf.mxu0
  %v3367 = vadd.f32 0.0, %v3366
  %3368 = vmatmul.f32.gmra.mxu0 %v1681
  %v3369 = vpop.f32.mrf.mxu0
  %v3370 = vadd.f32 0.0, %v3369
  %3371 = vmatmul.f32.gmra.mxu0 %v1683
  %v3372 = vpop.f32.mrf.mxu0
  %v3373 = vadd.f32 0.0, %v3372
  %3374 = vmatmul.f32.gmra.mxu0 %v1685
  %v3375 = vpop.f32.mrf.mxu0
  %v3376 = vadd.f32 0.0, %v3375
  %3377 = vmatmul.f32.gmra.mxu0 %v1687
  %v3378 = vpop.f32.mrf.mxu0
  %v3379 = vadd.f32 0.0, %v3378
  %3380 = vmatmul.f32.gmra.mxu0 %v1689
  %v3381 = vpop.f32.mrf.mxu0
  %v3382 = vadd.f32 0.0, %v3381
  %3383 = vmatmul.f32.gmra.mxu0 %v1691
  %v3384 = vpop.f32.mrf.mxu0
  %v3385 = vadd.f32 0.0, %v3384
  %3386 = vmatmul.f32.gmra.mxu0 %v1693
  %v3387 = vpop.f32.mrf.mxu0
  %v3388 = vadd.f32 0.0, %v3387
  %3389 = vmatmul.f32.gmra.mxu0 %v1695
  %v3390 = vpop.f32.mrf.mxu0
  %v3391 = vadd.f32 0.0, %v3390
  %3392 = vmatmul.f32.gmra.mxu0 %v1697
  %v3393 = vpop.f32.mrf.mxu0
  %v3394 = vadd.f32 0.0, %v3393
  %3395 = vmatmul.f32.gmra.mxu0 %v1699
  %v3396 = vpop.f32.mrf.mxu0
  %v3397 = vadd.f32 0.0, %v3396
  %3398 = vmatmul.f32.gmra.mxu0 %v1701
  %v3399 = vpop.f32.mrf.mxu0
  %v3400 = vadd.f32 0.0, %v3399
  %3401 = vmatmul.f32.gmra.mxu0 %v1703
  %v3402 = vpop.f32.mrf.mxu0
  %v3403 = vadd.f32 0.0, %v3402
  %3404 = vmatmul.f32.gmra.mxu0 %v1705
  %v3405 = vpop.f32.mrf.mxu0
  %v3406 = vadd.f32 0.0, %v3405
  %3407 = vmatmul.f32.gmra.mxu0 %v1707
  %v3408 = vpop.f32.mrf.mxu0
  %v3409 = vadd.f32 0.0, %v3408
  %3410 = vmatmul.f32.gmra.mxu0 %v1709
  %v3411 = vpop.f32.mrf.mxu0
  %v3412 = vadd.f32 0.0, %v3411
  %3413 = vmatmul.f32.gmra.mxu0 %v1711
  %v3414 = vpop.f32.mrf.mxu0
  %v3415 = vadd.f32 0.0, %v3414
  %3416 = vmatmul.f32.gmra.mxu0 %v1713
  %v3417 = vpop.f32.mrf.mxu0
  %v3418 = vadd.f32 0.0, %v3417
  %3419 = vmatmul.f32.gmra.mxu0 %v1715
  %v3420 = vpop.f32.mrf.mxu0
  %v3421 = vadd.f32 0.0, %v3420
  %3422 = vmatmul.f32.gmra.mxu0 %v1717
  %v3423 = vpop.f32.mrf.mxu0
  %v3424 = vadd.f32 0.0, %v3423
  %3425 = vmatmul.f32.gmra.mxu0 %v1719
  %v3426 = vpop.f32.mrf.mxu0
  %v3427 = vadd.f32 0.0, %v3426
  %3428 = vmatmul.f32.gmra.mxu0 %v1721
  %v3429 = vpop.f32.mrf.mxu0
  %v3430 = vadd.f32 0.0, %v3429
  %3431 = vmatmul.f32.gmra.mxu0 %v1723
  %v3432 = vpop.f32.mrf.mxu0
  %v3433 = vadd.f32 0.0, %v3432
  %3434 = vmatmul.f32.gmra.mxu0 %v1725
  %v3435 = vpop.f32.mrf.mxu0
  %v3436 = vadd.f32 0.0, %v3435
  %3437 = vmatmul.f32.gmra.mxu0 %v1727
  %v3438 = vpop.f32.mrf.mxu0
  %v3439 = vadd.f32 0.0, %v3438
  %3440 = vmatmul.f32.gmra.mxu0 %v1729
  %v3441 = vpop.f32.mrf.mxu0
  %v3442 = vadd.f32 0.0, %v3441
  %3443 = vmatmul.f32.gmra.mxu0 %v1731
  %v3444 = vpop.f32.mrf.mxu0
  %v3445 = vadd.f32 0.0, %v3444
  %3446 = vmatmul.f32.gmra.mxu0 %v1733
  %v3447 = vpop.f32.mrf.mxu0
  %v3448 = vadd.f32 0.0, %v3447
  %3449 = vmatmul.f32.gmra.mxu0 %v1735
  %v3450 = vpop.f32.mrf.mxu0
  %v3451 = vadd.f32 0.0, %v3450
  %3452 = vmatmul.f32.gmra.mxu0 %v1737
  %v3453 = vpop.f32.mrf.mxu0
  %v3454 = vadd.f32 0.0, %v3453
  %3455 = vmatmul.f32.gmra.mxu0 %v1739
  %v3456 = vpop.f32.mrf.mxu0
  %v3457 = vadd.f32 0.0, %v3456
  %3458 = vmatmul.f32.gmra.mxu0 %v1741
  %v3459 = vpop.f32.mrf.mxu0
  %v3460 = vadd.f32 0.0, %v3459
  %3461 = vmatmul.f32.gmra.mxu0 %v1743
  %v3462 = vpop.f32.mrf.mxu0
  %v3463 = vadd.f32 0.0, %v3462
  %3464 = vmatmul.f32.gmra.mxu0 %v1745
  %v3465 = vpop.f32.mrf.mxu0
  %v3466 = vadd.f32 0.0, %v3465
  %3467 = vmatmul.f32.gmra.mxu0 %v1747
  %v3468 = vpop.f32.mrf.mxu0
  %v3469 = vadd.f32 0.0, %v3468
  %3470 = vmatmul.f32.gmra.mxu0 %v1749
  %v3471 = vpop.f32.mrf.mxu0
  %v3472 = vadd.f32 0.0, %v3471
  %3473 = vmatmul.f32.gmra.mxu0 %v1751
  %v3474 = vpop.f32.mrf.mxu0
  %v3475 = vadd.f32 0.0, %v3474
  %3476 = vmatmul.f32.gmra.mxu0 %v1753
  %v3477 = vpop.f32.mrf.mxu0
  %v3478 = vadd.f32 0.0, %v3477
  %3479 = vmatmul.f32.gmra.mxu0 %v1755
  %v3480 = vpop.f32.mrf.mxu0
  %v3481 = vadd.f32 0.0, %v3480
  %3482 = vmatmul.f32.gmra.mxu0 %v1757
  %v3483 = vpop.f32.mrf.mxu0
  %v3484 = vadd.f32 0.0, %v3483
  %3485 = vmatmul.f32.gmra.mxu0 %v1759
  %v3486 = vpop.f32.mrf.mxu0
  %v3487 = vadd.f32 0.0, %v3486
  %3488 = vmatmul.f32.gmra.mxu0 %v1761
  %v3489 = vpop.f32.mrf.mxu0
  %v3490 = vadd.f32 0.0, %v3489
  %3491 = vmatmul.f32.gmra.mxu0 %v1763
  %v3492 = vpop.f32.mrf.mxu0
  %v3493 = vadd.f32 0.0, %v3492
  %3494 = vmatmul.f32.gmra.mxu0 %v1765
  %v3495 = vpop.f32.mrf.mxu0
  %v3496 = vadd.f32 0.0, %v3495
  %3497 = vmatmul.f32.gmra.mxu0 %v1767
  %v3498 = vpop.f32.mrf.mxu0
  %v3499 = vadd.f32 0.0, %v3498
  %3500 = vmatmul.f32.gmra.mxu0 %v1769
  %v3501 = vpop.f32.mrf.mxu0
  %v3502 = vadd.f32 0.0, %v3501
  %3503 = vmatmul.f32.gmra.mxu0 %v1771
  %v3504 = vpop.f32.mrf.mxu0
  %v3505 = vadd.f32 0.0, %v3504
  %3506 = vmatmul.f32.gmra.mxu0 %v1773
  %v3507 = vpop.f32.mrf.mxu0
  %v3508 = vadd.f32 0.0, %v3507
  %3509 = vmatmul.f32.gmra.mxu0 %v1775
  %v3510 = vpop.f32.mrf.mxu0
  %v3511 = vadd.f32 0.0, %v3510
  %3512 = vmatmul.f32.gmra.mxu0 %v1777
  %v3513 = vpop.f32.mrf.mxu0
  %v3514 = vadd.f32 0.0, %v3513
  %3515 = vmatmul.f32.gmra.mxu0 %v1779
  %v3516 = vpop.f32.mrf.mxu0
  %v3517 = vadd.f32 0.0, %v3516
  %3518 = vmatmul.f32.gmra.mxu0 %v1781
  %v3519 = vpop.f32.mrf.mxu0
  %v3520 = vadd.f32 0.0, %v3519
  %3521 = vmatmul.f32.gmra.mxu0 %v1783
  %v3522 = vpop.f32.mrf.mxu0
  %v3523 = vadd.f32 0.0, %v3522
  %3524 = vmatmul.f32.gmra.mxu0 %v1785
  %v3525 = vpop.f32.mrf.mxu0
  %v3526 = vadd.f32 0.0, %v3525
  %3527 = vmatmul.f32.gmra.mxu0 %v1787
  %v3528 = vpop.f32.mrf.mxu0
  %v3529 = vadd.f32 0.0, %v3528
  %3530 = vmatmul.f32.gmra.mxu0 %v1789
  %v3531 = vpop.f32.mrf.mxu0
  %v3532 = vadd.f32 0.0, %v3531
  %3533 = vmatmul.f32.gmra.mxu0 %v1791
  %v3534 = vpop.f32.mrf.mxu0
  %v3535 = vadd.f32 0.0, %v3534
  %3536 = vmatmul.f32.gmra.mxu0 %v1793
  %v3537 = vpop.f32.mrf.mxu0
  %v3538 = vadd.f32 0.0, %v3537
  %3539 = vmatmul.f32.gmra.mxu0 %v1795
  %v3540 = vpop.f32.mrf.mxu0
  %v3541 = vadd.f32 0.0, %v3540
  %3542 = vmatmul.f32.gmra.mxu0 %v1797
  %v3543 = vpop.f32.mrf.mxu0
  %v3544 = vadd.f32 0.0, %v3543
  %3545 = vmatmul.f32.gmra.mxu0 %v1799
  %v3546 = vpop.f32.mrf.mxu0
  %v3547 = vadd.f32 0.0, %v3546
  %3548 = vmatmul.f32.gmra.mxu0 %v1801
  %v3549 = vpop.f32.mrf.mxu0
  %v3550 = vadd.f32 0.0, %v3549
  %3551 = vmatmul.f32.gmra.mxu0 %v1803
  %v3552 = vpop.f32.mrf.mxu0
  %v3553 = vadd.f32 0.0, %v3552
  %3554 = vmatmul.f32.gmra.mxu0 %v1805
  %v3555 = vpop.f32.mrf.mxu0
  %v3556 = vadd.f32 0.0, %v3555
  %3557 = vmatmul.f32.gmra.mxu0 %v1807
  %v3558 = vpop.f32.mrf.mxu0
  %v3559 = vadd.f32 0.0, %v3558
  %3560 = vmatmul.f32.gmra.mxu0 %v1809
  %v3561 = vpop.f32.mrf.mxu0
  %v3562 = vadd.f32 0.0, %v3561
  %3563 = vmatmul.f32.gmra.mxu0 %v1811
  %v3564 = vpop.f32.mrf.mxu0
  %v3565 = vadd.f32 0.0, %v3564
  %3566 = vmatmul.f32.gmra.mxu0 %v1813
  %v3567 = vpop.f32.mrf.mxu0
  %v3568 = vadd.f32 0.0, %v3567
  %3569 = vmatmul.f32.gmra.mxu0 %v1815
  %v3570 = vpop.f32.mrf.mxu0
  %v3571 = vadd.f32 0.0, %v3570
  %3572 = vmatmul.f32.gmra.mxu0 %v1817
  %v3573 = vpop.f32.mrf.mxu0
  %v3574 = vadd.f32 0.0, %v3573
  %3575 = vmatmul.f32.gmra.mxu0 %v1819
  %v3576 = vpop.f32.mrf.mxu0
  %v3577 = vadd.f32 0.0, %v3576
  %3578 = vmatmul.f32.gmra.mxu0 %v1821
  %v3579 = vpop.f32.mrf.mxu0
  %v3580 = vadd.f32 0.0, %v3579
  %3581 = vmatmul.f32.gmra.mxu0 %v1823
  %v3582 = vpop.f32.mrf.mxu0
  %v3583 = vadd.f32 0.0, %v3582
  %3584 = vmatmul.f32.gmra.mxu0 %v1825
  %v3585 = vpop.f32.mrf.mxu0
  %v3586 = vadd.f32 0.0, %v3585
  %3587 = vmatmul.f32.gmra.mxu0 %v1827
  %v3588 = vpop.f32.mrf.mxu0
  %v3589 = vadd.f32 0.0, %v3588
  %3590 = vmatmul.f32.gmra.mxu0 %v1829
  %v3591 = vpop.f32.mrf.mxu0
  %v3592 = vadd.f32 0.0, %v3591
  %3593 = vmatmul.f32.gmra.mxu0 %v1831
  %v3594 = vpop.f32.mrf.mxu0
  %v3595 = vadd.f32 0.0, %v3594
  %3596 = vmatmul.f32.gmra.mxu0 %v1833
  %v3597 = vpop.f32.mrf.mxu0
  %v3598 = vadd.f32 0.0, %v3597
  %3599 = vmatmul.f32.gmra.mxu0 %v1835
  %v3600 = vpop.f32.mrf.mxu0
  %v3601 = vadd.f32 0.0, %v3600
  %3602 = vmatmul.f32.gmra.mxu0 %v1837
  %v3603 = vpop.f32.mrf.mxu0
  %v3604 = vadd.f32 0.0, %v3603
  %3605 = vmatmul.f32.gmra.mxu0 %v1839
  %v3606 = vpop.f32.mrf.mxu0
  %v3607 = vadd.f32 0.0, %v3606
  %3608 = vmatmul.f32.gmra.mxu0 %v1841
  %v3609 = vpop.f32.mrf.mxu0
  %v3610 = vadd.f32 0.0, %v3609
  %3611 = vmatmul.f32.gmra.mxu0 %v1843
  %v3612 = vpop.f32.mrf.mxu0
  %v3613 = vadd.f32 0.0, %v3612
  %3614 = vmatmul.f32.gmra.mxu0 %v1845
  %v3615 = vpop.f32.mrf.mxu0
  %v3616 = vadd.f32 0.0, %v3615
  %3617 = vmatmul.f32.gmra.mxu0 %v1847
  %v3618 = vpop.f32.mrf.mxu0
  %v3619 = vadd.f32 0.0, %v3618
  %3620 = vmatmul.f32.gmra.mxu0 %v1849
  %v3621 = vpop.f32.mrf.mxu0
  %v3622 = vadd.f32 0.0, %v3621
  %3623 = vmatmul.f32.gmra.mxu0 %v1851
  %v3624 = vpop.f32.mrf.mxu0
  %v3625 = vadd.f32 0.0, %v3624
  %3626 = vmatmul.f32.gmra.mxu0 %v1853
  %v3627 = vpop.f32.mrf.mxu0
  %v3628 = vadd.f32 0.0, %v3627
  %3629 = vmatmul.f32.gmra.mxu0 %v1855
  %v3630 = vpop.f32.mrf.mxu0
  %v3631 = vadd.f32 0.0, %v3630
  %3632 = vmatmul.f32.gmra.mxu0 %v1857
  %v3633 = vpop.f32.mrf.mxu0
  %v3634 = vadd.f32 0.0, %v3633
  %3635 = vmatmul.f32.gmra.mxu0 %v1859
  %v3636 = vpop.f32.mrf.mxu0
  %v3637 = vadd.f32 0.0, %v3636
  %3638 = vmatmul.f32.gmra.mxu0 %v1861
  %v3639 = vpop.f32.mrf.mxu0
  %v3640 = vadd.f32 0.0, %v3639
  %3641 = vmatmul.f32.gmra.mxu0 %v1863
  %v3642 = vpop.f32.mrf.mxu0
  %v3643 = vadd.f32 0.0, %v3642
  %3644 = vmatmul.f32.gmra.mxu0 %v1865
  %v3645 = vpop.f32.mrf.mxu0
  %v3646 = vadd.f32 0.0, %v3645
  %3647 = vmatmul.f32.gmra.mxu0 %v1867
  %v3648 = vpop.f32.mrf.mxu0
  %v3649 = vadd.f32 0.0, %v3648
  %3650 = vmatmul.f32.gmra.mxu0 %v1869
  %v3651 = vpop.f32.mrf.mxu0
  %v3652 = vadd.f32 0.0, %v3651
  %3653 = vmatmul.f32.gmra.mxu0 %v1871
  %v3654 = vpop.f32.mrf.mxu0
  %v3655 = vadd.f32 0.0, %v3654
  %3656 = vmatmul.f32.gmra.mxu0 %v1873
  %v3657 = vpop.f32.mrf.mxu0
  %v3658 = vadd.f32 0.0, %v3657
  %3659 = vmatmul.f32.gmra.mxu0 %v1875
  %v3660 = vpop.f32.mrf.mxu0
  %v3661 = vadd.f32 0.0, %v3660
  %3662 = vmatmul.f32.gmra.mxu0 %v1877
  %v3663 = vpop.f32.mrf.mxu0
  %v3664 = vadd.f32 0.0, %v3663
  %3665 = vmatmul.f32.gmra.mxu0 %v1879
  %v3666 = vpop.f32.mrf.mxu0
  %v3667 = vadd.f32 0.0, %v3666
  %3668 = vmatmul.f32.gmra.mxu0 %v1881
  %v3669 = vpop.f32.mrf.mxu0
  %v3670 = vadd.f32 0.0, %v3669
  %3671 = vmatmul.f32.gmra.mxu0 %v1883
  %v3672 = vpop.f32.mrf.mxu0
  %v3673 = vadd.f32 0.0, %v3672
  %3674 = vmatmul.f32.gmra.mxu0 %v1885
  %v3675 = vpop.f32.mrf.mxu0
  %v3676 = vadd.f32 0.0, %v3675
  %3677 = vmatmul.f32.gmra.mxu0 %v1887
  %v3678 = vpop.f32.mrf.mxu0
  %v3679 = vadd.f32 0.0, %v3678
  %3680 = vmatmul.f32.gmra.mxu0 %v1889
  %v3681 = vpop.f32.mrf.mxu0
  %v3682 = vadd.f32 0.0, %v3681
  %3683 = vmatmul.f32.gmra.mxu0 %v1891
  %v3684 = vpop.f32.mrf.mxu0
  %v3685 = vadd.f32 0.0, %v3684
  %3686 = vmatmul.f32.gmra.mxu0 %v1893
  %v3687 = vpop.f32.mrf.mxu0
  %v3688 = vadd.f32 0.0, %v3687
  %3689 = vmatmul.f32.gmra.mxu0 %v1895
  %v3690 = vpop.f32.mrf.mxu0
  %v3691 = vadd.f32 0.0, %v3690
  %3692 = vmatmul.f32.gmra.mxu0 %v1897
  %v3693 = vpop.f32.mrf.mxu0
  %v3694 = vadd.f32 0.0, %v3693
  %3695 = vmatmul.f32.gmra.mxu0 %v1899
  %v3696 = vpop.f32.mrf.mxu0
  %v3697 = vadd.f32 0.0, %v3696
  %3698 = vmatmul.f32.gmra.mxu0 %v1901
  %v3699 = vpop.f32.mrf.mxu0
  %v3700 = vadd.f32 0.0, %v3699
  %3701 = vmatmul.f32.gmra.mxu0 %v1903
  %v3702 = vpop.f32.mrf.mxu0
  %v3703 = vadd.f32 0.0, %v3702
  %3704 = vmatmul.f32.gmra.mxu0 %v1905
  %v3705 = vpop.f32.mrf.mxu0
  %v3706 = vadd.f32 0.0, %v3705
  %3707 = vmatmul.f32.gmra.mxu0 %v1907
  %v3708 = vpop.f32.mrf.mxu0
  %v3709 = vadd.f32 0.0, %v3708
  %3710 = vmatmul.f32.gmra.mxu0 %v1909
  %v3711 = vpop.f32.mrf.mxu0
  %v3712 = vadd.f32 0.0, %v3711
  %3713 = vmatmul.f32.gmra.mxu0 %v1911
  %v3714 = vpop.f32.mrf.mxu0
  %v3715 = vadd.f32 0.0, %v3714
  %3716 = vmatmul.f32.gmra.mxu0 %v1913
  %v3717 = vpop.f32.mrf.mxu0
  %v3718 = vadd.f32 0.0, %v3717
  %3719 = vmatmul.f32.gmra.mxu0 %v1915
  %v3720 = vpop.f32.mrf.mxu0
  %v3721 = vadd.f32 0.0, %v3720
  %3722 = vmatmul.f32.gmra.mxu0 %v1917
  %v3723 = vpop.f32.mrf.mxu0
  %v3724 = vadd.f32 0.0, %v3723
  %3725 = vmatmul.f32.gmra.mxu0 %v1919
  %v3726 = vpop.f32.mrf.mxu0
  %v3727 = vadd.f32 0.0, %v3726
  %3728 = vmatmul.f32.gmra.mxu0 %v1921
  %v3729 = vpop.f32.mrf.mxu0
  %v3730 = vadd.f32 0.0, %v3729
  %3731 = vmatmul.f32.gmra.mxu0 %v1923
  %v3732 = vpop.f32.mrf.mxu0
  %v3733 = vadd.f32 0.0, %v3732
  %3734 = vmatmul.f32.gmra.mxu0 %v1925
  %v3735 = vpop.f32.mrf.mxu0
  %v3736 = vadd.f32 0.0, %v3735
  %3737 = vmatmul.f32.gmra.mxu0 %v1927
  %v3738 = vpop.f32.mrf.mxu0
  %v3739 = vadd.f32 0.0, %v3738
  %3740 = vmatmul.f32.gmra.mxu0 %v1929
  %v3741 = vpop.f32.mrf.mxu0
  %v3742 = vadd.f32 0.0, %v3741
  %3743 = vmatmul.f32.gmra.mxu0 %v1931
  %v3744 = vpop.f32.mrf.mxu0
  %v3745 = vadd.f32 0.0, %v3744
  %3746 = vmatmul.f32.gmra.mxu0 %v1933
  %v3747 = vpop.f32.mrf.mxu0
  %v3748 = vadd.f32 0.0, %v3747
  %3749 = vmatmul.f32.gmra.mxu0 %v1935
  %v3750 = vpop.f32.mrf.mxu0
  %v3751 = vadd.f32 0.0, %v3750
  %3752 = vmatmul.f32.gmra.mxu0 %v1937
  %v3753 = vpop.f32.mrf.mxu0
  %v3754 = vadd.f32 0.0, %v3753
  %3755 = vmatmul.f32.gmra.mxu0 %v1939
  %v3756 = vpop.f32.mrf.mxu0
  %v3757 = vadd.f32 0.0, %v3756
  %3758 = vmatmul.f32.gmra.mxu0 %v1941
  %v3759 = vpop.f32.mrf.mxu0
  %v3760 = vadd.f32 0.0, %v3759
  %3761 = vmatmul.f32.gmra.mxu0 %v1943
  %v3762 = vpop.f32.mrf.mxu0
  %v3763 = vadd.f32 0.0, %v3762
  %3764 = vmatmul.f32.gmra.mxu0 %v1945
  %v3765 = vpop.f32.mrf.mxu0
  %v3766 = vadd.f32 0.0, %v3765
  %3767 = vmatmul.f32.gmra.mxu0 %v1947
  %v3768 = vpop.f32.mrf.mxu0
  %v3769 = vadd.f32 0.0, %v3768
  %3770 = vmatmul.f32.gmra.mxu0 %v1949
  %v3771 = vpop.f32.mrf.mxu0
  %v3772 = vadd.f32 0.0, %v3771
  %3773 = vmatmul.f32.gmra.mxu0 %v1951
  %v3774 = vpop.f32.mrf.mxu0
  %v3775 = vadd.f32 0.0, %v3774
  %3776 = vmatmul.f32.gmra.mxu0 %v1953
  %v3777 = vpop.f32.mrf.mxu0
  %v3778 = vadd.f32 0.0, %v3777
  %3779 = vmatmul.f32.gmra.mxu0 %v1955
  %v3780 = vpop.f32.mrf.mxu0
  %v3781 = vadd.f32 0.0, %v3780
  %3782 = vmatmul.f32.gmra.mxu0 %v1957
  %v3783 = vpop.f32.mrf.mxu0
  %v3784 = vadd.f32 0.0, %v3783
  %3785 = vmatmul.f32.gmra.mxu0 %v1959
  %v3786 = vpop.f32.mrf.mxu0
  %v3787 = vadd.f32 0.0, %v3786
  %3788 = vmatmul.f32.gmra.mxu0 %v1961
  %v3789 = vpop.f32.mrf.mxu0
  %v3790 = vadd.f32 0.0, %v3789
  %3791 = vmatmul.f32.gmra.mxu0 %v1963
  %v3792 = vpop.f32.mrf.mxu0
  %v3793 = vadd.f32 0.0, %v3792
  %3794 = vmatmul.f32.gmra.mxu0 %v1965
  %v3795 = vpop.f32.mrf.mxu0
  %v3796 = vadd.f32 0.0, %v3795
  %3797 = vmatmul.f32.gmra.mxu0 %v1967
  %v3798 = vpop.f32.mrf.mxu0
  %v3799 = vadd.f32 0.0, %v3798
  %3800 = vmatmul.f32.gmra.mxu0 %v1969
  %v3801 = vpop.f32.mrf.mxu0
  %v3802 = vadd.f32 0.0, %v3801
  %3803 = vmatmul.f32.gmra.mxu0 %v1971
  %v3804 = vpop.f32.mrf.mxu0
  %v3805 = vadd.f32 0.0, %v3804
  %3806 = vmatmul.f32.gmra.mxu0 %v1973
  %v3807 = vpop.f32.mrf.mxu0
  %v3808 = vadd.f32 0.0, %v3807
  %3809 = vmatmul.f32.gmra.mxu0 %v1975
  %v3810 = vpop.f32.mrf.mxu0
  %v3811 = vadd.f32 0.0, %v3810
  %3812 = vmatmul.f32.gmra.mxu0 %v1977
  %v3813 = vpop.f32.mrf.mxu0
  %v3814 = vadd.f32 0.0, %v3813
  %3815 = vmatmul.f32.gmra.mxu0 %v1979
  %v3816 = vpop.f32.mrf.mxu0
  %v3817 = vadd.f32 0.0, %v3816
  %3818 = vmatmul.f32.gmra.mxu0 %v1981
  %v3819 = vpop.f32.mrf.mxu0
  %v3820 = vadd.f32 0.0, %v3819
  %3821 = vmatmul.f32.gmra.mxu0 %v1983
  %v3822 = vpop.f32.mrf.mxu0
  %v3823 = vadd.f32 0.0, %v3822
  %3824 = vmatmul.f32.gmra.mxu0 %v1985
  %v3825 = vpop.f32.mrf.mxu0
  %v3826 = vadd.f32 0.0, %v3825
  %3827 = vmatmul.f32.gmra.mxu0 %v1987
  %v3828 = vpop.f32.mrf.mxu0
  %v3829 = vadd.f32 0.0, %v3828
  %3830 = vmatmul.f32.gmra.mxu0 %v1989
  %v3831 = vpop.f32.mrf.mxu0
  %v3832 = vadd.f32 0.0, %v3831
  %3833 = vmatmul.f32.gmra.mxu0 %v1991
  %v3834 = vpop.f32.mrf.mxu0
  %v3835 = vadd.f32 0.0, %v3834
  %3836 = vmatmul.f32.gmra.mxu0 %v1993
  %v3837 = vpop.f32.mrf.mxu0
  %v3838 = vadd.f32 0.0, %v3837
  %3839 = vmatmul.f32.gmra.mxu0 %v1995
  %v3840 = vpop.f32.mrf.mxu0
  %v3841 = vadd.f32 0.0, %v3840
  %3842 = vmatmul.f32.gmra.mxu0 %v1997
  %v3843 = vpop.f32.mrf.mxu0
  %v3844 = vadd.f32 0.0, %v3843
  %3845 = vmatmul.f32.gmra.mxu0 %v1999
  %v3846 = vpop.f32.mrf.mxu0
  %v3847 = vadd.f32 0.0, %v3846
  %3848 = vmatmul.f32.gmra.mxu0 %v2001
  %v3849 = vpop.f32.mrf.mxu0
  %v3850 = vadd.f32 0.0, %v3849
  %3851 = vmatmul.f32.gmra.mxu0 %v2003
  %v3852 = vpop.f32.mrf.mxu0
  %v3853 = vadd.f32 0.0, %v3852
  %3854 = vmatmul.f32.gmra.mxu0 %v2005
  %v3855 = vpop.f32.mrf.mxu0
  %v3856 = vadd.f32 0.0, %v3855
  %3857 = vmatmul.f32.gmra.mxu0 %v2007
  %v3858 = vpop.f32.mrf.mxu0
  %v3859 = vadd.f32 0.0, %v3858
  %3860 = vmatmul.f32.gmra.mxu0 %v2009
  %v3861 = vpop.f32.mrf.mxu0
  %v3862 = vadd.f32 0.0, %v3861
  %3863 = vmatmul.f32.gmra.mxu0 %v2011
  %v3864 = vpop.f32.mrf.mxu0
  %v3865 = vadd.f32 0.0, %v3864
  %3866 = vmatmul.f32.gmra.mxu0 %v2013
  %v3867 = vpop.f32.mrf.mxu0
  %v3868 = vadd.f32 0.0, %v3867
  %3869 = vmatmul.f32.gmra.mxu0 %v2015
  %v3870 = vpop.f32.mrf.mxu0
  %v3871 = vadd.f32 0.0, %v3870
  %3872 = vmatmul.f32.gmra.mxu0 %v2017
  %v3873 = vpop.f32.mrf.mxu0
  %v3874 = vadd.f32 0.0, %v3873
  %3875 = vmatmul.f32.gmra.mxu0 %v2019
  %v3876 = vpop.f32.mrf.mxu0
  %v3877 = vadd.f32 0.0, %v3876
  %3878 = vmatmul.f32.gmra.mxu0 %v2021
  %v3879 = vpop.f32.mrf.mxu0
  %v3880 = vadd.f32 0.0, %v3879
  %3881 = vmatmul.f32.gmra.mxu0 %v2023
  %v3882 = vpop.f32.mrf.mxu0
  %v3883 = vadd.f32 0.0, %v3882
  %3884 = vmatmul.f32.gmra.mxu0 %v2025
  %v3885 = vpop.f32.mrf.mxu0
  %v3886 = vadd.f32 0.0, %v3885
  %3887 = vmatmul.f32.gmra.mxu0 %v2027
  %v3888 = vpop.f32.mrf.mxu0
  %v3889 = vadd.f32 0.0, %v3888
  %3890 = vmatmul.f32.gmra.mxu0 %v2029
  %v3891 = vpop.f32.mrf.mxu0
  %v3892 = vadd.f32 0.0, %v3891
  %3893 = vmatmul.f32.gmra.mxu0 %v2031
  %v3894 = vpop.f32.mrf.mxu0
  %v3895 = vadd.f32 0.0, %v3894
  %3896 = vmatmul.f32.gmra.mxu0 %v2033
  %v3897 = vpop.f32.mrf.mxu0
  %v3898 = vadd.f32 0.0, %v3897
  %3899 = vmatmul.f32.gmra.mxu0 %v2035
  %v3900 = vpop.f32.mrf.mxu0
  %v3901 = vadd.f32 0.0, %v3900
  %3902 = vmatmul.f32.gmra.mxu0 %v2037
  %v3903 = vpop.f32.mrf.mxu0
  %v3904 = vadd.f32 0.0, %v3903
  %3905 = vmatmul.f32.gmra.mxu0 %v2039
  %v3906 = vpop.f32.mrf.mxu0
  %v3907 = vadd.f32 0.0, %v3906
  %3908 = vmatmul.f32.gmra.mxu0 %v2041
  %v3909 = vpop.f32.mrf.mxu0
  %v3910 = vadd.f32 0.0, %v3909
  %3911 = vmatmul.f32.gmra.mxu0 %v2043
  %v3912 = vpop.f32.mrf.mxu0
  %v3913 = vadd.f32 0.0, %v3912
  %3914 = vmatmul.f32.gmra.mxu0 %v2045
  %v3915 = vpop.f32.mrf.mxu0
  %v3916 = vadd.f32 0.0, %v3915
  %3917 = vmatmul.f32.gmra.mxu0 %v2047
  %v3918 = vpop.f32.mrf.mxu0
  %v3919 = vadd.f32 0.0, %v3918
  %3920 = vmatmul.f32.gmra.mxu0 %v2049
  %v3921 = vpop.f32.mrf.mxu0
  %v3922 = vadd.f32 0.0, %v3921
  %3923 = vmatmul.f32.gmra.mxu0 %v2051
  %v3924 = vpop.f32.mrf.mxu0
  %v3925 = vadd.f32 0.0, %v3924
  %3926 = vmatmul.f32.gmra.mxu0 %v2053
  %v3927 = vpop.f32.mrf.mxu0
  %v3928 = vadd.f32 0.0, %v3927
  %3929 = vmatmul.f32.gmra.mxu0 %v2055
  %v3930 = vpop.f32.mrf.mxu0
  %v3931 = vadd.f32 0.0, %v3930
  %3932 = vmatmul.f32.gmra.mxu0 %v2057
  %v3933 = vpop.f32.mrf.mxu0
  %v3934 = vadd.f32 0.0, %v3933
  %3935 = vmatmul.f32.gmra.mxu0 %v2059
  %v3936 = vpop.f32.mrf.mxu0
  %v3937 = vadd.f32 0.0, %v3936
  %3938 = vmatmul.f32.gmra.mxu0 %v2061
  %v3939 = vpop.f32.mrf.mxu0
  %v3940 = vadd.f32 0.0, %v3939
  %3941 = vmatmul.f32.gmra.mxu0 %v2063
  %v3942 = vpop.f32.mrf.mxu0
  %v3943 = vadd.f32 0.0, %v3942
  %3944 = vmatmul.f32.gmra.mxu0 %v2065
  %v3945 = vpop.f32.mrf.mxu0
  %v3946 = vadd.f32 0.0, %v3945
  %3947 = vmatmul.f32.gmra.mxu0 %v2067
  %v3948 = vpop.f32.mrf.mxu0
  %v3949 = vadd.f32 0.0, %v3948
  %3950 = vmatmul.f32.gmra.mxu0 %v2069
  %v3951 = vpop.f32.mrf.mxu0
  %v3952 = vadd.f32 0.0, %v3951
  %3953 = vmatmul.f32.gmra.mxu0 %v2071
  %v3954 = vpop.f32.mrf.mxu0
  %v3955 = vadd.f32 0.0, %v3954
  %3956 = vmatmul.f32.gmra.mxu0 %v2073
  %v3957 = vpop.f32.mrf.mxu0
  %v3958 = vadd.f32 0.0, %v3957
  %3959 = vmatmul.f32.gmra.mxu0 %v2075
  %v3960 = vpop.f32.mrf.mxu0
  %v3961 = vadd.f32 0.0, %v3960
  %3962 = vmatmul.f32.gmra.mxu0 %v2077
  %v3963 = vpop.f32.mrf.mxu0
  %v3964 = vadd.f32 0.0, %v3963
  %3965 = vmatmul.f32.gmra.mxu0 %v2079
  %v3966 = vpop.f32.mrf.mxu0
  %v3967 = vadd.f32 0.0, %v3966
  %3968 = vmatmul.f32.gmra.mxu0 %v2081
  %v3969 = vpop.f32.mrf.mxu0
  %v3970 = vadd.f32 0.0, %v3969
  %3971 = vmatmul.f32.gmra.mxu0 %v2083
  %v3972 = vpop.f32.mrf.mxu0
  %v3973 = vadd.f32 0.0, %v3972
  %3974 = vmatmul.f32.gmra.mxu0 %v2085
  %v3975 = vpop.f32.mrf.mxu0
  %v3976 = vadd.f32 0.0, %v3975
  %3977 = vmatmul.f32.gmra.mxu0 %v2087
  %v3978 = vpop.f32.mrf.mxu0
  %v3979 = vadd.f32 0.0, %v3978
  %3980 = vmatmul.f32.gmra.mxu0 %v2089
  %v3981 = vpop.f32.mrf.mxu0
  %v3982 = vadd.f32 0.0, %v3981
  %3983 = vmatmul.f32.gmra.mxu0 %v2091
  %v3984 = vpop.f32.mrf.mxu0
  %v3985 = vadd.f32 0.0, %v3984
  %3986 = vmatmul.f32.gmra.mxu0 %v2093
  %v3987 = vpop.f32.mrf.mxu0
  %v3988 = vadd.f32 0.0, %v3987
  %3989 = vmatmul.f32.gmra.mxu0 %v2095
  %v3990 = vpop.f32.mrf.mxu0
  %v3991 = vadd.f32 0.0, %v3990
  %3992 = vmatmul.f32.gmra.mxu0 %v2097
  %v3993 = vpop.f32.mrf.mxu0
  %v3994 = vadd.f32 0.0, %v3993
  %3995 = vmatmul.f32.gmra.mxu0 %v2099
  %v3996 = vpop.f32.mrf.mxu0
  %v3997 = vadd.f32 0.0, %v3996
  %3998 = vmatmul.f32.gmra.mxu0 %v2101
  %v3999 = vpop.f32.mrf.mxu0
  %v4000 = vadd.f32 0.0, %v3999
  %4001 = vmatmul.f32.gmra.mxu0 %v2103
  %v4002 = vpop.f32.mrf.mxu0
  %v4003 = vadd.f32 0.0, %v4002
  %4004 = vmatmul.f32.gmra.mxu0 %v2105
  %v4005 = vpop.f32.mrf.mxu0
  %v4006 = vadd.f32 0.0, %v4005
  %4007 = vmatmul.f32.gmra.mxu0 %v2107
  %v4008 = vpop.f32.mrf.mxu0
  %v4009 = vadd.f32 0.0, %v4008
  %4010 = vmatmul.f32.gmra.mxu0 %v2109
  %v4011 = vpop.f32.mrf.mxu0
  %v4012 = vadd.f32 0.0, %v4011
  %4013 = vmatmul.f32.gmra.mxu0 %v2111
  %v4014 = vpop.f32.mrf.mxu0
  %v4015 = vadd.f32 0.0, %v4014
  %4016 = vmatmul.f32.gmra.mxu0 %v2113
  %v4017 = vpop.f32.mrf.mxu0
  %v4018 = vadd.f32 0.0, %v4017
  %4019 = vmatmul.f32.gmra.mxu0 %v2115
  %v4020 = vpop.f32.mrf.mxu0
  %v4021 = vadd.f32 0.0, %v4020
  %4022 = vmatmul.f32.gmra.mxu0 %v2117
  %v4023 = vpop.f32.mrf.mxu0
  %v4024 = vadd.f32 0.0, %v4023
  %4025 = vmatmul.f32.gmra.mxu0 %v2119
  %v4026 = vpop.f32.mrf.mxu0
  %v4027 = vadd.f32 0.0, %v4026
  %4028 = vmatmul.f32.gmra.mxu0 %v2121
  %v4029 = vpop.f32.mrf.mxu0
  %v4030 = vadd.f32 0.0, %v4029
  %4031 = vmatmul.f32.gmra.mxu0 %v2123
  %v4032 = vpop.f32.mrf.mxu0
  %v4033 = vadd.f32 0.0, %v4032
  %4034 = vmatmul.f32.gmra.mxu0 %v2125
  %v4035 = vpop.f32.mrf.mxu0
  %v4036 = vadd.f32 0.0, %v4035
  %4037 = vmatmul.f32.gmra.mxu0 %v2127
  %v4038 = vpop.f32.mrf.mxu0
  %v4039 = vadd.f32 0.0, %v4038
  %4040 = vmatmul.f32.gmra.mxu0 %v2129
  %v4041 = vpop.f32.mrf.mxu0
  %v4042 = vadd.f32 0.0, %v4041
  %4043 = vmatmul.f32.gmra.mxu0 %v2131
  %v4044 = vpop.f32.mrf.mxu0
  %v4045 = vadd.f32 0.0, %v4044
  %4046 = vmatmul.f32.gmra.mxu0 %v2133
  %v4047 = vpop.f32.mrf.mxu0
  %v4048 = vadd.f32 0.0, %v4047
  %4049 = vmatmul.f32.gmra.mxu0 %v2135
  %v4050 = vpop.f32.mrf.mxu0
  %v4051 = vadd.f32 0.0, %v4050
  %4052 = vmatmul.f32.gmra.mxu0 %v2137
  %v4053 = vpop.f32.mrf.mxu0
  %v4054 = vadd.f32 0.0, %v4053
  %4055 = vmatmul.f32.gmra.mxu0 %v2139
  %v4056 = vpop.f32.mrf.mxu0
  %v4057 = vadd.f32 0.0, %v4056
  %4058 = vmatmul.f32.gmra.mxu0 %v2141
  %v4059 = vpop.f32.mrf.mxu0
  %v4060 = vadd.f32 0.0, %v4059
  %4061 = vmatmul.f32.gmra.mxu0 %v2143
  %v4062 = vpop.f32.mrf.mxu0
  %v4063 = vadd.f32 0.0, %v4062
  %4064 = vmatmul.f32.gmra.mxu0 %v2145
  %v4065 = vpop.f32.mrf.mxu0
  %v4066 = vadd.f32 0.0, %v4065
  %4067 = vmatmul.f32.gmra.mxu0 %v2147
  %v4068 = vpop.f32.mrf.mxu0
  %v4069 = vadd.f32 0.0, %v4068
  %4070 = vmatmul.f32.gmra.mxu0 %v2149
  %v4071 = vpop.f32.mrf.mxu0
  %v4072 = vadd.f32 0.0, %v4071
  %4073 = vmatmul.f32.gmra.mxu0 %v2151
  %v4074 = vpop.f32.mrf.mxu0
  %v4075 = vadd.f32 0.0, %v4074
  %4076 = vmatmul.f32.gmra.mxu0 %v2153
  %v4077 = vpop.f32.mrf.mxu0
  %v4078 = vadd.f32 0.0, %v4077
  %4079 = vmatmul.f32.gmra.mxu0 %v2155
  %v4080 = vpop.f32.mrf.mxu0
  %v4081 = vadd.f32 0.0, %v4080
  %4082 = vmatmul.f32.gmra.mxu0 %v2157
  %v4083 = vpop.f32.mrf.mxu0
  %v4084 = vadd.f32 0.0, %v4083
  %4085 = vmatmul.f32.gmra.mxu0 %v2159
  %v4086 = vpop.f32.mrf.mxu0
  %v4087 = vadd.f32 0.0, %v4086
  %4088 = vmatmul.f32.gmra.mxu0 %v2161
  %v4089 = vpop.f32.mrf.mxu0
  %v4090 = vadd.f32 0.0, %v4089
  %4091 = vmatmul.f32.gmra.mxu0 %v2163
  %v4092 = vpop.f32.mrf.mxu0
  %v4093 = vadd.f32 0.0, %v4092
  %4094 = vmatmul.f32.gmra.mxu0 %v2165
  %v4095 = vpop.f32.mrf.mxu0
  %v4096 = vadd.f32 0.0, %v4095
  %4097 = vmatmul.f32.gmra.mxu0 %v2167
  %v4098 = vpop.f32.mrf.mxu0
  %v4099 = vadd.f32 0.0, %v4098
  %4100 = vmatmul.f32.gmra.mxu0 %v2169
  %v4101 = vpop.f32.mrf.mxu0
  %v4102 = vadd.f32 0.0, %v4101
  %4103 = vmatmul.f32.gmra.mxu0 %v2171
  %v4104 = vpop.f32.mrf.mxu0
  %v4105 = vadd.f32 0.0, %v4104
  %4106 = vmatmul.f32.gmra.mxu0 %v2173
  %v4107 = vpop.f32.mrf.mxu0
  %v4108 = vadd.f32 0.0, %v4107
  %4109 = vmatmul.f32.gmra.mxu0 %v2175
  %v4110 = vpop.f32.mrf.mxu0
  %v4111 = vadd.f32 0.0, %v4110
  %4112 = vmatmul.f32.gmra.mxu0 %v2177
  %v4113 = vpop.f32.mrf.mxu0
  %v4114 = vadd.f32 0.0, %v4113
  %4115 = vmatmul.f32.gmra.mxu0 %v2179
  %v4116 = vpop.f32.mrf.mxu0
  %v4117 = vadd.f32 0.0, %v4116
  %4118 = vmatmul.f32.gmra.mxu0 %v2181
  %v4119 = vpop.f32.mrf.mxu0
  %v4120 = vadd.f32 0.0, %v4119
  %4121 = vmatmul.f32.gmra.mxu0 %v2183
  %v4122 = vpop.f32.mrf.mxu0
  %v4123 = vadd.f32 0.0, %v4122
  %4124 = vmatmul.f32.gmra.mxu0 %v2185
  %v4125 = vpop.f32.mrf.mxu0
  %v4126 = vadd.f32 0.0, %v4125
  %4127 = vmatmul.f32.gmra.mxu0 %v2187
  %v4128 = vpop.f32.mrf.mxu0
  %v4129 = vadd.f32 0.0, %v4128
  %4130 = vmatmul.f32.gmra.mxu0 %v2189
  %v4131 = vpop.f32.mrf.mxu0
  %v4132 = vadd.f32 0.0, %v4131
  %4133 = vmatmul.f32.gmra.mxu0 %v2191
  %v4134 = vpop.f32.mrf.mxu0
  %v4135 = vadd.f32 0.0, %v4134
  %4136 = vmatmul.f32.gmra.mxu0 %v2193
  %v4137 = vpop.f32.mrf.mxu0
  %v4138 = vadd.f32 0.0, %v4137
  %4139 = vmatmul.f32.gmra.mxu0 %v2195
  %v4140 = vpop.f32.mrf.mxu0
  %v4141 = vadd.f32 0.0, %v4140
  %4142 = vmatmul.f32.gmra.mxu0 %v2197
  %v4143 = vpop.f32.mrf.mxu0
  %v4144 = vadd.f32 0.0, %v4143
  %4145 = vmatmul.f32.gmra.mxu0 %v2199
  %v4146 = vpop.f32.mrf.mxu0
  %v4147 = vadd.f32 0.0, %v4146
  %4148 = vmatmul.f32.gmra.mxu0 %v2201
  %v4149 = vpop.f32.mrf.mxu0
  %v4150 = vadd.f32 0.0, %v4149
  %4151 = vmatmul.f32.gmra.mxu0 %v2203
  %v4152 = vpop.f32.mrf.mxu0
  %v4153 = vadd.f32 0.0, %v4152
  %4154 = vmatmul.f32.gmra.mxu0 %v2205
  %v4155 = vpop.f32.mrf.mxu0
  %v4156 = vadd.f32 0.0, %v4155
  %4157 = vmatmul.f32.gmra.mxu0 %v2207
  %v4158 = vpop.f32.mrf.mxu0
  %v4159 = vadd.f32 0.0, %v4158
  %4160 = vmatmul.f32.gmra.mxu0 %v2209
  %v4161 = vpop.f32.mrf.mxu0
  %v4162 = vadd.f32 0.0, %v4161
  %4163 = vmatmul.f32.gmra.mxu0 %v2211
  %v4164 = vpop.f32.mrf.mxu0
  %v4165 = vadd.f32 0.0, %v4164
  %4166 = vmatmul.f32.gmra.mxu0 %v2213
  %v4167 = vpop.f32.mrf.mxu0
  %v4168 = vadd.f32 0.0, %v4167
  %4169 = vmatmul.f32.gmra.mxu0 %v2215
  %v4170 = vpop.f32.mrf.mxu0
  %v4171 = vadd.f32 0.0, %v4170
  %4172 = vmatmul.f32.gmra.mxu0 %v2217
  %v4173 = vpop.f32.mrf.mxu0
  %v4174 = vadd.f32 0.0, %v4173
  %4175 = vmatmul.f32.gmra.mxu0 %v2219
  %v4176 = vpop.f32.mrf.mxu0
  %v4177 = vadd.f32 0.0, %v4176
  %4178 = vmatmul.f32.gmra.mxu0 %v2221
  %v4179 = vpop.f32.mrf.mxu0
  %v4180 = vadd.f32 0.0, %v4179
  %4181 = vmatmul.f32.gmra.mxu0 %v2223
  %v4182 = vpop.f32.mrf.mxu0
  %v4183 = vadd.f32 0.0, %v4182
  %4184 = vmatmul.f32.gmra.mxu0 %v2225
  %v4185 = vpop.f32.mrf.mxu0
  %v4186 = vadd.f32 0.0, %v4185
  %4187 = vdwg.mxu0
  %4188 = vmatpush.msra.mxu0 0.0
  %4189 = vmatpush.msra.mxu0 0.0
  %4190 = vmatpush.msra.mxu0 0.0
  %4191 = vmatpush.msra.mxu0 0.0
  %4192 = vmatpush.msra.mxu0 0.0
  %4193 = vmatpush.msra.mxu0 0.0
  %4194 = vmatpush.msra.mxu0 0.0
  %4195 = vmatpush.msra.mxu0 %v1254
  %4196 = vmatpush.msra.mxu0 %v1253
  %4197 = vmatpush.msra.mxu0 %v1252
  %4198 = vmatpush.msra.mxu0 %v1251
  %4199 = vmatpush.msra.mxu0 %v1250
  %4200 = vmatpush.msra.mxu0 %v1249
  %4201 = vmatpush.msra.mxu0 %v1248
  %4202 = vmatpush.msra.mxu0 %v1247
  %4203 = vmatpush.msra.mxu0 %v1246
  %4204 = vmatmul.f32.gmra.mxu0 %v2228
  %v4205 = vpop.f32.mrf.mxu0
  %v4206 = vadd.f32 %v3217, %v4205
  %4207 = vmatmul.f32.gmra.mxu0 %v2231
  %v4208 = vpop.f32.mrf.mxu0
  %v4209 = vadd.f32 %v3220, %v4208
  %4210 = vmatmul.f32.gmra.mxu0 %v2234
  %v4211 = vpop.f32.mrf.mxu0
  %v4212 = vadd.f32 %v3223, %v4211
  %4213 = vmatmul.f32.gmra.mxu0 %v2237
  %v4214 = vpop.f32.mrf.mxu0
  %v4215 = vadd.f32 %v3226, %v4214
  %4216 = vmatmul.f32.gmra.mxu0 %v2240
  %v4217 = vpop.f32.mrf.mxu0
  %v4218 = vadd.f32 %v3229, %v4217
  %4219 = vmatmul.f32.gmra.mxu0 %v2243
  %v4220 = vpop.f32.mrf.mxu0
  %v4221 = vadd.f32 %v3232, %v4220
  %4222 = vmatmul.f32.gmra.mxu0 %v2246
  %v4223 = vpop.f32.mrf.mxu0
  %v4224 = vadd.f32 %v3235, %v4223
  %4225 = vmatmul.f32.gmra.mxu0 %v2249
  %v4226 = vpop.f32.mrf.mxu0
  %v4227 = vadd.f32 %v3238, %v4226
  %4228 = vmatmul.f32.gmra.mxu0 %v2252
  %v4229 = vpop.f32.mrf.mxu0
  %v4230 = vadd.f32 %v3241, %v4229
  %4231 = vmatmul.f32.gmra.mxu0 %v2255
  %v4232 = vpop.f32.mrf.mxu0
  %v4233 = vadd.f32 %v3244, %v4232
  %4234 = vmatmul.f32.gmra.mxu0 %v2258
  %v4235 = vpop.f32.mrf.mxu0
  %v4236 = vadd.f32 %v3247, %v4235
  %4237 = vmatmul.f32.gmra.mxu0 %v2261
  %v4238 = vpop.f32.mrf.mxu0
  %v4239 = vadd.f32 %v3250, %v4238
  %4240 = vmatmul.f32.gmra.mxu0 %v2264
  %v4241 = vpop.f32.mrf.mxu0
  %v4242 = vadd.f32 %v3253, %v4241
  %4243 = vmatmul.f32.gmra.mxu0 %v2267
  %v4244 = vpop.f32.mrf.mxu0
  %v4245 = vadd.f32 %v3256, %v4244
  %4246 = vmatmul.f32.gmra.mxu0 %v2270
  %v4247 = vpop.f32.mrf.mxu0
  %v4248 = vadd.f32 %v3259, %v4247
  %4249 = vmatmul.f32.gmra.mxu0 %v2273
  %v4250 = vpop.f32.mrf.mxu0
  %v4251 = vadd.f32 %v3262, %v4250
  %4252 = vmatmul.f32.gmra.mxu0 %v2276
  %v4253 = vpop.f32.mrf.mxu0
  %v4254 = vadd.f32 %v3265, %v4253
  %4255 = vmatmul.f32.gmra.mxu0 %v2279
  %v4256 = vpop.f32.mrf.mxu0
  %v4257 = vadd.f32 %v3268, %v4256
  %4258 = vmatmul.f32.gmra.mxu0 %v2282
  %v4259 = vpop.f32.mrf.mxu0
  %v4260 = vadd.f32 %v3271, %v4259
  %4261 = vmatmul.f32.gmra.mxu0 %v2285
  %v4262 = vpop.f32.mrf.mxu0
  %v4263 = vadd.f32 %v3274, %v4262
  %4264 = vmatmul.f32.gmra.mxu0 %v2288
  %v4265 = vpop.f32.mrf.mxu0
  %v4266 = vadd.f32 %v3277, %v4265
  %4267 = vmatmul.f32.gmra.mxu0 %v2291
  %v4268 = vpop.f32.mrf.mxu0
  %v4269 = vadd.f32 %v3280, %v4268
  %4270 = vmatmul.f32.gmra.mxu0 %v2294
  %v4271 = vpop.f32.mrf.mxu0
  %v4272 = vadd.f32 %v3283, %v4271
  %4273 = vmatmul.f32.gmra.mxu0 %v2297
  %v4274 = vpop.f32.mrf.mxu0
  %v4275 = vadd.f32 %v3286, %v4274
  %4276 = vmatmul.f32.gmra.mxu0 %v2300
  %v4277 = vpop.f32.mrf.mxu0
  %v4278 = vadd.f32 %v3289, %v4277
  %4279 = vmatmul.f32.gmra.mxu0 %v2303
  %v4280 = vpop.f32.mrf.mxu0
  %v4281 = vadd.f32 %v3292, %v4280
  %4282 = vmatmul.f32.gmra.mxu0 %v2306
  %v4283 = vpop.f32.mrf.mxu0
  %v4284 = vadd.f32 %v3295, %v4283
  %4285 = vmatmul.f32.gmra.mxu0 %v2309
  %v4286 = vpop.f32.mrf.mxu0
  %v4287 = vadd.f32 %v3298, %v4286
  %4288 = vmatmul.f32.gmra.mxu0 %v2312
  %v4289 = vpop.f32.mrf.mxu0
  %v4290 = vadd.f32 %v3301, %v4289
  %4291 = vmatmul.f32.gmra.mxu0 %v2315
  %v4292 = vpop.f32.mrf.mxu0
  %v4293 = vadd.f32 %v3304, %v4292
  %4294 = vmatmul.f32.gmra.mxu0 %v2318
  %v4295 = vpop.f32.mrf.mxu0
  %v4296 = vadd.f32 %v3307, %v4295
  %4297 = vmatmul.f32.gmra.mxu0 %v2321
  %v4298 = vpop.f32.mrf.mxu0
  %v4299 = vadd.f32 %v3310, %v4298
  %4300 = vmatmul.f32.gmra.mxu0 %v2324
  %v4301 = vpop.f32.mrf.mxu0
  %v4302 = vadd.f32 %v3313, %v4301
  %4303 = vmatmul.f32.gmra.mxu0 %v2327
  %v4304 = vpop.f32.mrf.mxu0
  %v4305 = vadd.f32 %v3316, %v4304
  %4306 = vmatmul.f32.gmra.mxu0 %v2330
  %v4307 = vpop.f32.mrf.mxu0
  %v4308 = vadd.f32 %v3319, %v4307
  %4309 = vmatmul.f32.gmra.mxu0 %v2333
  %v4310 = vpop.f32.mrf.mxu0
  %v4311 = vadd.f32 %v3322, %v4310
  %4312 = vmatmul.f32.gmra.mxu0 %v2336
  %v4313 = vpop.f32.mrf.mxu0
  %v4314 = vadd.f32 %v3325, %v4313
  %4315 = vmatmul.f32.gmra.mxu0 %v2339
  %v4316 = vpop.f32.mrf.mxu0
  %v4317 = vadd.f32 %v3328, %v4316
  %4318 = vmatmul.f32.gmra.mxu0 %v2342
  %v4319 = vpop.f32.mrf.mxu0
  %v4320 = vadd.f32 %v3331, %v4319
  %4321 = vmatmul.f32.gmra.mxu0 %v2345
  %v4322 = vpop.f32.mrf.mxu0
  %v4323 = vadd.f32 %v3334, %v4322
  %4324 = vmatmul.f32.gmra.mxu0 %v2348
  %v4325 = vpop.f32.mrf.mxu0
  %v4326 = vadd.f32 %v3337, %v4325
  %4327 = vmatmul.f32.gmra.mxu0 %v2351
  %v4328 = vpop.f32.mrf.mxu0
  %v4329 = vadd.f32 %v3340, %v4328
  %4330 = vmatmul.f32.gmra.mxu0 %v2354
  %v4331 = vpop.f32.mrf.mxu0
  %v4332 = vadd.f32 %v3343, %v4331
  %4333 = vmatmul.f32.gmra.mxu0 %v2357
  %v4334 = vpop.f32.mrf.mxu0
  %v4335 = vadd.f32 %v3346, %v4334
  %4336 = vmatmul.f32.gmra.mxu0 %v2360
  %v4337 = vpop.f32.mrf.mxu0
  %v4338 = vadd.f32 %v3349, %v4337
  %4339 = vmatmul.f32.gmra.mxu0 %v2363
  %v4340 = vpop.f32.mrf.mxu0
  %v4341 = vadd.f32 %v3352, %v4340
  %4342 = vmatmul.f32.gmra.mxu0 %v2366
  %v4343 = vpop.f32.mrf.mxu0
  %v4344 = vadd.f32 %v3355, %v4343
  %4345 = vmatmul.f32.gmra.mxu0 %v2369
  %v4346 = vpop.f32.mrf.mxu0
  %v4347 = vadd.f32 %v3358, %v4346
  %4348 = vmatmul.f32.gmra.mxu0 %v2372
  %v4349 = vpop.f32.mrf.mxu0
  %v4350 = vadd.f32 %v3361, %v4349
  %4351 = vmatmul.f32.gmra.mxu0 %v2375
  %v4352 = vpop.f32.mrf.mxu0
  %v4353 = vadd.f32 %v3364, %v4352
  %4354 = vmatmul.f32.gmra.mxu0 %v2378
  %v4355 = vpop.f32.mrf.mxu0
  %v4356 = vadd.f32 %v3367, %v4355
  %4357 = vmatmul.f32.gmra.mxu0 %v2381
  %v4358 = vpop.f32.mrf.mxu0
  %v4359 = vadd.f32 %v3370, %v4358
  %4360 = vmatmul.f32.gmra.mxu0 %v2384
  %v4361 = vpop.f32.mrf.mxu0
  %v4362 = vadd.f32 %v3373, %v4361
  %4363 = vmatmul.f32.gmra.mxu0 %v2387
  %v4364 = vpop.f32.mrf.mxu0
  %v4365 = vadd.f32 %v3376, %v4364
  %4366 = vmatmul.f32.gmra.mxu0 %v2390
  %v4367 = vpop.f32.mrf.mxu0
  %v4368 = vadd.f32 %v3379, %v4367
  %4369 = vmatmul.f32.gmra.mxu0 %v2393
  %v4370 = vpop.f32.mrf.mxu0
  %v4371 = vadd.f32 %v3382, %v4370
  %4372 = vmatmul.f32.gmra.mxu0 %v2396
  %v4373 = vpop.f32.mrf.mxu0
  %v4374 = vadd.f32 %v3385, %v4373
  %4375 = vmatmul.f32.gmra.mxu0 %v2399
  %v4376 = vpop.f32.mrf.mxu0
  %v4377 = vadd.f32 %v3388, %v4376
  %4378 = vmatmul.f32.gmra.mxu0 %v2402
  %v4379 = vpop.f32.mrf.mxu0
  %v4380 = vadd.f32 %v3391, %v4379
  %4381 = vmatmul.f32.gmra.mxu0 %v2405
  %v4382 = vpop.f32.mrf.mxu0
  %v4383 = vadd.f32 %v3394, %v4382
  %4384 = vmatmul.f32.gmra.mxu0 %v2408
  %v4385 = vpop.f32.mrf.mxu0
  %v4386 = vadd.f32 %v3397, %v4385
  %4387 = vmatmul.f32.gmra.mxu0 %v2411
  %v4388 = vpop.f32.mrf.mxu0
  %v4389 = vadd.f32 %v3400, %v4388
  %4390 = vmatmul.f32.gmra.mxu0 %v2414
  %v4391 = vpop.f32.mrf.mxu0
  %v4392 = vadd.f32 %v3403, %v4391
  %4393 = vmatmul.f32.gmra.mxu0 %v2417
  %v4394 = vpop.f32.mrf.mxu0
  %v4395 = vadd.f32 %v3406, %v4394
  %4396 = vmatmul.f32.gmra.mxu0 %v2420
  %v4397 = vpop.f32.mrf.mxu0
  %v4398 = vadd.f32 %v3409, %v4397
  %4399 = vmatmul.f32.gmra.mxu0 %v2423
  %v4400 = vpop.f32.mrf.mxu0
  %v4401 = vadd.f32 %v3412, %v4400
  %4402 = vmatmul.f32.gmra.mxu0 %v2426
  %v4403 = vpop.f32.mrf.mxu0
  %v4404 = vadd.f32 %v3415, %v4403
  %4405 = vmatmul.f32.gmra.mxu0 %v2429
  %v4406 = vpop.f32.mrf.mxu0
  %v4407 = vadd.f32 %v3418, %v4406
  %4408 = vmatmul.f32.gmra.mxu0 %v2432
  %v4409 = vpop.f32.mrf.mxu0
  %v4410 = vadd.f32 %v3421, %v4409
  %4411 = vmatmul.f32.gmra.mxu0 %v2435
  %v4412 = vpop.f32.mrf.mxu0
  %v4413 = vadd.f32 %v3424, %v4412
  %4414 = vmatmul.f32.gmra.mxu0 %v2438
  %v4415 = vpop.f32.mrf.mxu0
  %v4416 = vadd.f32 %v3427, %v4415
  %4417 = vmatmul.f32.gmra.mxu0 %v2441
  %v4418 = vpop.f32.mrf.mxu0
  %v4419 = vadd.f32 %v3430, %v4418
  %4420 = vmatmul.f32.gmra.mxu0 %v2444
  %v4421 = vpop.f32.mrf.mxu0
  %v4422 = vadd.f32 %v3433, %v4421
  %4423 = vmatmul.f32.gmra.mxu0 %v2447
  %v4424 = vpop.f32.mrf.mxu0
  %v4425 = vadd.f32 %v3436, %v4424
  %4426 = vmatmul.f32.gmra.mxu0 %v2450
  %v4427 = vpop.f32.mrf.mxu0
  %v4428 = vadd.f32 %v3439, %v4427
  %4429 = vmatmul.f32.gmra.mxu0 %v2453
  %v4430 = vpop.f32.mrf.mxu0
  %v4431 = vadd.f32 %v3442, %v4430
  %4432 = vmatmul.f32.gmra.mxu0 %v2456
  %v4433 = vpop.f32.mrf.mxu0
  %v4434 = vadd.f32 %v3445, %v4433
  %4435 = vmatmul.f32.gmra.mxu0 %v2459
  %v4436 = vpop.f32.mrf.mxu0
  %v4437 = vadd.f32 %v3448, %v4436
  %4438 = vmatmul.f32.gmra.mxu0 %v2462
  %v4439 = vpop.f32.mrf.mxu0
  %v4440 = vadd.f32 %v3451, %v4439
  %4441 = vmatmul.f32.gmra.mxu0 %v2465
  %v4442 = vpop.f32.mrf.mxu0
  %v4443 = vadd.f32 %v3454, %v4442
  %4444 = vmatmul.f32.gmra.mxu0 %v2468
  %v4445 = vpop.f32.mrf.mxu0
  %v4446 = vadd.f32 %v3457, %v4445
  %4447 = vmatmul.f32.gmra.mxu0 %v2471
  %v4448 = vpop.f32.mrf.mxu0
  %v4449 = vadd.f32 %v3460, %v4448
  %4450 = vmatmul.f32.gmra.mxu0 %v2474
  %v4451 = vpop.f32.mrf.mxu0
  %v4452 = vadd.f32 %v3463, %v4451
  %4453 = vmatmul.f32.gmra.mxu0 %v2477
  %v4454 = vpop.f32.mrf.mxu0
  %v4455 = vadd.f32 %v3466, %v4454
  %4456 = vmatmul.f32.gmra.mxu0 %v2480
  %v4457 = vpop.f32.mrf.mxu0
  %v4458 = vadd.f32 %v3469, %v4457
  %4459 = vmatmul.f32.gmra.mxu0 %v2483
  %v4460 = vpop.f32.mrf.mxu0
  %v4461 = vadd.f32 %v3472, %v4460
  %4462 = vmatmul.f32.gmra.mxu0 %v2486
  %v4463 = vpop.f32.mrf.mxu0
  %v4464 = vadd.f32 %v3475, %v4463
  %4465 = vmatmul.f32.gmra.mxu0 %v2489
  %v4466 = vpop.f32.mrf.mxu0
  %v4467 = vadd.f32 %v3478, %v4466
  %4468 = vmatmul.f32.gmra.mxu0 %v2492
  %v4469 = vpop.f32.mrf.mxu0
  %v4470 = vadd.f32 %v3481, %v4469
  %4471 = vmatmul.f32.gmra.mxu0 %v2495
  %v4472 = vpop.f32.mrf.mxu0
  %v4473 = vadd.f32 %v3484, %v4472
  %4474 = vmatmul.f32.gmra.mxu0 %v2498
  %v4475 = vpop.f32.mrf.mxu0
  %v4476 = vadd.f32 %v3487, %v4475
  %4477 = vmatmul.f32.gmra.mxu0 %v2501
  %v4478 = vpop.f32.mrf.mxu0
  %v4479 = vadd.f32 %v3490, %v4478
  %4480 = vmatmul.f32.gmra.mxu0 %v2504
  %v4481 = vpop.f32.mrf.mxu0
  %v4482 = vadd.f32 %v3493, %v4481
  %4483 = vmatmul.f32.gmra.mxu0 %v2507
  %v4484 = vpop.f32.mrf.mxu0
  %v4485 = vadd.f32 %v3496, %v4484
  %4486 = vmatmul.f32.gmra.mxu0 %v2510
  %v4487 = vpop.f32.mrf.mxu0
  %v4488 = vadd.f32 %v3499, %v4487
  %4489 = vmatmul.f32.gmra.mxu0 %v2513
  %v4490 = vpop.f32.mrf.mxu0
  %v4491 = vadd.f32 %v3502, %v4490
  %4492 = vmatmul.f32.gmra.mxu0 %v2516
  %v4493 = vpop.f32.mrf.mxu0
  %v4494 = vadd.f32 %v3505, %v4493
  %4495 = vmatmul.f32.gmra.mxu0 %v2519
  %v4496 = vpop.f32.mrf.mxu0
  %v4497 = vadd.f32 %v3508, %v4496
  %4498 = vmatmul.f32.gmra.mxu0 %v2522
  %v4499 = vpop.f32.mrf.mxu0
  %v4500 = vadd.f32 %v3511, %v4499
  %4501 = vmatmul.f32.gmra.mxu0 %v2525
  %v4502 = vpop.f32.mrf.mxu0
  %v4503 = vadd.f32 %v3514, %v4502
  %4504 = vmatmul.f32.gmra.mxu0 %v2528
  %v4505 = vpop.f32.mrf.mxu0
  %v4506 = vadd.f32 %v3517, %v4505
  %4507 = vmatmul.f32.gmra.mxu0 %v2531
  %v4508 = vpop.f32.mrf.mxu0
  %v4509 = vadd.f32 %v3520, %v4508
  %4510 = vmatmul.f32.gmra.mxu0 %v2534
  %v4511 = vpop.f32.mrf.mxu0
  %v4512 = vadd.f32 %v3523, %v4511
  %4513 = vmatmul.f32.gmra.mxu0 %v2537
  %v4514 = vpop.f32.mrf.mxu0
  %v4515 = vadd.f32 %v3526, %v4514
  %4516 = vmatmul.f32.gmra.mxu0 %v2540
  %v4517 = vpop.f32.mrf.mxu0
  %v4518 = vadd.f32 %v3529, %v4517
  %4519 = vmatmul.f32.gmra.mxu0 %v2543
  %v4520 = vpop.f32.mrf.mxu0
  %v4521 = vadd.f32 %v3532, %v4520
  %4522 = vmatmul.f32.gmra.mxu0 %v2546
  %v4523 = vpop.f32.mrf.mxu0
  %v4524 = vadd.f32 %v3535, %v4523
  %4525 = vmatmul.f32.gmra.mxu0 %v2549
  %v4526 = vpop.f32.mrf.mxu0
  %v4527 = vadd.f32 %v3538, %v4526
  %4528 = vmatmul.f32.gmra.mxu0 %v2552
  %v4529 = vpop.f32.mrf.mxu0
  %v4530 = vadd.f32 %v3541, %v4529
  %4531 = vmatmul.f32.gmra.mxu0 %v2555
  %v4532 = vpop.f32.mrf.mxu0
  %v4533 = vadd.f32 %v3544, %v4532
  %4534 = vmatmul.f32.gmra.mxu0 %v2558
  %v4535 = vpop.f32.mrf.mxu0
  %v4536 = vadd.f32 %v3547, %v4535
  %4537 = vmatmul.f32.gmra.mxu0 %v2561
  %v4538 = vpop.f32.mrf.mxu0
  %v4539 = vadd.f32 %v3550, %v4538
  %4540 = vmatmul.f32.gmra.mxu0 %v2564
  %v4541 = vpop.f32.mrf.mxu0
  %v4542 = vadd.f32 %v3553, %v4541
  %4543 = vmatmul.f32.gmra.mxu0 %v2567
  %v4544 = vpop.f32.mrf.mxu0
  %v4545 = vadd.f32 %v3556, %v4544
  %4546 = vmatmul.f32.gmra.mxu0 %v2570
  %v4547 = vpop.f32.mrf.mxu0
  %v4548 = vadd.f32 %v3559, %v4547
  %4549 = vmatmul.f32.gmra.mxu0 %v2573
  %v4550 = vpop.f32.mrf.mxu0
  %v4551 = vadd.f32 %v3562, %v4550
  %4552 = vmatmul.f32.gmra.mxu0 %v2576
  %v4553 = vpop.f32.mrf.mxu0
  %v4554 = vadd.f32 %v3565, %v4553
  %4555 = vmatmul.f32.gmra.mxu0 %v2579
  %v4556 = vpop.f32.mrf.mxu0
  %v4557 = vadd.f32 %v3568, %v4556
  %4558 = vmatmul.f32.gmra.mxu0 %v2582
  %v4559 = vpop.f32.mrf.mxu0
  %v4560 = vadd.f32 %v3571, %v4559
  %4561 = vmatmul.f32.gmra.mxu0 %v2585
  %v4562 = vpop.f32.mrf.mxu0
  %v4563 = vadd.f32 %v3574, %v4562
  %4564 = vmatmul.f32.gmra.mxu0 %v2588
  %v4565 = vpop.f32.mrf.mxu0
  %v4566 = vadd.f32 %v3577, %v4565
  %4567 = vmatmul.f32.gmra.mxu0 %v2591
  %v4568 = vpop.f32.mrf.mxu0
  %v4569 = vadd.f32 %v3580, %v4568
  %4570 = vmatmul.f32.gmra.mxu0 %v2594
  %v4571 = vpop.f32.mrf.mxu0
  %v4572 = vadd.f32 %v3583, %v4571
  %4573 = vmatmul.f32.gmra.mxu0 %v2597
  %v4574 = vpop.f32.mrf.mxu0
  %v4575 = vadd.f32 %v3586, %v4574
  %4576 = vmatmul.f32.gmra.mxu0 %v2600
  %v4577 = vpop.f32.mrf.mxu0
  %v4578 = vadd.f32 %v3589, %v4577
  %4579 = vmatmul.f32.gmra.mxu0 %v2603
  %v4580 = vpop.f32.mrf.mxu0
  %v4581 = vadd.f32 %v3592, %v4580
  %4582 = vmatmul.f32.gmra.mxu0 %v2606
  %v4583 = vpop.f32.mrf.mxu0
  %v4584 = vadd.f32 %v3595, %v4583
  %4585 = vmatmul.f32.gmra.mxu0 %v2609
  %v4586 = vpop.f32.mrf.mxu0
  %v4587 = vadd.f32 %v3598, %v4586
  %4588 = vmatmul.f32.gmra.mxu0 %v2612
  %v4589 = vpop.f32.mrf.mxu0
  %v4590 = vadd.f32 %v3601, %v4589
  %4591 = vmatmul.f32.gmra.mxu0 %v2615
  %v4592 = vpop.f32.mrf.mxu0
  %v4593 = vadd.f32 %v3604, %v4592
  %4594 = vmatmul.f32.gmra.mxu0 %v2618
  %v4595 = vpop.f32.mrf.mxu0
  %v4596 = vadd.f32 %v3607, %v4595
  %4597 = vmatmul.f32.gmra.mxu0 %v2621
  %v4598 = vpop.f32.mrf.mxu0
  %v4599 = vadd.f32 %v3610, %v4598
  %4600 = vmatmul.f32.gmra.mxu0 %v2624
  %v4601 = vpop.f32.mrf.mxu0
  %v4602 = vadd.f32 %v3613, %v4601
  %4603 = vmatmul.f32.gmra.mxu0 %v2627
  %v4604 = vpop.f32.mrf.mxu0
  %v4605 = vadd.f32 %v3616, %v4604
  %4606 = vmatmul.f32.gmra.mxu0 %v2630
  %v4607 = vpop.f32.mrf.mxu0
  %v4608 = vadd.f32 %v3619, %v4607
  %4609 = vmatmul.f32.gmra.mxu0 %v2633
  %v4610 = vpop.f32.mrf.mxu0
  %v4611 = vadd.f32 %v3622, %v4610
  %4612 = vmatmul.f32.gmra.mxu0 %v2636
  %v4613 = vpop.f32.mrf.mxu0
  %v4614 = vadd.f32 %v3625, %v4613
  %4615 = vmatmul.f32.gmra.mxu0 %v2639
  %v4616 = vpop.f32.mrf.mxu0
  %v4617 = vadd.f32 %v3628, %v4616
  %4618 = vmatmul.f32.gmra.mxu0 %v2642
  %v4619 = vpop.f32.mrf.mxu0
  %v4620 = vadd.f32 %v3631, %v4619
  %4621 = vmatmul.f32.gmra.mxu0 %v2645
  %v4622 = vpop.f32.mrf.mxu0
  %v4623 = vadd.f32 %v3634, %v4622
  %4624 = vmatmul.f32.gmra.mxu0 %v2648
  %v4625 = vpop.f32.mrf.mxu0
  %v4626 = vadd.f32 %v3637, %v4625
  %4627 = vmatmul.f32.gmra.mxu0 %v2651
  %v4628 = vpop.f32.mrf.mxu0
  %v4629 = vadd.f32 %v3640, %v4628
  %4630 = vmatmul.f32.gmra.mxu0 %v2654
  %v4631 = vpop.f32.mrf.mxu0
  %v4632 = vadd.f32 %v3643, %v4631
  %4633 = vmatmul.f32.gmra.mxu0 %v2657
  %v4634 = vpop.f32.mrf.mxu0
  %v4635 = vadd.f32 %v3646, %v4634
  %4636 = vmatmul.f32.gmra.mxu0 %v2660
  %v4637 = vpop.f32.mrf.mxu0
  %v4638 = vadd.f32 %v3649, %v4637
  %4639 = vmatmul.f32.gmra.mxu0 %v2663
  %v4640 = vpop.f32.mrf.mxu0
  %v4641 = vadd.f32 %v3652, %v4640
  %4642 = vmatmul.f32.gmra.mxu0 %v2666
  %v4643 = vpop.f32.mrf.mxu0
  %v4644 = vadd.f32 %v3655, %v4643
  %4645 = vmatmul.f32.gmra.mxu0 %v2669
  %v4646 = vpop.f32.mrf.mxu0
  %v4647 = vadd.f32 %v3658, %v4646
  %4648 = vmatmul.f32.gmra.mxu0 %v2672
  %v4649 = vpop.f32.mrf.mxu0
  %v4650 = vadd.f32 %v3661, %v4649
  %4651 = vmatmul.f32.gmra.mxu0 %v2675
  %v4652 = vpop.f32.mrf.mxu0
  %v4653 = vadd.f32 %v3664, %v4652
  %4654 = vmatmul.f32.gmra.mxu0 %v2678
  %v4655 = vpop.f32.mrf.mxu0
  %v4656 = vadd.f32 %v3667, %v4655
  %4657 = vmatmul.f32.gmra.mxu0 %v2681
  %v4658 = vpop.f32.mrf.mxu0
  %v4659 = vadd.f32 %v3670, %v4658
  %4660 = vmatmul.f32.gmra.mxu0 %v2684
  %v4661 = vpop.f32.mrf.mxu0
  %v4662 = vadd.f32 %v3673, %v4661
  %4663 = vmatmul.f32.gmra.mxu0 %v2687
  %v4664 = vpop.f32.mrf.mxu0
  %v4665 = vadd.f32 %v3676, %v4664
  %4666 = vmatmul.f32.gmra.mxu0 %v2690
  %v4667 = vpop.f32.mrf.mxu0
  %v4668 = vadd.f32 %v3679, %v4667
  %4669 = vmatmul.f32.gmra.mxu0 %v2693
  %v4670 = vpop.f32.mrf.mxu0
  %v4671 = vadd.f32 %v3682, %v4670
  %4672 = vmatmul.f32.gmra.mxu0 %v2696
  %v4673 = vpop.f32.mrf.mxu0
  %v4674 = vadd.f32 %v3685, %v4673
  %4675 = vmatmul.f32.gmra.mxu0 %v2699
  %v4676 = vpop.f32.mrf.mxu0
  %v4677 = vadd.f32 %v3688, %v4676
  %4678 = vmatmul.f32.gmra.mxu0 %v2702
  %v4679 = vpop.f32.mrf.mxu0
  %v4680 = vadd.f32 %v3691, %v4679
  %4681 = vmatmul.f32.gmra.mxu0 %v2705
  %v4682 = vpop.f32.mrf.mxu0
  %v4683 = vadd.f32 %v3694, %v4682
  %4684 = vmatmul.f32.gmra.mxu0 %v2708
  %v4685 = vpop.f32.mrf.mxu0
  %v4686 = vadd.f32 %v3697, %v4685
  %4687 = vmatmul.f32.gmra.mxu0 %v2711
  %v4688 = vpop.f32.mrf.mxu0
  %v4689 = vadd.f32 %v3700, %v4688
  %4690 = vmatmul.f32.gmra.mxu0 %v2714
  %v4691 = vpop.f32.mrf.mxu0
  %v4692 = vadd.f32 %v3703, %v4691
  %4693 = vmatmul.f32.gmra.mxu0 %v2717
  %v4694 = vpop.f32.mrf.mxu0
  %v4695 = vadd.f32 %v3706, %v4694
  %4696 = vmatmul.f32.gmra.mxu0 %v2720
  %v4697 = vpop.f32.mrf.mxu0
  %v4698 = vadd.f32 %v3709, %v4697
  %4699 = vmatmul.f32.gmra.mxu0 %v2723
  %v4700 = vpop.f32.mrf.mxu0
  %v4701 = vadd.f32 %v3712, %v4700
  %4702 = vmatmul.f32.gmra.mxu0 %v2726
  %v4703 = vpop.f32.mrf.mxu0
  %v4704 = vadd.f32 %v3715, %v4703
  %4705 = vmatmul.f32.gmra.mxu0 %v2729
  %v4706 = vpop.f32.mrf.mxu0
  %v4707 = vadd.f32 %v3718, %v4706
  %4708 = vmatmul.f32.gmra.mxu0 %v2732
  %v4709 = vpop.f32.mrf.mxu0
  %v4710 = vadd.f32 %v3721, %v4709
  %4711 = vmatmul.f32.gmra.mxu0 %v2735
  %v4712 = vpop.f32.mrf.mxu0
  %v4713 = vadd.f32 %v3724, %v4712
  %4714 = vmatmul.f32.gmra.mxu0 %v2738
  %v4715 = vpop.f32.mrf.mxu0
  %v4716 = vadd.f32 %v3727, %v4715
  %4717 = vmatmul.f32.gmra.mxu0 %v2741
  %v4718 = vpop.f32.mrf.mxu0
  %v4719 = vadd.f32 %v3730, %v4718
  %4720 = vmatmul.f32.gmra.mxu0 %v2744
  %v4721 = vpop.f32.mrf.mxu0
  %v4722 = vadd.f32 %v3733, %v4721
  %4723 = vmatmul.f32.gmra.mxu0 %v2747
  %v4724 = vpop.f32.mrf.mxu0
  %v4725 = vadd.f32 %v3736, %v4724
  %4726 = vmatmul.f32.gmra.mxu0 %v2750
  %v4727 = vpop.f32.mrf.mxu0
  %v4728 = vadd.f32 %v3739, %v4727
  %4729 = vmatmul.f32.gmra.mxu0 %v2753
  %v4730 = vpop.f32.mrf.mxu0
  %v4731 = vadd.f32 %v3742, %v4730
  %4732 = vmatmul.f32.gmra.mxu0 %v2756
  %v4733 = vpop.f32.mrf.mxu0
  %v4734 = vadd.f32 %v3745, %v4733
  %4735 = vmatmul.f32.gmra.mxu0 %v2759
  %v4736 = vpop.f32.mrf.mxu0
  %v4737 = vadd.f32 %v3748, %v4736
  %4738 = vmatmul.f32.gmra.mxu0 %v2762
  %v4739 = vpop.f32.mrf.mxu0
  %v4740 = vadd.f32 %v3751, %v4739
  %4741 = vmatmul.f32.gmra.mxu0 %v2765
  %v4742 = vpop.f32.mrf.mxu0
  %v4743 = vadd.f32 %v3754, %v4742
  %4744 = vmatmul.f32.gmra.mxu0 %v2768
  %v4745 = vpop.f32.mrf.mxu0
  %v4746 = vadd.f32 %v3757, %v4745
  %4747 = vmatmul.f32.gmra.mxu0 %v2771
  %v4748 = vpop.f32.mrf.mxu0
  %v4749 = vadd.f32 %v3760, %v4748
  %4750 = vmatmul.f32.gmra.mxu0 %v2774
  %v4751 = vpop.f32.mrf.mxu0
  %v4752 = vadd.f32 %v3763, %v4751
  %4753 = vmatmul.f32.gmra.mxu0 %v2777
  %v4754 = vpop.f32.mrf.mxu0
  %v4755 = vadd.f32 %v3766, %v4754
  %4756 = vmatmul.f32.gmra.mxu0 %v2780
  %v4757 = vpop.f32.mrf.mxu0
  %v4758 = vadd.f32 %v3769, %v4757
  %4759 = vmatmul.f32.gmra.mxu0 %v2783
  %v4760 = vpop.f32.mrf.mxu0
  %v4761 = vadd.f32 %v3772, %v4760
  %4762 = vmatmul.f32.gmra.mxu0 %v2786
  %v4763 = vpop.f32.mrf.mxu0
  %v4764 = vadd.f32 %v3775, %v4763
  %4765 = vmatmul.f32.gmra.mxu0 %v2789
  %v4766 = vpop.f32.mrf.mxu0
  %v4767 = vadd.f32 %v3778, %v4766
  %4768 = vmatmul.f32.gmra.mxu0 %v2792
  %v4769 = vpop.f32.mrf.mxu0
  %v4770 = vadd.f32 %v3781, %v4769
  %4771 = vmatmul.f32.gmra.mxu0 %v2795
  %v4772 = vpop.f32.mrf.mxu0
  %v4773 = vadd.f32 %v3784, %v4772
  %4774 = vmatmul.f32.gmra.mxu0 %v2798
  %v4775 = vpop.f32.mrf.mxu0
  %v4776 = vadd.f32 %v3787, %v4775
  %4777 = vmatmul.f32.gmra.mxu0 %v2801
  %v4778 = vpop.f32.mrf.mxu0
  %v4779 = vadd.f32 %v3790, %v4778
  %4780 = vmatmul.f32.gmra.mxu0 %v2804
  %v4781 = vpop.f32.mrf.mxu0
  %v4782 = vadd.f32 %v3793, %v4781
  %4783 = vmatmul.f32.gmra.mxu0 %v2807
  %v4784 = vpop.f32.mrf.mxu0
  %v4785 = vadd.f32 %v3796, %v4784
  %4786 = vmatmul.f32.gmra.mxu0 %v2810
  %v4787 = vpop.f32.mrf.mxu0
  %v4788 = vadd.f32 %v3799, %v4787
  %4789 = vmatmul.f32.gmra.mxu0 %v2813
  %v4790 = vpop.f32.mrf.mxu0
  %v4791 = vadd.f32 %v3802, %v4790
  %4792 = vmatmul.f32.gmra.mxu0 %v2816
  %v4793 = vpop.f32.mrf.mxu0
  %v4794 = vadd.f32 %v3805, %v4793
  %4795 = vmatmul.f32.gmra.mxu0 %v2819
  %v4796 = vpop.f32.mrf.mxu0
  %v4797 = vadd.f32 %v3808, %v4796
  %4798 = vmatmul.f32.gmra.mxu0 %v2822
  %v4799 = vpop.f32.mrf.mxu0
  %v4800 = vadd.f32 %v3811, %v4799
  %4801 = vmatmul.f32.gmra.mxu0 %v2825
  %v4802 = vpop.f32.mrf.mxu0
  %v4803 = vadd.f32 %v3814, %v4802
  %4804 = vmatmul.f32.gmra.mxu0 %v2828
  %v4805 = vpop.f32.mrf.mxu0
  %v4806 = vadd.f32 %v3817, %v4805
  %4807 = vmatmul.f32.gmra.mxu0 %v2831
  %v4808 = vpop.f32.mrf.mxu0
  %v4809 = vadd.f32 %v3820, %v4808
  %4810 = vmatmul.f32.gmra.mxu0 %v2834
  %v4811 = vpop.f32.mrf.mxu0
  %v4812 = vadd.f32 %v3823, %v4811
  %4813 = vmatmul.f32.gmra.mxu0 %v2837
  %v4814 = vpop.f32.mrf.mxu0
  %v4815 = vadd.f32 %v3826, %v4814
  %4816 = vmatmul.f32.gmra.mxu0 %v2840
  %v4817 = vpop.f32.mrf.mxu0
  %v4818 = vadd.f32 %v3829, %v4817
  %4819 = vmatmul.f32.gmra.mxu0 %v2843
  %v4820 = vpop.f32.mrf.mxu0
  %v4821 = vadd.f32 %v3832, %v4820
  %4822 = vmatmul.f32.gmra.mxu0 %v2846
  %v4823 = vpop.f32.mrf.mxu0
  %v4824 = vadd.f32 %v3835, %v4823
  %4825 = vmatmul.f32.gmra.mxu0 %v2849
  %v4826 = vpop.f32.mrf.mxu0
  %v4827 = vadd.f32 %v3838, %v4826
  %4828 = vmatmul.f32.gmra.mxu0 %v2852
  %v4829 = vpop.f32.mrf.mxu0
  %v4830 = vadd.f32 %v3841, %v4829
  %4831 = vmatmul.f32.gmra.mxu0 %v2855
  %v4832 = vpop.f32.mrf.mxu0
  %v4833 = vadd.f32 %v3844, %v4832
  %4834 = vmatmul.f32.gmra.mxu0 %v2858
  %v4835 = vpop.f32.mrf.mxu0
  %v4836 = vadd.f32 %v3847, %v4835
  %4837 = vmatmul.f32.gmra.mxu0 %v2861
  %v4838 = vpop.f32.mrf.mxu0
  %v4839 = vadd.f32 %v3850, %v4838
  %4840 = vmatmul.f32.gmra.mxu0 %v2864
  %v4841 = vpop.f32.mrf.mxu0
  %v4842 = vadd.f32 %v3853, %v4841
  %4843 = vmatmul.f32.gmra.mxu0 %v2867
  %v4844 = vpop.f32.mrf.mxu0
  %v4845 = vadd.f32 %v3856, %v4844
  %4846 = vmatmul.f32.gmra.mxu0 %v2870
  %v4847 = vpop.f32.mrf.mxu0
  %v4848 = vadd.f32 %v3859, %v4847
  %4849 = vmatmul.f32.gmra.mxu0 %v2873
  %v4850 = vpop.f32.mrf.mxu0
  %v4851 = vadd.f32 %v3862, %v4850
  %4852 = vmatmul.f32.gmra.mxu0 %v2876
  %v4853 = vpop.f32.mrf.mxu0
  %v4854 = vadd.f32 %v3865, %v4853
  %4855 = vmatmul.f32.gmra.mxu0 %v2879
  %v4856 = vpop.f32.mrf.mxu0
  %v4857 = vadd.f32 %v3868, %v4856
  %4858 = vmatmul.f32.gmra.mxu0 %v2882
  %v4859 = vpop.f32.mrf.mxu0
  %v4860 = vadd.f32 %v3871, %v4859
  %4861 = vmatmul.f32.gmra.mxu0 %v2885
  %v4862 = vpop.f32.mrf.mxu0
  %v4863 = vadd.f32 %v3874, %v4862
  %4864 = vmatmul.f32.gmra.mxu0 %v2888
  %v4865 = vpop.f32.mrf.mxu0
  %v4866 = vadd.f32 %v3877, %v4865
  %4867 = vmatmul.f32.gmra.mxu0 %v2891
  %v4868 = vpop.f32.mrf.mxu0
  %v4869 = vadd.f32 %v3880, %v4868
  %4870 = vmatmul.f32.gmra.mxu0 %v2894
  %v4871 = vpop.f32.mrf.mxu0
  %v4872 = vadd.f32 %v3883, %v4871
  %4873 = vmatmul.f32.gmra.mxu0 %v2897
  %v4874 = vpop.f32.mrf.mxu0
  %v4875 = vadd.f32 %v3886, %v4874
  %4876 = vmatmul.f32.gmra.mxu0 %v2900
  %v4877 = vpop.f32.mrf.mxu0
  %v4878 = vadd.f32 %v3889, %v4877
  %4879 = vmatmul.f32.gmra.mxu0 %v2903
  %v4880 = vpop.f32.mrf.mxu0
  %v4881 = vadd.f32 %v3892, %v4880
  %4882 = vmatmul.f32.gmra.mxu0 %v2906
  %v4883 = vpop.f32.mrf.mxu0
  %v4884 = vadd.f32 %v3895, %v4883
  %4885 = vmatmul.f32.gmra.mxu0 %v2909
  %v4886 = vpop.f32.mrf.mxu0
  %v4887 = vadd.f32 %v3898, %v4886
  %4888 = vmatmul.f32.gmra.mxu0 %v2912
  %v4889 = vpop.f32.mrf.mxu0
  %v4890 = vadd.f32 %v3901, %v4889
  %4891 = vmatmul.f32.gmra.mxu0 %v2915
  %v4892 = vpop.f32.mrf.mxu0
  %v4893 = vadd.f32 %v3904, %v4892
  %4894 = vmatmul.f32.gmra.mxu0 %v2918
  %v4895 = vpop.f32.mrf.mxu0
  %v4896 = vadd.f32 %v3907, %v4895
  %4897 = vmatmul.f32.gmra.mxu0 %v2921
  %v4898 = vpop.f32.mrf.mxu0
  %v4899 = vadd.f32 %v3910, %v4898
  %4900 = vmatmul.f32.gmra.mxu0 %v2924
  %v4901 = vpop.f32.mrf.mxu0
  %v4902 = vadd.f32 %v3913, %v4901
  %4903 = vmatmul.f32.gmra.mxu0 %v2927
  %v4904 = vpop.f32.mrf.mxu0
  %v4905 = vadd.f32 %v3916, %v4904
  %4906 = vmatmul.f32.gmra.mxu0 %v2930
  %v4907 = vpop.f32.mrf.mxu0
  %v4908 = vadd.f32 %v3919, %v4907
  %4909 = vmatmul.f32.gmra.mxu0 %v2933
  %v4910 = vpop.f32.mrf.mxu0
  %v4911 = vadd.f32 %v3922, %v4910
  %4912 = vmatmul.f32.gmra.mxu0 %v2936
  %v4913 = vpop.f32.mrf.mxu0
  %v4914 = vadd.f32 %v3925, %v4913
  %4915 = vmatmul.f32.gmra.mxu0 %v2939
  %v4916 = vpop.f32.mrf.mxu0
  %v4917 = vadd.f32 %v3928, %v4916
  %4918 = vmatmul.f32.gmra.mxu0 %v2942
  %v4919 = vpop.f32.mrf.mxu0
  %v4920 = vadd.f32 %v3931, %v4919
  %4921 = vmatmul.f32.gmra.mxu0 %v2945
  %v4922 = vpop.f32.mrf.mxu0
  %v4923 = vadd.f32 %v3934, %v4922
  %4924 = vmatmul.f32.gmra.mxu0 %v2948
  %v4925 = vpop.f32.mrf.mxu0
  %v4926 = vadd.f32 %v3937, %v4925
  %4927 = vmatmul.f32.gmra.mxu0 %v2951
  %v4928 = vpop.f32.mrf.mxu0
  %v4929 = vadd.f32 %v3940, %v4928
  %4930 = vmatmul.f32.gmra.mxu0 %v2954
  %v4931 = vpop.f32.mrf.mxu0
  %v4932 = vadd.f32 %v3943, %v4931
  %4933 = vmatmul.f32.gmra.mxu0 %v2957
  %v4934 = vpop.f32.mrf.mxu0
  %v4935 = vadd.f32 %v3946, %v4934
  %4936 = vmatmul.f32.gmra.mxu0 %v2960
  %v4937 = vpop.f32.mrf.mxu0
  %v4938 = vadd.f32 %v3949, %v4937
  %4939 = vmatmul.f32.gmra.mxu0 %v2963
  %v4940 = vpop.f32.mrf.mxu0
  %v4941 = vadd.f32 %v3952, %v4940
  %4942 = vmatmul.f32.gmra.mxu0 %v2966
  %v4943 = vpop.f32.mrf.mxu0
  %v4944 = vadd.f32 %v3955, %v4943
  %4945 = vmatmul.f32.gmra.mxu0 %v2969
  %v4946 = vpop.f32.mrf.mxu0
  %v4947 = vadd.f32 %v3958, %v4946
  %4948 = vmatmul.f32.gmra.mxu0 %v2972
  %v4949 = vpop.f32.mrf.mxu0
  %v4950 = vadd.f32 %v3961, %v4949
  %4951 = vmatmul.f32.gmra.mxu0 %v2975
  %v4952 = vpop.f32.mrf.mxu0
  %v4953 = vadd.f32 %v3964, %v4952
  %4954 = vmatmul.f32.gmra.mxu0 %v2978
  %v4955 = vpop.f32.mrf.mxu0
  %v4956 = vadd.f32 %v3967, %v4955
  %4957 = vmatmul.f32.gmra.mxu0 %v2981
  %v4958 = vpop.f32.mrf.mxu0
  %v4959 = vadd.f32 %v3970, %v4958
  %4960 = vmatmul.f32.gmra.mxu0 %v2984
  %v4961 = vpop.f32.mrf.mxu0
  %v4962 = vadd.f32 %v3973, %v4961
  %4963 = vmatmul.f32.gmra.mxu0 %v2987
  %v4964 = vpop.f32.mrf.mxu0
  %v4965 = vadd.f32 %v3976, %v4964
  %4966 = vmatmul.f32.gmra.mxu0 %v2990
  %v4967 = vpop.f32.mrf.mxu0
  %v4968 = vadd.f32 %v3979, %v4967
  %4969 = vmatmul.f32.gmra.mxu0 %v2993
  %v4970 = vpop.f32.mrf.mxu0
  %v4971 = vadd.f32 %v3982, %v4970
  %4972 = vmatmul.f32.gmra.mxu0 %v2996
  %v4973 = vpop.f32.mrf.mxu0
  %v4974 = vadd.f32 %v3985, %v4973
  %4975 = vmatmul.f32.gmra.mxu0 %v2999
  %v4976 = vpop.f32.mrf.mxu0
  %v4977 = vadd.f32 %v3988, %v4976
  %4978 = vmatmul.f32.gmra.mxu0 %v3002
  %v4979 = vpop.f32.mrf.mxu0
  %v4980 = vadd.f32 %v3991, %v4979
  %4981 = vmatmul.f32.gmra.mxu0 %v3005
  %v4982 = vpop.f32.mrf.mxu0
  %v4983 = vadd.f32 %v3994, %v4982
  %4984 = vmatmul.f32.gmra.mxu0 %v3008
  %v4985 = vpop.f32.mrf.mxu0
  %v4986 = vadd.f32 %v3997, %v4985
  %4987 = vmatmul.f32.gmra.mxu0 %v3011
  %v4988 = vpop.f32.mrf.mxu0
  %v4989 = vadd.f32 %v4000, %v4988
  %4990 = vmatmul.f32.gmra.mxu0 %v3014
  %v4991 = vpop.f32.mrf.mxu0
  %v4992 = vadd.f32 %v4003, %v4991
  %4993 = vmatmul.f32.gmra.mxu0 %v3017
  %v4994 = vpop.f32.mrf.mxu0
  %v4995 = vadd.f32 %v4006, %v4994
  %4996 = vmatmul.f32.gmra.mxu0 %v3020
  %v4997 = vpop.f32.mrf.mxu0
  %v4998 = vadd.f32 %v4009, %v4997
  %4999 = vmatmul.f32.gmra.mxu0 %v3023
  %v5000 = vpop.f32.mrf.mxu0
  %v5001 = vadd.f32 %v4012, %v5000
  %5002 = vmatmul.f32.gmra.mxu0 %v3026
  %v5003 = vpop.f32.mrf.mxu0
  %v5004 = vadd.f32 %v4015, %v5003
  %5005 = vmatmul.f32.gmra.mxu0 %v3029
  %v5006 = vpop.f32.mrf.mxu0
  %v5007 = vadd.f32 %v4018, %v5006
  %5008 = vmatmul.f32.gmra.mxu0 %v3032
  %v5009 = vpop.f32.mrf.mxu0
  %v5010 = vadd.f32 %v4021, %v5009
  %5011 = vmatmul.f32.gmra.mxu0 %v3035
  %v5012 = vpop.f32.mrf.mxu0
  %v5013 = vadd.f32 %v4024, %v5012
  %5014 = vmatmul.f32.gmra.mxu0 %v3038
  %v5015 = vpop.f32.mrf.mxu0
  %v5016 = vadd.f32 %v4027, %v5015
  %5017 = vmatmul.f32.gmra.mxu0 %v3041
  %v5018 = vpop.f32.mrf.mxu0
  %v5019 = vadd.f32 %v4030, %v5018
  %5020 = vmatmul.f32.gmra.mxu0 %v3044
  %v5021 = vpop.f32.mrf.mxu0
  %v5022 = vadd.f32 %v4033, %v5021
  %5023 = vmatmul.f32.gmra.mxu0 %v3047
  %v5024 = vpop.f32.mrf.mxu0
  %v5025 = vadd.f32 %v4036, %v5024
  %5026 = vmatmul.f32.gmra.mxu0 %v3050
  %v5027 = vpop.f32.mrf.mxu0
  %v5028 = vadd.f32 %v4039, %v5027
  %5029 = vmatmul.f32.gmra.mxu0 %v3053
  %v5030 = vpop.f32.mrf.mxu0
  %v5031 = vadd.f32 %v4042, %v5030
  %5032 = vmatmul.f32.gmra.mxu0 %v3056
  %v5033 = vpop.f32.mrf.mxu0
  %v5034 = vadd.f32 %v4045, %v5033
  %5035 = vmatmul.f32.gmra.mxu0 %v3059
  %v5036 = vpop.f32.mrf.mxu0
  %v5037 = vadd.f32 %v4048, %v5036
  %5038 = vmatmul.f32.gmra.mxu0 %v3062
  %v5039 = vpop.f32.mrf.mxu0
  %v5040 = vadd.f32 %v4051, %v5039
  %5041 = vmatmul.f32.gmra.mxu0 %v3065
  %v5042 = vpop.f32.mrf.mxu0
  %v5043 = vadd.f32 %v4054, %v5042
  %5044 = vmatmul.f32.gmra.mxu0 %v3068
  %v5045 = vpop.f32.mrf.mxu0
  %v5046 = vadd.f32 %v4057, %v5045
  %5047 = vmatmul.f32.gmra.mxu0 %v3071
  %v5048 = vpop.f32.mrf.mxu0
  %v5049 = vadd.f32 %v4060, %v5048
  %5050 = vmatmul.f32.gmra.mxu0 %v3074
  %v5051 = vpop.f32.mrf.mxu0
  %v5052 = vadd.f32 %v4063, %v5051
  %5053 = vmatmul.f32.gmra.mxu0 %v3077
  %v5054 = vpop.f32.mrf.mxu0
  %v5055 = vadd.f32 %v4066, %v5054
  %5056 = vmatmul.f32.gmra.mxu0 %v3080
  %v5057 = vpop.f32.mrf.mxu0
  %v5058 = vadd.f32 %v4069, %v5057
  %5059 = vmatmul.f32.gmra.mxu0 %v3083
  %v5060 = vpop.f32.mrf.mxu0
  %v5061 = vadd.f32 %v4072, %v5060
  %5062 = vmatmul.f32.gmra.mxu0 %v3086
  %v5063 = vpop.f32.mrf.mxu0
  %v5064 = vadd.f32 %v4075, %v5063
  %5065 = vmatmul.f32.gmra.mxu0 %v3089
  %v5066 = vpop.f32.mrf.mxu0
  %v5067 = vadd.f32 %v4078, %v5066
  %5068 = vmatmul.f32.gmra.mxu0 %v3092
  %v5069 = vpop.f32.mrf.mxu0
  %v5070 = vadd.f32 %v4081, %v5069
  %5071 = vmatmul.f32.gmra.mxu0 %v3095
  %v5072 = vpop.f32.mrf.mxu0
  %v5073 = vadd.f32 %v4084, %v5072
  %5074 = vmatmul.f32.gmra.mxu0 %v3098
  %v5075 = vpop.f32.mrf.mxu0
  %v5076 = vadd.f32 %v4087, %v5075
  %5077 = vmatmul.f32.gmra.mxu0 %v3101
  %v5078 = vpop.f32.mrf.mxu0
  %v5079 = vadd.f32 %v4090, %v5078
  %5080 = vmatmul.f32.gmra.mxu0 %v3104
  %v5081 = vpop.f32.mrf.mxu0
  %v5082 = vadd.f32 %v4093, %v5081
  %5083 = vmatmul.f32.gmra.mxu0 %v3107
  %v5084 = vpop.f32.mrf.mxu0
  %v5085 = vadd.f32 %v4096, %v5084
  %5086 = vmatmul.f32.gmra.mxu0 %v3110
  %v5087 = vpop.f32.mrf.mxu0
  %v5088 = vadd.f32 %v4099, %v5087
  %5089 = vmatmul.f32.gmra.mxu0 %v3113
  %v5090 = vpop.f32.mrf.mxu0
  %v5091 = vadd.f32 %v4102, %v5090
  %5092 = vmatmul.f32.gmra.mxu0 %v3116
  %v5093 = vpop.f32.mrf.mxu0
  %v5094 = vadd.f32 %v4105, %v5093
  %5095 = vmatmul.f32.gmra.mxu0 %v3119
  %v5096 = vpop.f32.mrf.mxu0
  %v5097 = vadd.f32 %v4108, %v5096
  %5098 = vmatmul.f32.gmra.mxu0 %v3122
  %v5099 = vpop.f32.mrf.mxu0
  %v5100 = vadd.f32 %v4111, %v5099
  %5101 = vmatmul.f32.gmra.mxu0 %v3125
  %v5102 = vpop.f32.mrf.mxu0
  %v5103 = vadd.f32 %v4114, %v5102
  %5104 = vmatmul.f32.gmra.mxu0 %v3128
  %v5105 = vpop.f32.mrf.mxu0
  %v5106 = vadd.f32 %v4117, %v5105
  %5107 = vmatmul.f32.gmra.mxu0 %v3131
  %v5108 = vpop.f32.mrf.mxu0
  %v5109 = vadd.f32 %v4120, %v5108
  %5110 = vmatmul.f32.gmra.mxu0 %v3134
  %v5111 = vpop.f32.mrf.mxu0
  %v5112 = vadd.f32 %v4123, %v5111
  %5113 = vmatmul.f32.gmra.mxu0 %v3137
  %v5114 = vpop.f32.mrf.mxu0
  %v5115 = vadd.f32 %v4126, %v5114
  %5116 = vmatmul.f32.gmra.mxu0 %v3140
  %v5117 = vpop.f32.mrf.mxu0
  %v5118 = vadd.f32 %v4129, %v5117
  %5119 = vmatmul.f32.gmra.mxu0 %v3143
  %v5120 = vpop.f32.mrf.mxu0
  %v5121 = vadd.f32 %v4132, %v5120
  %5122 = vmatmul.f32.gmra.mxu0 %v3146
  %v5123 = vpop.f32.mrf.mxu0
  %v5124 = vadd.f32 %v4135, %v5123
  %5125 = vmatmul.f32.gmra.mxu0 %v3149
  %v5126 = vpop.f32.mrf.mxu0
  %v5127 = vadd.f32 %v4138, %v5126
  %5128 = vmatmul.f32.gmra.mxu0 %v3152
  %v5129 = vpop.f32.mrf.mxu0
  %v5130 = vadd.f32 %v4141, %v5129
  %5131 = vmatmul.f32.gmra.mxu0 %v3155
  %v5132 = vpop.f32.mrf.mxu0
  %v5133 = vadd.f32 %v4144, %v5132
  %5134 = vmatmul.f32.gmra.mxu0 %v3158
  %v5135 = vpop.f32.mrf.mxu0
  %v5136 = vadd.f32 %v4147, %v5135
  %5137 = vmatmul.f32.gmra.mxu0 %v3161
  %v5138 = vpop.f32.mrf.mxu0
  %v5139 = vadd.f32 %v4150, %v5138
  %5140 = vmatmul.f32.gmra.mxu0 %v3164
  %v5141 = vpop.f32.mrf.mxu0
  %v5142 = vadd.f32 %v4153, %v5141
  %5143 = vmatmul.f32.gmra.mxu0 %v3167
  %v5144 = vpop.f32.mrf.mxu0
  %v5145 = vadd.f32 %v4156, %v5144
  %5146 = vmatmul.f32.gmra.mxu0 %v3170
  %v5147 = vpop.f32.mrf.mxu0
  %v5148 = vadd.f32 %v4159, %v5147
  %5149 = vmatmul.f32.gmra.mxu0 %v3173
  %v5150 = vpop.f32.mrf.mxu0
  %v5151 = vadd.f32 %v4162, %v5150
  %5152 = vmatmul.f32.gmra.mxu0 %v3176
  %v5153 = vpop.f32.mrf.mxu0
  %v5154 = vadd.f32 %v4165, %v5153
  %5155 = vmatmul.f32.gmra.mxu0 %v3179
  %v5156 = vpop.f32.mrf.mxu0
  %v5157 = vadd.f32 %v4168, %v5156
  %5158 = vmatmul.f32.gmra.mxu0 %v3182
  %v5159 = vpop.f32.mrf.mxu0
  %v5160 = vadd.f32 %v4171, %v5159
  %5161 = vmatmul.f32.gmra.mxu0 %v3185
  %v5162 = vpop.f32.mrf.mxu0
  %v5163 = vadd.f32 %v4174, %v5162
  %5164 = vmatmul.f32.gmra.mxu0 %v3188
  %v5165 = vpop.f32.mrf.mxu0
  %v5166 = vadd.f32 %v4177, %v5165
  %5167 = vmatmul.f32.gmra.mxu0 %v3191
  %v5168 = vpop.f32.mrf.mxu0
  %v5169 = vadd.f32 %v4180, %v5168
  %5170 = vmatmul.f32.gmra.mxu0 %v3194
  %v5171 = vpop.f32.mrf.mxu0
  %v5172 = vadd.f32 %v4183, %v5171
  %5173 = vmatmul.f32.gmra.mxu0 %v3197
  %v5174 = vpop.f32.mrf.mxu0
  %v5175 = vadd.f32 %v4186, %v5174
  %5176 = vdwg.mxu0
  %v5177 = vld [vmem:[%s8] sm:$0xff]
  %v5178 = vld [vmem:[%s8 + $0x8] sm:$0x3]
  %s5179 = scalar_lea.vmem %s8, 16
  %v5180 = vld [vmem:[%s5179] sm:$0xff]
  %v5181 = vld [vmem:[%s5179 + $0x8] sm:$0x3]
  %v5183 = vsel %vm959, %v4314, 0
  %v5186 = vsel %vm959, %v4317, 0
  %v5189 = vsel %vm959, %v4320, 0
  %v5192 = vsel %vm959, %v4323, 0
  %v5195 = vsel %vm959, %v4326, 0
  %v5198 = vsel %vm959, %v4329, 0
  %v5201 = vsel %vm959, %v4332, 0
  %v5204 = vsel %vm959, %v4335, 0
  %v5207 = vsel %vm959, %v4338, 0
  %v5210 = vsel %vm959, %v4341, 0
  %v5213 = vsel %vm959, %v4344, 0
  %v5216 = vsel %vm959, %v4347, 0
  %v5219 = vsel %vm959, %v4350, 0
  %v5222 = vsel %vm959, %v4353, 0
  %v5225 = vsel %vm959, %v4356, 0
  %v5228 = vsel %vm959, %v4359, 0
  %v5231 = vsel %vm959, %v4362, 0
  %v5234 = vsel %vm959, %v4365, 0
  %v5237 = vsel %vm959, %v4368, 0
  %v5240 = vsel %vm959, %v4371, 0
  %v5243 = vsel %vm959, %v4374, 0
  %v5246 = vsel %vm959, %v4377, 0
  %v5249 = vsel %vm959, %v4380, 0
  %v5252 = vsel %vm959, %v4383, 0
  %v5255 = vsel %vm959, %v4386, 0
  %v5258 = vsel %vm959, %v4389, 0
  %v5261 = vsel %vm959, %v4392, 0
  %v5264 = vsel %vm959, %v4395, 0
  %v5267 = vsel %vm959, %v4398, 0
  %v5270 = vsel %vm959, %v4401, 0
  %v5273 = vsel %vm959, %v4404, 0
  %v5276 = vsel %vm959, %v4407, 0
  %v5279 = vsel %vm959, %v4410, 0
  %v5282 = vsel %vm959, %v4413, 0
  %v5285 = vsel %vm959, %v4416, 0
  %v5288 = vsel %vm959, %v4419, 0
  %v5291 = vsel %vm963, %v5181, 0
  %5293 = vmatpush.msra.mxu0 0.0
  %5294 = vmatpush.msra.mxu0 0.0
  %5295 = vmatpush.msra.mxu0 0.0
  %5296 = vmatpush.msra.mxu0 0.0
  %5297 = vmatpush.msra.mxu0 0.0
  %5298 = vmatpush.msra.mxu0 0.0
  %5299 = vmatpush.msra.mxu0 0.0
  %5300 = vmatpush.msra.mxu0 0.0
  %5301 = vmatpush.msra.mxu0 0.0
  %5302 = vmatpush.msra.mxu0 0.0
  %5303 = vmatpush.msra.mxu0 0.0
  %5304 = vmatpush.msra.mxu0 0.0
  %5305 = vmatpush.msra.mxu0 0.0
  %5306 = vmatpush.msra.mxu0 0.0
  %5307 = vmatpush.msra.mxu0 %v5291
  %5308 = vmatpush.msra.mxu0 %v5180
  %5309 = vmatmul.f32.gmra.mxu0 %v5183
  %v5310 = vpop.f32.mrf.mxu0
  %v5311 = vadd.f32 0.0, %v5310
  %5312 = vmatmul.f32.gmra.mxu0 %v5186
  %v5313 = vpop.f32.mrf.mxu0
  %v5314 = vadd.f32 0.0, %v5313
  %5315 = vmatmul.f32.gmra.mxu0 %v5189
  %v5316 = vpop.f32.mrf.mxu0
  %v5317 = vadd.f32 0.0, %v5316
  %5318 = vmatmul.f32.gmra.mxu0 %v5192
  %v5319 = vpop.f32.mrf.mxu0
  %v5320 = vadd.f32 0.0, %v5319
  %5321 = vmatmul.f32.gmra.mxu0 %v5195
  %v5322 = vpop.f32.mrf.mxu0
  %v5323 = vadd.f32 0.0, %v5322
  %5324 = vmatmul.f32.gmra.mxu0 %v5198
  %v5325 = vpop.f32.mrf.mxu0
  %v5326 = vadd.f32 0.0, %v5325
  %5327 = vmatmul.f32.gmra.mxu0 %v5201
  %v5328 = vpop.f32.mrf.mxu0
  %v5329 = vadd.f32 0.0, %v5328
  %5330 = vmatmul.f32.gmra.mxu0 %v5204
  %v5331 = vpop.f32.mrf.mxu0
  %v5332 = vadd.f32 0.0, %v5331
  %5333 = vmatmul.f32.gmra.mxu0 %v5207
  %v5334 = vpop.f32.mrf.mxu0
  %v5335 = vadd.f32 0.0, %v5334
  %5336 = vmatmul.f32.gmra.mxu0 %v5210
  %v5337 = vpop.f32.mrf.mxu0
  %v5338 = vadd.f32 0.0, %v5337
  %5339 = vmatmul.f32.gmra.mxu0 %v5213
  %v5340 = vpop.f32.mrf.mxu0
  %v5341 = vadd.f32 0.0, %v5340
  %5342 = vmatmul.f32.gmra.mxu0 %v5216
  %v5343 = vpop.f32.mrf.mxu0
  %v5344 = vadd.f32 0.0, %v5343
  %5345 = vmatmul.f32.gmra.mxu0 %v5219
  %v5346 = vpop.f32.mrf.mxu0
  %v5347 = vadd.f32 0.0, %v5346
  %5348 = vmatmul.f32.gmra.mxu0 %v5222
  %v5349 = vpop.f32.mrf.mxu0
  %v5350 = vadd.f32 0.0, %v5349
  %5351 = vmatmul.f32.gmra.mxu0 %v5225
  %v5352 = vpop.f32.mrf.mxu0
  %v5353 = vadd.f32 0.0, %v5352
  %5354 = vmatmul.f32.gmra.mxu0 %v5228
  %v5355 = vpop.f32.mrf.mxu0
  %v5356 = vadd.f32 0.0, %v5355
  %5357 = vmatmul.f32.gmra.mxu0 %v5231
  %v5358 = vpop.f32.mrf.mxu0
  %v5359 = vadd.f32 0.0, %v5358
  %5360 = vmatmul.f32.gmra.mxu0 %v5234
  %v5361 = vpop.f32.mrf.mxu0
  %v5362 = vadd.f32 0.0, %v5361
  %5363 = vmatmul.f32.gmra.mxu0 %v5237
  %v5364 = vpop.f32.mrf.mxu0
  %v5365 = vadd.f32 0.0, %v5364
  %5366 = vmatmul.f32.gmra.mxu0 %v5240
  %v5367 = vpop.f32.mrf.mxu0
  %v5368 = vadd.f32 0.0, %v5367
  %5369 = vmatmul.f32.gmra.mxu0 %v5243
  %v5370 = vpop.f32.mrf.mxu0
  %v5371 = vadd.f32 0.0, %v5370
  %5372 = vmatmul.f32.gmra.mxu0 %v5246
  %v5373 = vpop.f32.mrf.mxu0
  %v5374 = vadd.f32 0.0, %v5373
  %5375 = vmatmul.f32.gmra.mxu0 %v5249
  %v5376 = vpop.f32.mrf.mxu0
  %v5377 = vadd.f32 0.0, %v5376
  %5378 = vmatmul.f32.gmra.mxu0 %v5252
  %v5379 = vpop.f32.mrf.mxu0
  %v5380 = vadd.f32 0.0, %v5379
  %5381 = vmatmul.f32.gmra.mxu0 %v5255
  %v5382 = vpop.f32.mrf.mxu0
  %v5383 = vadd.f32 0.0, %v5382
  %5384 = vmatmul.f32.gmra.mxu0 %v5258
  %v5385 = vpop.f32.mrf.mxu0
  %v5386 = vadd.f32 0.0, %v5385
  %5387 = vmatmul.f32.gmra.mxu0 %v5261
  %v5388 = vpop.f32.mrf.mxu0
  %v5389 = vadd.f32 0.0, %v5388
  %5390 = vmatmul.f32.gmra.mxu0 %v5264
  %v5391 = vpop.f32.mrf.mxu0
  %v5392 = vadd.f32 0.0, %v5391
  %5393 = vmatmul.f32.gmra.mxu0 %v5267
  %v5394 = vpop.f32.mrf.mxu0
  %v5395 = vadd.f32 0.0, %v5394
  %5396 = vmatmul.f32.gmra.mxu0 %v5270
  %v5397 = vpop.f32.mrf.mxu0
  %v5398 = vadd.f32 0.0, %v5397
  %5399 = vmatmul.f32.gmra.mxu0 %v5273
  %v5400 = vpop.f32.mrf.mxu0
  %v5401 = vadd.f32 0.0, %v5400
  %5402 = vmatmul.f32.gmra.mxu0 %v5276
  %v5403 = vpop.f32.mrf.mxu0
  %v5404 = vadd.f32 0.0, %v5403
  %5405 = vmatmul.f32.gmra.mxu0 %v5279
  %v5406 = vpop.f32.mrf.mxu0
  %v5407 = vadd.f32 0.0, %v5406
  %5408 = vmatmul.f32.gmra.mxu0 %v5282
  %v5409 = vpop.f32.mrf.mxu0
  %v5410 = vadd.f32 0.0, %v5409
  %5411 = vmatmul.f32.gmra.mxu0 %v5285
  %v5412 = vpop.f32.mrf.mxu0
  %v5413 = vadd.f32 0.0, %v5412
  %5414 = vmatmul.f32.gmra.mxu0 %v5288
  %v5415 = vpop.f32.mrf.mxu0
  %v5416 = vadd.f32 0.0, %v5415
  %5417 = vdwg.mxu0
  %v5419 = vsel %vm959, %v4206, 0
  %v5422 = vsel %vm959, %v4209, 0
  %v5425 = vsel %vm959, %v4212, 0
  %v5428 = vsel %vm959, %v4215, 0
  %v5431 = vsel %vm959, %v4218, 0
  %v5434 = vsel %vm959, %v4221, 0
  %v5437 = vsel %vm959, %v4224, 0
  %v5440 = vsel %vm959, %v4227, 0
  %v5443 = vsel %vm959, %v4230, 0
  %v5446 = vsel %vm959, %v4233, 0
  %v5449 = vsel %vm959, %v4236, 0
  %v5452 = vsel %vm959, %v4239, 0
  %v5455 = vsel %vm959, %v4242, 0
  %v5458 = vsel %vm959, %v4245, 0
  %v5461 = vsel %vm959, %v4248, 0
  %v5464 = vsel %vm959, %v4251, 0
  %v5467 = vsel %vm959, %v4254, 0
  %v5470 = vsel %vm959, %v4257, 0
  %v5473 = vsel %vm959, %v4260, 0
  %v5476 = vsel %vm959, %v4263, 0
  %v5479 = vsel %vm959, %v4266, 0
  %v5482 = vsel %vm959, %v4269, 0
  %v5485 = vsel %vm959, %v4272, 0
  %v5488 = vsel %vm959, %v4275, 0
  %v5491 = vsel %vm959, %v4278, 0
  %v5494 = vsel %vm959, %v4281, 0
  %v5497 = vsel %vm959, %v4284, 0
  %v5500 = vsel %vm959, %v4287, 0
  %v5503 = vsel %vm959, %v4290, 0
  %v5506 = vsel %vm959, %v4293, 0
  %v5509 = vsel %vm959, %v4296, 0
  %v5512 = vsel %vm959, %v4299, 0
  %v5515 = vsel %vm959, %v4302, 0
  %v5518 = vsel %vm959, %v4305, 0
  %v5521 = vsel %vm959, %v4308, 0
  %v5524 = vsel %vm959, %v4311, 0
  %v5527 = vsel %vm963, %v5178, 0
  %5529 = vmatpush.msra.mxu0 0.0
  %5530 = vmatpush.msra.mxu0 0.0
  %5531 = vmatpush.msra.mxu0 0.0
  %5532 = vmatpush.msra.mxu0 0.0
  %5533 = vmatpush.msra.mxu0 0.0
  %5534 = vmatpush.msra.mxu0 0.0
  %5535 = vmatpush.msra.mxu0 0.0
  %5536 = vmatpush.msra.mxu0 0.0
  %5537 = vmatpush.msra.mxu0 0.0
  %5538 = vmatpush.msra.mxu0 0.0
  %5539 = vmatpush.msra.mxu0 0.0
  %5540 = vmatpush.msra.mxu0 0.0
  %5541 = vmatpush.msra.mxu0 0.0
  %5542 = vmatpush.msra.mxu0 0.0
  %5543 = vmatpush.msra.mxu0 %v5527
  %5544 = vmatpush.msra.mxu0 %v5177
  %5545 = vmatmul.f32.gmra.mxu0 %v5419
  %v5546 = vpop.f32.mrf.mxu0
  %v5547 = vadd.f32 %v5311, %v5546
  %5548 = vmatmul.f32.gmra.mxu0 %v5422
  %v5549 = vpop.f32.mrf.mxu0
  %v5550 = vadd.f32 %v5314, %v5549
  %5551 = vmatmul.f32.gmra.mxu0 %v5425
  %v5552 = vpop.f32.mrf.mxu0
  %v5553 = vadd.f32 %v5317, %v5552
  %5554 = vmatmul.f32.gmra.mxu0 %v5428
  %v5555 = vpop.f32.mrf.mxu0
  %v5556 = vadd.f32 %v5320, %v5555
  %5557 = vmatmul.f32.gmra.mxu0 %v5431
  %v5558 = vpop.f32.mrf.mxu0
  %v5559 = vadd.f32 %v5323, %v5558
  %5560 = vmatmul.f32.gmra.mxu0 %v5434
  %v5561 = vpop.f32.mrf.mxu0
  %v5562 = vadd.f32 %v5326, %v5561
  %5563 = vmatmul.f32.gmra.mxu0 %v5437
  %v5564 = vpop.f32.mrf.mxu0
  %v5565 = vadd.f32 %v5329, %v5564
  %5566 = vmatmul.f32.gmra.mxu0 %v5440
  %v5567 = vpop.f32.mrf.mxu0
  %v5568 = vadd.f32 %v5332, %v5567
  %5569 = vmatmul.f32.gmra.mxu0 %v5443
  %v5570 = vpop.f32.mrf.mxu0
  %v5571 = vadd.f32 %v5335, %v5570
  %5572 = vmatmul.f32.gmra.mxu0 %v5446
  %v5573 = vpop.f32.mrf.mxu0
  %v5574 = vadd.f32 %v5338, %v5573
  %5575 = vmatmul.f32.gmra.mxu0 %v5449
  %v5576 = vpop.f32.mrf.mxu0
  %v5577 = vadd.f32 %v5341, %v5576
  %5578 = vmatmul.f32.gmra.mxu0 %v5452
  %v5579 = vpop.f32.mrf.mxu0
  %v5580 = vadd.f32 %v5344, %v5579
  %5581 = vmatmul.f32.gmra.mxu0 %v5455
  %v5582 = vpop.f32.mrf.mxu0
  %v5583 = vadd.f32 %v5347, %v5582
  %5584 = vmatmul.f32.gmra.mxu0 %v5458
  %v5585 = vpop.f32.mrf.mxu0
  %v5586 = vadd.f32 %v5350, %v5585
  %5587 = vmatmul.f32.gmra.mxu0 %v5461
  %v5588 = vpop.f32.mrf.mxu0
  %v5589 = vadd.f32 %v5353, %v5588
  %5590 = vmatmul.f32.gmra.mxu0 %v5464
  %v5591 = vpop.f32.mrf.mxu0
  %v5592 = vadd.f32 %v5356, %v5591
  %5593 = vmatmul.f32.gmra.mxu0 %v5467
  %v5594 = vpop.f32.mrf.mxu0
  %v5595 = vadd.f32 %v5359, %v5594
  %5596 = vmatmul.f32.gmra.mxu0 %v5470
  %v5597 = vpop.f32.mrf.mxu0
  %v5598 = vadd.f32 %v5362, %v5597
  %5599 = vmatmul.f32.gmra.mxu0 %v5473
  %v5600 = vpop.f32.mrf.mxu0
  %v5601 = vadd.f32 %v5365, %v5600
  %5602 = vmatmul.f32.gmra.mxu0 %v5476
  %v5603 = vpop.f32.mrf.mxu0
  %v5604 = vadd.f32 %v5368, %v5603
  %5605 = vmatmul.f32.gmra.mxu0 %v5479
  %v5606 = vpop.f32.mrf.mxu0
  %v5607 = vadd.f32 %v5371, %v5606
  %5608 = vmatmul.f32.gmra.mxu0 %v5482
  %v5609 = vpop.f32.mrf.mxu0
  %v5610 = vadd.f32 %v5374, %v5609
  %5611 = vmatmul.f32.gmra.mxu0 %v5485
  %v5612 = vpop.f32.mrf.mxu0
  %v5613 = vadd.f32 %v5377, %v5612
  %5614 = vmatmul.f32.gmra.mxu0 %v5488
  %v5615 = vpop.f32.mrf.mxu0
  %v5616 = vadd.f32 %v5380, %v5615
  %5617 = vmatmul.f32.gmra.mxu0 %v5491
  %v5618 = vpop.f32.mrf.mxu0
  %v5619 = vadd.f32 %v5383, %v5618
  %5620 = vmatmul.f32.gmra.mxu0 %v5494
  %v5621 = vpop.f32.mrf.mxu0
  %v5622 = vadd.f32 %v5386, %v5621
  %5623 = vmatmul.f32.gmra.mxu0 %v5497
  %v5624 = vpop.f32.mrf.mxu0
  %v5625 = vadd.f32 %v5389, %v5624
  %5626 = vmatmul.f32.gmra.mxu0 %v5500
  %v5627 = vpop.f32.mrf.mxu0
  %v5628 = vadd.f32 %v5392, %v5627
  %5629 = vmatmul.f32.gmra.mxu0 %v5503
  %v5630 = vpop.f32.mrf.mxu0
  %v5631 = vadd.f32 %v5395, %v5630
  %5632 = vmatmul.f32.gmra.mxu0 %v5506
  %v5633 = vpop.f32.mrf.mxu0
  %v5634 = vadd.f32 %v5398, %v5633
  %5635 = vmatmul.f32.gmra.mxu0 %v5509
  %v5636 = vpop.f32.mrf.mxu0
  %v5637 = vadd.f32 %v5401, %v5636
  %5638 = vmatmul.f32.gmra.mxu0 %v5512
  %v5639 = vpop.f32.mrf.mxu0
  %v5640 = vadd.f32 %v5404, %v5639
  %5641 = vmatmul.f32.gmra.mxu0 %v5515
  %v5642 = vpop.f32.mrf.mxu0
  %v5643 = vadd.f32 %v5407, %v5642
  %5644 = vmatmul.f32.gmra.mxu0 %v5518
  %v5645 = vpop.f32.mrf.mxu0
  %v5646 = vadd.f32 %v5410, %v5645
  %5647 = vmatmul.f32.gmra.mxu0 %v5521
  %v5648 = vpop.f32.mrf.mxu0
  %v5649 = vadd.f32 %v5413, %v5648
  %5650 = vmatmul.f32.gmra.mxu0 %v5524
  %v5651 = vpop.f32.mrf.mxu0
  %v5652 = vadd.f32 %v5416, %v5651
  %5653 = vdwg.mxu0
  %s5654 = scalar_lea.vmem %s8, 32
  %v5655 = vld [vmem:[%s5654] sm:$0xff]
  %v5656 = vld [vmem:[%s5654 + $0x8] sm:$0x3]
  %v5658 = vsel %vm959, %v4422, 0
  %v5661 = vsel %vm959, %v4425, 0
  %v5664 = vsel %vm959, %v4428, 0
  %v5667 = vsel %vm959, %v4431, 0
  %v5670 = vsel %vm959, %v4434, 0
  %v5673 = vsel %vm959, %v4437, 0
  %v5676 = vsel %vm959, %v4440, 0
  %v5679 = vsel %vm959, %v4443, 0
  %v5682 = vsel %vm959, %v4446, 0
  %v5685 = vsel %vm959, %v4449, 0
  %v5688 = vsel %vm959, %v4452, 0
  %v5691 = vsel %vm959, %v4455, 0
  %v5694 = vsel %vm959, %v4458, 0
  %v5697 = vsel %vm959, %v4461, 0
  %v5700 = vsel %vm959, %v4464, 0
  %v5703 = vsel %vm959, %v4467, 0
  %v5706 = vsel %vm959, %v4470, 0
  %v5709 = vsel %vm959, %v4473, 0
  %v5712 = vsel %vm959, %v4476, 0
  %v5715 = vsel %vm959, %v4479, 0
  %v5718 = vsel %vm959, %v4482, 0
  %v5721 = vsel %vm959, %v4485, 0
  %v5724 = vsel %vm959, %v4488, 0
  %v5727 = vsel %vm959, %v4491, 0
  %v5730 = vsel %vm959, %v4494, 0
  %v5733 = vsel %vm959, %v4497, 0
  %v5736 = vsel %vm959, %v4500, 0
  %v5739 = vsel %vm959, %v4503, 0
  %v5742 = vsel %vm959, %v4506, 0
  %v5745 = vsel %vm959, %v4509, 0
  %v5748 = vsel %vm959, %v4512, 0
  %v5751 = vsel %vm959, %v4515, 0
  %v5754 = vsel %vm959, %v4518, 0
  %v5757 = vsel %vm959, %v4521, 0
  %v5760 = vsel %vm959, %v4524, 0
  %v5763 = vsel %vm959, %v4527, 0
  %v5766 = vsel %vm963, %v5656, 0
  %5768 = vmatpush.msra.mxu0 0.0
  %5769 = vmatpush.msra.mxu0 0.0
  %5770 = vmatpush.msra.mxu0 0.0
  %5771 = vmatpush.msra.mxu0 0.0
  %5772 = vmatpush.msra.mxu0 0.0
  %5773 = vmatpush.msra.mxu0 0.0
  %5774 = vmatpush.msra.mxu0 0.0
  %5775 = vmatpush.msra.mxu0 0.0
  %5776 = vmatpush.msra.mxu0 0.0
  %5777 = vmatpush.msra.mxu0 0.0
  %5778 = vmatpush.msra.mxu0 0.0
  %5779 = vmatpush.msra.mxu0 0.0
  %5780 = vmatpush.msra.mxu0 0.0
  %5781 = vmatpush.msra.mxu0 0.0
  %5782 = vmatpush.msra.mxu0 %v5766
  %5783 = vmatpush.msra.mxu0 %v5655
  %5784 = vmatmul.f32.gmra.mxu0 %v5658
  %v5785 = vpop.f32.mrf.mxu0
  %v5786 = vadd.f32 0.0, %v5785
  %5787 = vmatmul.f32.gmra.mxu0 %v5661
  %v5788 = vpop.f32.mrf.mxu0
  %v5789 = vadd.f32 0.0, %v5788
  %5790 = vmatmul.f32.gmra.mxu0 %v5664
  %v5791 = vpop.f32.mrf.mxu0
  %v5792 = vadd.f32 0.0, %v5791
  %5793 = vmatmul.f32.gmra.mxu0 %v5667
  %v5794 = vpop.f32.mrf.mxu0
  %v5795 = vadd.f32 0.0, %v5794
  %5796 = vmatmul.f32.gmra.mxu0 %v5670
  %v5797 = vpop.f32.mrf.mxu0
  %v5798 = vadd.f32 0.0, %v5797
  %5799 = vmatmul.f32.gmra.mxu0 %v5673
  %v5800 = vpop.f32.mrf.mxu0
  %v5801 = vadd.f32 0.0, %v5800
  %5802 = vmatmul.f32.gmra.mxu0 %v5676
  %v5803 = vpop.f32.mrf.mxu0
  %v5804 = vadd.f32 0.0, %v5803
  %5805 = vmatmul.f32.gmra.mxu0 %v5679
  %v5806 = vpop.f32.mrf.mxu0
  %v5807 = vadd.f32 0.0, %v5806
  %5808 = vmatmul.f32.gmra.mxu0 %v5682
  %v5809 = vpop.f32.mrf.mxu0
  %v5810 = vadd.f32 0.0, %v5809
  %5811 = vmatmul.f32.gmra.mxu0 %v5685
  %v5812 = vpop.f32.mrf.mxu0
  %v5813 = vadd.f32 0.0, %v5812
  %5814 = vmatmul.f32.gmra.mxu0 %v5688
  %v5815 = vpop.f32.mrf.mxu0
  %v5816 = vadd.f32 0.0, %v5815
  %5817 = vmatmul.f32.gmra.mxu0 %v5691
  %v5818 = vpop.f32.mrf.mxu0
  %v5819 = vadd.f32 0.0, %v5818
  %5820 = vmatmul.f32.gmra.mxu0 %v5694
  %v5821 = vpop.f32.mrf.mxu0
  %v5822 = vadd.f32 0.0, %v5821
  %5823 = vmatmul.f32.gmra.mxu0 %v5697
  %v5824 = vpop.f32.mrf.mxu0
  %v5825 = vadd.f32 0.0, %v5824
  %5826 = vmatmul.f32.gmra.mxu0 %v5700
  %v5827 = vpop.f32.mrf.mxu0
  %v5828 = vadd.f32 0.0, %v5827
  %5829 = vmatmul.f32.gmra.mxu0 %v5703
  %v5830 = vpop.f32.mrf.mxu0
  %v5831 = vadd.f32 0.0, %v5830
  %5832 = vmatmul.f32.gmra.mxu0 %v5706
  %v5833 = vpop.f32.mrf.mxu0
  %v5834 = vadd.f32 0.0, %v5833
  %5835 = vmatmul.f32.gmra.mxu0 %v5709
  %v5836 = vpop.f32.mrf.mxu0
  %v5837 = vadd.f32 0.0, %v5836
  %5838 = vmatmul.f32.gmra.mxu0 %v5712
  %v5839 = vpop.f32.mrf.mxu0
  %v5840 = vadd.f32 0.0, %v5839
  %5841 = vmatmul.f32.gmra.mxu0 %v5715
  %v5842 = vpop.f32.mrf.mxu0
  %v5843 = vadd.f32 0.0, %v5842
  %5844 = vmatmul.f32.gmra.mxu0 %v5718
  %v5845 = vpop.f32.mrf.mxu0
  %v5846 = vadd.f32 0.0, %v5845
  %5847 = vmatmul.f32.gmra.mxu0 %v5721
  %v5848 = vpop.f32.mrf.mxu0
  %v5849 = vadd.f32 0.0, %v5848
  %5850 = vmatmul.f32.gmra.mxu0 %v5724
  %v5851 = vpop.f32.mrf.mxu0
  %v5852 = vadd.f32 0.0, %v5851
  %5853 = vmatmul.f32.gmra.mxu0 %v5727
  %v5854 = vpop.f32.mrf.mxu0
  %v5855 = vadd.f32 0.0, %v5854
  %5856 = vmatmul.f32.gmra.mxu0 %v5730
  %v5857 = vpop.f32.mrf.mxu0
  %v5858 = vadd.f32 0.0, %v5857
  %5859 = vmatmul.f32.gmra.mxu0 %v5733
  %v5860 = vpop.f32.mrf.mxu0
  %v5861 = vadd.f32 0.0, %v5860
  %5862 = vmatmul.f32.gmra.mxu0 %v5736
  %v5863 = vpop.f32.mrf.mxu0
  %v5864 = vadd.f32 0.0, %v5863
  %5865 = vmatmul.f32.gmra.mxu0 %v5739
  %v5866 = vpop.f32.mrf.mxu0
  %v5867 = vadd.f32 0.0, %v5866
  %5868 = vmatmul.f32.gmra.mxu0 %v5742
  %v5869 = vpop.f32.mrf.mxu0
  %v5870 = vadd.f32 0.0, %v5869
  %5871 = vmatmul.f32.gmra.mxu0 %v5745
  %v5872 = vpop.f32.mrf.mxu0
  %v5873 = vadd.f32 0.0, %v5872
  %5874 = vmatmul.f32.gmra.mxu0 %v5748
  %v5875 = vpop.f32.mrf.mxu0
  %v5876 = vadd.f32 0.0, %v5875
  %5877 = vmatmul.f32.gmra.mxu0 %v5751
  %v5878 = vpop.f32.mrf.mxu0
  %v5879 = vadd.f32 0.0, %v5878
  %5880 = vmatmul.f32.gmra.mxu0 %v5754
  %v5881 = vpop.f32.mrf.mxu0
  %v5882 = vadd.f32 0.0, %v5881
  %5883 = vmatmul.f32.gmra.mxu0 %v5757
  %v5884 = vpop.f32.mrf.mxu0
  %v5885 = vadd.f32 0.0, %v5884
  %5886 = vmatmul.f32.gmra.mxu0 %v5760
  %v5887 = vpop.f32.mrf.mxu0
  %v5888 = vadd.f32 0.0, %v5887
  %5889 = vmatmul.f32.gmra.mxu0 %v5763
  %v5890 = vpop.f32.mrf.mxu0
  %v5891 = vadd.f32 0.0, %v5890
  %5892 = vdwg.mxu0
  %v5893 = vadd.f32 %v5547, %v5786
  %v5894 = vadd.f32 %v5550, %v5789
  %v5895 = vadd.f32 %v5553, %v5792
  %v5896 = vadd.f32 %v5556, %v5795
  %v5897 = vadd.f32 %v5559, %v5798
  %v5898 = vadd.f32 %v5562, %v5801
  %v5899 = vadd.f32 %v5565, %v5804
  %v5900 = vadd.f32 %v5568, %v5807
  %v5901 = vadd.f32 %v5571, %v5810
  %v5902 = vadd.f32 %v5574, %v5813
  %v5903 = vadd.f32 %v5577, %v5816
  %v5904 = vadd.f32 %v5580, %v5819
  %v5905 = vadd.f32 %v5583, %v5822
  %v5906 = vadd.f32 %v5586, %v5825
  %v5907 = vadd.f32 %v5589, %v5828
  %v5908 = vadd.f32 %v5592, %v5831
  %v5909 = vadd.f32 %v5595, %v5834
  %v5910 = vadd.f32 %v5598, %v5837
  %v5911 = vadd.f32 %v5601, %v5840
  %v5912 = vadd.f32 %v5604, %v5843
  %v5913 = vadd.f32 %v5607, %v5846
  %v5914 = vadd.f32 %v5610, %v5849
  %v5915 = vadd.f32 %v5613, %v5852
  %v5916 = vadd.f32 %v5616, %v5855
  %v5917 = vadd.f32 %v5619, %v5858
  %v5918 = vadd.f32 %v5622, %v5861
  %v5919 = vadd.f32 %v5625, %v5864
  %v5920 = vadd.f32 %v5628, %v5867
  %v5921 = vadd.f32 %v5631, %v5870
  %v5922 = vadd.f32 %v5634, %v5873
  %v5923 = vadd.f32 %v5637, %v5876
  %v5924 = vadd.f32 %v5640, %v5879
  %v5925 = vadd.f32 %v5643, %v5882
  %v5926 = vadd.f32 %v5646, %v5885
  %v5927 = vadd.f32 %v5649, %v5888
  %v5928 = vadd.f32 %v5652, %v5891
  %s5929 = scalar_lea.vmem %s8, 48
  %v5930 = vld [vmem:[%s5929] sm:$0xff]
  %v5931 = vld [vmem:[%s5929 + $0x8] sm:$0x3]
  %v5933 = vsel %vm959, %v4530, 0
  %v5936 = vsel %vm959, %v4533, 0
  %v5939 = vsel %vm959, %v4536, 0
  %v5942 = vsel %vm959, %v4539, 0
  %v5945 = vsel %vm959, %v4542, 0
  %v5948 = vsel %vm959, %v4545, 0
  %v5951 = vsel %vm959, %v4548, 0
  %v5954 = vsel %vm959, %v4551, 0
  %v5957 = vsel %vm959, %v4554, 0
  %v5960 = vsel %vm959, %v4557, 0
  %v5963 = vsel %vm959, %v4560, 0
  %v5966 = vsel %vm959, %v4563, 0
  %v5969 = vsel %vm959, %v4566, 0
  %v5972 = vsel %vm959, %v4569, 0
  %v5975 = vsel %vm959, %v4572, 0
  %v5978 = vsel %vm959, %v4575, 0
  %v5981 = vsel %vm959, %v4578, 0
  %v5984 = vsel %vm959, %v4581, 0
  %v5987 = vsel %vm959, %v4584, 0
  %v5990 = vsel %vm959, %v4587, 0
  %v5993 = vsel %vm959, %v4590, 0
  %v5996 = vsel %vm959, %v4593, 0
  %v5999 = vsel %vm959, %v4596, 0
  %v6002 = vsel %vm959, %v4599, 0
  %v6005 = vsel %vm959, %v4602, 0
  %v6008 = vsel %vm959, %v4605, 0
  %v6011 = vsel %vm959, %v4608, 0
  %v6014 = vsel %vm959, %v4611, 0
  %v6017 = vsel %vm959, %v4614, 0
  %v6020 = vsel %vm959, %v4617, 0
  %v6023 = vsel %vm959, %v4620, 0
  %v6026 = vsel %vm959, %v4623, 0
  %v6029 = vsel %vm959, %v4626, 0
  %v6032 = vsel %vm959, %v4629, 0
  %v6035 = vsel %vm959, %v4632, 0
  %v6038 = vsel %vm959, %v4635, 0
  %v6041 = vsel %vm963, %v5931, 0
  %6043 = vmatpush.msra.mxu0 0.0
  %6044 = vmatpush.msra.mxu0 0.0
  %6045 = vmatpush.msra.mxu0 0.0
  %6046 = vmatpush.msra.mxu0 0.0
  %6047 = vmatpush.msra.mxu0 0.0
  %6048 = vmatpush.msra.mxu0 0.0
  %6049 = vmatpush.msra.mxu0 0.0
  %6050 = vmatpush.msra.mxu0 0.0
  %6051 = vmatpush.msra.mxu0 0.0
  %6052 = vmatpush.msra.mxu0 0.0
  %6053 = vmatpush.msra.mxu0 0.0
  %6054 = vmatpush.msra.mxu0 0.0
  %6055 = vmatpush.msra.mxu0 0.0
  %6056 = vmatpush.msra.mxu0 0.0
  %6057 = vmatpush.msra.mxu0 %v6041
  %6058 = vmatpush.msra.mxu0 %v5930
  %6059 = vmatmul.f32.gmra.mxu0 %v5933
  %v6060 = vpop.f32.mrf.mxu0
  %v6061 = vadd.f32 0.0, %v6060
  %6062 = vmatmul.f32.gmra.mxu0 %v5936
  %v6063 = vpop.f32.mrf.mxu0
  %v6064 = vadd.f32 0.0, %v6063
  %6065 = vmatmul.f32.gmra.mxu0 %v5939
  %v6066 = vpop.f32.mrf.mxu0
  %v6067 = vadd.f32 0.0, %v6066
  %6068 = vmatmul.f32.gmra.mxu0 %v5942
  %v6069 = vpop.f32.mrf.mxu0
  %v6070 = vadd.f32 0.0, %v6069
  %6071 = vmatmul.f32.gmra.mxu0 %v5945
  %v6072 = vpop.f32.mrf.mxu0
  %v6073 = vadd.f32 0.0, %v6072
  %6074 = vmatmul.f32.gmra.mxu0 %v5948
  %v6075 = vpop.f32.mrf.mxu0
  %v6076 = vadd.f32 0.0, %v6075
  %6077 = vmatmul.f32.gmra.mxu0 %v5951
  %v6078 = vpop.f32.mrf.mxu0
  %v6079 = vadd.f32 0.0, %v6078
  %6080 = vmatmul.f32.gmra.mxu0 %v5954
  %v6081 = vpop.f32.mrf.mxu0
  %v6082 = vadd.f32 0.0, %v6081
  %6083 = vmatmul.f32.gmra.mxu0 %v5957
  %v6084 = vpop.f32.mrf.mxu0
  %v6085 = vadd.f32 0.0, %v6084
  %6086 = vmatmul.f32.gmra.mxu0 %v5960
  %v6087 = vpop.f32.mrf.mxu0
  %v6088 = vadd.f32 0.0, %v6087
  %6089 = vmatmul.f32.gmra.mxu0 %v5963
  %v6090 = vpop.f32.mrf.mxu0
  %v6091 = vadd.f32 0.0, %v6090
  %6092 = vmatmul.f32.gmra.mxu0 %v5966
  %v6093 = vpop.f32.mrf.mxu0
  %v6094 = vadd.f32 0.0, %v6093
  %6095 = vmatmul.f32.gmra.mxu0 %v5969
  %v6096 = vpop.f32.mrf.mxu0
  %v6097 = vadd.f32 0.0, %v6096
  %6098 = vmatmul.f32.gmra.mxu0 %v5972
  %v6099 = vpop.f32.mrf.mxu0
  %v6100 = vadd.f32 0.0, %v6099
  %6101 = vmatmul.f32.gmra.mxu0 %v5975
  %v6102 = vpop.f32.mrf.mxu0
  %v6103 = vadd.f32 0.0, %v6102
  %6104 = vmatmul.f32.gmra.mxu0 %v5978
  %v6105 = vpop.f32.mrf.mxu0
  %v6106 = vadd.f32 0.0, %v6105
  %6107 = vmatmul.f32.gmra.mxu0 %v5981
  %v6108 = vpop.f32.mrf.mxu0
  %v6109 = vadd.f32 0.0, %v6108
  %6110 = vmatmul.f32.gmra.mxu0 %v5984
  %v6111 = vpop.f32.mrf.mxu0
  %v6112 = vadd.f32 0.0, %v6111
  %6113 = vmatmul.f32.gmra.mxu0 %v5987
  %v6114 = vpop.f32.mrf.mxu0
  %v6115 = vadd.f32 0.0, %v6114
  %6116 = vmatmul.f32.gmra.mxu0 %v5990
  %v6117 = vpop.f32.mrf.mxu0
  %v6118 = vadd.f32 0.0, %v6117
  %6119 = vmatmul.f32.gmra.mxu0 %v5993
  %v6120 = vpop.f32.mrf.mxu0
  %v6121 = vadd.f32 0.0, %v6120
  %6122 = vmatmul.f32.gmra.mxu0 %v5996
  %v6123 = vpop.f32.mrf.mxu0
  %v6124 = vadd.f32 0.0, %v6123
  %6125 = vmatmul.f32.gmra.mxu0 %v5999
  %v6126 = vpop.f32.mrf.mxu0
  %v6127 = vadd.f32 0.0, %v6126
  %6128 = vmatmul.f32.gmra.mxu0 %v6002
  %v6129 = vpop.f32.mrf.mxu0
  %v6130 = vadd.f32 0.0, %v6129
  %6131 = vmatmul.f32.gmra.mxu0 %v6005
  %v6132 = vpop.f32.mrf.mxu0
  %v6133 = vadd.f32 0.0, %v6132
  %6134 = vmatmul.f32.gmra.mxu0 %v6008
  %v6135 = vpop.f32.mrf.mxu0
  %v6136 = vadd.f32 0.0, %v6135
  %6137 = vmatmul.f32.gmra.mxu0 %v6011
  %v6138 = vpop.f32.mrf.mxu0
  %v6139 = vadd.f32 0.0, %v6138
  %6140 = vmatmul.f32.gmra.mxu0 %v6014
  %v6141 = vpop.f32.mrf.mxu0
  %v6142 = vadd.f32 0.0, %v6141
  %6143 = vmatmul.f32.gmra.mxu0 %v6017
  %v6144 = vpop.f32.mrf.mxu0
  %v6145 = vadd.f32 0.0, %v6144
  %6146 = vmatmul.f32.gmra.mxu0 %v6020
  %v6147 = vpop.f32.mrf.mxu0
  %v6148 = vadd.f32 0.0, %v6147
  %6149 = vmatmul.f32.gmra.mxu0 %v6023
  %v6150 = vpop.f32.mrf.mxu0
  %v6151 = vadd.f32 0.0, %v6150
  %6152 = vmatmul.f32.gmra.mxu0 %v6026
  %v6153 = vpop.f32.mrf.mxu0
  %v6154 = vadd.f32 0.0, %v6153
  %6155 = vmatmul.f32.gmra.mxu0 %v6029
  %v6156 = vpop.f32.mrf.mxu0
  %v6157 = vadd.f32 0.0, %v6156
  %6158 = vmatmul.f32.gmra.mxu0 %v6032
  %v6159 = vpop.f32.mrf.mxu0
  %v6160 = vadd.f32 0.0, %v6159
  %6161 = vmatmul.f32.gmra.mxu0 %v6035
  %v6162 = vpop.f32.mrf.mxu0
  %v6163 = vadd.f32 0.0, %v6162
  %6164 = vmatmul.f32.gmra.mxu0 %v6038
  %v6165 = vpop.f32.mrf.mxu0
  %v6166 = vadd.f32 0.0, %v6165
  %6167 = vdwg.mxu0
  %v6168 = vadd.f32 %v5893, %v6061
  %v6169 = vadd.f32 %v5894, %v6064
  %v6170 = vadd.f32 %v5895, %v6067
  %v6171 = vadd.f32 %v5896, %v6070
  %v6172 = vadd.f32 %v5897, %v6073
  %v6173 = vadd.f32 %v5898, %v6076
  %v6174 = vadd.f32 %v5899, %v6079
  %v6175 = vadd.f32 %v5900, %v6082
  %v6176 = vadd.f32 %v5901, %v6085
  %v6177 = vadd.f32 %v5902, %v6088
  %v6178 = vadd.f32 %v5903, %v6091
  %v6179 = vadd.f32 %v5904, %v6094
  %v6180 = vadd.f32 %v5905, %v6097
  %v6181 = vadd.f32 %v5906, %v6100
  %v6182 = vadd.f32 %v5907, %v6103
  %v6183 = vadd.f32 %v5908, %v6106
  %v6184 = vadd.f32 %v5909, %v6109
  %v6185 = vadd.f32 %v5910, %v6112
  %v6186 = vadd.f32 %v5911, %v6115
  %v6187 = vadd.f32 %v5912, %v6118
  %v6188 = vadd.f32 %v5913, %v6121
  %v6189 = vadd.f32 %v5914, %v6124
  %v6190 = vadd.f32 %v5915, %v6127
  %v6191 = vadd.f32 %v5916, %v6130
  %v6192 = vadd.f32 %v5917, %v6133
  %v6193 = vadd.f32 %v5918, %v6136
  %v6194 = vadd.f32 %v5919, %v6139
  %v6195 = vadd.f32 %v5920, %v6142
  %v6196 = vadd.f32 %v5921, %v6145
  %v6197 = vadd.f32 %v5922, %v6148
  %v6198 = vadd.f32 %v5923, %v6151
  %v6199 = vadd.f32 %v5924, %v6154
  %v6200 = vadd.f32 %v5925, %v6157
  %v6201 = vadd.f32 %v5926, %v6160
  %v6202 = vadd.f32 %v5927, %v6163
  %v6203 = vadd.f32 %v5928, %v6166
  %s6204 = scalar_lea.vmem %s8, 64
  %v6205 = vld [vmem:[%s6204] sm:$0xff]
  %v6206 = vld [vmem:[%s6204 + $0x8] sm:$0x3]
  %v6208 = vsel %vm959, %v4638, 0
  %v6211 = vsel %vm959, %v4641, 0
  %v6214 = vsel %vm959, %v4644, 0
  %v6217 = vsel %vm959, %v4647, 0
  %v6220 = vsel %vm959, %v4650, 0
  %v6223 = vsel %vm959, %v4653, 0
  %v6226 = vsel %vm959, %v4656, 0
  %v6229 = vsel %vm959, %v4659, 0
  %v6232 = vsel %vm959, %v4662, 0
  %v6235 = vsel %vm959, %v4665, 0
  %v6238 = vsel %vm959, %v4668, 0
  %v6241 = vsel %vm959, %v4671, 0
  %v6244 = vsel %vm959, %v4674, 0
  %v6247 = vsel %vm959, %v4677, 0
  %v6250 = vsel %vm959, %v4680, 0
  %v6253 = vsel %vm959, %v4683, 0
  %v6256 = vsel %vm959, %v4686, 0
  %v6259 = vsel %vm959, %v4689, 0
  %v6262 = vsel %vm959, %v4692, 0
  %v6265 = vsel %vm959, %v4695, 0
  %v6268 = vsel %vm959, %v4698, 0
  %v6271 = vsel %vm959, %v4701, 0
  %v6274 = vsel %vm959, %v4704, 0
  %v6277 = vsel %vm959, %v4707, 0
  %v6280 = vsel %vm959, %v4710, 0
  %v6283 = vsel %vm959, %v4713, 0
  %v6286 = vsel %vm959, %v4716, 0
  %v6289 = vsel %vm959, %v4719, 0
  %v6292 = vsel %vm959, %v4722, 0
  %v6295 = vsel %vm959, %v4725, 0
  %v6298 = vsel %vm959, %v4728, 0
  %v6301 = vsel %vm959, %v4731, 0
  %v6304 = vsel %vm959, %v4734, 0
  %v6307 = vsel %vm959, %v4737, 0
  %v6310 = vsel %vm959, %v4740, 0
  %v6313 = vsel %vm959, %v4743, 0
  %v6316 = vsel %vm963, %v6206, 0
  %6318 = vmatpush.msra.mxu0 0.0
  %6319 = vmatpush.msra.mxu0 0.0
  %6320 = vmatpush.msra.mxu0 0.0
  %6321 = vmatpush.msra.mxu0 0.0
  %6322 = vmatpush.msra.mxu0 0.0
  %6323 = vmatpush.msra.mxu0 0.0
  %6324 = vmatpush.msra.mxu0 0.0
  %6325 = vmatpush.msra.mxu0 0.0
  %6326 = vmatpush.msra.mxu0 0.0
  %6327 = vmatpush.msra.mxu0 0.0
  %6328 = vmatpush.msra.mxu0 0.0
  %6329 = vmatpush.msra.mxu0 0.0
  %6330 = vmatpush.msra.mxu0 0.0
  %6331 = vmatpush.msra.mxu0 0.0
  %6332 = vmatpush.msra.mxu0 %v6316
  %6333 = vmatpush.msra.mxu0 %v6205
  %6334 = vmatmul.f32.gmra.mxu0 %v6208
  %v6335 = vpop.f32.mrf.mxu0
  %v6336 = vadd.f32 0.0, %v6335
  %6337 = vmatmul.f32.gmra.mxu0 %v6211
  %v6338 = vpop.f32.mrf.mxu0
  %v6339 = vadd.f32 0.0, %v6338
  %6340 = vmatmul.f32.gmra.mxu0 %v6214
  %v6341 = vpop.f32.mrf.mxu0
  %v6342 = vadd.f32 0.0, %v6341
  %6343 = vmatmul.f32.gmra.mxu0 %v6217
  %v6344 = vpop.f32.mrf.mxu0
  %v6345 = vadd.f32 0.0, %v6344
  %6346 = vmatmul.f32.gmra.mxu0 %v6220
  %v6347 = vpop.f32.mrf.mxu0
  %v6348 = vadd.f32 0.0, %v6347
  %6349 = vmatmul.f32.gmra.mxu0 %v6223
  %v6350 = vpop.f32.mrf.mxu0
  %v6351 = vadd.f32 0.0, %v6350
  %6352 = vmatmul.f32.gmra.mxu0 %v6226
  %v6353 = vpop.f32.mrf.mxu0
  %v6354 = vadd.f32 0.0, %v6353
  %6355 = vmatmul.f32.gmra.mxu0 %v6229
  %v6356 = vpop.f32.mrf.mxu0
  %v6357 = vadd.f32 0.0, %v6356
  %6358 = vmatmul.f32.gmra.mxu0 %v6232
  %v6359 = vpop.f32.mrf.mxu0
  %v6360 = vadd.f32 0.0, %v6359
  %6361 = vmatmul.f32.gmra.mxu0 %v6235
  %v6362 = vpop.f32.mrf.mxu0
  %v6363 = vadd.f32 0.0, %v6362
  %6364 = vmatmul.f32.gmra.mxu0 %v6238
  %v6365 = vpop.f32.mrf.mxu0
  %v6366 = vadd.f32 0.0, %v6365
  %6367 = vmatmul.f32.gmra.mxu0 %v6241
  %v6368 = vpop.f32.mrf.mxu0
  %v6369 = vadd.f32 0.0, %v6368
  %6370 = vmatmul.f32.gmra.mxu0 %v6244
  %v6371 = vpop.f32.mrf.mxu0
  %v6372 = vadd.f32 0.0, %v6371
  %6373 = vmatmul.f32.gmra.mxu0 %v6247
  %v6374 = vpop.f32.mrf.mxu0
  %v6375 = vadd.f32 0.0, %v6374
  %6376 = vmatmul.f32.gmra.mxu0 %v6250
  %v6377 = vpop.f32.mrf.mxu0
  %v6378 = vadd.f32 0.0, %v6377
  %6379 = vmatmul.f32.gmra.mxu0 %v6253
  %v6380 = vpop.f32.mrf.mxu0
  %v6381 = vadd.f32 0.0, %v6380
  %6382 = vmatmul.f32.gmra.mxu0 %v6256
  %v6383 = vpop.f32.mrf.mxu0
  %v6384 = vadd.f32 0.0, %v6383
  %6385 = vmatmul.f32.gmra.mxu0 %v6259
  %v6386 = vpop.f32.mrf.mxu0
  %v6387 = vadd.f32 0.0, %v6386
  %6388 = vmatmul.f32.gmra.mxu0 %v6262
  %v6389 = vpop.f32.mrf.mxu0
  %v6390 = vadd.f32 0.0, %v6389
  %6391 = vmatmul.f32.gmra.mxu0 %v6265
  %v6392 = vpop.f32.mrf.mxu0
  %v6393 = vadd.f32 0.0, %v6392
  %6394 = vmatmul.f32.gmra.mxu0 %v6268
  %v6395 = vpop.f32.mrf.mxu0
  %v6396 = vadd.f32 0.0, %v6395
  %6397 = vmatmul.f32.gmra.mxu0 %v6271
  %v6398 = vpop.f32.mrf.mxu0
  %v6399 = vadd.f32 0.0, %v6398
  %6400 = vmatmul.f32.gmra.mxu0 %v6274
  %v6401 = vpop.f32.mrf.mxu0
  %v6402 = vadd.f32 0.0, %v6401
  %6403 = vmatmul.f32.gmra.mxu0 %v6277
  %v6404 = vpop.f32.mrf.mxu0
  %v6405 = vadd.f32 0.0, %v6404
  %6406 = vmatmul.f32.gmra.mxu0 %v6280
  %v6407 = vpop.f32.mrf.mxu0
  %v6408 = vadd.f32 0.0, %v6407
  %6409 = vmatmul.f32.gmra.mxu0 %v6283
  %v6410 = vpop.f32.mrf.mxu0
  %v6411 = vadd.f32 0.0, %v6410
  %6412 = vmatmul.f32.gmra.mxu0 %v6286
  %v6413 = vpop.f32.mrf.mxu0
  %v6414 = vadd.f32 0.0, %v6413
  %6415 = vmatmul.f32.gmra.mxu0 %v6289
  %v6416 = vpop.f32.mrf.mxu0
  %v6417 = vadd.f32 0.0, %v6416
  %6418 = vmatmul.f32.gmra.mxu0 %v6292
  %v6419 = vpop.f32.mrf.mxu0
  %v6420 = vadd.f32 0.0, %v6419
  %6421 = vmatmul.f32.gmra.mxu0 %v6295
  %v6422 = vpop.f32.mrf.mxu0
  %v6423 = vadd.f32 0.0, %v6422
  %6424 = vmatmul.f32.gmra.mxu0 %v6298
  %v6425 = vpop.f32.mrf.mxu0
  %v6426 = vadd.f32 0.0, %v6425
  %6427 = vmatmul.f32.gmra.mxu0 %v6301
  %v6428 = vpop.f32.mrf.mxu0
  %v6429 = vadd.f32 0.0, %v6428
  %6430 = vmatmul.f32.gmra.mxu0 %v6304
  %v6431 = vpop.f32.mrf.mxu0
  %v6432 = vadd.f32 0.0, %v6431
  %6433 = vmatmul.f32.gmra.mxu0 %v6307
  %v6434 = vpop.f32.mrf.mxu0
  %v6435 = vadd.f32 0.0, %v6434
  %6436 = vmatmul.f32.gmra.mxu0 %v6310
  %v6437 = vpop.f32.mrf.mxu0
  %v6438 = vadd.f32 0.0, %v6437
  %6439 = vmatmul.f32.gmra.mxu0 %v6313
  %v6440 = vpop.f32.mrf.mxu0
  %v6441 = vadd.f32 0.0, %v6440
  %6442 = vdwg.mxu0
  %v6443 = vadd.f32 %v6168, %v6336
  %v6444 = vadd.f32 %v6169, %v6339
  %v6445 = vadd.f32 %v6170, %v6342
  %v6446 = vadd.f32 %v6171, %v6345
  %v6447 = vadd.f32 %v6172, %v6348
  %v6448 = vadd.f32 %v6173, %v6351
  %v6449 = vadd.f32 %v6174, %v6354
  %v6450 = vadd.f32 %v6175, %v6357
  %v6451 = vadd.f32 %v6176, %v6360
  %v6452 = vadd.f32 %v6177, %v6363
  %v6453 = vadd.f32 %v6178, %v6366
  %v6454 = vadd.f32 %v6179, %v6369
  %v6455 = vadd.f32 %v6180, %v6372
  %v6456 = vadd.f32 %v6181, %v6375
  %v6457 = vadd.f32 %v6182, %v6378
  %v6458 = vadd.f32 %v6183, %v6381
  %v6459 = vadd.f32 %v6184, %v6384
  %v6460 = vadd.f32 %v6185, %v6387
  %v6461 = vadd.f32 %v6186, %v6390
  %v6462 = vadd.f32 %v6187, %v6393
  %v6463 = vadd.f32 %v6188, %v6396
  %v6464 = vadd.f32 %v6189, %v6399
  %v6465 = vadd.f32 %v6190, %v6402
  %v6466 = vadd.f32 %v6191, %v6405
  %v6467 = vadd.f32 %v6192, %v6408
  %v6468 = vadd.f32 %v6193, %v6411
  %v6469 = vadd.f32 %v6194, %v6414
  %v6470 = vadd.f32 %v6195, %v6417
  %v6471 = vadd.f32 %v6196, %v6420
  %v6472 = vadd.f32 %v6197, %v6423
  %v6473 = vadd.f32 %v6198, %v6426
  %v6474 = vadd.f32 %v6199, %v6429
  %v6475 = vadd.f32 %v6200, %v6432
  %v6476 = vadd.f32 %v6201, %v6435
  %v6477 = vadd.f32 %v6202, %v6438
  %v6478 = vadd.f32 %v6203, %v6441
  %s6479 = scalar_lea.vmem %s8, 80
  %v6480 = vld [vmem:[%s6479] sm:$0xff]
  %v6481 = vld [vmem:[%s6479 + $0x8] sm:$0x3]
  %v6483 = vsel %vm959, %v4746, 0
  %v6486 = vsel %vm959, %v4749, 0
  %v6489 = vsel %vm959, %v4752, 0
  %v6492 = vsel %vm959, %v4755, 0
  %v6495 = vsel %vm959, %v4758, 0
  %v6498 = vsel %vm959, %v4761, 0
  %v6501 = vsel %vm959, %v4764, 0
  %v6504 = vsel %vm959, %v4767, 0
  %v6507 = vsel %vm959, %v4770, 0
  %v6510 = vsel %vm959, %v4773, 0
  %v6513 = vsel %vm959, %v4776, 0
  %v6516 = vsel %vm959, %v4779, 0
  %v6519 = vsel %vm959, %v4782, 0
  %v6522 = vsel %vm959, %v4785, 0
  %v6525 = vsel %vm959, %v4788, 0
  %v6528 = vsel %vm959, %v4791, 0
  %v6531 = vsel %vm959, %v4794, 0
  %v6534 = vsel %vm959, %v4797, 0
  %v6537 = vsel %vm959, %v4800, 0
  %v6540 = vsel %vm959, %v4803, 0
  %v6543 = vsel %vm959, %v4806, 0
  %v6546 = vsel %vm959, %v4809, 0
  %v6549 = vsel %vm959, %v4812, 0
  %v6552 = vsel %vm959, %v4815, 0
  %v6555 = vsel %vm959, %v4818, 0
  %v6558 = vsel %vm959, %v4821, 0
  %v6561 = vsel %vm959, %v4824, 0
  %v6564 = vsel %vm959, %v4827, 0
  %v6567 = vsel %vm959, %v4830, 0
  %v6570 = vsel %vm959, %v4833, 0
  %v6573 = vsel %vm959, %v4836, 0
  %v6576 = vsel %vm959, %v4839, 0
  %v6579 = vsel %vm959, %v4842, 0
  %v6582 = vsel %vm959, %v4845, 0
  %v6585 = vsel %vm959, %v4848, 0
  %v6588 = vsel %vm959, %v4851, 0
  %v6591 = vsel %vm963, %v6481, 0
  %6593 = vmatpush.msra.mxu0 0.0
  %6594 = vmatpush.msra.mxu0 0.0
  %6595 = vmatpush.msra.mxu0 0.0
  %6596 = vmatpush.msra.mxu0 0.0
  %6597 = vmatpush.msra.mxu0 0.0
  %6598 = vmatpush.msra.mxu0 0.0
  %6599 = vmatpush.msra.mxu0 0.0
  %6600 = vmatpush.msra.mxu0 0.0
  %6601 = vmatpush.msra.mxu0 0.0
  %6602 = vmatpush.msra.mxu0 0.0
  %6603 = vmatpush.msra.mxu0 0.0
  %6604 = vmatpush.msra.mxu0 0.0
  %6605 = vmatpush.msra.mxu0 0.0
  %6606 = vmatpush.msra.mxu0 0.0
  %6607 = vmatpush.msra.mxu0 %v6591
  %6608 = vmatpush.msra.mxu0 %v6480
  %6609 = vmatmul.f32.gmra.mxu0 %v6483
  %v6610 = vpop.f32.mrf.mxu0
  %v6611 = vadd.f32 0.0, %v6610
  %6612 = vmatmul.f32.gmra.mxu0 %v6486
  %v6613 = vpop.f32.mrf.mxu0
  %v6614 = vadd.f32 0.0, %v6613
  %6615 = vmatmul.f32.gmra.mxu0 %v6489
  %v6616 = vpop.f32.mrf.mxu0
  %v6617 = vadd.f32 0.0, %v6616
  %6618 = vmatmul.f32.gmra.mxu0 %v6492
  %v6619 = vpop.f32.mrf.mxu0
  %v6620 = vadd.f32 0.0, %v6619
  %6621 = vmatmul.f32.gmra.mxu0 %v6495
  %v6622 = vpop.f32.mrf.mxu0
  %v6623 = vadd.f32 0.0, %v6622
  %6624 = vmatmul.f32.gmra.mxu0 %v6498
  %v6625 = vpop.f32.mrf.mxu0
  %v6626 = vadd.f32 0.0, %v6625
  %6627 = vmatmul.f32.gmra.mxu0 %v6501
  %v6628 = vpop.f32.mrf.mxu0
  %v6629 = vadd.f32 0.0, %v6628
  %6630 = vmatmul.f32.gmra.mxu0 %v6504
  %v6631 = vpop.f32.mrf.mxu0
  %v6632 = vadd.f32 0.0, %v6631
  %6633 = vmatmul.f32.gmra.mxu0 %v6507
  %v6634 = vpop.f32.mrf.mxu0
  %v6635 = vadd.f32 0.0, %v6634
  %6636 = vmatmul.f32.gmra.mxu0 %v6510
  %v6637 = vpop.f32.mrf.mxu0
  %v6638 = vadd.f32 0.0, %v6637
  %6639 = vmatmul.f32.gmra.mxu0 %v6513
  %v6640 = vpop.f32.mrf.mxu0
  %v6641 = vadd.f32 0.0, %v6640
  %6642 = vmatmul.f32.gmra.mxu0 %v6516
  %v6643 = vpop.f32.mrf.mxu0
  %v6644 = vadd.f32 0.0, %v6643
  %6645 = vmatmul.f32.gmra.mxu0 %v6519
  %v6646 = vpop.f32.mrf.mxu0
  %v6647 = vadd.f32 0.0, %v6646
  %6648 = vmatmul.f32.gmra.mxu0 %v6522
  %v6649 = vpop.f32.mrf.mxu0
  %v6650 = vadd.f32 0.0, %v6649
  %6651 = vmatmul.f32.gmra.mxu0 %v6525
  %v6652 = vpop.f32.mrf.mxu0
  %v6653 = vadd.f32 0.0, %v6652
  %6654 = vmatmul.f32.gmra.mxu0 %v6528
  %v6655 = vpop.f32.mrf.mxu0
  %v6656 = vadd.f32 0.0, %v6655
  %6657 = vmatmul.f32.gmra.mxu0 %v6531
  %v6658 = vpop.f32.mrf.mxu0
  %v6659 = vadd.f32 0.0, %v6658
  %6660 = vmatmul.f32.gmra.mxu0 %v6534
  %v6661 = vpop.f32.mrf.mxu0
  %v6662 = vadd.f32 0.0, %v6661
  %6663 = vmatmul.f32.gmra.mxu0 %v6537
  %v6664 = vpop.f32.mrf.mxu0
  %v6665 = vadd.f32 0.0, %v6664
  %6666 = vmatmul.f32.gmra.mxu0 %v6540
  %v6667 = vpop.f32.mrf.mxu0
  %v6668 = vadd.f32 0.0, %v6667
  %6669 = vmatmul.f32.gmra.mxu0 %v6543
  %v6670 = vpop.f32.mrf.mxu0
  %v6671 = vadd.f32 0.0, %v6670
  %6672 = vmatmul.f32.gmra.mxu0 %v6546
  %v6673 = vpop.f32.mrf.mxu0
  %v6674 = vadd.f32 0.0, %v6673
  %6675 = vmatmul.f32.gmra.mxu0 %v6549
  %v6676 = vpop.f32.mrf.mxu0
  %v6677 = vadd.f32 0.0, %v6676
  %6678 = vmatmul.f32.gmra.mxu0 %v6552
  %v6679 = vpop.f32.mrf.mxu0
  %v6680 = vadd.f32 0.0, %v6679
  %6681 = vmatmul.f32.gmra.mxu0 %v6555
  %v6682 = vpop.f32.mrf.mxu0
  %v6683 = vadd.f32 0.0, %v6682
  %6684 = vmatmul.f32.gmra.mxu0 %v6558
  %v6685 = vpop.f32.mrf.mxu0
  %v6686 = vadd.f32 0.0, %v6685
  %6687 = vmatmul.f32.gmra.mxu0 %v6561
  %v6688 = vpop.f32.mrf.mxu0
  %v6689 = vadd.f32 0.0, %v6688
  %6690 = vmatmul.f32.gmra.mxu0 %v6564
  %v6691 = vpop.f32.mrf.mxu0
  %v6692 = vadd.f32 0.0, %v6691
  %6693 = vmatmul.f32.gmra.mxu0 %v6567
  %v6694 = vpop.f32.mrf.mxu0
  %v6695 = vadd.f32 0.0, %v6694
  %6696 = vmatmul.f32.gmra.mxu0 %v6570
  %v6697 = vpop.f32.mrf.mxu0
  %v6698 = vadd.f32 0.0, %v6697
  %6699 = vmatmul.f32.gmra.mxu0 %v6573
  %v6700 = vpop.f32.mrf.mxu0
  %v6701 = vadd.f32 0.0, %v6700
  %6702 = vmatmul.f32.gmra.mxu0 %v6576
  %v6703 = vpop.f32.mrf.mxu0
  %v6704 = vadd.f32 0.0, %v6703
  %6705 = vmatmul.f32.gmra.mxu0 %v6579
  %v6706 = vpop.f32.mrf.mxu0
  %v6707 = vadd.f32 0.0, %v6706
  %6708 = vmatmul.f32.gmra.mxu0 %v6582
  %v6709 = vpop.f32.mrf.mxu0
  %v6710 = vadd.f32 0.0, %v6709
  %6711 = vmatmul.f32.gmra.mxu0 %v6585
  %v6712 = vpop.f32.mrf.mxu0
  %v6713 = vadd.f32 0.0, %v6712
  %6714 = vmatmul.f32.gmra.mxu0 %v6588
  %v6715 = vpop.f32.mrf.mxu0
  %v6716 = vadd.f32 0.0, %v6715
  %6717 = vdwg.mxu0
  %v6718 = vadd.f32 %v6443, %v6611
  %v6719 = vadd.f32 %v6444, %v6614
  %v6720 = vadd.f32 %v6445, %v6617
  %v6721 = vadd.f32 %v6446, %v6620
  %v6722 = vadd.f32 %v6447, %v6623
  %v6723 = vadd.f32 %v6448, %v6626
  %v6724 = vadd.f32 %v6449, %v6629
  %v6725 = vadd.f32 %v6450, %v6632
  %v6726 = vadd.f32 %v6451, %v6635
  %v6727 = vadd.f32 %v6452, %v6638
  %v6728 = vadd.f32 %v6453, %v6641
  %v6729 = vadd.f32 %v6454, %v6644
  %v6730 = vadd.f32 %v6455, %v6647
  %v6731 = vadd.f32 %v6456, %v6650
  %v6732 = vadd.f32 %v6457, %v6653
  %v6733 = vadd.f32 %v6458, %v6656
  %v6734 = vadd.f32 %v6459, %v6659
  %v6735 = vadd.f32 %v6460, %v6662
  %v6736 = vadd.f32 %v6461, %v6665
  %v6737 = vadd.f32 %v6462, %v6668
  %v6738 = vadd.f32 %v6463, %v6671
  %v6739 = vadd.f32 %v6464, %v6674
  %v6740 = vadd.f32 %v6465, %v6677
  %v6741 = vadd.f32 %v6466, %v6680
  %v6742 = vadd.f32 %v6467, %v6683
  %v6743 = vadd.f32 %v6468, %v6686
  %v6744 = vadd.f32 %v6469, %v6689
  %v6745 = vadd.f32 %v6470, %v6692
  %v6746 = vadd.f32 %v6471, %v6695
  %v6747 = vadd.f32 %v6472, %v6698
  %v6748 = vadd.f32 %v6473, %v6701
  %v6749 = vadd.f32 %v6474, %v6704
  %v6750 = vadd.f32 %v6475, %v6707
  %v6751 = vadd.f32 %v6476, %v6710
  %v6752 = vadd.f32 %v6477, %v6713
  %v6753 = vadd.f32 %v6478, %v6716
  %s6754 = scalar_lea.vmem %s8, 96
  %v6755 = vld [vmem:[%s6754] sm:$0xff]
  %v6756 = vld [vmem:[%s6754 + $0x8] sm:$0x3]
  %v6758 = vsel %vm959, %v4854, 0
  %v6761 = vsel %vm959, %v4857, 0
  %v6764 = vsel %vm959, %v4860, 0
  %v6767 = vsel %vm959, %v4863, 0
  %v6770 = vsel %vm959, %v4866, 0
  %v6773 = vsel %vm959, %v4869, 0
  %v6776 = vsel %vm959, %v4872, 0
  %v6779 = vsel %vm959, %v4875, 0
  %v6782 = vsel %vm959, %v4878, 0
  %v6785 = vsel %vm959, %v4881, 0
  %v6788 = vsel %vm959, %v4884, 0
  %v6791 = vsel %vm959, %v4887, 0
  %v6794 = vsel %vm959, %v4890, 0
  %v6797 = vsel %vm959, %v4893, 0
  %v6800 = vsel %vm959, %v4896, 0
  %v6803 = vsel %vm959, %v4899, 0
  %v6806 = vsel %vm959, %v4902, 0
  %v6809 = vsel %vm959, %v4905, 0
  %v6812 = vsel %vm959, %v4908, 0
  %v6815 = vsel %vm959, %v4911, 0
  %v6818 = vsel %vm959, %v4914, 0
  %v6821 = vsel %vm959, %v4917, 0
  %v6824 = vsel %vm959, %v4920, 0
  %v6827 = vsel %vm959, %v4923, 0
  %v6830 = vsel %vm959, %v4926, 0
  %v6833 = vsel %vm959, %v4929, 0
  %v6836 = vsel %vm959, %v4932, 0
  %v6839 = vsel %vm959, %v4935, 0
  %v6842 = vsel %vm959, %v4938, 0
  %v6845 = vsel %vm959, %v4941, 0
  %v6848 = vsel %vm959, %v4944, 0
  %v6851 = vsel %vm959, %v4947, 0
  %v6854 = vsel %vm959, %v4950, 0
  %v6857 = vsel %vm959, %v4953, 0
  %v6860 = vsel %vm959, %v4956, 0
  %v6863 = vsel %vm959, %v4959, 0
  %v6866 = vsel %vm963, %v6756, 0
  %6868 = vmatpush.msra.mxu0 0.0
  %6869 = vmatpush.msra.mxu0 0.0
  %6870 = vmatpush.msra.mxu0 0.0
  %6871 = vmatpush.msra.mxu0 0.0
  %6872 = vmatpush.msra.mxu0 0.0
  %6873 = vmatpush.msra.mxu0 0.0
  %6874 = vmatpush.msra.mxu0 0.0
  %6875 = vmatpush.msra.mxu0 0.0
  %6876 = vmatpush.msra.mxu0 0.0
  %6877 = vmatpush.msra.mxu0 0.0
  %6878 = vmatpush.msra.mxu0 0.0
  %6879 = vmatpush.msra.mxu0 0.0
  %6880 = vmatpush.msra.mxu0 0.0
  %6881 = vmatpush.msra.mxu0 0.0
  %6882 = vmatpush.msra.mxu0 %v6866
  %6883 = vmatpush.msra.mxu0 %v6755
  %6884 = vmatmul.f32.gmra.mxu0 %v6758
  %v6885 = vpop.f32.mrf.mxu0
  %v6886 = vadd.f32 0.0, %v6885
  %6887 = vmatmul.f32.gmra.mxu0 %v6761
  %v6888 = vpop.f32.mrf.mxu0
  %v6889 = vadd.f32 0.0, %v6888
  %6890 = vmatmul.f32.gmra.mxu0 %v6764
  %v6891 = vpop.f32.mrf.mxu0
  %v6892 = vadd.f32 0.0, %v6891
  %6893 = vmatmul.f32.gmra.mxu0 %v6767
  %v6894 = vpop.f32.mrf.mxu0
  %v6895 = vadd.f32 0.0, %v6894
  %6896 = vmatmul.f32.gmra.mxu0 %v6770
  %v6897 = vpop.f32.mrf.mxu0
  %v6898 = vadd.f32 0.0, %v6897
  %6899 = vmatmul.f32.gmra.mxu0 %v6773
  %v6900 = vpop.f32.mrf.mxu0
  %v6901 = vadd.f32 0.0, %v6900
  %6902 = vmatmul.f32.gmra.mxu0 %v6776
  %v6903 = vpop.f32.mrf.mxu0
  %v6904 = vadd.f32 0.0, %v6903
  %6905 = vmatmul.f32.gmra.mxu0 %v6779
  %v6906 = vpop.f32.mrf.mxu0
  %v6907 = vadd.f32 0.0, %v6906
  %6908 = vmatmul.f32.gmra.mxu0 %v6782
  %v6909 = vpop.f32.mrf.mxu0
  %v6910 = vadd.f32 0.0, %v6909
  %6911 = vmatmul.f32.gmra.mxu0 %v6785
  %v6912 = vpop.f32.mrf.mxu0
  %v6913 = vadd.f32 0.0, %v6912
  %6914 = vmatmul.f32.gmra.mxu0 %v6788
  %v6915 = vpop.f32.mrf.mxu0
  %v6916 = vadd.f32 0.0, %v6915
  %6917 = vmatmul.f32.gmra.mxu0 %v6791
  %v6918 = vpop.f32.mrf.mxu0
  %v6919 = vadd.f32 0.0, %v6918
  %6920 = vmatmul.f32.gmra.mxu0 %v6794
  %v6921 = vpop.f32.mrf.mxu0
  %v6922 = vadd.f32 0.0, %v6921
  %6923 = vmatmul.f32.gmra.mxu0 %v6797
  %v6924 = vpop.f32.mrf.mxu0
  %v6925 = vadd.f32 0.0, %v6924
  %6926 = vmatmul.f32.gmra.mxu0 %v6800
  %v6927 = vpop.f32.mrf.mxu0
  %v6928 = vadd.f32 0.0, %v6927
  %6929 = vmatmul.f32.gmra.mxu0 %v6803
  %v6930 = vpop.f32.mrf.mxu0
  %v6931 = vadd.f32 0.0, %v6930
  %6932 = vmatmul.f32.gmra.mxu0 %v6806
  %v6933 = vpop.f32.mrf.mxu0
  %v6934 = vadd.f32 0.0, %v6933
  %6935 = vmatmul.f32.gmra.mxu0 %v6809
  %v6936 = vpop.f32.mrf.mxu0
  %v6937 = vadd.f32 0.0, %v6936
  %6938 = vmatmul.f32.gmra.mxu0 %v6812
  %v6939 = vpop.f32.mrf.mxu0
  %v6940 = vadd.f32 0.0, %v6939
  %6941 = vmatmul.f32.gmra.mxu0 %v6815
  %v6942 = vpop.f32.mrf.mxu0
  %v6943 = vadd.f32 0.0, %v6942
  %6944 = vmatmul.f32.gmra.mxu0 %v6818
  %v6945 = vpop.f32.mrf.mxu0
  %v6946 = vadd.f32 0.0, %v6945
  %6947 = vmatmul.f32.gmra.mxu0 %v6821
  %v6948 = vpop.f32.mrf.mxu0
  %v6949 = vadd.f32 0.0, %v6948
  %6950 = vmatmul.f32.gmra.mxu0 %v6824
  %v6951 = vpop.f32.mrf.mxu0
  %v6952 = vadd.f32 0.0, %v6951
  %6953 = vmatmul.f32.gmra.mxu0 %v6827
  %v6954 = vpop.f32.mrf.mxu0
  %v6955 = vadd.f32 0.0, %v6954
  %6956 = vmatmul.f32.gmra.mxu0 %v6830
  %v6957 = vpop.f32.mrf.mxu0
  %v6958 = vadd.f32 0.0, %v6957
  %6959 = vmatmul.f32.gmra.mxu0 %v6833
  %v6960 = vpop.f32.mrf.mxu0
  %v6961 = vadd.f32 0.0, %v6960
  %6962 = vmatmul.f32.gmra.mxu0 %v6836
  %v6963 = vpop.f32.mrf.mxu0
  %v6964 = vadd.f32 0.0, %v6963
  %6965 = vmatmul.f32.gmra.mxu0 %v6839
  %v6966 = vpop.f32.mrf.mxu0
  %v6967 = vadd.f32 0.0, %v6966
  %6968 = vmatmul.f32.gmra.mxu0 %v6842
  %v6969 = vpop.f32.mrf.mxu0
  %v6970 = vadd.f32 0.0, %v6969
  %6971 = vmatmul.f32.gmra.mxu0 %v6845
  %v6972 = vpop.f32.mrf.mxu0
  %v6973 = vadd.f32 0.0, %v6972
  %6974 = vmatmul.f32.gmra.mxu0 %v6848
  %v6975 = vpop.f32.mrf.mxu0
  %v6976 = vadd.f32 0.0, %v6975
  %6977 = vmatmul.f32.gmra.mxu0 %v6851
  %v6978 = vpop.f32.mrf.mxu0
  %v6979 = vadd.f32 0.0, %v6978
  %6980 = vmatmul.f32.gmra.mxu0 %v6854
  %v6981 = vpop.f32.mrf.mxu0
  %v6982 = vadd.f32 0.0, %v6981
  %6983 = vmatmul.f32.gmra.mxu0 %v6857
  %v6984 = vpop.f32.mrf.mxu0
  %v6985 = vadd.f32 0.0, %v6984
  %6986 = vmatmul.f32.gmra.mxu0 %v6860
  %v6987 = vpop.f32.mrf.mxu0
  %v6988 = vadd.f32 0.0, %v6987
  %6989 = vmatmul.f32.gmra.mxu0 %v6863
  %v6990 = vpop.f32.mrf.mxu0
  %v6991 = vadd.f32 0.0, %v6990
  %6992 = vdwg.mxu0
  %v6993 = vadd.f32 %v6718, %v6886
  %v6994 = vadd.f32 %v6719, %v6889
  %v6995 = vadd.f32 %v6720, %v6892
  %v6996 = vadd.f32 %v6721, %v6895
  %v6997 = vadd.f32 %v6722, %v6898
  %v6998 = vadd.f32 %v6723, %v6901
  %v6999 = vadd.f32 %v6724, %v6904
  %v7000 = vadd.f32 %v6725, %v6907
  %v7001 = vadd.f32 %v6726, %v6910
  %v7002 = vadd.f32 %v6727, %v6913
  %v7003 = vadd.f32 %v6728, %v6916
  %v7004 = vadd.f32 %v6729, %v6919
  %v7005 = vadd.f32 %v6730, %v6922
  %v7006 = vadd.f32 %v6731, %v6925
  %v7007 = vadd.f32 %v6732, %v6928
  %v7008 = vadd.f32 %v6733, %v6931
  %v7009 = vadd.f32 %v6734, %v6934
  %v7010 = vadd.f32 %v6735, %v6937
  %v7011 = vadd.f32 %v6736, %v6940
  %v7012 = vadd.f32 %v6737, %v6943
  %v7013 = vadd.f32 %v6738, %v6946
  %v7014 = vadd.f32 %v6739, %v6949
  %v7015 = vadd.f32 %v6740, %v6952
  %v7016 = vadd.f32 %v6741, %v6955
  %v7017 = vadd.f32 %v6742, %v6958
  %v7018 = vadd.f32 %v6743, %v6961
  %v7019 = vadd.f32 %v6744, %v6964
  %v7020 = vadd.f32 %v6745, %v6967
  %v7021 = vadd.f32 %v6746, %v6970
  %v7022 = vadd.f32 %v6747, %v6973
  %v7023 = vadd.f32 %v6748, %v6976
  %v7024 = vadd.f32 %v6749, %v6979
  %v7025 = vadd.f32 %v6750, %v6982
  %v7026 = vadd.f32 %v6751, %v6985
  %v7027 = vadd.f32 %v6752, %v6988
  %v7028 = vadd.f32 %v6753, %v6991
  %s7029 = scalar_lea.vmem %s8, 112
  %v7030 = vld [vmem:[%s7029] sm:$0xff]
  %v7031 = vld [vmem:[%s7029 + $0x8] sm:$0x3]
  %v7033 = vsel %vm959, %v4962, 0
  %v7036 = vsel %vm959, %v4965, 0
  %v7039 = vsel %vm959, %v4968, 0
  %v7042 = vsel %vm959, %v4971, 0
  %v7045 = vsel %vm959, %v4974, 0
  %v7048 = vsel %vm959, %v4977, 0
  %v7051 = vsel %vm959, %v4980, 0
  %v7054 = vsel %vm959, %v4983, 0
  %v7057 = vsel %vm959, %v4986, 0
  %v7060 = vsel %vm959, %v4989, 0
  %v7063 = vsel %vm959, %v4992, 0
  %v7066 = vsel %vm959, %v4995, 0
  %v7069 = vsel %vm959, %v4998, 0
  %v7072 = vsel %vm959, %v5001, 0
  %v7075 = vsel %vm959, %v5004, 0
  %v7078 = vsel %vm959, %v5007, 0
  %v7081 = vsel %vm959, %v5010, 0
  %v7084 = vsel %vm959, %v5013, 0
  %v7087 = vsel %vm959, %v5016, 0
  %v7090 = vsel %vm959, %v5019, 0
  %v7093 = vsel %vm959, %v5022, 0
  %v7096 = vsel %vm959, %v5025, 0
  %v7099 = vsel %vm959, %v5028, 0
  %v7102 = vsel %vm959, %v5031, 0
  %v7105 = vsel %vm959, %v5034, 0
  %v7108 = vsel %vm959, %v5037, 0
  %v7111 = vsel %vm959, %v5040, 0
  %v7114 = vsel %vm959, %v5043, 0
  %v7117 = vsel %vm959, %v5046, 0
  %v7120 = vsel %vm959, %v5049, 0
  %v7123 = vsel %vm959, %v5052, 0
  %v7126 = vsel %vm959, %v5055, 0
  %v7129 = vsel %vm959, %v5058, 0
  %v7132 = vsel %vm959, %v5061, 0
  %v7135 = vsel %vm959, %v5064, 0
  %v7138 = vsel %vm959, %v5067, 0
  %v7141 = vsel %vm963, %v7031, 0
  %7143 = vmatpush.msra.mxu0 0.0
  %7144 = vmatpush.msra.mxu0 0.0
  %7145 = vmatpush.msra.mxu0 0.0
  %7146 = vmatpush.msra.mxu0 0.0
  %7147 = vmatpush.msra.mxu0 0.0
  %7148 = vmatpush.msra.mxu0 0.0
  %7149 = vmatpush.msra.mxu0 0.0
  %7150 = vmatpush.msra.mxu0 0.0
  %7151 = vmatpush.msra.mxu0 0.0
  %7152 = vmatpush.msra.mxu0 0.0
  %7153 = vmatpush.msra.mxu0 0.0
  %7154 = vmatpush.msra.mxu0 0.0
  %7155 = vmatpush.msra.mxu0 0.0
  %7156 = vmatpush.msra.mxu0 0.0
  %7157 = vmatpush.msra.mxu0 %v7141
  %7158 = vmatpush.msra.mxu0 %v7030
  %7159 = vmatmul.f32.gmra.mxu0 %v7033
  %v7160 = vpop.f32.mrf.mxu0
  %v7161 = vadd.f32 0.0, %v7160
  %7162 = vmatmul.f32.gmra.mxu0 %v7036
  %v7163 = vpop.f32.mrf.mxu0
  %v7164 = vadd.f32 0.0, %v7163
  %7165 = vmatmul.f32.gmra.mxu0 %v7039
  %v7166 = vpop.f32.mrf.mxu0
  %v7167 = vadd.f32 0.0, %v7166
  %7168 = vmatmul.f32.gmra.mxu0 %v7042
  %v7169 = vpop.f32.mrf.mxu0
  %v7170 = vadd.f32 0.0, %v7169
  %7171 = vmatmul.f32.gmra.mxu0 %v7045
  %v7172 = vpop.f32.mrf.mxu0
  %v7173 = vadd.f32 0.0, %v7172
  %7174 = vmatmul.f32.gmra.mxu0 %v7048
  %v7175 = vpop.f32.mrf.mxu0
  %v7176 = vadd.f32 0.0, %v7175
  %7177 = vmatmul.f32.gmra.mxu0 %v7051
  %v7178 = vpop.f32.mrf.mxu0
  %v7179 = vadd.f32 0.0, %v7178
  %7180 = vmatmul.f32.gmra.mxu0 %v7054
  %v7181 = vpop.f32.mrf.mxu0
  %v7182 = vadd.f32 0.0, %v7181
  %7183 = vmatmul.f32.gmra.mxu0 %v7057
  %v7184 = vpop.f32.mrf.mxu0
  %v7185 = vadd.f32 0.0, %v7184
  %7186 = vmatmul.f32.gmra.mxu0 %v7060
  %v7187 = vpop.f32.mrf.mxu0
  %v7188 = vadd.f32 0.0, %v7187
  %7189 = vmatmul.f32.gmra.mxu0 %v7063
  %v7190 = vpop.f32.mrf.mxu0
  %v7191 = vadd.f32 0.0, %v7190
  %7192 = vmatmul.f32.gmra.mxu0 %v7066
  %v7193 = vpop.f32.mrf.mxu0
  %v7194 = vadd.f32 0.0, %v7193
  %7195 = vmatmul.f32.gmra.mxu0 %v7069
  %v7196 = vpop.f32.mrf.mxu0
  %v7197 = vadd.f32 0.0, %v7196
  %7198 = vmatmul.f32.gmra.mxu0 %v7072
  %v7199 = vpop.f32.mrf.mxu0
  %v7200 = vadd.f32 0.0, %v7199
  %7201 = vmatmul.f32.gmra.mxu0 %v7075
  %v7202 = vpop.f32.mrf.mxu0
  %v7203 = vadd.f32 0.0, %v7202
  %7204 = vmatmul.f32.gmra.mxu0 %v7078
  %v7205 = vpop.f32.mrf.mxu0
  %v7206 = vadd.f32 0.0, %v7205
  %7207 = vmatmul.f32.gmra.mxu0 %v7081
  %v7208 = vpop.f32.mrf.mxu0
  %v7209 = vadd.f32 0.0, %v7208
  %7210 = vmatmul.f32.gmra.mxu0 %v7084
  %v7211 = vpop.f32.mrf.mxu0
  %v7212 = vadd.f32 0.0, %v7211
  %7213 = vmatmul.f32.gmra.mxu0 %v7087
  %v7214 = vpop.f32.mrf.mxu0
  %v7215 = vadd.f32 0.0, %v7214
  %7216 = vmatmul.f32.gmra.mxu0 %v7090
  %v7217 = vpop.f32.mrf.mxu0
  %v7218 = vadd.f32 0.0, %v7217
  %7219 = vmatmul.f32.gmra.mxu0 %v7093
  %v7220 = vpop.f32.mrf.mxu0
  %v7221 = vadd.f32 0.0, %v7220
  %7222 = vmatmul.f32.gmra.mxu0 %v7096
  %v7223 = vpop.f32.mrf.mxu0
  %v7224 = vadd.f32 0.0, %v7223
  %7225 = vmatmul.f32.gmra.mxu0 %v7099
  %v7226 = vpop.f32.mrf.mxu0
  %v7227 = vadd.f32 0.0, %v7226
  %7228 = vmatmul.f32.gmra.mxu0 %v7102
  %v7229 = vpop.f32.mrf.mxu0
  %v7230 = vadd.f32 0.0, %v7229
  %7231 = vmatmul.f32.gmra.mxu0 %v7105
  %v7232 = vpop.f32.mrf.mxu0
  %v7233 = vadd.f32 0.0, %v7232
  %7234 = vmatmul.f32.gmra.mxu0 %v7108
  %v7235 = vpop.f32.mrf.mxu0
  %v7236 = vadd.f32 0.0, %v7235
  %7237 = vmatmul.f32.gmra.mxu0 %v7111
  %v7238 = vpop.f32.mrf.mxu0
  %v7239 = vadd.f32 0.0, %v7238
  %7240 = vmatmul.f32.gmra.mxu0 %v7114
  %v7241 = vpop.f32.mrf.mxu0
  %v7242 = vadd.f32 0.0, %v7241
  %7243 = vmatmul.f32.gmra.mxu0 %v7117
  %v7244 = vpop.f32.mrf.mxu0
  %v7245 = vadd.f32 0.0, %v7244
  %7246 = vmatmul.f32.gmra.mxu0 %v7120
  %v7247 = vpop.f32.mrf.mxu0
  %v7248 = vadd.f32 0.0, %v7247
  %7249 = vmatmul.f32.gmra.mxu0 %v7123
  %v7250 = vpop.f32.mrf.mxu0
  %v7251 = vadd.f32 0.0, %v7250
  %7252 = vmatmul.f32.gmra.mxu0 %v7126
  %v7253 = vpop.f32.mrf.mxu0
  %v7254 = vadd.f32 0.0, %v7253
  %7255 = vmatmul.f32.gmra.mxu0 %v7129
  %v7256 = vpop.f32.mrf.mxu0
  %v7257 = vadd.f32 0.0, %v7256
  %7258 = vmatmul.f32.gmra.mxu0 %v7132
  %v7259 = vpop.f32.mrf.mxu0
  %v7260 = vadd.f32 0.0, %v7259
  %7261 = vmatmul.f32.gmra.mxu0 %v7135
  %v7262 = vpop.f32.mrf.mxu0
  %v7263 = vadd.f32 0.0, %v7262
  %7264 = vmatmul.f32.gmra.mxu0 %v7138
  %v7265 = vpop.f32.mrf.mxu0
  %v7266 = vadd.f32 0.0, %v7265
  %7267 = vdwg.mxu0
  %v7268 = vadd.f32 %v6993, %v7161
  %v7269 = vadd.f32 %v6994, %v7164
  %v7270 = vadd.f32 %v6995, %v7167
  %v7271 = vadd.f32 %v6996, %v7170
  %v7272 = vadd.f32 %v6997, %v7173
  %v7273 = vadd.f32 %v6998, %v7176
  %v7274 = vadd.f32 %v6999, %v7179
  %v7275 = vadd.f32 %v7000, %v7182
  %v7276 = vadd.f32 %v7001, %v7185
  %v7277 = vadd.f32 %v7002, %v7188
  %v7278 = vadd.f32 %v7003, %v7191
  %v7279 = vadd.f32 %v7004, %v7194
  %v7280 = vadd.f32 %v7005, %v7197
  %v7281 = vadd.f32 %v7006, %v7200
  %v7282 = vadd.f32 %v7007, %v7203
  %v7283 = vadd.f32 %v7008, %v7206
  %v7284 = vadd.f32 %v7009, %v7209
  %v7285 = vadd.f32 %v7010, %v7212
  %v7286 = vadd.f32 %v7011, %v7215
  %v7287 = vadd.f32 %v7012, %v7218
  %v7288 = vadd.f32 %v7013, %v7221
  %v7289 = vadd.f32 %v7014, %v7224
  %v7290 = vadd.f32 %v7015, %v7227
  %v7291 = vadd.f32 %v7016, %v7230
  %v7292 = vadd.f32 %v7017, %v7233
  %v7293 = vadd.f32 %v7018, %v7236
  %v7294 = vadd.f32 %v7019, %v7239
  %v7295 = vadd.f32 %v7020, %v7242
  %v7296 = vadd.f32 %v7021, %v7245
  %v7297 = vadd.f32 %v7022, %v7248
  %v7298 = vadd.f32 %v7023, %v7251
  %v7299 = vadd.f32 %v7024, %v7254
  %v7300 = vadd.f32 %v7025, %v7257
  %v7301 = vadd.f32 %v7026, %v7260
  %v7302 = vadd.f32 %v7027, %v7263
  %v7303 = vadd.f32 %v7028, %v7266
  %s7304 = scalar_lea.vmem %s8, 128
  %v7305 = vld [vmem:[%s7304] sm:$0xff]
  %v7306 = vld [vmem:[%s7304 + $0x8] sm:$0x3]
  %v7308 = vsel %vm959, %v5070, 0
  %v7311 = vsel %vm959, %v5073, 0
  %v7314 = vsel %vm959, %v5076, 0
  %v7317 = vsel %vm959, %v5079, 0
  %v7320 = vsel %vm959, %v5082, 0
  %v7323 = vsel %vm959, %v5085, 0
  %v7326 = vsel %vm959, %v5088, 0
  %v7329 = vsel %vm959, %v5091, 0
  %v7332 = vsel %vm959, %v5094, 0
  %v7335 = vsel %vm959, %v5097, 0
  %v7338 = vsel %vm959, %v5100, 0
  %v7341 = vsel %vm959, %v5103, 0
  %v7344 = vsel %vm959, %v5106, 0
  %v7347 = vsel %vm959, %v5109, 0
  %v7350 = vsel %vm959, %v5112, 0
  %v7353 = vsel %vm959, %v5115, 0
  %v7356 = vsel %vm959, %v5118, 0
  %v7359 = vsel %vm959, %v5121, 0
  %v7362 = vsel %vm959, %v5124, 0
  %v7365 = vsel %vm959, %v5127, 0
  %v7368 = vsel %vm959, %v5130, 0
  %v7371 = vsel %vm959, %v5133, 0
  %v7374 = vsel %vm959, %v5136, 0
  %v7377 = vsel %vm959, %v5139, 0
  %v7380 = vsel %vm959, %v5142, 0
  %v7383 = vsel %vm959, %v5145, 0
  %v7386 = vsel %vm959, %v5148, 0
  %v7389 = vsel %vm959, %v5151, 0
  %v7392 = vsel %vm959, %v5154, 0
  %v7395 = vsel %vm959, %v5157, 0
  %v7398 = vsel %vm959, %v5160, 0
  %v7401 = vsel %vm959, %v5163, 0
  %v7404 = vsel %vm959, %v5166, 0
  %v7407 = vsel %vm959, %v5169, 0
  %v7410 = vsel %vm959, %v5172, 0
  %v7413 = vsel %vm959, %v5175, 0
  %v7416 = vsel %vm963, %v7306, 0
  %7418 = vmatpush.msra.mxu0 0.0
  %7419 = vmatpush.msra.mxu0 0.0
  %7420 = vmatpush.msra.mxu0 0.0
  %7421 = vmatpush.msra.mxu0 0.0
  %7422 = vmatpush.msra.mxu0 0.0
  %7423 = vmatpush.msra.mxu0 0.0
  %7424 = vmatpush.msra.mxu0 0.0
  %7425 = vmatpush.msra.mxu0 0.0
  %7426 = vmatpush.msra.mxu0 0.0
  %7427 = vmatpush.msra.mxu0 0.0
  %7428 = vmatpush.msra.mxu0 0.0
  %7429 = vmatpush.msra.mxu0 0.0
  %7430 = vmatpush.msra.mxu0 0.0
  %7431 = vmatpush.msra.mxu0 0.0
  %7432 = vmatpush.msra.mxu0 %v7416
  %7433 = vmatpush.msra.mxu0 %v7305
  %7434 = vmatmul.f32.gmra.mxu0 %v7308
  %v7435 = vpop.f32.mrf.mxu0
  %v7436 = vadd.f32 0.0, %v7435
  %7437 = vmatmul.f32.gmra.mxu0 %v7311
  %v7438 = vpop.f32.mrf.mxu0
  %v7439 = vadd.f32 0.0, %v7438
  %7440 = vmatmul.f32.gmra.mxu0 %v7314
  %v7441 = vpop.f32.mrf.mxu0
  %v7442 = vadd.f32 0.0, %v7441
  %7443 = vmatmul.f32.gmra.mxu0 %v7317
  %v7444 = vpop.f32.mrf.mxu0
  %v7445 = vadd.f32 0.0, %v7444
  %7446 = vmatmul.f32.gmra.mxu0 %v7320
  %v7447 = vpop.f32.mrf.mxu0
  %v7448 = vadd.f32 0.0, %v7447
  %7449 = vmatmul.f32.gmra.mxu0 %v7323
  %v7450 = vpop.f32.mrf.mxu0
  %v7451 = vadd.f32 0.0, %v7450
  %7452 = vmatmul.f32.gmra.mxu0 %v7326
  %v7453 = vpop.f32.mrf.mxu0
  %v7454 = vadd.f32 0.0, %v7453
  %7455 = vmatmul.f32.gmra.mxu0 %v7329
  %v7456 = vpop.f32.mrf.mxu0
  %v7457 = vadd.f32 0.0, %v7456
  %7458 = vmatmul.f32.gmra.mxu0 %v7332
  %v7459 = vpop.f32.mrf.mxu0
  %v7460 = vadd.f32 0.0, %v7459
  %7461 = vmatmul.f32.gmra.mxu0 %v7335
  %v7462 = vpop.f32.mrf.mxu0
  %v7463 = vadd.f32 0.0, %v7462
  %7464 = vmatmul.f32.gmra.mxu0 %v7338
  %v7465 = vpop.f32.mrf.mxu0
  %v7466 = vadd.f32 0.0, %v7465
  %7467 = vmatmul.f32.gmra.mxu0 %v7341
  %v7468 = vpop.f32.mrf.mxu0
  %v7469 = vadd.f32 0.0, %v7468
  %7470 = vmatmul.f32.gmra.mxu0 %v7344
  %v7471 = vpop.f32.mrf.mxu0
  %v7472 = vadd.f32 0.0, %v7471
  %7473 = vmatmul.f32.gmra.mxu0 %v7347
  %v7474 = vpop.f32.mrf.mxu0
  %v7475 = vadd.f32 0.0, %v7474
  %7476 = vmatmul.f32.gmra.mxu0 %v7350
  %v7477 = vpop.f32.mrf.mxu0
  %v7478 = vadd.f32 0.0, %v7477
  %7479 = vmatmul.f32.gmra.mxu0 %v7353
  %v7480 = vpop.f32.mrf.mxu0
  %v7481 = vadd.f32 0.0, %v7480
  %7482 = vmatmul.f32.gmra.mxu0 %v7356
  %v7483 = vpop.f32.mrf.mxu0
  %v7484 = vadd.f32 0.0, %v7483
  %7485 = vmatmul.f32.gmra.mxu0 %v7359
  %v7486 = vpop.f32.mrf.mxu0
  %v7487 = vadd.f32 0.0, %v7486
  %7488 = vmatmul.f32.gmra.mxu0 %v7362
  %v7489 = vpop.f32.mrf.mxu0
  %v7490 = vadd.f32 0.0, %v7489
  %7491 = vmatmul.f32.gmra.mxu0 %v7365
  %v7492 = vpop.f32.mrf.mxu0
  %v7493 = vadd.f32 0.0, %v7492
  %7494 = vmatmul.f32.gmra.mxu0 %v7368
  %v7495 = vpop.f32.mrf.mxu0
  %v7496 = vadd.f32 0.0, %v7495
  %7497 = vmatmul.f32.gmra.mxu0 %v7371
  %v7498 = vpop.f32.mrf.mxu0
  %v7499 = vadd.f32 0.0, %v7498
  %7500 = vmatmul.f32.gmra.mxu0 %v7374
  %v7501 = vpop.f32.mrf.mxu0
  %v7502 = vadd.f32 0.0, %v7501
  %7503 = vmatmul.f32.gmra.mxu0 %v7377
  %v7504 = vpop.f32.mrf.mxu0
  %v7505 = vadd.f32 0.0, %v7504
  %7506 = vmatmul.f32.gmra.mxu0 %v7380
  %v7507 = vpop.f32.mrf.mxu0
  %v7508 = vadd.f32 0.0, %v7507
  %7509 = vmatmul.f32.gmra.mxu0 %v7383
  %v7510 = vpop.f32.mrf.mxu0
  %v7511 = vadd.f32 0.0, %v7510
  %7512 = vmatmul.f32.gmra.mxu0 %v7386
  %v7513 = vpop.f32.mrf.mxu0
  %v7514 = vadd.f32 0.0, %v7513
  %7515 = vmatmul.f32.gmra.mxu0 %v7389
  %v7516 = vpop.f32.mrf.mxu0
  %v7517 = vadd.f32 0.0, %v7516
  %7518 = vmatmul.f32.gmra.mxu0 %v7392
  %v7519 = vpop.f32.mrf.mxu0
  %v7520 = vadd.f32 0.0, %v7519
  %7521 = vmatmul.f32.gmra.mxu0 %v7395
  %v7522 = vpop.f32.mrf.mxu0
  %v7523 = vadd.f32 0.0, %v7522
  %7524 = vmatmul.f32.gmra.mxu0 %v7398
  %v7525 = vpop.f32.mrf.mxu0
  %v7526 = vadd.f32 0.0, %v7525
  %7527 = vmatmul.f32.gmra.mxu0 %v7401
  %v7528 = vpop.f32.mrf.mxu0
  %v7529 = vadd.f32 0.0, %v7528
  %7530 = vmatmul.f32.gmra.mxu0 %v7404
  %v7531 = vpop.f32.mrf.mxu0
  %v7532 = vadd.f32 0.0, %v7531
  %7533 = vmatmul.f32.gmra.mxu0 %v7407
  %v7534 = vpop.f32.mrf.mxu0
  %v7535 = vadd.f32 0.0, %v7534
  %7536 = vmatmul.f32.gmra.mxu0 %v7410
  %v7537 = vpop.f32.mrf.mxu0
  %v7538 = vadd.f32 0.0, %v7537
  %7539 = vmatmul.f32.gmra.mxu0 %v7413
  %v7540 = vpop.f32.mrf.mxu0
  %v7541 = vadd.f32 0.0, %v7540
  %7542 = vdwg.mxu0
  %v7543 = vadd.f32 %v7268, %v7436
  %v7544 = vadd.f32 %v7269, %v7439
  %v7545 = vadd.f32 %v7270, %v7442
  %v7546 = vadd.f32 %v7271, %v7445
  %v7547 = vadd.f32 %v7272, %v7448
  %v7548 = vadd.f32 %v7273, %v7451
  %v7549 = vadd.f32 %v7274, %v7454
  %v7550 = vadd.f32 %v7275, %v7457
  %v7551 = vadd.f32 %v7276, %v7460
  %v7552 = vadd.f32 %v7277, %v7463
  %v7553 = vadd.f32 %v7278, %v7466
  %v7554 = vadd.f32 %v7279, %v7469
  %v7555 = vadd.f32 %v7280, %v7472
  %v7556 = vadd.f32 %v7281, %v7475
  %v7557 = vadd.f32 %v7282, %v7478
  %v7558 = vadd.f32 %v7283, %v7481
  %v7559 = vadd.f32 %v7284, %v7484
  %v7560 = vadd.f32 %v7285, %v7487
  %v7561 = vadd.f32 %v7286, %v7490
  %v7562 = vadd.f32 %v7287, %v7493
  %v7563 = vadd.f32 %v7288, %v7496
  %v7564 = vadd.f32 %v7289, %v7499
  %v7565 = vadd.f32 %v7290, %v7502
  %v7566 = vadd.f32 %v7291, %v7505
  %v7567 = vadd.f32 %v7292, %v7508
  %v7568 = vadd.f32 %v7293, %v7511
  %v7569 = vadd.f32 %v7294, %v7514
  %v7570 = vadd.f32 %v7295, %v7517
  %v7571 = vadd.f32 %v7296, %v7520
  %v7572 = vadd.f32 %v7297, %v7523
  %v7573 = vadd.f32 %v7298, %v7526
  %v7574 = vadd.f32 %v7299, %v7529
  %v7575 = vadd.f32 %v7300, %v7532
  %v7576 = vadd.f32 %v7301, %v7535
  %v7577 = vadd.f32 %v7302, %v7538
  %v7578 = vadd.f32 %v7303, %v7541
  %v7579 = vld [vmem:[%s9] sm:$0x1]
  %v7581 = vperm.slane %v7579, 0
  %v7583 = vadd.f32 %v7543, %v7581
  %v7584 = vadd.f32 %v7544, %v7581
  %v7585 = vadd.f32 %v7545, %v7581
  %v7586 = vadd.f32 %v7546, %v7581
  %v7587 = vadd.f32 %v7547, %v7581
  %v7588 = vadd.f32 %v7548, %v7581
  %v7589 = vadd.f32 %v7549, %v7581
  %v7590 = vadd.f32 %v7550, %v7581
  %v7591 = vadd.f32 %v7551, %v7581
  %v7592 = vadd.f32 %v7552, %v7581
  %v7593 = vadd.f32 %v7553, %v7581
  %v7594 = vadd.f32 %v7554, %v7581
  %v7595 = vadd.f32 %v7555, %v7581
  %v7596 = vadd.f32 %v7556, %v7581
  %v7597 = vadd.f32 %v7557, %v7581
  %v7598 = vadd.f32 %v7558, %v7581
  %v7599 = vadd.f32 %v7559, %v7581
  %v7600 = vadd.f32 %v7560, %v7581
  %v7601 = vadd.f32 %v7561, %v7581
  %v7602 = vadd.f32 %v7562, %v7581
  %v7603 = vadd.f32 %v7563, %v7581
  %v7604 = vadd.f32 %v7564, %v7581
  %v7605 = vadd.f32 %v7565, %v7581
  %v7606 = vadd.f32 %v7566, %v7581
  %v7607 = vadd.f32 %v7567, %v7581
  %v7608 = vadd.f32 %v7568, %v7581
  %v7609 = vadd.f32 %v7569, %v7581
  %v7610 = vadd.f32 %v7570, %v7581
  %v7611 = vadd.f32 %v7571, %v7581
  %v7612 = vadd.f32 %v7572, %v7581
  %v7613 = vadd.f32 %v7573, %v7581
  %v7614 = vadd.f32 %v7574, %v7581
  %v7615 = vadd.f32 %v7575, %v7581
  %v7616 = vadd.f32 %v7576, %v7581
  %v7617 = vadd.f32 %v7577, %v7581
  %v7618 = vadd.f32 %v7578, %v7581
  %vm7619 = vcmask 162816
  %v7620 = vsel %vm7619, %v7583, 0.0
  %v7621 = vsel %vm7619, %v7584, 0.0
  %v7622 = vadd.f32 %v7620, %v7621
  %v7623 = vsel %vm7619, %v7585, 0.0
  %v7624 = vadd.f32 %v7622, %v7623
  %v7625 = vsel %vm7619, %v7586, 0.0
  %v7626 = vadd.f32 %v7624, %v7625
  %v7627 = vsel %vm7619, %v7587, 0.0
  %v7628 = vadd.f32 %v7626, %v7627
  %v7629 = vsel %vm7619, %v7588, 0.0
  %v7630 = vadd.f32 %v7628, %v7629
  %v7631 = vsel %vm7619, %v7589, 0.0
  %v7632 = vadd.f32 %v7630, %v7631
  %v7633 = vsel %vm7619, %v7590, 0.0
  %v7634 = vadd.f32 %v7632, %v7633
  %v7635 = vsel %vm7619, %v7591, 0.0
  %v7636 = vadd.f32 %v7634, %v7635
  %v7637 = vsel %vm7619, %v7592, 0.0
  %v7638 = vadd.f32 %v7636, %v7637
  %v7639 = vsel %vm7619, %v7593, 0.0
  %v7640 = vadd.f32 %v7638, %v7639
  %v7641 = vsel %vm7619, %v7594, 0.0
  %v7642 = vadd.f32 %v7640, %v7641
  %v7643 = vsel %vm7619, %v7595, 0.0
  %v7644 = vadd.f32 %v7642, %v7643
  %v7645 = vsel %vm7619, %v7596, 0.0
  %v7646 = vadd.f32 %v7644, %v7645
  %v7647 = vsel %vm7619, %v7597, 0.0
  %v7648 = vadd.f32 %v7646, %v7647
  %v7649 = vsel %vm7619, %v7598, 0.0
  %v7650 = vadd.f32 %v7648, %v7649
  %v7651 = vsel %vm7619, %v7599, 0.0
  %v7652 = vadd.f32 %v7650, %v7651
  %v7653 = vsel %vm7619, %v7600, 0.0
  %v7654 = vadd.f32 %v7652, %v7653
  %v7655 = vsel %vm7619, %v7601, 0.0
  %v7656 = vadd.f32 %v7654, %v7655
  %v7657 = vsel %vm7619, %v7602, 0.0
  %v7658 = vadd.f32 %v7656, %v7657
  %v7659 = vsel %vm7619, %v7603, 0.0
  %v7660 = vadd.f32 %v7658, %v7659
  %v7661 = vsel %vm7619, %v7604, 0.0
  %v7662 = vadd.f32 %v7660, %v7661
  %v7663 = vsel %vm7619, %v7605, 0.0
  %v7664 = vadd.f32 %v7662, %v7663
  %v7665 = vsel %vm7619, %v7606, 0.0
  %v7666 = vadd.f32 %v7664, %v7665
  %v7667 = vsel %vm7619, %v7607, 0.0
  %v7668 = vadd.f32 %v7666, %v7667
  %v7669 = vsel %vm7619, %v7608, 0.0
  %v7670 = vadd.f32 %v7668, %v7669
  %v7671 = vsel %vm7619, %v7609, 0.0
  %v7672 = vadd.f32 %v7670, %v7671
  %v7673 = vsel %vm7619, %v7610, 0.0
  %v7674 = vadd.f32 %v7672, %v7673
  %v7675 = vsel %vm7619, %v7611, 0.0
  %v7676 = vadd.f32 %v7674, %v7675
  %v7677 = vsel %vm7619, %v7612, 0.0
  %v7678 = vadd.f32 %v7676, %v7677
  %v7679 = vsel %vm7619, %v7613, 0.0
  %v7680 = vadd.f32 %v7678, %v7679
  %v7681 = vsel %vm7619, %v7614, 0.0
  %v7682 = vadd.f32 %v7680, %v7681
  %v7683 = vsel %vm7619, %v7615, 0.0
  %v7684 = vadd.f32 %v7682, %v7683
  %v7685 = vsel %vm7619, %v7616, 0.0
  %v7686 = vadd.f32 %v7684, %v7685
  %v7687 = vsel %vm7619, %v7617, 0.0
  %v7688 = vadd.f32 %v7686, %v7687
  %v7689 = vsel %vm7619, %v7618, 0.0
  %v7690 = vadd.f32 %v7688, %v7689
  %v7691 = vrot.slane %v7690, 4
  %v7692 = vadd.f32 %v7690, %v7691
  %v7693 = vrot.slane %v7692, 2
  %v7694 = vadd.f32 %v7692, %v7693
  %v7695 = vrot.slane %v7694, 1
  %v7696 = vadd.f32 %v7694, %v7695
  %v7697 = vrcp.pop 288.0
  %v7698 = vmul.f32 288.0, %v7697
  %v7699 = vsub.f32 1.0, %v7698
  %v7700 = vmul.f32 %v7697, %v7699
  %v7701 = vadd.f32 %v7697, %v7700
  %vm7702 = vweird.f32 %v7697
  %v7703 = vsel %vm7702, %v7697, %v7701
  %v7704 = vmul.f32 %v7696, %v7703
  %v7705 = vsub.f32 %v7583, %v7704
  %v7706 = vsub.f32 %v7584, %v7704
  %v7707 = vsub.f32 %v7585, %v7704
  %v7708 = vsub.f32 %v7586, %v7704
  %v7709 = vsub.f32 %v7587, %v7704
  %v7710 = vsub.f32 %v7588, %v7704
  %v7711 = vsub.f32 %v7589, %v7704
  %v7712 = vsub.f32 %v7590, %v7704
  %v7713 = vsub.f32 %v7591, %v7704
  %v7714 = vsub.f32 %v7592, %v7704
  %v7715 = vsub.f32 %v7593, %v7704
  %v7716 = vsub.f32 %v7594, %v7704
  %v7717 = vsub.f32 %v7595, %v7704
  %v7718 = vsub.f32 %v7596, %v7704
  %v7719 = vsub.f32 %v7597, %v7704
  %v7720 = vsub.f32 %v7598, %v7704
  %v7721 = vsub.f32 %v7599, %v7704
  %v7722 = vsub.f32 %v7600, %v7704
  %v7723 = vsub.f32 %v7601, %v7704
  %v7724 = vsub.f32 %v7602, %v7704
  %v7725 = vsub.f32 %v7603, %v7704
  %v7726 = vsub.f32 %v7604, %v7704
  %v7727 = vsub.f32 %v7605, %v7704
  %v7728 = vsub.f32 %v7606, %v7704
  %v7729 = vsub.f32 %v7607, %v7704
  %v7730 = vsub.f32 %v7608, %v7704
  %v7731 = vsub.f32 %v7609, %v7704
  %v7732 = vsub.f32 %v7610, %v7704
  %v7733 = vsub.f32 %v7611, %v7704
  %v7734 = vsub.f32 %v7612, %v7704
  %v7735 = vsub.f32 %v7613, %v7704
  %v7736 = vsub.f32 %v7614, %v7704
  %v7737 = vsub.f32 %v7615, %v7704
  %v7738 = vsub.f32 %v7616, %v7704
  %v7739 = vsub.f32 %v7617, %v7704
  %v7740 = vsub.f32 %v7618, %v7704
  %v7741 = vmul.f32 %v7705, %v7705
  %v7742 = vmul.f32 %v7706, %v7706
  %v7743 = vmul.f32 %v7707, %v7707
  %v7744 = vmul.f32 %v7708, %v7708
  %v7745 = vmul.f32 %v7709, %v7709
  %v7746 = vmul.f32 %v7710, %v7710
  %v7747 = vmul.f32 %v7711, %v7711
  %v7748 = vmul.f32 %v7712, %v7712
  %v7749 = vmul.f32 %v7713, %v7713
  %v7750 = vmul.f32 %v7714, %v7714
  %v7751 = vmul.f32 %v7715, %v7715
  %v7752 = vmul.f32 %v7716, %v7716
  %v7753 = vmul.f32 %v7717, %v7717
  %v7754 = vmul.f32 %v7718, %v7718
  %v7755 = vmul.f32 %v7719, %v7719
  %v7756 = vmul.f32 %v7720, %v7720
  %v7757 = vmul.f32 %v7721, %v7721
  %v7758 = vmul.f32 %v7722, %v7722
  %v7759 = vmul.f32 %v7723, %v7723
  %v7760 = vmul.f32 %v7724, %v7724
  %v7761 = vmul.f32 %v7725, %v7725
  %v7762 = vmul.f32 %v7726, %v7726
  %v7763 = vmul.f32 %v7727, %v7727
  %v7764 = vmul.f32 %v7728, %v7728
  %v7765 = vmul.f32 %v7729, %v7729
  %v7766 = vmul.f32 %v7730, %v7730
  %v7767 = vmul.f32 %v7731, %v7731
  %v7768 = vmul.f32 %v7732, %v7732
  %v7769 = vmul.f32 %v7733, %v7733
  %v7770 = vmul.f32 %v7734, %v7734
  %v7771 = vmul.f32 %v7735, %v7735
  %v7772 = vmul.f32 %v7736, %v7736
  %v7773 = vmul.f32 %v7737, %v7737
  %v7774 = vmul.f32 %v7738, %v7738
  %v7775 = vmul.f32 %v7739, %v7739
  %v7776 = vmul.f32 %v7740, %v7740
  %v7777 = vsel %vm7619, %v7741, 0.0
  %v7778 = vsel %vm7619, %v7742, 0.0
  %v7779 = vadd.f32 %v7777, %v7778
  %v7780 = vsel %vm7619, %v7743, 0.0
  %v7781 = vadd.f32 %v7779, %v7780
  %v7782 = vsel %vm7619, %v7744, 0.0
  %v7783 = vadd.f32 %v7781, %v7782
  %v7784 = vsel %vm7619, %v7745, 0.0
  %v7785 = vadd.f32 %v7783, %v7784
  %v7786 = vsel %vm7619, %v7746, 0.0
  %v7787 = vadd.f32 %v7785, %v7786
  %v7788 = vsel %vm7619, %v7747, 0.0
  %v7789 = vadd.f32 %v7787, %v7788
  %v7790 = vsel %vm7619, %v7748, 0.0
  %v7791 = vadd.f32 %v7789, %v7790
  %v7792 = vsel %vm7619, %v7749, 0.0
  %v7793 = vadd.f32 %v7791, %v7792
  %v7794 = vsel %vm7619, %v7750, 0.0
  %v7795 = vadd.f32 %v7793, %v7794
  %v7796 = vsel %vm7619, %v7751, 0.0
  %v7797 = vadd.f32 %v7795, %v7796
  %v7798 = vsel %vm7619, %v7752, 0.0
  %v7799 = vadd.f32 %v7797, %v7798
  %v7800 = vsel %vm7619, %v7753, 0.0
  %v7801 = vadd.f32 %v7799, %v7800
  %v7802 = vsel %vm7619, %v7754, 0.0
  %v7803 = vadd.f32 %v7801, %v7802
  %v7804 = vsel %vm7619, %v7755, 0.0
  %v7805 = vadd.f32 %v7803, %v7804
  %v7806 = vsel %vm7619, %v7756, 0.0
  %v7807 = vadd.f32 %v7805, %v7806
  %v7808 = vsel %vm7619, %v7757, 0.0
  %v7809 = vadd.f32 %v7807, %v7808
  %v7810 = vsel %vm7619, %v7758, 0.0
  %v7811 = vadd.f32 %v7809, %v7810
  %v7812 = vsel %vm7619, %v7759, 0.0
  %v7813 = vadd.f32 %v7811, %v7812
  %v7814 = vsel %vm7619, %v7760, 0.0
  %v7815 = vadd.f32 %v7813, %v7814
  %v7816 = vsel %vm7619, %v7761, 0.0
  %v7817 = vadd.f32 %v7815, %v7816
  %v7818 = vsel %vm7619, %v7762, 0.0
  %v7819 = vadd.f32 %v7817, %v7818
  %v7820 = vsel %vm7619, %v7763, 0.0
  %v7821 = vadd.f32 %v7819, %v7820
  %v7822 = vsel %vm7619, %v7764, 0.0
  %v7823 = vadd.f32 %v7821, %v7822
  %v7824 = vsel %vm7619, %v7765, 0.0
  %v7825 = vadd.f32 %v7823, %v7824
  %v7826 = vsel %vm7619, %v7766, 0.0
  %v7827 = vadd.f32 %v7825, %v7826
  %v7828 = vsel %vm7619, %v7767, 0.0
  %v7829 = vadd.f32 %v7827, %v7828
  %v7830 = vsel %vm7619, %v7768, 0.0
  %v7831 = vadd.f32 %v7829, %v7830
  %v7832 = vsel %vm7619, %v7769, 0.0
  %v7833 = vadd.f32 %v7831, %v7832
  %v7834 = vsel %vm7619, %v7770, 0.0
  %v7835 = vadd.f32 %v7833, %v7834
  %v7836 = vsel %vm7619, %v7771, 0.0
  %v7837 = vadd.f32 %v7835, %v7836
  %v7838 = vsel %vm7619, %v7772, 0.0
  %v7839 = vadd.f32 %v7837, %v7838
  %v7840 = vsel %vm7619, %v7773, 0.0
  %v7841 = vadd.f32 %v7839, %v7840
  %v7842 = vsel %vm7619, %v7774, 0.0
  %v7843 = vadd.f32 %v7841, %v7842
  %v7844 = vsel %vm7619, %v7775, 0.0
  %v7845 = vadd.f32 %v7843, %v7844
  %v7846 = vsel %vm7619, %v7776, 0.0
  %v7847 = vadd.f32 %v7845, %v7846
  %v7848 = vrot.slane %v7847, 4
  %v7849 = vadd.f32 %v7847, %v7848
  %v7850 = vrot.slane %v7849, 2
  %v7851 = vadd.f32 %v7849, %v7850
  %v7852 = vrot.slane %v7851, 1
  %v7853 = vadd.f32 %v7851, %v7852
  %v7854 = vmul.f32 %v7853, %v7703
  %v7855 = vadd.f32 %v7854, 1e-05
  %v7856 = vrsqrt.pop %v7855
  %v7857 = vmul.f32 %v7856, %v7855
  %v7858 = vmul.f32 %v7857, %v7856
  %v7859 = vmul.f32 0.5, %v7858
  %v7860 = vsub.f32 1.5, %v7859
  %v7861 = vmul.f32 %v7856, %v7860
  %vm7862 = vweird.f32 %v7855
  %vm7863 = vweird.f32 %v7856
  %vm7864 = vmor %vm7862, %vm7863
  %v7865 = vsel %vm7864, %v7856, %v7861
  %v7866 = vmul.f32 %v7705, %v7865
  %v7867 = vmul.f32 %v7706, %v7865
  %v7868 = vmul.f32 %v7707, %v7865
  %v7869 = vmul.f32 %v7708, %v7865
  %v7870 = vmul.f32 %v7709, %v7865
  %v7871 = vmul.f32 %v7710, %v7865
  %v7872 = vmul.f32 %v7711, %v7865
  %v7873 = vmul.f32 %v7712, %v7865
  %v7874 = vmul.f32 %v7713, %v7865
  %v7875 = vmul.f32 %v7714, %v7865
  %v7876 = vmul.f32 %v7715, %v7865
  %v7877 = vmul.f32 %v7716, %v7865
  %v7878 = vmul.f32 %v7717, %v7865
  %v7879 = vmul.f32 %v7718, %v7865
  %v7880 = vmul.f32 %v7719, %v7865
  %v7881 = vmul.f32 %v7720, %v7865
  %v7882 = vmul.f32 %v7721, %v7865
  %v7883 = vmul.f32 %v7722, %v7865
  %v7884 = vmul.f32 %v7723, %v7865
  %v7885 = vmul.f32 %v7724, %v7865
  %v7886 = vmul.f32 %v7725, %v7865
  %v7887 = vmul.f32 %v7726, %v7865
  %v7888 = vmul.f32 %v7727, %v7865
  %v7889 = vmul.f32 %v7728, %v7865
  %v7890 = vmul.f32 %v7729, %v7865
  %v7891 = vmul.f32 %v7730, %v7865
  %v7892 = vmul.f32 %v7731, %v7865
  %v7893 = vmul.f32 %v7732, %v7865
  %v7894 = vmul.f32 %v7733, %v7865
  %v7895 = vmul.f32 %v7734, %v7865
  %v7896 = vmul.f32 %v7735, %v7865
  %v7897 = vmul.f32 %v7736, %v7865
  %v7898 = vmul.f32 %v7737, %v7865
  %v7899 = vmul.f32 %v7738, %v7865
  %v7900 = vmul.f32 %v7739, %v7865
  %v7901 = vmul.f32 %v7740, %v7865
  %v7902 = vld [vmem:[%s10] sm:$0x1]
  %v7904 = vperm.slane %v7902, 0
  %v7906 = vmul.f32 %v7866, %v7904
  %v7907 = vmul.f32 %v7867, %v7904
  %v7908 = vmul.f32 %v7868, %v7904
  %v7909 = vmul.f32 %v7869, %v7904
  %v7910 = vmul.f32 %v7870, %v7904
  %v7911 = vmul.f32 %v7871, %v7904
  %v7912 = vmul.f32 %v7872, %v7904
  %v7913 = vmul.f32 %v7873, %v7904
  %v7914 = vmul.f32 %v7874, %v7904
  %v7915 = vmul.f32 %v7875, %v7904
  %v7916 = vmul.f32 %v7876, %v7904
  %v7917 = vmul.f32 %v7877, %v7904
  %v7918 = vmul.f32 %v7878, %v7904
  %v7919 = vmul.f32 %v7879, %v7904
  %v7920 = vmul.f32 %v7880, %v7904
  %v7921 = vmul.f32 %v7881, %v7904
  %v7922 = vmul.f32 %v7882, %v7904
  %v7923 = vmul.f32 %v7883, %v7904
  %v7924 = vmul.f32 %v7884, %v7904
  %v7925 = vmul.f32 %v7885, %v7904
  %v7926 = vmul.f32 %v7886, %v7904
  %v7927 = vmul.f32 %v7887, %v7904
  %v7928 = vmul.f32 %v7888, %v7904
  %v7929 = vmul.f32 %v7889, %v7904
  %v7930 = vmul.f32 %v7890, %v7904
  %v7931 = vmul.f32 %v7891, %v7904
  %v7932 = vmul.f32 %v7892, %v7904
  %v7933 = vmul.f32 %v7893, %v7904
  %v7934 = vmul.f32 %v7894, %v7904
  %v7935 = vmul.f32 %v7895, %v7904
  %v7936 = vmul.f32 %v7896, %v7904
  %v7937 = vmul.f32 %v7897, %v7904
  %v7938 = vmul.f32 %v7898, %v7904
  %v7939 = vmul.f32 %v7899, %v7904
  %v7940 = vmul.f32 %v7900, %v7904
  %v7941 = vmul.f32 %v7901, %v7904
  %v7942 = vld [vmem:[%s11] sm:$0x1]
  %v7944 = vperm.slane %v7942, 0
  %v7946 = vadd.f32 %v7906, %v7944
  %v7947 = vadd.f32 %v7907, %v7944
  %v7948 = vadd.f32 %v7908, %v7944
  %v7949 = vadd.f32 %v7909, %v7944
  %v7950 = vadd.f32 %v7910, %v7944
  %v7951 = vadd.f32 %v7911, %v7944
  %v7952 = vadd.f32 %v7912, %v7944
  %v7953 = vadd.f32 %v7913, %v7944
  %v7954 = vadd.f32 %v7914, %v7944
  %v7955 = vadd.f32 %v7915, %v7944
  %v7956 = vadd.f32 %v7916, %v7944
  %v7957 = vadd.f32 %v7917, %v7944
  %v7958 = vadd.f32 %v7918, %v7944
  %v7959 = vadd.f32 %v7919, %v7944
  %v7960 = vadd.f32 %v7920, %v7944
  %v7961 = vadd.f32 %v7921, %v7944
  %v7962 = vadd.f32 %v7922, %v7944
  %v7963 = vadd.f32 %v7923, %v7944
  %v7964 = vadd.f32 %v7924, %v7944
  %v7965 = vadd.f32 %v7925, %v7944
  %v7966 = vadd.f32 %v7926, %v7944
  %v7967 = vadd.f32 %v7927, %v7944
  %v7968 = vadd.f32 %v7928, %v7944
  %v7969 = vadd.f32 %v7929, %v7944
  %v7970 = vadd.f32 %v7930, %v7944
  %v7971 = vadd.f32 %v7931, %v7944
  %v7972 = vadd.f32 %v7932, %v7944
  %v7973 = vadd.f32 %v7933, %v7944
  %v7974 = vadd.f32 %v7934, %v7944
  %v7975 = vadd.f32 %v7935, %v7944
  %v7976 = vadd.f32 %v7936, %v7944
  %v7977 = vadd.f32 %v7937, %v7944
  %v7978 = vadd.f32 %v7938, %v7944
  %v7979 = vadd.f32 %v7939, %v7944
  %v7980 = vadd.f32 %v7940, %v7944
  %v7981 = vadd.f32 %v7941, %v7944
  %v7982 = vmax.f32 %v7946, 0.0
  %v7983 = vmax.f32 %v7947, 0.0
  %v7984 = vmax.f32 %v7948, 0.0
  %v7985 = vmax.f32 %v7949, 0.0
  %v7986 = vmax.f32 %v7950, 0.0
  %v7987 = vmax.f32 %v7951, 0.0
  %v7988 = vmax.f32 %v7952, 0.0
  %v7989 = vmax.f32 %v7953, 0.0
  %v7990 = vmax.f32 %v7954, 0.0
  %v7991 = vmax.f32 %v7955, 0.0
  %v7992 = vmax.f32 %v7956, 0.0
  %v7993 = vmax.f32 %v7957, 0.0
  %v7994 = vmax.f32 %v7958, 0.0
  %v7995 = vmax.f32 %v7959, 0.0
  %v7996 = vmax.f32 %v7960, 0.0
  %v7997 = vmax.f32 %v7961, 0.0
  %v7998 = vmax.f32 %v7962, 0.0
  %v7999 = vmax.f32 %v7963, 0.0
  %v8000 = vmax.f32 %v7964, 0.0
  %v8001 = vmax.f32 %v7965, 0.0
  %v8002 = vmax.f32 %v7966, 0.0
  %v8003 = vmax.f32 %v7967, 0.0
  %v8004 = vmax.f32 %v7968, 0.0
  %v8005 = vmax.f32 %v7969, 0.0
  %v8006 = vmax.f32 %v7970, 0.0
  %v8007 = vmax.f32 %v7971, 0.0
  %v8008 = vmax.f32 %v7972, 0.0
  %v8009 = vmax.f32 %v7973, 0.0
  %v8010 = vmax.f32 %v7974, 0.0
  %v8011 = vmax.f32 %v7975, 0.0
  %v8012 = vmax.f32 %v7976, 0.0
  %v8013 = vmax.f32 %v7977, 0.0
  %v8014 = vmax.f32 %v7978, 0.0
  %v8015 = vmax.f32 %v7979, 0.0
  %v8016 = vmax.f32 %v7980, 0.0
  %v8017 = vmax.f32 %v7981, 0.0
  %v8018 = vld [vmem:[%s12] sm:$0x3f]
  %8020 = vst [vmem:[#allocation1] ss:$4 sm:$0xff] %v8018
  %v8021 = vld.sshfl [vmem:[#allocation1] sm:$0xff pattern:$0x73625140]
  %v8022 = vld.sshfl [vmem:[#allocation1 + $0x8] sm:$0xff pattern:$0x73625140]
  %v8023 = vld.sshfl [vmem:[#allocation1 + $0x10] sm:$0xff pattern:$0x73625140]
  %vm8026 = vcmask 261120
  %v8027 = vsel %vm8026, %v8023, 0
  %8029 = vmatpush.msra.mxu0 %v7997
  %8030 = vmatpush.msra.mxu0 %v7996
  %8031 = vmatpush.msra.mxu0 %v7995
  %8032 = vmatpush.msra.mxu0 %v7994
  %8033 = vmatpush.msra.mxu0 %v7993
  %8034 = vmatpush.msra.mxu0 %v7992
  %8035 = vmatpush.msra.mxu0 %v7991
  %8036 = vmatpush.msra.mxu0 %v7990
  %8037 = vmatpush.msra.mxu0 %v7989
  %8038 = vmatpush.msra.mxu0 %v7988
  %8039 = vmatpush.msra.mxu0 %v7987
  %8040 = vmatpush.msra.mxu0 %v7986
  %8041 = vmatpush.msra.mxu0 %v7985
  %8042 = vmatpush.msra.mxu0 %v7984
  %8043 = vmatpush.msra.mxu0 %v7983
  %8044 = vmatpush.msra.mxu0 %v7982
  %8045 = vmatmul.f32.gmra.mxu0 %v8021
  %v8046 = vpop.f32.mrf.mxu0
  %v8047 = vadd.f32 0.0, %v8046
  %8048 = vdwg.mxu0
  %8049 = vmatpush.msra.mxu0 %v8013
  %8050 = vmatpush.msra.mxu0 %v8012
  %8051 = vmatpush.msra.mxu0 %v8011
  %8052 = vmatpush.msra.mxu0 %v8010
  %8053 = vmatpush.msra.mxu0 %v8009
  %8054 = vmatpush.msra.mxu0 %v8008
  %8055 = vmatpush.msra.mxu0 %v8007
  %8056 = vmatpush.msra.mxu0 %v8006
  %8057 = vmatpush.msra.mxu0 %v8005
  %8058 = vmatpush.msra.mxu0 %v8004
  %8059 = vmatpush.msra.mxu0 %v8003
  %8060 = vmatpush.msra.mxu0 %v8002
  %8061 = vmatpush.msra.mxu0 %v8001
  %8062 = vmatpush.msra.mxu0 %v8000
  %8063 = vmatpush.msra.mxu0 %v7999
  %8064 = vmatpush.msra.mxu0 %v7998
  %8065 = vmatmul.f32.gmra.mxu0 %v8022
  %v8066 = vpop.f32.mrf.mxu0
  %v8067 = vadd.f32 %v8047, %v8066
  %8068 = vdwg.mxu0
  %8069 = vmatpush.msra.mxu0 0.0
  %8070 = vmatpush.msra.mxu0 0.0
  %8071 = vmatpush.msra.mxu0 0.0
  %8072 = vmatpush.msra.mxu0 0.0
  %8073 = vmatpush.msra.mxu0 0.0
  %8074 = vmatpush.msra.mxu0 0.0
  %8075 = vmatpush.msra.mxu0 0.0
  %8076 = vmatpush.msra.mxu0 0.0
  %8077 = vmatpush.msra.mxu0 0.0
  %8078 = vmatpush.msra.mxu0 0.0
  %8079 = vmatpush.msra.mxu0 0.0
  %8080 = vmatpush.msra.mxu0 0.0
  %8081 = vmatpush.msra.mxu0 %v8017
  %8082 = vmatpush.msra.mxu0 %v8016
  %8083 = vmatpush.msra.mxu0 %v8015
  %8084 = vmatpush.msra.mxu0 %v8014
  %8085 = vmatmul.f32.gmra.mxu0 %v8027
  %v8086 = vpop.f32.mrf.mxu0
  %v8087 = vadd.f32 %v8067, %v8086
  %8088 = vdwg.mxu0
  %v8089 = vld [vmem:[%s14] sm:$0xff]
  %v8090 = vld [vmem:[%s14 + $0x8] sm:$0xff]
  %v8091 = vld [vmem:[%s14 + $0x10] sm:$0xf]
  %v8093 = vsel %vm7619, %v8087, 0
  %vm8095 = vcmask 1043456
  %v8097 = vsel %vm8095, %v8091, 0
  %8099 = vmatpush.msra.mxu0 0.0
  %8100 = vmatpush.msra.mxu0 0.0
  %8101 = vmatpush.msra.mxu0 0.0
  %8102 = vmatpush.msra.mxu0 0.0
  %8103 = vmatpush.msra.mxu0 0.0
  %8104 = vmatpush.msra.mxu0 0.0
  %8105 = vmatpush.msra.mxu0 0.0
  %8106 = vmatpush.msra.mxu0 0.0
  %8107 = vmatpush.msra.mxu0 0.0
  %8108 = vmatpush.msra.mxu0 0.0
  %8109 = vmatpush.msra.mxu0 0.0
  %8110 = vmatpush.msra.mxu0 0.0
  %8111 = vmatpush.msra.mxu0 0.0
  %8112 = vmatpush.msra.mxu0 %v8097
  %8113 = vmatpush.msra.mxu0 %v8090
  %8114 = vmatpush.msra.mxu0 %v8089
  %8115 = vmatmul.f32.gmra.mxu0 %v8093
  %v8116 = vpop.f32.mrf.mxu0
  %v8117 = vadd.f32 0.0, %v8116
  %8118 = vdwg.mxu0
  %v8119 = vmax.f32 %v8117, 0.0
  %v8120 = vld [vmem:[%s15] sm:$0xf]
  %vm8121 = vcmask 31744
  %v8123 = vsel %vm8121, %v8119, 0
  %v8126 = vsel %vm8095, %v8120, 0
  %8128 = vmatpush.msra.mxu0 0.0
  %8129 = vmatpush.msra.mxu0 0.0
  %8130 = vmatpush.msra.mxu0 0.0
  %8131 = vmatpush.msra.mxu0 0.0
  %8132 = vmatpush.msra.mxu0 0.0
  %8133 = vmatpush.msra.mxu0 0.0
  %8134 = vmatpush.msra.mxu0 0.0
  %8135 = vmatpush.msra.mxu0 0.0
  %8136 = vmatpush.msra.mxu0 0.0
  %8137 = vmatpush.msra.mxu0 0.0
  %8138 = vmatpush.msra.mxu0 0.0
  %8139 = vmatpush.msra.mxu0 0.0
  %8140 = vmatpush.msra.mxu0 0.0
  %8141 = vmatpush.msra.mxu0 0.0
  %8142 = vmatpush.msra.mxu0 0.0
  %8143 = vmatpush.msra.mxu0 %v8126
  %8144 = vmatmul.f32.gmra.mxu0 %v8123
  %v8145 = vpop.f32.mrf.mxu0
  %v8146 = vadd.f32 0.0, %v8145
  %8147 = vdwg.mxu0
  %v8148 = vxor.u32 %v8146, 2147483648
  %v8149 = vmul.f32 %v8148, 1.442695
  %v8150 = vpow.pop %v8149
  %v8151 = vadd.f32 %v8150, 1.0
  %v8152 = vrcp.pop %v8151
  %v8153 = vmul.f32 %v8151, %v8152
  %v8154 = vsub.f32 1.0, %v8153
  %v8155 = vmul.f32 %v8152, %v8154
  %v8156 = vadd.f32 %v8152, %v8155
  %vm8157 = vweird.f32 %v8151
  %vm8158 = vweird.f32 %v8152
  %vm8159 = vmor %vm8157, %vm8158
  %v8160 = vsel %vm8159, %v8152, %v8156
  %v8161 = vand.u32 2147483647, %v8151
  %vm8162 = vcmp.eq.f32.partialorder %v8161, 8.507059e+37
  %v8163 = vand.u32 %v8151, 2147483648
  %v8164 = vor.u32 1.1754944e-38, %v8163
  %v8165 = vsel %vm8162, %v8164, %v8160
  %v8166 = vmul.f32 1.0, %v8165
  %v8167 = vld [vmem:[%s13] sm:$0xff]
  %v8168 = vld [vmem:[%s13 + $0x8] sm:$0xff]
  %v8169 = vld [vmem:[%s13 + $0x10] sm:$0xff]
  %v8170 = vld [vmem:[%s13 + $0x18] sm:$0xff]
  %v8171 = vld [vmem:[%s13 + $0x20] sm:$0xff]
  %v8172 = vld [vmem:[%s13 + $0x28] sm:$0xff]
  %v8173 = vld [vmem:[%s13 + $0x30] sm:$0xff]
  %v8174 = vld [vmem:[%s13 + $0x38] sm:$0xff]
  %v8175 = vld [vmem:[%s13 + $0x40] sm:$0xff]
  %v8176 = vld [vmem:[%s13 + $0x48] sm:$0xff]
  %v8177 = vld [vmem:[%s13 + $0x50] sm:$0xff]
  %v8178 = vld [vmem:[%s13 + $0x58] sm:$0xff]
  %v8179 = vld [vmem:[%s13 + $0x60] sm:$0xff]
  %v8180 = vld [vmem:[%s13 + $0x68] sm:$0xff]
  %v8181 = vld [vmem:[%s13 + $0x70] sm:$0xff]
  %v8182 = vld [vmem:[%s13 + $0x78] sm:$0xff]
  %v8183 = vld [vmem:[%s13 + $0x80] sm:$0xff]
  %v8184 = vld [vmem:[%s13 + $0x88] sm:$0xff]
  %v8185 = vld [vmem:[%s13 + $0x90] sm:$0xff]
  %v8186 = vld [vmem:[%s13 + $0x98] sm:$0xff]
  %v8187 = vld [vmem:[%s13 + $0xa0] sm:$0xff]
  %v8188 = vld [vmem:[%s13 + $0xa8] sm:$0xff]
  %v8189 = vld [vmem:[%s13 + $0xb0] sm:$0xff]
  %v8190 = vld [vmem:[%s13 + $0xb8] sm:$0xff]
  %v8191 = vld [vmem:[%s13 + $0xc0] sm:$0xff]
  %v8192 = vld [vmem:[%s13 + $0xc8] sm:$0xff]
  %v8193 = vld [vmem:[%s13 + $0xd0] sm:$0xff]
  %v8194 = vld [vmem:[%s13 + $0xd8] sm:$0xff]
  %v8195 = vld [vmem:[%s13 + $0xe0] sm:$0xff]
  %v8196 = vld [vmem:[%s13 + $0xe8] sm:$0xff]
  %v8197 = vld [vmem:[%s13 + $0xf0] sm:$0xff]
  %v8198 = vld [vmem:[%s13 + $0xf8] sm:$0xff]
  %v8199 = vld [vmem:[%s13 + $0x100] sm:$0xff]
  %v8200 = vld [vmem:[%s13 + $0x108] sm:$0xff]
  %v8201 = vld [vmem:[%s13 + $0x110] sm:$0xff]
  %v8202 = vld [vmem:[%s13 + $0x118] sm:$0xff]
  %v8204 = vsel %vm989, %v8167, 0
  %v8207 = vsel %vm989, %v8168, 0
  %v8210 = vsel %vm989, %v8169, 0
  %v8213 = vsel %vm989, %v8170, 0
  %v8216 = vsel %vm989, %v8171, 0
  %v8219 = vsel %vm989, %v8172, 0
  %v8222 = vsel %vm989, %v8173, 0
  %v8225 = vsel %vm989, %v8174, 0
  %v8228 = vsel %vm989, %v8175, 0
  %v8231 = vsel %vm989, %v8176, 0
  %v8234 = vsel %vm989, %v8177, 0
  %v8237 = vsel %vm989, %v8178, 0
  %v8240 = vsel %vm989, %v8179, 0
  %v8243 = vsel %vm989, %v8180, 0
  %v8246 = vsel %vm989, %v8181, 0
  %v8249 = vsel %vm989, %v8182, 0
  %v8252 = vsel %vm989, %v8183, 0
  %v8255 = vsel %vm989, %v8184, 0
  %v8258 = vsel %vm989, %v8185, 0
  %v8261 = vsel %vm989, %v8186, 0
  %v8264 = vsel %vm989, %v8187, 0
  %v8267 = vsel %vm989, %v8188, 0
  %v8270 = vsel %vm989, %v8189, 0
  %v8273 = vsel %vm989, %v8190, 0
  %v8276 = vsel %vm989, %v8191, 0
  %v8279 = vsel %vm989, %v8192, 0
  %v8282 = vsel %vm989, %v8193, 0
  %v8285 = vsel %vm989, %v8194, 0
  %v8288 = vsel %vm989, %v8195, 0
  %v8291 = vsel %vm989, %v8196, 0
  %v8294 = vsel %vm989, %v8197, 0
  %v8297 = vsel %vm989, %v8198, 0
  %v8300 = vsel %vm989, %v8199, 0
  %v8303 = vsel %vm989, %v8200, 0
  %v8306 = vsel %vm989, %v8201, 0
  %v8309 = vsel %vm989, %v8202, 0
  %v8312 = vsel %vm963, %v8166, 0
  %8314 = vmatpush.msra.mxu0 0.0
  %8315 = vmatpush.msra.mxu0 0.0
  %8316 = vmatpush.msra.mxu0 0.0
  %8317 = vmatpush.msra.mxu0 0.0
  %8318 = vmatpush.msra.mxu0 0.0
  %8319 = vmatpush.msra.mxu0 0.0
  %8320 = vmatpush.msra.mxu0 0.0
  %8321 = vmatpush.msra.mxu0 0.0
  %8322 = vmatpush.msra.mxu0 0.0
  %8323 = vmatpush.msra.mxu0 0.0
  %8324 = vmatpush.msra.mxu0 0.0
  %8325 = vmatpush.msra.mxu0 0.0
  %8326 = vmatpush.msra.mxu0 0.0
  %8327 = vmatpush.msra.mxu0 0.0
  %8328 = vmatpush.msra.mxu0 0.0
  %8329 = vmatpush.msra.mxu0 %v8312
  %8330 = vmatmul.f32.gmra.mxu0 %v8204
  %v8331 = vpop.f32.mrf.mxu0
  %v8332 = vadd.f32 0.0, %v8331
  %8333 = vmatmul.f32.gmra.mxu0 %v8207
  %v8334 = vpop.f32.mrf.mxu0
  %v8335 = vadd.f32 0.0, %v8334
  %8336 = vmatmul.f32.gmra.mxu0 %v8210
  %v8337 = vpop.f32.mrf.mxu0
  %v8338 = vadd.f32 0.0, %v8337
  %8339 = vmatmul.f32.gmra.mxu0 %v8213
  %v8340 = vpop.f32.mrf.mxu0
  %v8341 = vadd.f32 0.0, %v8340
  %8342 = vmatmul.f32.gmra.mxu0 %v8216
  %v8343 = vpop.f32.mrf.mxu0
  %v8344 = vadd.f32 0.0, %v8343
  %8345 = vmatmul.f32.gmra.mxu0 %v8219
  %v8346 = vpop.f32.mrf.mxu0
  %v8347 = vadd.f32 0.0, %v8346
  %8348 = vmatmul.f32.gmra.mxu0 %v8222
  %v8349 = vpop.f32.mrf.mxu0
  %v8350 = vadd.f32 0.0, %v8349
  %8351 = vmatmul.f32.gmra.mxu0 %v8225
  %v8352 = vpop.f32.mrf.mxu0
  %v8353 = vadd.f32 0.0, %v8352
  %8354 = vmatmul.f32.gmra.mxu0 %v8228
  %v8355 = vpop.f32.mrf.mxu0
  %v8356 = vadd.f32 0.0, %v8355
  %8357 = vmatmul.f32.gmra.mxu0 %v8231
  %v8358 = vpop.f32.mrf.mxu0
  %v8359 = vadd.f32 0.0, %v8358
  %8360 = vmatmul.f32.gmra.mxu0 %v8234
  %v8361 = vpop.f32.mrf.mxu0
  %v8362 = vadd.f32 0.0, %v8361
  %8363 = vmatmul.f32.gmra.mxu0 %v8237
  %v8364 = vpop.f32.mrf.mxu0
  %v8365 = vadd.f32 0.0, %v8364
  %8366 = vmatmul.f32.gmra.mxu0 %v8240
  %v8367 = vpop.f32.mrf.mxu0
  %v8368 = vadd.f32 0.0, %v8367
  %8369 = vmatmul.f32.gmra.mxu0 %v8243
  %v8370 = vpop.f32.mrf.mxu0
  %v8371 = vadd.f32 0.0, %v8370
  %8372 = vmatmul.f32.gmra.mxu0 %v8246
  %v8373 = vpop.f32.mrf.mxu0
  %v8374 = vadd.f32 0.0, %v8373
  %8375 = vmatmul.f32.gmra.mxu0 %v8249
  %v8376 = vpop.f32.mrf.mxu0
  %v8377 = vadd.f32 0.0, %v8376
  %8378 = vmatmul.f32.gmra.mxu0 %v8252
  %v8379 = vpop.f32.mrf.mxu0
  %v8380 = vadd.f32 0.0, %v8379
  %8381 = vmatmul.f32.gmra.mxu0 %v8255
  %v8382 = vpop.f32.mrf.mxu0
  %v8383 = vadd.f32 0.0, %v8382
  %8384 = vmatmul.f32.gmra.mxu0 %v8258
  %v8385 = vpop.f32.mrf.mxu0
  %v8386 = vadd.f32 0.0, %v8385
  %8387 = vmatmul.f32.gmra.mxu0 %v8261
  %v8388 = vpop.f32.mrf.mxu0
  %v8389 = vadd.f32 0.0, %v8388
  %8390 = vmatmul.f32.gmra.mxu0 %v8264
  %v8391 = vpop.f32.mrf.mxu0
  %v8392 = vadd.f32 0.0, %v8391
  %8393 = vmatmul.f32.gmra.mxu0 %v8267
  %v8394 = vpop.f32.mrf.mxu0
  %v8395 = vadd.f32 0.0, %v8394
  %8396 = vmatmul.f32.gmra.mxu0 %v8270
  %v8397 = vpop.f32.mrf.mxu0
  %v8398 = vadd.f32 0.0, %v8397
  %8399 = vmatmul.f32.gmra.mxu0 %v8273
  %v8400 = vpop.f32.mrf.mxu0
  %v8401 = vadd.f32 0.0, %v8400
  %8402 = vmatmul.f32.gmra.mxu0 %v8276
  %v8403 = vpop.f32.mrf.mxu0
  %v8404 = vadd.f32 0.0, %v8403
  %8405 = vmatmul.f32.gmra.mxu0 %v8279
  %v8406 = vpop.f32.mrf.mxu0
  %v8407 = vadd.f32 0.0, %v8406
  %8408 = vmatmul.f32.gmra.mxu0 %v8282
  %v8409 = vpop.f32.mrf.mxu0
  %v8410 = vadd.f32 0.0, %v8409
  %8411 = vmatmul.f32.gmra.mxu0 %v8285
  %v8412 = vpop.f32.mrf.mxu0
  %v8413 = vadd.f32 0.0, %v8412
  %8414 = vmatmul.f32.gmra.mxu0 %v8288
  %v8415 = vpop.f32.mrf.mxu0
  %v8416 = vadd.f32 0.0, %v8415
  %8417 = vmatmul.f32.gmra.mxu0 %v8291
  %v8418 = vpop.f32.mrf.mxu0
  %v8419 = vadd.f32 0.0, %v8418
  %8420 = vmatmul.f32.gmra.mxu0 %v8294
  %v8421 = vpop.f32.mrf.mxu0
  %v8422 = vadd.f32 0.0, %v8421
  %8423 = vmatmul.f32.gmra.mxu0 %v8297
  %v8424 = vpop.f32.mrf.mxu0
  %v8425 = vadd.f32 0.0, %v8424
  %8426 = vmatmul.f32.gmra.mxu0 %v8300
  %v8427 = vpop.f32.mrf.mxu0
  %v8428 = vadd.f32 0.0, %v8427
  %8429 = vmatmul.f32.gmra.mxu0 %v8303
  %v8430 = vpop.f32.mrf.mxu0
  %v8431 = vadd.f32 0.0, %v8430
  %8432 = vmatmul.f32.gmra.mxu0 %v8306
  %v8433 = vpop.f32.mrf.mxu0
  %v8434 = vadd.f32 0.0, %v8433
  %8435 = vmatmul.f32.gmra.mxu0 %v8309
  %v8436 = vpop.f32.mrf.mxu0
  %v8437 = vadd.f32 0.0, %v8436
  %8438 = vdwg.mxu0
  %v8439 = vmul.f32 %v7982, %v8332
  %v8440 = vmul.f32 %v7983, %v8335
  %v8441 = vmul.f32 %v7984, %v8338
  %v8442 = vmul.f32 %v7985, %v8341
  %v8443 = vmul.f32 %v7986, %v8344
  %v8444 = vmul.f32 %v7987, %v8347
  %v8445 = vmul.f32 %v7988, %v8350
  %v8446 = vmul.f32 %v7989, %v8353
  %v8447 = vmul.f32 %v7990, %v8356
  %v8448 = vmul.f32 %v7991, %v8359
  %v8449 = vmul.f32 %v7992, %v8362
  %v8450 = vmul.f32 %v7993, %v8365
  %v8451 = vmul.f32 %v7994, %v8368
  %v8452 = vmul.f32 %v7995, %v8371
  %v8453 = vmul.f32 %v7996, %v8374
  %v8454 = vmul.f32 %v7997, %v8377
  %v8455 = vmul.f32 %v7998, %v8380
  %v8456 = vmul.f32 %v7999, %v8383
  %v8457 = vmul.f32 %v8000, %v8386
  %v8458 = vmul.f32 %v8001, %v8389
  %v8459 = vmul.f32 %v8002, %v8392
  %v8460 = vmul.f32 %v8003, %v8395
  %v8461 = vmul.f32 %v8004, %v8398
  %v8462 = vmul.f32 %v8005, %v8401
  %v8463 = vmul.f32 %v8006, %v8404
  %v8464 = vmul.f32 %v8007, %v8407
  %v8465 = vmul.f32 %v8008, %v8410
  %v8466 = vmul.f32 %v8009, %v8413
  %v8467 = vmul.f32 %v8010, %v8416
  %v8468 = vmul.f32 %v8011, %v8419
  %v8469 = vmul.f32 %v8012, %v8422
  %v8470 = vmul.f32 %v8013, %v8425
  %v8471 = vmul.f32 %v8014, %v8428
  %v8472 = vmul.f32 %v8015, %v8431
  %v8473 = vmul.f32 %v8016, %v8434
  %v8474 = vmul.f32 %v8017, %v8437
  %8475 = vst.msk [vmem:[%s16] sm:$0xff] %vm7619, %v8439
  %8476 = vst.msk [vmem:[%s16 + $0x8] sm:$0xff] %vm7619, %v8440
  %8477 = vst.msk [vmem:[%s16 + $0x10] sm:$0xff] %vm7619, %v8441
  %8478 = vst.msk [vmem:[%s16 + $0x18] sm:$0xff] %vm7619, %v8442
  %8479 = vst.msk [vmem:[%s16 + $0x20] sm:$0xff] %vm7619, %v8443
  %8480 = vst.msk [vmem:[%s16 + $0x28] sm:$0xff] %vm7619, %v8444
  %8481 = vst.msk [vmem:[%s16 + $0x30] sm:$0xff] %vm7619, %v8445
  %8482 = vst.msk [vmem:[%s16 + $0x38] sm:$0xff] %vm7619, %v8446
  %8483 = vst.msk [vmem:[%s16 + $0x40] sm:$0xff] %vm7619, %v8447
  %8484 = vst.msk [vmem:[%s16 + $0x48] sm:$0xff] %vm7619, %v8448
  %8485 = vst.msk [vmem:[%s16 + $0x50] sm:$0xff] %vm7619, %v8449
  %8486 = vst.msk [vmem:[%s16 + $0x58] sm:$0xff] %vm7619, %v8450
  %8487 = vst.msk [vmem:[%s16 + $0x60] sm:$0xff] %vm7619, %v8451
  %8488 = vst.msk [vmem:[%s16 + $0x68] sm:$0xff] %vm7619, %v8452
  %8489 = vst.msk [vmem:[%s16 + $0x70] sm:$0xff] %vm7619, %v8453
  %8490 = vst.msk [vmem:[%s16 + $0x78] sm:$0xff] %vm7619, %v8454
  %8491 = vst.msk [vmem:[%s16 + $0x80] sm:$0xff] %vm7619, %v8455
  %8492 = vst.msk [vmem:[%s16 + $0x88] sm:$0xff] %vm7619, %v8456
  %8493 = vst.msk [vmem:[%s16 + $0x90] sm:$0xff] %vm7619, %v8457
  %8494 = vst.msk [vmem:[%s16 + $0x98] sm:$0xff] %vm7619, %v8458
  %8495 = vst.msk [vmem:[%s16 + $0xa0] sm:$0xff] %vm7619, %v8459
  %8496 = vst.msk [vmem:[%s16 + $0xa8] sm:$0xff] %vm7619, %v8460
  %8497 = vst.msk [vmem:[%s16 + $0xb0] sm:$0xff] %vm7619, %v8461
  %8498 = vst.msk [vmem:[%s16 + $0xb8] sm:$0xff] %vm7619, %v8462
  %8499 = vst.msk [vmem:[%s16 + $0xc0] sm:$0xff] %vm7619, %v8463
  %8500 = vst.msk [vmem:[%s16 + $0xc8] sm:$0xff] %vm7619, %v8464
  %8501 = vst.msk [vmem:[%s16 + $0xd0] sm:$0xff] %vm7619, %v8465
  %8502 = vst.msk [vmem:[%s16 + $0xd8] sm:$0xff] %vm7619, %v8466
  %8503 = vst.msk [vmem:[%s16 + $0xe0] sm:$0xff] %vm7619, %v8467
  %8504 = vst.msk [vmem:[%s16 + $0xe8] sm:$0xff] %vm7619, %v8468
  %8505 = vst.msk [vmem:[%s16 + $0xf0] sm:$0xff] %vm7619, %v8469
  %8506 = vst.msk [vmem:[%s16 + $0xf8] sm:$0xff] %vm7619, %v8470
  %8507 = vst.msk [vmem:[%s16 + $0x100] sm:$0xff] %vm7619, %v8471
  %8508 = vst.msk [vmem:[%s16 + $0x108] sm:$0xff] %vm7619, %v8472
  %8509 = vst.msk [vmem:[%s16 + $0x110] sm:$0xff] %vm7619, %v8473
  %8510 = vst.msk [vmem:[%s16 + $0x118] sm:$0xff] %vm7619, %v8474
  // Predicated region
  $region66: #{cnn_se_forward.2} parent=0 // pred_check
    _
  $region67: #{cnn_se_forward.2} parent=0 // pred_check_branch
    %8512 = sbr.rel (0) target = $region69
  $region68: #{cnn_se_forward.2} parent=0 // pred_region
    _
  $region69: #{cnn_se_forward.2} parent=0 // pred_fallthru
    _
  // Predicated region
  $region70: #{cnn_se_forward.2} parent=0 // pred_check
    _
  $region71: #{cnn_se_forward.2} parent=0 // pred_check_branch
    %8514 = sbr.rel (0) target = $region73
  $region72: #{cnn_se_forward.2} parent=0 // pred_region
    _
  $region73: #{cnn_se_forward.2} parent=0 // pred_fallthru
    _

</llo_original>
